<compile_context>
chip_gen: v7x
topology: tpu7x:2x2x1
jax: 0.10.0
libtpu: 0.0.40
codegen_flags: <defaults>
</compile_context>

<pallas_src>
import functools

import jax
import jax.numpy as jnp
from jax.experimental import pallas as pl
from jax.experimental.pallas import tpu as pltpu


# ----------------------------------------------------------------------------
# Pallas kernel 1: conv1 + ReLU as a ky-reduction of matmuls.
#   grid axis 0 walks blocks of ky; the output tile is resident across the grid
#   (constant out block index) and accumulated directly; bias + ReLU on last step.
# ----------------------------------------------------------------------------
def _conv1_kernel(lhs_ref, wt_ref, b_ref, o_ref, *, kb):
    @pl.when(pl.program_id(0) == 0)
    def _():
        o_ref[...] = jnp.zeros_like(o_ref)

    acc = o_ref[...]
    for i in range(kb):                       # static unroll over the ky sub-block
        acc += jnp.dot(lhs_ref[i], wt_ref[i], preferred_element_type=jnp.float32)
    o_ref[...] = acc

    @pl.when(pl.program_id(0) == pl.num_programs(0) - 1)
    def _():
        o_ref[...] = jnp.maximum(o_ref[...] + b_ref[...], 0.0)


def conv1_relu(x, w, b, *, ky_block=5):
    """Conv2d(stride 1, no padding) + ReLU.
    x: (N, Cin, H, W) NCHW f32, w: (OC, Cin, KH, KW), b: (OC,).
    Returns NHWC (N, OH, OW, OC) f32."""
    n, cin, h, wimg = x.shape
    oc, _, kh, kw = w.shape
    oh, ow = h - kh + 1, wimg - kw + 1
    assert kh % ky_block == 0

    # LHS[ky, n*oh + oy, c*W + wi] = x[n, c, oy+ky, wi]        (~17 MB here)
    ih = jnp.arange(oh)[:, None] + jnp.arange(kh)[None, :]     # (oh, kh)
    rows = x[:, :, ih, :]                                      # (n, cin, oh, kh, W)
    lhs = rows.transpose(3, 0, 2, 1, 4).reshape(kh, n * oh, cin * wimg)

    # Width-Toeplitz weight: Wt[ky, c*W + wi, ox*OC + o] = w[o, c, ky, wi-ox]
    # (zero where wi-ox is outside [0, kw)).                    (~51 MB here)
    wi = jnp.arange(wimg)[:, None]                             # (W, 1)
    ox = jnp.arange(ow)[None, :]                               # (1, ow)
    kx = wi - ox                                               # (W, ow)
    valid = (kx >= 0) & (kx < kw)
    wt = w.transpose(2, 1, 3, 0)                               # (kh, cin, kw, oc)
    wt = wt[:, :, jnp.clip(kx, 0, kw - 1), :]                  # (kh, cin, W, ow, oc)
    wt = jnp.where(valid[None, None, :, :, None], wt, 0.0)
    wt = wt.reshape(kh, cin * wimg, ow * oc)

    b_cols = jnp.tile(b, ow).reshape(1, ow * oc)               # column j -> b[j % oc]

    out = pl.pallas_call(
        functools.partial(_conv1_kernel, kb=ky_block),
        out_shape=jax.ShapeDtypeStruct((n * oh, ow * oc), jnp.float32),
        grid_spec=pltpu.PrefetchScalarGridSpec(
            num_scalar_prefetch=0,
            grid=(kh // ky_block,),
            in_specs=[
                pl.BlockSpec((ky_block, n * oh, cin * wimg), lambda k: (k, 0, 0)),
                pl.BlockSpec((ky_block, cin * wimg, ow * oc), lambda k: (k, 0, 0)),
                pl.BlockSpec((1, ow * oc), lambda k: (0, 0)),
            ],
            out_specs=pl.BlockSpec((n * oh, ow * oc), lambda k: (0, 0)),
        ),
        compiler_params=pltpu.CompilerParams(
            dimension_semantics=("arbitrary",),   # reduction axis
        ),
    )(lhs, wt, b_cols)
    return out.reshape(n, oh, ow, oc)             # NHWC


# ----------------------------------------------------------------------------
# Pallas kernel 2: single-block matmul + bias (+ ReLU) for the small layers
#   (conv2-as-im2col, fc1, fc2).  All operands fit in VMEM; no grid, no padding.
# ----------------------------------------------------------------------------
def _mm_bias_kernel(x_ref, w_ref, b_ref, o_ref, *, relu):
    r = jnp.dot(x_ref[...], w_ref[...], preferred_element_type=jnp.float32)
    r = r + b_ref[...]
    if relu:
        r = jnp.maximum(r, 0.0)
    o_ref[...] = r.astype(o_ref.dtype)


def matmul_bias(x, w, b, *, relu):
    """y = x @ w + b (+ReLU).  x:(M,K), w:(K,N), b:(N,) -> (M,N) f32."""
    m, k = x.shape
    k2, nn = w.shape
    assert k == k2
    return pl.pallas_call(
        functools.partial(_mm_bias_kernel, relu=relu),
        out_shape=jax.ShapeDtypeStruct((m, nn), jnp.float32),
    )(x.astype(jnp.float32), w.astype(jnp.float32),
      b.reshape(1, nn).astype(jnp.float32))


# ----------------------------------------------------------------------------
# Pallas kernel 3: 2x2 max-pool (NHWC) as elementwise max over 4 strided views,
#   flattened so the output last dim is lane-dense (W/2 * C >= 128 here).
# ----------------------------------------------------------------------------
def _max4_kernel(a_ref, b_ref, c_ref, d_ref, o_ref):
    o_ref[...] = jnp.maximum(
        jnp.maximum(a_ref[...], b_ref[...]),
        jnp.maximum(c_ref[...], d_ref[...]),
    )


def maxpool2x2_nhwc(x):
    """MaxPool2d(kernel=2, stride=2) on NHWC input with even H, W."""
    n, h, w, c = x.shape
    ho, wo = h // 2, w // 2
    a = x[:, 0::2, 0::2, :]
    b = x[:, 0::2, 1::2, :]
    cc = x[:, 1::2, 0::2, :]
    d = x[:, 1::2, 1::2, :]
    flat = lambda t: t.reshape(n * ho, wo * c)
    out = pl.pallas_call(
        _max4_kernel,
        out_shape=jax.ShapeDtypeStruct((n * ho, wo * c), x.dtype),
    )(flat(a), flat(b), flat(cc), flat(d))
    return out.reshape(n, ho, wo, c)


# ----------------------------------------------------------------------------
# Glue: NHWC im2col for the tiny conv2 (patch matrix is only ~0.5 MB)
# ----------------------------------------------------------------------------
def im2col_nhwc(x, kh, kw):
    """x: (N, H, W, C) -> (N*oh*ow, C*kh*kw), stride 1, valid.
    Column order (c, ky, kx) matches PyTorch's (oc, ic, kh, kw) flattening."""
    n, h, w, c = x.shape
    oh, ow = h - kh + 1, w - kw + 1
    ih = jnp.arange(oh)[:, None] + jnp.arange(kh)[None, :]     # (oh, kh)
    iw = jnp.arange(ow)[:, None] + jnp.arange(kw)[None, :]     # (ow, kw)
    p = x[:, ih]                          # (n, oh, kh, W, c)
    p = p[:, :, :, iw]                    # (n, oh, kh, ow, kw, c)
    p = p.transpose(0, 1, 3, 5, 2, 4)     # (n, oh, ow, c, kh, kw)
    return p.reshape(n * oh * ow, c * kh * kw)


# ----------------------------------------------------------------------------
# Net forward (mirrors the PyTorch module)
# ----------------------------------------------------------------------------
def net_forward(x, params):
    w1, b1, w2, b2, fw1, fb1, fw2, fb2 = params
    n = x.shape[0]

    # conv1: Conv2d(3, 6, 100) + ReLU      (N,3,147,147) -> NHWC (N,48,48,6)
    y = conv1_relu(x, w1, b1)

    # pool1: MaxPool2d(2,2)                -> (N,24,24,6)
    y = maxpool2x2_nhwc(y)

    # conv2: Conv2d(6, 16, 5) + ReLU       -> (N,20,20,16)
    p2 = im2col_nhwc(y, 5, 5)                                  # (N*400, 150)
    y = matmul_bias(p2, w2.reshape(16, -1).T, b2, relu=True)
    y = y.reshape(n, 20, 20, 16)

    # pool2: MaxPool2d(2,2)                -> (N,10,10,16)
    y = maxpool2x2_nhwc(y)

    # flatten in PyTorch's NCHW order, then fc1 (ReLU) + fc2
    flat = y.transpose(0, 3, 1, 2).reshape(n, 16 * 10 * 10)    # (N, 1600)
    h = matmul_bias(flat, fw1.T, fb1, relu=True)               # (N, 84)
    out = matmul_bias(h, fw2.T, fb2, relu=False)               # (N, 2)
    return out


def init_params(key):
    ks = jax.random.split(key, 8)

    def init(k, shape, fan_in):
        return jax.random.normal(k, shape, jnp.float32) / jnp.sqrt(fan_in)

    w1 = init(ks[0], (6, 3, 100, 100), 3 * 100 * 100)
    b1 = init(ks[1], (6,), 3 * 100 * 100)
    w2 = init(ks[2], (16, 6, 5, 5), 6 * 5 * 5)
    b2 = init(ks[3], (16,), 6 * 5 * 5)
    fw1 = init(ks[4], (84, 1600), 1600)
    fb1 = init(ks[5], (84,), 1600)
    fw2 = init(ks[6], (2, 84), 84)
    fb2 = init(ks[7], (2,), 84)
    return (w1, b1, w2, b2, fw1, fb1, fw2, fb2)


if __name__ == "__main__":
    key = jax.random.PRNGKey(0)
    k_x, k_p = jax.random.split(key)

    # Input spatial size is fixed by the module: fc1 expects 16*10*10, which
    # back-propagates through the pools/convs to a 147x147 input. Batch = 2.
    x = jax.random.normal(k_x, (2, 3, 147, 147), jnp.float32)
    params = init_params(k_p)

    out = jax.jit(net_forward)(x, params)
    out = jax.block_until_ready(out)
    assert out.shape == (2, 2) and out.dtype == jnp.float32
    print("KERNEL_OK")
</pallas_src>

<mosaic_0001>
module attributes {stable_mosaic.version = 11 : i64} {
  func.func private @main(%arg0: i32) attributes {dimension_semantics = [#tpu.dimension_semantics<core_parallel>], iteration_bounds = array<i64: 2>, tpu.core_type = #tpu.core_type<sc_scalar_subcore>, window_params = []} {
    return
  }
}

module attributes {stable_mosaic.version = 11 : i64} {
  func.func private @main(%arg0: i32) attributes {dimension_semantics = [#tpu.dimension_semantics<core_parallel>], iteration_bounds = array<i64: 2>, tpu.core_type = #tpu.core_type<sc_scalar_subcore>, window_params = []} {
    return
  }
}

module attributes {stable_mosaic.version = 11 : i64} {
  func.func @_conv1_kernel(%arg0: i32, %arg1: memref<5x96x441xf32, #tpu.memory_space<vmem>>, %arg2: memref<5x441x288xf32, #tpu.memory_space<vmem>>, %arg3: memref<1x288xf32, #tpu.memory_space<vmem>>, %arg4: memref<96x288xf32, #tpu.memory_space<vmem>>) attributes {dimension_semantics = [#tpu.dimension_semantics<arbitrary>], iteration_bounds = array<i64: 20>, scalar_prefetch = 0 : i64, scratch_operands = 0 : i64, tpu.core_type = #tpu.core_type<tc>, window_params = [{transform_indices = @transform_0, window_bounds = array<i64: 5, 96, 441>}, {transform_indices = @transform_1, window_bounds = array<i64: 5, 441, 288>}, {pipeline_mode = #tpu.pipeline_mode<synchronous>, transform_indices = @transform_2, window_bounds = array<i64: 1, 288>}, {pipeline_mode = #tpu.pipeline_mode<synchronous>, transform_indices = @transform_3, window_bounds = array<i64: 96, 288>}]} {
    %c0_i32 = arith.constant 0 : i32
    %0 = arith.cmpi eq, %arg0, %c0_i32 : i32
    %1 = arith.extui %0 : i1 to i32
    %c0_i32_0 = arith.constant 0 : i32
    %2 = arith.cmpi ne, %1, %c0_i32_0 : i32
    scf.if %2 {
      %cst_35 = arith.constant 0.000000e+00 : f32
      %38 = vector.broadcast %cst_35 : f32 to vector<96x288xf32>
      %c0_36 = arith.constant 0 : index
      %c0_37 = arith.constant 0 : index
      %39 = vector.load %arg4[%c0_36, %c0_37] : memref<96x288xf32, #tpu.memory_space<vmem>>, vector<96x288xf32>
      tpu.vector_store %arg4[%c0_36, %c0_37], %38 {strides = array<i32>} : memref<96x288xf32, #tpu.memory_space<vmem>>, vector<96x288xf32>,
    } else {
    }
    %c0 = arith.constant 0 : index
    %c0_1 = arith.constant 0 : index
    %3 = vector.load %arg4[%c0, %c0_1] : memref<96x288xf32, #tpu.memory_space<vmem>>, vector<96x288xf32>
    %c0_2 = arith.constant 0 : index
    %c0_3 = arith.constant 0 : index
    %c0_4 = arith.constant 0 : index
    %4 = vector.load %arg1[%c0_2, %c0_3, %c0_4] : memref<5x96x441xf32, #tpu.memory_space<vmem>>, vector<1x96x441xf32>
    %5 = vector.shape_cast %4 : vector<1x96x441xf32> to vector<96x441xf32>
    %c0_5 = arith.constant 0 : index
    %c0_6 = arith.constant 0 : index
    %c0_7 = arith.constant 0 : index
    %6 = vector.load %arg2[%c0_5, %c0_6, %c0_7] : memref<5x441x288xf32, #tpu.memory_space<vmem>>, vector<1x441x288xf32>
    %7 = vector.shape_cast %6 : vector<1x441x288xf32> to vector<441x288xf32>
    %cst = arith.constant dense<0.000000e+00> : vector<96x288xf32>
    %8 = tpu.matmul %5, %7, %cst {dimension_numbers = #tpu.dot_dimension_numbers<[1], [0], [0], [1], [0, 0, 1, 1], [], []>} : vector<96x441xf32>, vector<441x288xf32>, vector<96x288xf32> -> vector<96x288xf32>
    %9 = arith.addf %3, %8 : vector<96x288xf32>
    %c1 = arith.constant 1 : index
    %c0_8 = arith.constant 0 : index
    %c0_9 = arith.constant 0 : index
    %10 = vector.load %arg1[%c1, %c0_8, %c0_9] : memref<5x96x441xf32, #tpu.memory_space<vmem>>, vector<1x96x441xf32>
    %11 = vector.shape_cast %10 : vector<1x96x441xf32> to vector<96x441xf32>
    %c1_10 = arith.constant 1 : index
    %c0_11 = arith.constant 0 : index
    %c0_12 = arith.constant 0 : index
    %12 = vector.load %arg2[%c1_10, %c0_11, %c0_12] : memref<5x441x288xf32, #tpu.memory_space<vmem>>, vector<1x441x288xf32>
    %13 = vector.shape_cast %12 : vector<1x441x288xf32> to vector<441x288xf32>
    %cst_13 = arith.constant dense<0.000000e+00> : vector<96x288xf32>
    %14 = tpu.matmul %11, %13, %cst_13 {dimension_numbers = #tpu.dot_dimension_numbers<[1], [0], [0], [1], [0, 0, 1, 1], [], []>} : vector<96x441xf32>, vector<441x288xf32>, vector<96x288xf32> -> vector<96x288xf32>
    %15 = arith.addf %9, %14 : vector<96x288xf32>
    %c2 = arith.constant 2 : index
    %c0_14 = arith.constant 0 : index
    %c0_15 = arith.constant 0 : index
    %16 = vector.load %arg1[%c2, %c0_14, %c0_15] : memref<5x96x441xf32, #tpu.memory_space<vmem>>, vector<1x96x441xf32>
    %17 = vector.shape_cast %16 : vector<1x96x441xf32> to vector<96x441xf32>
    %c2_16 = arith.constant 2 : index
    %c0_17 = arith.constant 0 : index
    %c0_18 = arith.constant 0 : index
    %18 = vector.load %arg2[%c2_16, %c0_17, %c0_18] : memref<5x441x288xf32, #tpu.memory_space<vmem>>, vector<1x441x288xf32>
    %19 = vector.shape_cast %18 : vector<1x441x288xf32> to vector<441x288xf32>
    %cst_19 = arith.constant dense<0.000000e+00> : vector<96x288xf32>
    %20 = tpu.matmul %17, %19, %cst_19 {dimension_numbers = #tpu.dot_dimension_numbers<[1], [0], [0], [1], [0, 0, 1, 1], [], []>} : vector<96x441xf32>, vector<441x288xf32>, vector<96x288xf32> -> vector<96x288xf32>
    %21 = arith.addf %15, %20 : vector<96x288xf32>
    %c3 = arith.constant 3 : index
    %c0_20 = arith.constant 0 : index
    %c0_21 = arith.constant 0 : index
    %22 = vector.load %arg1[%c3, %c0_20, %c0_21] : memref<5x96x441xf32, #tpu.memory_space<vmem>>, vector<1x96x441xf32>
    %23 = vector.shape_cast %22 : vector<1x96x441xf32> to vector<96x441xf32>
    %c3_22 = arith.constant 3 : index
    %c0_23 = arith.constant 0 : index
    %c0_24 = arith.constant 0 : index
    %24 = vector.load %arg2[%c3_22, %c0_23, %c0_24] : memref<5x441x288xf32, #tpu.memory_space<vmem>>, vector<1x441x288xf32>
    %25 = vector.shape_cast %24 : vector<1x441x288xf32> to vector<441x288xf32>
    %cst_25 = arith.constant dense<0.000000e+00> : vector<96x288xf32>
    %26 = tpu.matmul %23, %25, %cst_25 {dimension_numbers = #tpu.dot_dimension_numbers<[1], [0], [0], [1], [0, 0, 1, 1], [], []>} : vector<96x441xf32>, vector<441x288xf32>, vector<96x288xf32> -> vector<96x288xf32>
    %27 = arith.addf %21, %26 : vector<96x288xf32>
    %c4 = arith.constant 4 : index
    %c0_26 = arith.constant 0 : index
    %c0_27 = arith.constant 0 : index
    %28 = vector.load %arg1[%c4, %c0_26, %c0_27] : memref<5x96x441xf32, #tpu.memory_space<vmem>>, vector<1x96x441xf32>
    %29 = vector.shape_cast %28 : vector<1x96x441xf32> to vector<96x441xf32>
    %c4_28 = arith.constant 4 : index
    %c0_29 = arith.constant 0 : index
    %c0_30 = arith.constant 0 : index
    %30 = vector.load %arg2[%c4_28, %c0_29, %c0_30] : memref<5x441x288xf32, #tpu.memory_space<vmem>>, vector<1x441x288xf32>
    %31 = vector.shape_cast %30 : vector<1x441x288xf32> to vector<441x288xf32>
    %cst_31 = arith.constant dense<0.000000e+00> : vector<96x288xf32>
    %32 = tpu.matmul %29, %31, %cst_31 {dimension_numbers = #tpu.dot_dimension_numbers<[1], [0], [0], [1], [0, 0, 1, 1], [], []>} : vector<96x441xf32>, vector<441x288xf32>, vector<96x288xf32> -> vector<96x288xf32>
    %33 = arith.addf %27, %32 : vector<96x288xf32>
    %c0_32 = arith.constant 0 : index
    %c0_33 = arith.constant 0 : index
    %34 = vector.load %arg4[%c0_32, %c0_33] : memref<96x288xf32, #tpu.memory_space<vmem>>, vector<96x288xf32>
    tpu.vector_store %arg4[%c0_32, %c0_33], %33 {strides = array<i32>} : memref<96x288xf32, #tpu.memory_space<vmem>>, vector<96x288xf32>,
    %c19_i32 = arith.constant 19 : i32
    %35 = arith.cmpi eq, %arg0, %c19_i32 : i32
    %36 = arith.extui %35 : i1 to i32
    %c0_i32_34 = arith.constant 0 : i32
    %37 = arith.cmpi ne, %36, %c0_i32_34 : i32
    scf.if %37 {
      %c0_35 = arith.constant 0 : index
      %c0_36 = arith.constant 0 : index
      %38 = vector.load %arg4[%c0_35, %c0_36] : memref<96x288xf32, #tpu.memory_space<vmem>>, vector<96x288xf32>
      %c0_37 = arith.constant 0 : index
      %c0_38 = arith.constant 0 : index
      %39 = vector.load %arg3[%c0_37, %c0_38] : memref<1x288xf32, #tpu.memory_space<vmem>>, vector<1x288xf32>
      %40 = vector.broadcast %39 : vector<1x288xf32> to vector<96x288xf32>
      %41 = arith.addf %38, %40 : vector<96x288xf32>
      %cst_39 = arith.constant 0.000000e+00 : f32
      %42 = vector.broadcast %cst_39 : f32 to vector<96x288xf32>
      %43 = arith.maximumf %41, %42 : vector<96x288xf32>
      %c0_40 = arith.constant 0 : index
      %c0_41 = arith.constant 0 : index
      %44 = vector.load %arg4[%c0_40, %c0_41] : memref<96x288xf32, #tpu.memory_space<vmem>>, vector<96x288xf32>
      tpu.vector_store %arg4[%c0_40, %c0_41], %43 {strides = array<i32>} : memref<96x288xf32, #tpu.memory_space<vmem>>, vector<96x288xf32>,
    } else {
    }
    return
  }
  func.func @transform_0(%arg0: i32) -> (i32, i32, i32) {
    %c0_i32 = arith.constant 0 : i32
    %c0_i32_0 = arith.constant 0 : i32
    %c0_i32_1 = arith.constant 0 : i32
    return %arg0, %c0_i32, %c0_i32_0 : i32, i32, i32
  }
  func.func @transform_1(%arg0: i32) -> (i32, i32, i32) {
    %c0_i32 = arith.constant 0 : i32
    %c0_i32_0 = arith.constant 0 : i32
    %c0_i32_1 = arith.constant 0 : i32
    return %arg0, %c0_i32, %c0_i32_0 : i32, i32, i32
  }
  func.func @transform_2(%arg0: i32) -> (i32, i32) {
    %c0_i32 = arith.constant 0 : i32
    %c0_i32_0 = arith.constant 0 : i32
    %c0_i32_1 = arith.constant 0 : i32
    return %c0_i32, %c0_i32_0 : i32, i32
  }
  func.func @transform_3(%arg0: i32) -> (i32, i32) {
    %c0_i32 = arith.constant 0 : i32
    %c0_i32_0 = arith.constant 0 : i32
    %c0_i32_1 = arith.constant 0 : i32
    return %c0_i32, %c0_i32_0 : i32, i32
  }
}

module attributes {stable_mosaic.version = 11 : i64} {
  func.func @_max4_kernel(%arg0: memref<48x144xf32, #tpu.memory_space<vmem>>, %arg1: memref<48x144xf32, #tpu.memory_space<vmem>>, %arg2: memref<48x144xf32, #tpu.memory_space<vmem>>, %arg3: memref<48x144xf32, #tpu.memory_space<vmem>>, %arg4: memref<48x144xf32, #tpu.memory_space<vmem>>) attributes {dimension_semantics = [], scalar_prefetch = 0 : i64, scratch_operands = 0 : i64, tpu.core_type = #tpu.core_type<tc>} {
    %c0 = arith.constant 0 : index
    %c0_0 = arith.constant 0 : index
    %0 = vector.load %arg0[%c0, %c0_0] : memref<48x144xf32, #tpu.memory_space<vmem>>, vector<48x144xf32>
    %c0_1 = arith.constant 0 : index
    %c0_2 = arith.constant 0 : index
    %1 = vector.load %arg1[%c0_1, %c0_2] : memref<48x144xf32, #tpu.memory_space<vmem>>, vector<48x144xf32>
    %2 = arith.maximumf %0, %1 : vector<48x144xf32>
    %c0_3 = arith.constant 0 : index
    %c0_4 = arith.constant 0 : index
    %3 = vector.load %arg2[%c0_3, %c0_4] : memref<48x144xf32, #tpu.memory_space<vmem>>, vector<48x144xf32>
    %c0_5 = arith.constant 0 : index
    %c0_6 = arith.constant 0 : index
    %4 = vector.load %arg3[%c0_5, %c0_6] : memref<48x144xf32, #tpu.memory_space<vmem>>, vector<48x144xf32>
    %5 = arith.maximumf %3, %4 : vector<48x144xf32>
    %6 = arith.maximumf %2, %5 : vector<48x144xf32>
    %c0_7 = arith.constant 0 : index
    %c0_8 = arith.constant 0 : index
    %7 = vector.load %arg4[%c0_7, %c0_8] : memref<48x144xf32, #tpu.memory_space<vmem>>, vector<48x144xf32>
    tpu.vector_store %arg4[%c0_7, %c0_8], %6 {strides = array<i32>} : memref<48x144xf32, #tpu.memory_space<vmem>>, vector<48x144xf32>,
    return
  }
}

module attributes {stable_mosaic.version = 11 : i64} {
  func.func @_mm_bias_kernel(%arg0: memref<800x150xf32, #tpu.memory_space<vmem>>, %arg1: memref<150x16xf32, #tpu.memory_space<vmem>>, %arg2: memref<1x16xf32, #tpu.memory_space<vmem>>, %arg3: memref<800x16xf32, #tpu.memory_space<vmem>>) attributes {dimension_semantics = [], scalar_prefetch = 0 : i64, scratch_operands = 0 : i64, tpu.core_type = #tpu.core_type<tc>} {
    %c0 = arith.constant 0 : index
    %c0_0 = arith.constant 0 : index
    %0 = vector.load %arg0[%c0, %c0_0] : memref<800x150xf32, #tpu.memory_space<vmem>>, vector<800x150xf32>
    %c0_1 = arith.constant 0 : index
    %c0_2 = arith.constant 0 : index
    %1 = vector.load %arg1[%c0_1, %c0_2] : memref<150x16xf32, #tpu.memory_space<vmem>>, vector<150x16xf32>
    %cst = arith.constant dense<0.000000e+00> : vector<800x16xf32>
    %2 = tpu.matmul %0, %1, %cst {dimension_numbers = #tpu.dot_dimension_numbers<[1], [0], [0], [1], [0, 0, 1, 1], [], []>} : vector<800x150xf32>, vector<150x16xf32>, vector<800x16xf32> -> vector<800x16xf32>
    %c0_3 = arith.constant 0 : index
    %c0_4 = arith.constant 0 : index
    %3 = vector.load %arg2[%c0_3, %c0_4] : memref<1x16xf32, #tpu.memory_space<vmem>>, vector<1x16xf32>
    %4 = vector.broadcast %3 : vector<1x16xf32> to vector<800x16xf32>
    %5 = arith.addf %2, %4 : vector<800x16xf32>
    %cst_5 = arith.constant 0.000000e+00 : f32
    %6 = vector.broadcast %cst_5 : f32 to vector<800x16xf32>
    %7 = arith.maximumf %5, %6 : vector<800x16xf32>
    %c0_6 = arith.constant 0 : index
    %c0_7 = arith.constant 0 : index
    %8 = vector.load %arg3[%c0_6, %c0_7] : memref<800x16xf32, #tpu.memory_space<vmem>>, vector<800x16xf32>
    tpu.vector_store %arg3[%c0_6, %c0_7], %7 {strides = array<i32>} : memref<800x16xf32, #tpu.memory_space<vmem>>, vector<800x16xf32>,
    return
  }
}

module attributes {stable_mosaic.version = 11 : i64} {
  func.func @_max4_kernel(%arg0: memref<20x160xf32, #tpu.memory_space<vmem>>, %arg1: memref<20x160xf32, #tpu.memory_space<vmem>>, %arg2: memref<20x160xf32, #tpu.memory_space<vmem>>, %arg3: memref<20x160xf32, #tpu.memory_space<vmem>>, %arg4: memref<20x160xf32, #tpu.memory_space<vmem>>) attributes {dimension_semantics = [], scalar_prefetch = 0 : i64, scratch_operands = 0 : i64, tpu.core_type = #tpu.core_type<tc>} {
    %c0 = arith.constant 0 : index
    %c0_0 = arith.constant 0 : index
    %0 = vector.load %arg0[%c0, %c0_0] : memref<20x160xf32, #tpu.memory_space<vmem>>, vector<20x160xf32>
    %c0_1 = arith.constant 0 : index
    %c0_2 = arith.constant 0 : index
    %1 = vector.load %arg1[%c0_1, %c0_2] : memref<20x160xf32, #tpu.memory_space<vmem>>, vector<20x160xf32>
    %2 = arith.maximumf %0, %1 : vector<20x160xf32>
    %c0_3 = arith.constant 0 : index
    %c0_4 = arith.constant 0 : index
    %3 = vector.load %arg2[%c0_3, %c0_4] : memref<20x160xf32, #tpu.memory_space<vmem>>, vector<20x160xf32>
    %c0_5 = arith.constant 0 : index
    %c0_6 = arith.constant 0 : index
    %4 = vector.load %arg3[%c0_5, %c0_6] : memref<20x160xf32, #tpu.memory_space<vmem>>, vector<20x160xf32>
    %5 = arith.maximumf %3, %4 : vector<20x160xf32>
    %6 = arith.maximumf %2, %5 : vector<20x160xf32>
    %c0_7 = arith.constant 0 : index
    %c0_8 = arith.constant 0 : index
    %7 = vector.load %arg4[%c0_7, %c0_8] : memref<20x160xf32, #tpu.memory_space<vmem>>, vector<20x160xf32>
    tpu.vector_store %arg4[%c0_7, %c0_8], %6 {strides = array<i32>} : memref<20x160xf32, #tpu.memory_space<vmem>>, vector<20x160xf32>,
    return
  }
}

module attributes {stable_mosaic.version = 11 : i64} {
  func.func @_mm_bias_kernel(%arg0: memref<2x1600xf32, #tpu.memory_space<vmem>>, %arg1: memref<1600x84xf32, #tpu.memory_space<vmem>>, %arg2: memref<1x84xf32, #tpu.memory_space<vmem>>, %arg3: memref<2x84xf32, #tpu.memory_space<vmem>>) attributes {dimension_semantics = [], scalar_prefetch = 0 : i64, scratch_operands = 0 : i64, tpu.core_type = #tpu.core_type<tc>} {
    %c0 = arith.constant 0 : index
    %c0_0 = arith.constant 0 : index
    %0 = vector.load %arg0[%c0, %c0_0] : memref<2x1600xf32, #tpu.memory_space<vmem>>, vector<2x1600xf32>
    %c0_1 = arith.constant 0 : index
    %c0_2 = arith.constant 0 : index
    %1 = vector.load %arg1[%c0_1, %c0_2] : memref<1600x84xf32, #tpu.memory_space<vmem>>, vector<1600x84xf32>
    %cst = arith.constant dense<0.000000e+00> : vector<2x84xf32>
    %2 = tpu.matmul %0, %1, %cst {dimension_numbers = #tpu.dot_dimension_numbers<[1], [0], [0], [1], [0, 0, 1, 1], [], []>} : vector<2x1600xf32>, vector<1600x84xf32>, vector<2x84xf32> -> vector<2x84xf32>
    %c0_3 = arith.constant 0 : index
    %c0_4 = arith.constant 0 : index
    %3 = vector.load %arg2[%c0_3, %c0_4] : memref<1x84xf32, #tpu.memory_space<vmem>>, vector<1x84xf32>
    %4 = vector.broadcast %3 : vector<1x84xf32> to vector<2x84xf32>
    %5 = arith.addf %2, %4 : vector<2x84xf32>
    %cst_5 = arith.constant 0.000000e+00 : f32
    %6 = vector.broadcast %cst_5 : f32 to vector<2x84xf32>
    %7 = arith.maximumf %5, %6 : vector<2x84xf32>
    %c0_6 = arith.constant 0 : index
    %c0_7 = arith.constant 0 : index
    %8 = vector.load %arg3[%c0_6, %c0_7] : memref<2x84xf32, #tpu.memory_space<vmem>>, vector<2x84xf32>
    tpu.vector_store %arg3[%c0_6, %c0_7], %7 {strides = array<i32>} : memref<2x84xf32, #tpu.memory_space<vmem>>, vector<2x84xf32>,
    return
  }
}

module attributes {stable_mosaic.version = 11 : i64} {
  func.func @_mm_bias_kernel(%arg0: memref<2x84xf32, #tpu.memory_space<vmem>>, %arg1: memref<84x2xf32, #tpu.memory_space<vmem>>, %arg2: memref<1x2xf32, #tpu.memory_space<vmem>>, %arg3: memref<2x2xf32, #tpu.memory_space<vmem>>) attributes {dimension_semantics = [], scalar_prefetch = 0 : i64, scratch_operands = 0 : i64, tpu.core_type = #tpu.core_type<tc>} {
    %c0 = arith.constant 0 : index
    %c0_0 = arith.constant 0 : index
    %0 = vector.load %arg0[%c0, %c0_0] : memref<2x84xf32, #tpu.memory_space<vmem>>, vector<2x84xf32>
    %c0_1 = arith.constant 0 : index
    %c0_2 = arith.constant 0 : index
    %1 = vector.load %arg1[%c0_1, %c0_2] : memref<84x2xf32, #tpu.memory_space<vmem>>, vector<84x2xf32>
    %cst = arith.constant dense<0.000000e+00> : vector<2x2xf32>
    %2 = tpu.matmul %0, %1, %cst {dimension_numbers = #tpu.dot_dimension_numbers<[1], [0], [0], [1], [0, 0, 1, 1], [], []>} : vector<2x84xf32>, vector<84x2xf32>, vector<2x2xf32> -> vector<2x2xf32>
    %c0_3 = arith.constant 0 : index
    %c0_4 = arith.constant 0 : index
    %3 = vector.load %arg2[%c0_3, %c0_4] : memref<1x2xf32, #tpu.memory_space<vmem>>, vector<1x2xf32>
    %4 = vector.broadcast %3 : vector<1x2xf32> to vector<2x2xf32>
    %5 = arith.addf %2, %4 : vector<2x2xf32>
    %c0_5 = arith.constant 0 : index
    %c0_6 = arith.constant 0 : index
    %6 = vector.load %arg3[%c0_5, %c0_6] : memref<2x2xf32, #tpu.memory_space<vmem>>, vector<2x2xf32>
    tpu.vector_store %arg3[%c0_5, %c0_6], %5 {strides = array<i32>} : memref<2x2xf32, #tpu.memory_space<vmem>>, vector<2x2xf32>,
    return
  }
}

</mosaic_0001>

<llo_original>
// kernel: tile.8
$region0: #{tile.8}
  #allocation0 [shape = 's32[1]{0}', space=sflag, size = 0x4, scoped, tag = 'scoped memory for tile.8']
  %s0 = inlined_call_operand.vmem [shape: f32[6], index: 0, kind: input, shape index: {}]
  %s1 = inlined_call_operand.vmem [shape: f32[48,6], index: 1, kind: output, shape index: {}]
  // Predicated region
  $region2: #{tile.8} parent=0 // pred_check
    _
  $region3: #{tile.8} parent=0 // pred_check_branch
    %3 = sbr.rel (0) target = $region5
  $region4: #{tile.8} parent=0 // pred_region
    _
  $region5: #{tile.8} parent=0 // pred_fallthru
    _
  %v4 = vld [vmem:[%s0] ss:$0 sm:$0xff]
  %5 = vst [vmem:[%s1] sm:$0xff] %v4
  %s6 = scalar_lea.vmem %s1, 8
  %7 = vst [vmem:[%s6] sm:$0xff] %v4
  %s8 = scalar_lea.vmem %s1, 16
  %9 = vst [vmem:[%s8] sm:$0xff] %v4
  %s10 = scalar_lea.vmem %s1, 24
  %11 = vst [vmem:[%s10] sm:$0xff] %v4
  %s12 = scalar_lea.vmem %s1, 32
  %13 = vst [vmem:[%s12] sm:$0xff] %v4
  %s14 = scalar_lea.vmem %s1, 40
  %15 = vst [vmem:[%s14] sm:$0xff] %v4

// kernel: tile.9
$region0: #{tile.9}
  %s0 = inlined_call_operand.vmem [shape: f32[48,6], index: 0, kind: input, shape index: {}]
  %s1 = inlined_call_operand.vmem [shape: f32[1,288], index: 1, kind: output, shape index: {}]
  $region1: #{tile.9} parent=0
    #allocation0 [shape = 'u8[12288]{0}', space=vmem, size = 0x3000, scoped, tag = 'scoped mem for output reshape']
    %v2 = vld [vmem:[%s0] sm:$0x1]
    %vm3 = vcmask 48128
    %4 = vst.msk [vmem:[#allocation0] sm:$0x1] %vm3, %v2
    %s5 = scalar_lea.vmem %s0, 21
    %v6 = vld [vmem:[%s5] sm:$0x1]
    %s7 = scalar_lea.vmem %s0, 21
    %v8 = vld [vmem:[%s7] sm:$0x1]
    %vm9 = vcmask 15360
    %v10 = vsel %vm9, %v8, %v6
    %11 = vrot.lane.b32.xlu0 %v10, 126
    %v12 = vpop.permute.xlu0 %11
    %vm13 = vcmask 31744
    %s14 = scalar_lea.vmem [#allocation0], 8
    %15 = vst.msk [vmem:[%s14] sm:$0x1] %vm13, %v12
    %vm16 = vcmask 1048560
    %17 = vst.msk [vmem:[#allocation0] sm:$0x1] %vm16, %v12
    %s18 = scalar_lea.vmem %s0, 42
    %v19 = vld [vmem:[%s18] sm:$0x1]
    %s20 = scalar_lea.vmem %s0, 42
    %v21 = vld [vmem:[%s20] sm:$0x1]
    %vm22 = vcmask 31744
    %v23 = vsel %vm22, %v21, %v19
    %24 = vrot.lane.b32.xlu0 %v23, 124
    %v25 = vpop.permute.xlu0 %24
    %vm26 = vcmask 15360
    %s27 = scalar_lea.vmem [#allocation0], 16
    %28 = vst.msk [vmem:[%s27] sm:$0x1] %vm26, %v25
    %vm29 = vcmask 1048544
    %s30 = scalar_lea.vmem [#allocation0], 8
    %31 = vst.msk [vmem:[%s30] sm:$0x1] %vm29, %v25
    %s32 = scalar_lea.vmem %s0, 20
    %v33 = vld [vmem:[%s32] sm:$0x1]
    %34 = vrot.lane.b32.xlu0 %v33, 120
    %v35 = vpop.permute.xlu0 %34
    %vm36 = vcmask 1032128
    %37 = vst.msk [vmem:[#allocation0] sm:$0x1] %vm36, %v35
    %s38 = scalar_lea.vmem %s0, 41
    %v39 = vld [vmem:[%s38] sm:$0x1]
    %40 = vrot.lane.b32.xlu0 %v39, 118
    %v41 = vpop.permute.xlu0 %40
    %vm42 = vcmask 1015728
    %s43 = scalar_lea.vmem [#allocation0], 8
    %44 = vst.msk [vmem:[%s43] sm:$0x1] %vm42, %v41
    %s45 = scalar_lea.vmem %s0, 19
    %v46 = vld [vmem:[%s45] sm:$0x1]
    %47 = vrot.lane.b32.xlu0 %v46, 114
    %v48 = vpop.permute.xlu0 %47
    %vm49 = vcmask 982928
    %50 = vst.msk [vmem:[#allocation0] sm:$0x1] %vm49, %v48
    %s51 = scalar_lea.vmem %s0, 40
    %v52 = vld [vmem:[%s51] sm:$0x1]
    %53 = vrot.lane.b32.xlu0 %v52, 112
    %v54 = vpop.permute.xlu0 %53
    %vm55 = vcmask 966528
    %s56 = scalar_lea.vmem [#allocation0], 8
    %57 = vst.msk [vmem:[%s56] sm:$0x1] %vm55, %v54
    %s58 = scalar_lea.vmem %s0, 18
    %v59 = vld [vmem:[%s58] sm:$0x1]
    %60 = vrot.lane.b32.xlu0 %v59, 108
    %v61 = vpop.permute.xlu0 %60
    %vm62 = vcmask 933728
    %63 = vst.msk [vmem:[#allocation0] sm:$0x1] %vm62, %v61
    %s64 = scalar_lea.vmem %s0, 39
    %v65 = vld [vmem:[%s64] sm:$0x1]
    %66 = vrot.lane.b32.xlu0 %v65, 106
    %v67 = vpop.permute.xlu0 %66
    %vm68 = vcmask 917328
    %s69 = scalar_lea.vmem [#allocation0], 8
    %70 = vst.msk [vmem:[%s69] sm:$0x1] %vm68, %v67
    %s71 = scalar_lea.vmem %s0, 17
    %v72 = vld [vmem:[%s71] sm:$0x1]
    %73 = vrot.lane.b32.xlu0 %v72, 102
    %v74 = vpop.permute.xlu0 %73
    %vm75 = vcmask 884528
    %76 = vst.msk [vmem:[#allocation0] sm:$0x1] %vm75, %v74
    %s77 = scalar_lea.vmem %s0, 38
    %v78 = vld [vmem:[%s77] sm:$0x1]
    %79 = vrot.lane.b32.xlu0 %v78, 100
    %v80 = vpop.permute.xlu0 %79
    %vm81 = vcmask 868128
    %s82 = scalar_lea.vmem [#allocation0], 8
    %83 = vst.msk [vmem:[%s82] sm:$0x1] %vm81, %v80
    %s84 = scalar_lea.vmem %s0, 16
    %v85 = vld [vmem:[%s84] sm:$0x1]
    %86 = vrot.lane.b32.xlu0 %v85, 96
    %v87 = vpop.permute.xlu0 %86
    %vm88 = vcmask 835328
    %89 = vst.msk [vmem:[#allocation0] sm:$0x1] %vm88, %v87
    %s90 = scalar_lea.vmem %s0, 37
    %v91 = vld [vmem:[%s90] sm:$0x1]
    %92 = vrot.lane.b32.xlu0 %v91, 94
    %v93 = vpop.permute.xlu0 %92
    %vm94 = vcmask 818928
    %s95 = scalar_lea.vmem [#allocation0], 8
    %96 = vst.msk [vmem:[%s95] sm:$0x1] %vm94, %v93
    %s97 = scalar_lea.vmem %s0, 15
    %v98 = vld [vmem:[%s97] sm:$0x1]
    %99 = vrot.lane.b32.xlu0 %v98, 90
    %v100 = vpop.permute.xlu0 %99
    %vm101 = vcmask 786128
    %102 = vst.msk [vmem:[#allocation0] sm:$0x1] %vm101, %v100
    %s103 = scalar_lea.vmem %s0, 36
    %v104 = vld [vmem:[%s103] sm:$0x1]
    %105 = vrot.lane.b32.xlu0 %v104, 88
    %v106 = vpop.permute.xlu0 %105
    %vm107 = vcmask 769728
    %s108 = scalar_lea.vmem [#allocation0], 8
    %109 = vst.msk [vmem:[%s108] sm:$0x1] %vm107, %v106
    %s110 = scalar_lea.vmem %s0, 14
    %v111 = vld [vmem:[%s110] sm:$0x1]
    %112 = vrot.lane.b32.xlu0 %v111, 84
    %v113 = vpop.permute.xlu0 %112
    %vm114 = vcmask 736928
    %115 = vst.msk [vmem:[#allocation0] sm:$0x1] %vm114, %v113
    %s116 = scalar_lea.vmem %s0, 35
    %v117 = vld [vmem:[%s116] sm:$0x1]
    %118 = vrot.lane.b32.xlu0 %v117, 82
    %v119 = vpop.permute.xlu0 %118
    %vm120 = vcmask 720528
    %s121 = scalar_lea.vmem [#allocation0], 8
    %122 = vst.msk [vmem:[%s121] sm:$0x1] %vm120, %v119
    %s123 = scalar_lea.vmem %s0, 13
    %v124 = vld [vmem:[%s123] sm:$0x1]
    %125 = vrot.lane.b32.xlu0 %v124, 78
    %v126 = vpop.permute.xlu0 %125
    %vm127 = vcmask 687728
    %128 = vst.msk [vmem:[#allocation0] sm:$0x1] %vm127, %v126
    %s129 = scalar_lea.vmem %s0, 34
    %v130 = vld [vmem:[%s129] sm:$0x1]
    %131 = vrot.lane.b32.xlu0 %v130, 76
    %v132 = vpop.permute.xlu0 %131
    %vm133 = vcmask 671328
    %s134 = scalar_lea.vmem [#allocation0], 8
    %135 = vst.msk [vmem:[%s134] sm:$0x1] %vm133, %v132
    %s136 = scalar_lea.vmem %s0, 12
    %v137 = vld [vmem:[%s136] sm:$0x1]
    %138 = vrot.lane.b32.xlu0 %v137, 72
    %v139 = vpop.permute.xlu0 %138
    %vm140 = vcmask 638528
    %141 = vst.msk [vmem:[#allocation0] sm:$0x1] %vm140, %v139
    %s142 = scalar_lea.vmem %s0, 33
    %v143 = vld [vmem:[%s142] sm:$0x1]
    %144 = vrot.lane.b32.xlu0 %v143, 70
    %v145 = vpop.permute.xlu0 %144
    %vm146 = vcmask 622128
    %s147 = scalar_lea.vmem [#allocation0], 8
    %148 = vst.msk [vmem:[%s147] sm:$0x1] %vm146, %v145
    %s149 = scalar_lea.vmem %s0, 11
    %v150 = vld [vmem:[%s149] sm:$0x1]
    %151 = vrot.lane.b32.xlu0 %v150, 66
    %v152 = vpop.permute.xlu0 %151
    %vm153 = vcmask 589328
    %154 = vst.msk [vmem:[#allocation0] sm:$0x1] %vm153, %v152
    %s155 = scalar_lea.vmem %s0, 32
    %v156 = vld [vmem:[%s155] sm:$0x1]
    %157 = vrot.lane.b32.xlu0 %v156, 64
    %v158 = vpop.permute.xlu0 %157
    %vm159 = vcmask 572928
    %s160 = scalar_lea.vmem [#allocation0], 8
    %161 = vst.msk [vmem:[%s160] sm:$0x1] %vm159, %v158
    %s162 = scalar_lea.vmem %s0, 10
    %v163 = vld [vmem:[%s162] sm:$0x1]
    %164 = vrot.lane.b32.xlu0 %v163, 60
    %v165 = vpop.permute.xlu0 %164
    %vm166 = vcmask 540128
    %167 = vst.msk [vmem:[#allocation0] sm:$0x1] %vm166, %v165
    %s168 = scalar_lea.vmem %s0, 31
    %v169 = vld [vmem:[%s168] sm:$0x1]
    %170 = vrot.lane.b32.xlu0 %v169, 58
    %v171 = vpop.permute.xlu0 %170
    %vm172 = vcmask 523728
    %s173 = scalar_lea.vmem [#allocation0], 8
    %174 = vst.msk [vmem:[%s173] sm:$0x1] %vm172, %v171
    %s175 = scalar_lea.vmem %s0, 9
    %v176 = vld [vmem:[%s175] sm:$0x1]
    %177 = vrot.lane.b32.xlu0 %v176, 54
    %v178 = vpop.permute.xlu0 %177
    %vm179 = vcmask 490928
    %180 = vst.msk [vmem:[#allocation0] sm:$0x1] %vm179, %v178
    %s181 = scalar_lea.vmem %s0, 30
    %v182 = vld [vmem:[%s181] sm:$0x1]
    %183 = vrot.lane.b32.xlu0 %v182, 52
    %v184 = vpop.permute.xlu0 %183
    %vm185 = vcmask 474528
    %s186 = scalar_lea.vmem [#allocation0], 8
    %187 = vst.msk [vmem:[%s186] sm:$0x1] %vm185, %v184
    %s188 = scalar_lea.vmem %s0, 8
    %v189 = vld [vmem:[%s188] sm:$0x1]
    %190 = vrot.lane.b32.xlu0 %v189, 48
    %v191 = vpop.permute.xlu0 %190
    %vm192 = vcmask 441728
    %193 = vst.msk [vmem:[#allocation0] sm:$0x1] %vm192, %v191
    %s194 = scalar_lea.vmem %s0, 29
    %v195 = vld [vmem:[%s194] sm:$0x1]
    %196 = vrot.lane.b32.xlu0 %v195, 46
    %v197 = vpop.permute.xlu0 %196
    %vm198 = vcmask 425328
    %s199 = scalar_lea.vmem [#allocation0], 8
    %200 = vst.msk [vmem:[%s199] sm:$0x1] %vm198, %v197
    %s201 = scalar_lea.vmem %s0, 7
    %v202 = vld [vmem:[%s201] sm:$0x1]
    %203 = vrot.lane.b32.xlu0 %v202, 42
    %v204 = vpop.permute.xlu0 %203
    %vm205 = vcmask 392528
    %206 = vst.msk [vmem:[#allocation0] sm:$0x1] %vm205, %v204
    %s207 = scalar_lea.vmem %s0, 28
    %v208 = vld [vmem:[%s207] sm:$0x1]
    %209 = vrot.lane.b32.xlu0 %v208, 40
    %v210 = vpop.permute.xlu0 %209
    %vm211 = vcmask 376128
    %s212 = scalar_lea.vmem [#allocation0], 8
    %213 = vst.msk [vmem:[%s212] sm:$0x1] %vm211, %v210
    %s214 = scalar_lea.vmem %s0, 6
    %v215 = vld [vmem:[%s214] sm:$0x1]
    %216 = vrot.lane.b32.xlu0 %v215, 36
    %v217 = vpop.permute.xlu0 %216
    %vm218 = vcmask 343328
    %219 = vst.msk [vmem:[#allocation0] sm:$0x1] %vm218, %v217
    %s220 = scalar_lea.vmem %s0, 27
    %v221 = vld [vmem:[%s220] sm:$0x1]
    %222 = vrot.lane.b32.xlu0 %v221, 34
    %v223 = vpop.permute.xlu0 %222
    %vm224 = vcmask 326928
    %s225 = scalar_lea.vmem [#allocation0], 8
    %226 = vst.msk [vmem:[%s225] sm:$0x1] %vm224, %v223
    %s227 = scalar_lea.vmem %s0, 5
    %v228 = vld [vmem:[%s227] sm:$0x1]
    %229 = vrot.lane.b32.xlu0 %v228, 30
    %v230 = vpop.permute.xlu0 %229
    %vm231 = vcmask 294128
    %232 = vst.msk [vmem:[#allocation0] sm:$0x1] %vm231, %v230
    %s233 = scalar_lea.vmem %s0, 26
    %v234 = vld [vmem:[%s233] sm:$0x1]
    %235 = vrot.lane.b32.xlu0 %v234, 28
    %v236 = vpop.permute.xlu0 %235
    %vm237 = vcmask 277728
    %s238 = scalar_lea.vmem [#allocation0], 8
    %239 = vst.msk [vmem:[%s238] sm:$0x1] %vm237, %v236
    %s240 = scalar_lea.vmem %s0, 47
    %v241 = vld [vmem:[%s240] sm:$0x1]
    %242 = vrot.lane.b32.xlu0 %v241, 26
    %v243 = vpop.permute.xlu0 %242
    %vm244 = vcmask 261328
    %s245 = scalar_lea.vmem [#allocation0], 16
    %246 = vst.msk [vmem:[%s245] sm:$0x1] %vm244, %v243
    %s247 = scalar_lea.vmem %s0, 4
    %v248 = vld [vmem:[%s247] sm:$0x1]
    %249 = vrot.lane.b32.xlu0 %v248, 24
    %v250 = vpop.permute.xlu0 %249
    %vm251 = vcmask 244928
    %252 = vst.msk [vmem:[#allocation0] sm:$0x1] %vm251, %v250
    %s253 = scalar_lea.vmem %s0, 25
    %v254 = vld [vmem:[%s253] sm:$0x1]
    %255 = vrot.lane.b32.xlu0 %v254, 22
    %v256 = vpop.permute.xlu0 %255
    %vm257 = vcmask 228528
    %s258 = scalar_lea.vmem [#allocation0], 8
    %259 = vst.msk [vmem:[%s258] sm:$0x1] %vm257, %v256
    %s260 = scalar_lea.vmem %s0, 46
    %v261 = vld [vmem:[%s260] sm:$0x1]
    %262 = vrot.lane.b32.xlu0 %v261, 20
    %v263 = vpop.permute.xlu0 %262
    %vm264 = vcmask 212128
    %s265 = scalar_lea.vmem [#allocation0], 16
    %266 = vst.msk [vmem:[%s265] sm:$0x1] %vm264, %v263
    %s267 = scalar_lea.vmem %s0, 3
    %v268 = vld [vmem:[%s267] sm:$0x1]
    %269 = vrot.lane.b32.xlu0 %v268, 18
    %v270 = vpop.permute.xlu0 %269
    %vm271 = vcmask 195728
    %272 = vst.msk [vmem:[#allocation0] sm:$0x1] %vm271, %v270
    %s273 = scalar_lea.vmem %s0, 24
    %v274 = vld [vmem:[%s273] sm:$0x1]
    %275 = vrot.lane.b32.xlu0 %v274, 16
    %v276 = vpop.permute.xlu0 %275
    %vm277 = vcmask 179328
    %s278 = scalar_lea.vmem [#allocation0], 8
    %279 = vst.msk [vmem:[%s278] sm:$0x1] %vm277, %v276
    %s280 = scalar_lea.vmem %s0, 45
    %v281 = vld [vmem:[%s280] sm:$0x1]
    %282 = vrot.lane.b32.xlu0 %v281, 14
    %v283 = vpop.permute.xlu0 %282
    %vm284 = vcmask 162928
    %s285 = scalar_lea.vmem [#allocation0], 16
    %286 = vst.msk [vmem:[%s285] sm:$0x1] %vm284, %v283
    %s287 = scalar_lea.vmem %s0, 2
    %v288 = vld [vmem:[%s287] sm:$0x1]
    %289 = vrot.lane.b32.xlu0 %v288, 12
    %v290 = vpop.permute.xlu0 %289
    %vm291 = vcmask 146528
    %292 = vst.msk [vmem:[#allocation0] sm:$0x1] %vm291, %v290
    %s293 = scalar_lea.vmem %s0, 23
    %v294 = vld [vmem:[%s293] sm:$0x1]
    %295 = vrot.lane.b32.xlu0 %v294, 10
    %v296 = vpop.permute.xlu0 %295
    %vm297 = vcmask 130128
    %s298 = scalar_lea.vmem [#allocation0], 8
    %299 = vst.msk [vmem:[%s298] sm:$0x1] %vm297, %v296
    %s300 = scalar_lea.vmem %s0, 44
    %v301 = vld [vmem:[%s300] sm:$0x1]
    %302 = vrot.lane.b32.xlu0 %v301, 8
    %v303 = vpop.permute.xlu0 %302
    %vm304 = vcmask 113728
    %s305 = scalar_lea.vmem [#allocation0], 16
    %306 = vst.msk [vmem:[%s305] sm:$0x1] %vm304, %v303
    %s307 = scalar_lea.vmem %s0, 1
    %v308 = vld [vmem:[%s307] sm:$0x1]
    %309 = vrot.lane.b32.xlu0 %v308, 6
    %v310 = vpop.permute.xlu0 %309
    %vm311 = vcmask 97328
    %312 = vst.msk [vmem:[#allocation0] sm:$0x1] %vm311, %v310
    %s313 = scalar_lea.vmem %s0, 22
    %v314 = vld [vmem:[%s313] sm:$0x1]
    %315 = vrot.lane.b32.xlu0 %v314, 4
    %v316 = vpop.permute.xlu0 %315
    %vm317 = vcmask 80928
    %s318 = scalar_lea.vmem [#allocation0], 8
    %319 = vst.msk [vmem:[%s318] sm:$0x1] %vm317, %v316
    %s320 = scalar_lea.vmem %s0, 43
    %v321 = vld [vmem:[%s320] sm:$0x1]
    %322 = vrot.lane.b32.xlu0 %v321, 2
    %v323 = vpop.permute.xlu0 %322
    %vm324 = vcmask 64528
    %s325 = scalar_lea.vmem [#allocation0], 16
    %326 = vst.msk [vmem:[%s325] sm:$0x1] %vm324, %v323
    %s328 = sshllo.u32 0, 1
    %v330 = vld [vmem:[#allocation0] sm:%s328]
    %s331 = sshllo.u32 0, 1
    %332 = vst [vmem:[%s1] sm:%s331] %v330
    %s333 = scalar_lea.vmem [#allocation0], 8
    %v334 = vld [vmem:[%s333] sm:%s328]
    %s335 = sshllo.u32 0, 1
    %s336 = scalar_lea.vmem %s1, 1
    %337 = vst [vmem:[%s336] sm:%s335] %v334
    %s338 = scalar_lea.vmem [#allocation0], 16
    %v339 = vld [vmem:[%s338] sm:%s328]
    %s340 = sshllo.u32 0, 1
    %s341 = smul.addr 1, 2
    %s342 = scalar_lea.vmem %s1, %s341
    %343 = vst [vmem:[%s342] sm:%s340] %v339

// kernel: net_forward.6
$region0: #{net_forward.6}
  #allocation0 [shape = 'u32[]', space=smem, size = 0x4, offset = 0x4, fixed_abs, tag = 'smem constant byte address 0x4 - core index']
  #allocation1 [shape = 'u32[144,128]{1,0:T(1,128)}', space=vmem, size = 0x12000, scoped, tag = 'internal scratch']
  %s0 = inlined_call_operand.vmem [shape: f32[100,96,441], index: 0, kind: input, shape index: {}]
  %s1 = inlined_call_operand.hbm [shape: f32[100,441,288], index: 1, kind: input, shape index: {}]
  %s2 = inlined_call_operand.vmem [shape: f32[1,288], index: 2, kind: input, shape index: {}]
  %s3 = inlined_call_operand.vmem [shape: f32[96,288], index: 3, kind: output, shape index: {}]
  %s4 = sld [smem:[#allocation0]]
  $region57: #{net_forward.6} parent=0
    _
  %s6 = ssub.s32 1, %s4
  %s7 = scalar_select 0, %s6, %s4
  $region1: #{net_forward.6} parent=0
    #allocation2 [shape = 'u8[6881280]{0}', space=vmem, size = 0x690000, scoped, tag = 'input window, operand 1']
    #allocation3 [shape = 's32[2]{0}', space=sflag, size = 0x8, scoped, tag = 'scoped memory for net_forward.6']
    %8 = vsyncpa [#allocation3], 0
    %s9 = scalar_lea.sflag [#allocation3], 1
    %10 = vsyncpa %s9, 0
    loop: start=0, step=1, limit=22
    $region2: #{net_forward.6} parent=1 // loop_pre_header
      _
    $region3: #{net_forward.6} parent=1 // loop_header
      %s12 = sphi 0, %s16
      %p13 = scmp.ge.s32.totalorder %s12, 22
      %s22 = sphi 0, %s24
      %s25 = sphi 0, %s22
      %s26 = sphi 0, %s25
      %s42 = sphi 0, %s26
      %s48 = sphi 0, %s50
      %s51 = sphi 0, %s48
      %s52 = sphi 0, %s51
      %s68 = sphi 0, %s52
      %s72 = sphi 0, %s72
      %s74 = sphi 0, %s72
      %s75 = sphi 0, %s74
      %s89 = sphi 0, %s75
      %s93 = sphi 0, %s93
      %s95 = sphi 0, %s93
      %s96 = sphi 0, %s95
      %s110 = sphi 0, %s96
    $region4: #{net_forward.6} parent=1 // loop_header_branch
      %15 = sbr.rel (%p13) target = $region8
    $region5: #{net_forward.6} parent=1 // loop_body
      %s17 = ssub.s32 %s12, 1
      %s18 = ssub.s32 %s12, 2
      %s19 = sadd.s32 %s12, 1
      %s20 = ssub.s32 %s12, %s19
      %p21 = scmp.eq.s32.totalorder %s20, 0
      %s23 = sadd.s32 %s22, 1
      %s24 = scalar_select %p21, %s22, %s23
      %p27 = pneg %p21
      %p28 = scmp.eq.s32.totalorder %s12, 19
      %p29 = por %p27, %p28
      %p30 = scmp.ne.s32.totalorder %s22, %s25
      %p31 = scmp.eq.s32.totalorder %s12, 0
      %p32 = por %p30, %p31
      %p33 = scmp.ne.s32.totalorder %s22, %s25
      %p34 = scmp.eq.s32.totalorder %s17, 19
      %p35 = por %p33, %p34
      %p36 = scmp.ne.s32.totalorder %s25, %s26
      %p37 = scmp.eq.s32.totalorder %s17, 0
      %p38 = por %p36, %p37
      %p39 = scmp.ne.s32.totalorder %s25, %s26
      %p40 = scmp.eq.s32.totalorder %s18, 19
      %p41 = por %p39, %p40
      %p43 = scmp.ne.s32.totalorder %s26, %s42
      %p44 = scmp.eq.s32.totalorder %s18, 0
      %p45 = por %p43, %p44
      %s46 = ssub.s32 %s12, %s19
      %p47 = scmp.eq.s32.totalorder %s46, 0
      %s49 = sadd.s32 %s48, 1
      %s50 = scalar_select %p47, %s48, %s49
      %p53 = pneg %p47
      %p54 = scmp.eq.s32.totalorder %s12, 19
      %p55 = por %p53, %p54
      %p56 = scmp.ne.s32.totalorder %s48, %s51
      %p57 = scmp.eq.s32.totalorder %s12, 0
      %p58 = por %p56, %p57
      %p59 = scmp.ne.s32.totalorder %s48, %s51
      %p60 = scmp.eq.s32.totalorder %s17, 19
      %p61 = por %p59, %p60
      %p62 = scmp.ne.s32.totalorder %s51, %s52
      %p63 = scmp.eq.s32.totalorder %s17, 0
      %p64 = por %p62, %p63
      %p65 = scmp.ne.s32.totalorder %s51, %s52
      %p66 = scmp.eq.s32.totalorder %s18, 19
      %p67 = por %p65, %p66
      %p69 = scmp.ne.s32.totalorder %s52, %s68
      %p70 = scmp.eq.s32.totalorder %s18, 0
      %p71 = por %p69, %p70
      %s73 = sadd.s32 %s72, 1
      %p76 = scmp.eq.s32.totalorder %s12, 19
      %p77 = scmp.ne.s32.totalorder %s72, %s74
      %p78 = scmp.eq.s32.totalorder %s12, 0
      %p79 = por %p77, %p78
      %p80 = scmp.ne.s32.totalorder %s72, %s74
      %p81 = scmp.eq.s32.totalorder %s17, 19
      %p82 = por %p80, %p81
      %p83 = scmp.ne.s32.totalorder %s74, %s75
      %p84 = scmp.eq.s32.totalorder %s17, 0
      %p85 = por %p83, %p84
      %p86 = scmp.ne.s32.totalorder %s74, %s75
      %p87 = scmp.eq.s32.totalorder %s18, 19
      %p88 = por %p86, %p87
      %p90 = scmp.ne.s32.totalorder %s75, %s89
      %p91 = scmp.eq.s32.totalorder %s18, 0
      %p92 = por %p90, %p91
      %s94 = sadd.s32 %s93, 1
      %p97 = scmp.eq.s32.totalorder %s12, 19
      %p98 = scmp.ne.s32.totalorder %s93, %s95
      %p99 = scmp.eq.s32.totalorder %s12, 0
      %p100 = por %p98, %p99
      %p101 = scmp.ne.s32.totalorder %s93, %s95
      %p102 = scmp.eq.s32.totalorder %s17, 19
      %p103 = por %p101, %p102
      %p104 = scmp.ne.s32.totalorder %s95, %s96
      %p105 = scmp.eq.s32.totalorder %s17, 0
      %p106 = por %p104, %p105
      %p107 = scmp.ne.s32.totalorder %s95, %s96
      %p108 = scmp.eq.s32.totalorder %s18, 19
      %p109 = por %p107, %p108
      %p111 = scmp.ne.s32.totalorder %s96, %s110
      %p112 = scmp.eq.s32.totalorder %s18, 0
      %p113 = por %p111, %p112
      %p114 = scmp.le.s32.totalorder 1, %s12
      %p115 = scmp.lt.s32.totalorder %s12, 21
      %p116 = pnand %p114, %p115
      %p117 = pneg %p116
      // Predicated region
      $region9: #{net_forward.6} parent=5 // pred_check
        _
      $region10: #{net_forward.6} parent=5 // pred_check_branch
        %119 = sbr.rel (%p116) target = $region12
      $region11: #{net_forward.6} parent=5 // pred_region
        %s120 = ssub.s32 %s12, 1
        // Predicated region
        $region13: #{net_forward.6} parent=11 // pred_check
          %p121 = pneg %p85
        $region14: #{net_forward.6} parent=11 // pred_check_branch
          %123 = sbr.rel (%p121) target = $region16
        $region15: #{net_forward.6} parent=11 // pred_region
          _
        $region16: #{net_forward.6} parent=11 // pred_fallthru
          _
      $region12: #{net_forward.6} parent=5 // pred_fallthru
        _
      %p124 = scmp.lt.s32.totalorder %s12, 20
      // Predicated region
      $region17: #{net_forward.6} parent=5 // pred_check
        %p125 = pneg %p124
      $region18: #{net_forward.6} parent=5 // pred_check_branch
        %127 = sbr.rel (%p125) target = $region20
      $region19: #{net_forward.6} parent=5 // pred_region
        // Predicated region
        $region21: #{net_forward.6} parent=19 // pred_check
          %p128 = pneg %p32
        $region22: #{net_forward.6} parent=19 // pred_check_branch
          %130 = sbr.rel (%p128) target = $region24
        $region23: #{net_forward.6} parent=19 // pred_region
          %s131 = smul.u32 5, %s12
          %p132 = scmp.lt.s32.totalorder %s131, 99
          %s133 = scalar_select %p132, %s131, 99
          %s134 = smul.addr %s133, 48
          %s135 = smul.addr %s134, 8
          %s136 = scalar_lea.vmem %s0, %s135
          %s137 = smul.u32 5, %s12
        $region24: #{net_forward.6} parent=19 // pred_fallthru
          _
        // Predicated region
        $region25: #{net_forward.6} parent=19 // pred_check
          %p138 = pneg %p58
        $region26: #{net_forward.6} parent=19 // pred_check_branch
          %140 = sbr.rel (%p138) target = $region28
        $region27: #{net_forward.6} parent=19 // pred_region
          %s141 = sand.u32 %s48, 1
          %s142 = scalar_lea.sflag [#allocation3], %s141
          %s143 = sand.u32 %s48, 1
          %s144 = smul.addr %s143, 6720
          %s145 = scalar_lea.vmem [#allocation2], %s144
          %s146 = smul.u32 5, %s12
          %s148 = ssub.s32 107520, 107520
          %149 = vsyncadd %s142, %s148
          %s150 = smul.addr %s146, 168
          %s151 = smul.addr %s150, 128
          %s152 = scalar_lea.hbm %s1, %s151
          %s153 = sshll.u32 %s145, 4
          %s154 = int_to_ptr.vmem [resolvable:$true] %s153
          %159 = dma.hbm_to_vmem [thread:$0]  %s152, 107520, %s154, %s142, 384, 384, 24
        $region28: #{net_forward.6} parent=19 // pred_fallthru
          _
      $region20: #{net_forward.6} parent=5 // pred_fallthru
        _
      %p160 = scmp.le.s32.totalorder 1, %s12
      %p161 = scmp.lt.s32.totalorder %s12, 21
      %p162 = pnand %p160, %p161
      %p163 = pneg %p162
      // Predicated region
      $region29: #{net_forward.6} parent=5 // pred_check
        _
      $region30: #{net_forward.6} parent=5 // pred_check_branch
        %165 = sbr.rel (%p162) target = $region32
      $region31: #{net_forward.6} parent=5 // pred_region
        %s166 = ssub.s32 %s12, 1
        %s167 = sand.u32 %s51, 1
        %s168 = scalar_lea.sflag [#allocation3], %s167
        %s169 = sand.u32 %s51, 1
        %s170 = smul.addr %s169, 6720
        %s171 = scalar_lea.vmem [#allocation2], %s170
        // Predicated region
        $region33: #{net_forward.6} parent=31 // pred_check
          %p172 = pneg %p64
        $region34: #{net_forward.6} parent=31 // pred_check_branch
          %174 = sbr.rel (%p172) target = $region36
        $region35: #{net_forward.6} parent=31 // pred_region
          %175 = dma.done %s168, 107520
        $region36: #{net_forward.6} parent=31 // pred_fallthru
          _
        %s176 = smul.u32 5, %s17
        %p177 = scmp.lt.s32.totalorder %s176, 99
        %s178 = scalar_select %p177, %s176, 99
        %s179 = smul.addr %s178, 48
        %s180 = smul.addr %s179, 8
        %s181 = scalar_lea.vmem %s0, %s180
        %p182 = pneg %p38
        %p183 = pneg %p35
        %s184 = sand.u32 %s51, 1
        %s185 = scalar_lea.sflag [#allocation3], %s184
        %s186 = sand.u32 %s51, 1
        %s187 = smul.addr %s186, 6720
        %s188 = scalar_lea.vmem [#allocation2], %s187
        %p189 = pneg %p64
        %p190 = pneg %p61
        %p191 = pneg %p85
        %p192 = pneg %p82
        %p193 = pneg %p106
        %p194 = pneg %p103
        %s195 = smul.u32 5, %s17
        %p196 = scmp.lt.s32.totalorder %s195, 99
        %s197 = scalar_select %p196, %s195, 99
        %s198 = smul.addr %s197, 48
        %s199 = smul.addr %s198, 8
        %s200 = scalar_lea.vmem %s0, %s199
        %s201 = smul.u32 5, %s17
        %s202 = smul.u32 5, %s17
        %p203 = scmp.eq.s32.totalorder %s17, 0
        // Predicated region
        $region37: #{net_forward.6} parent=31 // pred_check
          %p204 = pneg %p203
        $region38: #{net_forward.6} parent=31 // pred_check_branch
          %206 = sbr.rel (%p204) target = $region40
        $region39: #{net_forward.6} parent=31 // pred_region
          %207 = vst [vmem:[%s3] sm:$0xff] 0.0
          %208 = vst [vmem:[%s3 + $0x8] sm:$0xff] 0.0
          %vm209 = vcmask 261120
          %210 = vst.msk [vmem:[%s3 + $0x10] sm:$0xff] %vm209, 0.0
          %211 = vst [vmem:[%s3 + $0x18] sm:$0xff] 0.0
          %212 = vst [vmem:[%s3 + $0x20] sm:$0xff] 0.0
          %213 = vst.msk [vmem:[%s3 + $0x28] sm:$0xff] %vm209, 0.0
          %214 = vst [vmem:[%s3 + $0x30] sm:$0xff] 0.0
          %215 = vst [vmem:[%s3 + $0x38] sm:$0xff] 0.0
          %216 = vst.msk [vmem:[%s3 + $0x40] sm:$0xff] %vm209, 0.0
          %217 = vst [vmem:[%s3 + $0x48] sm:$0xff] 0.0
          %218 = vst [vmem:[%s3 + $0x50] sm:$0xff] 0.0
          %219 = vst.msk [vmem:[%s3 + $0x58] sm:$0xff] %vm209, 0.0
          %220 = vst [vmem:[%s3 + $0x60] sm:$0xff] 0.0
          %221 = vst [vmem:[%s3 + $0x68] sm:$0xff] 0.0
          %222 = vst.msk [vmem:[%s3 + $0x70] sm:$0xff] %vm209, 0.0
          %223 = vst [vmem:[%s3 + $0x78] sm:$0xff] 0.0
          %224 = vst [vmem:[%s3 + $0x80] sm:$0xff] 0.0
          %225 = vst.msk [vmem:[%s3 + $0x88] sm:$0xff] %vm209, 0.0
          %226 = vst [vmem:[%s3 + $0x90] sm:$0xff] 0.0
          %227 = vst [vmem:[%s3 + $0x98] sm:$0xff] 0.0
          %228 = vst.msk [vmem:[%s3 + $0xa0] sm:$0xff] %vm209, 0.0
          %229 = vst [vmem:[%s3 + $0xa8] sm:$0xff] 0.0
          %230 = vst [vmem:[%s3 + $0xb0] sm:$0xff] 0.0
          %231 = vst.msk [vmem:[%s3 + $0xb8] sm:$0xff] %vm209, 0.0
          %232 = vst [vmem:[%s3 + $0xc0] sm:$0xff] 0.0
          %233 = vst [vmem:[%s3 + $0xc8] sm:$0xff] 0.0
          %234 = vst.msk [vmem:[%s3 + $0xd0] sm:$0xff] %vm209, 0.0
          %235 = vst [vmem:[%s3 + $0xd8] sm:$0xff] 0.0
          %236 = vst [vmem:[%s3 + $0xe0] sm:$0xff] 0.0
          %237 = vst.msk [vmem:[%s3 + $0xe8] sm:$0xff] %vm209, 0.0
          %238 = vst [vmem:[%s3 + $0xf0] sm:$0xff] 0.0
          %239 = vst [vmem:[%s3 + $0xf8] sm:$0xff] 0.0
          %240 = vst.msk [vmem:[%s3 + $0x100] sm:$0xff] %vm209, 0.0
          %241 = vst [vmem:[%s3 + $0x108] sm:$0xff] 0.0
          %242 = vst [vmem:[%s3 + $0x110] sm:$0xff] 0.0
          %243 = vst.msk [vmem:[%s3 + $0x118] sm:$0xff] %vm209, 0.0
        $region40: #{net_forward.6} parent=31 // pred_fallthru
          _
        %v244 = vld [vmem:[%s3] sm:$0xff]
        %v245 = vld [vmem:[%s3 + $0x8] sm:$0xff]
        %v246 = vld [vmem:[%s3 + $0x10] sm:$0xff]
        %v247 = vld [vmem:[%s3 + $0x18] sm:$0xff]
        %v248 = vld [vmem:[%s3 + $0x20] sm:$0xff]
        %v249 = vld [vmem:[%s3 + $0x28] sm:$0xff]
        %v250 = vld [vmem:[%s3 + $0x30] sm:$0xff]
        %v251 = vld [vmem:[%s3 + $0x38] sm:$0xff]
        %v252 = vld [vmem:[%s3 + $0x40] sm:$0xff]
        %v253 = vld [vmem:[%s3 + $0x48] sm:$0xff]
        %v254 = vld [vmem:[%s3 + $0x50] sm:$0xff]
        %v255 = vld [vmem:[%s3 + $0x58] sm:$0xff]
        %v256 = vld [vmem:[%s3 + $0x60] sm:$0xff]
        %v257 = vld [vmem:[%s3 + $0x68] sm:$0xff]
        %v258 = vld [vmem:[%s3 + $0x70] sm:$0xff]
        %v259 = vld [vmem:[%s3 + $0x78] sm:$0xff]
        %v260 = vld [vmem:[%s3 + $0x80] sm:$0xff]
        %v261 = vld [vmem:[%s3 + $0x88] sm:$0xff]
        %v262 = vld [vmem:[%s3 + $0x90] sm:$0xff]
        %v263 = vld [vmem:[%s3 + $0x98] sm:$0xff]
        %v264 = vld [vmem:[%s3 + $0xa0] sm:$0xff]
        %v265 = vld [vmem:[%s3 + $0xa8] sm:$0xff]
        %v266 = vld [vmem:[%s3 + $0xb0] sm:$0xff]
        %v267 = vld [vmem:[%s3 + $0xb8] sm:$0xff]
        %v268 = vld [vmem:[%s3 + $0xc0] sm:$0xff]
        %v269 = vld [vmem:[%s3 + $0xc8] sm:$0xff]
        %v270 = vld [vmem:[%s3 + $0xd0] sm:$0xff]
        %v271 = vld [vmem:[%s3 + $0xd8] sm:$0xff]
        %v272 = vld [vmem:[%s3 + $0xe0] sm:$0xff]
        %v273 = vld [vmem:[%s3 + $0xe8] sm:$0xff]
        %v274 = vld [vmem:[%s3 + $0xf0] sm:$0xff]
        %v275 = vld [vmem:[%s3 + $0xf8] sm:$0xff]
        %v276 = vld [vmem:[%s3 + $0x100] sm:$0xff]
        %v277 = vld [vmem:[%s3 + $0x108] sm:$0xff]
        %v278 = vld [vmem:[%s3 + $0x110] sm:$0xff]
        %v279 = vld [vmem:[%s3 + $0x118] sm:$0xff]
        %v280 = vld [vmem:[%s200] sm:$0xff]
        %v281 = vld [vmem:[%s200 + $0x8] sm:$0xff]
        %v282 = vld [vmem:[%s200 + $0x10] sm:$0xff]
        %v283 = vld [vmem:[%s200 + $0x18] sm:$0xff]
        %v284 = vld [vmem:[%s200 + $0x20] sm:$0xff]
        %v285 = vld [vmem:[%s200 + $0x28] sm:$0xff]
        %v286 = vld [vmem:[%s200 + $0x30] sm:$0xff]
        %v287 = vld [vmem:[%s200 + $0x38] sm:$0xff]
        %v288 = vld [vmem:[%s200 + $0x40] sm:$0xff]
        %v289 = vld [vmem:[%s200 + $0x48] sm:$0xff]
        %v290 = vld [vmem:[%s200 + $0x50] sm:$0xff]
        %v291 = vld [vmem:[%s200 + $0x58] sm:$0xff]
        %v292 = vld [vmem:[%s200 + $0x60] sm:$0xff]
        %v293 = vld [vmem:[%s200 + $0x68] sm:$0xff]
        %v294 = vld [vmem:[%s200 + $0x70] sm:$0xff]
        %v295 = vld [vmem:[%s200 + $0x78] sm:$0xff]
        %v296 = vld [vmem:[%s200 + $0x80] sm:$0xff]
        %v297 = vld [vmem:[%s200 + $0x88] sm:$0xff]
        %v298 = vld [vmem:[%s200 + $0x90] sm:$0xff]
        %v299 = vld [vmem:[%s200 + $0x98] sm:$0xff]
        %v300 = vld [vmem:[%s200 + $0xa0] sm:$0xff]
        %v301 = vld [vmem:[%s200 + $0xa8] sm:$0xff]
        %v302 = vld [vmem:[%s200 + $0xb0] sm:$0xff]
        %v303 = vld [vmem:[%s200 + $0xb8] sm:$0xff]
        %v304 = vld [vmem:[%s200 + $0xc0] sm:$0xff]
        %v305 = vld [vmem:[%s200 + $0xc8] sm:$0xff]
        %v306 = vld [vmem:[%s200 + $0xd0] sm:$0xff]
        %v307 = vld [vmem:[%s200 + $0xd8] sm:$0xff]
        %v308 = vld [vmem:[%s200 + $0xe0] sm:$0xff]
        %v309 = vld [vmem:[%s200 + $0xe8] sm:$0xff]
        %v310 = vld [vmem:[%s200 + $0xf0] sm:$0xff]
        %v311 = vld [vmem:[%s200 + $0xf8] sm:$0xff]
        %v312 = vld [vmem:[%s200 + $0x100] sm:$0xff]
        %v313 = vld [vmem:[%s200 + $0x108] sm:$0xff]
        %v314 = vld [vmem:[%s200 + $0x110] sm:$0xff]
        %v315 = vld [vmem:[%s200 + $0x118] sm:$0xff]
        %v316 = vld [vmem:[%s200 + $0x120] sm:$0xff]
        %v317 = vld [vmem:[%s200 + $0x128] sm:$0xff]
        %v318 = vld [vmem:[%s200 + $0x130] sm:$0xff]
        %v319 = vld [vmem:[%s200 + $0x138] sm:$0xff]
        %v320 = vld [vmem:[%s200 + $0x140] sm:$0xff]
        %v321 = vld [vmem:[%s200 + $0x148] sm:$0xff]
        %v322 = vld [vmem:[%s200 + $0x150] sm:$0xff]
        %v323 = vld [vmem:[%s200 + $0x158] sm:$0xff]
        %v324 = vld [vmem:[%s200 + $0x160] sm:$0xff]
        %v325 = vld [vmem:[%s200 + $0x168] sm:$0xff]
        %v326 = vld [vmem:[%s200 + $0x170] sm:$0xff]
        %v327 = vld [vmem:[%s200 + $0x178] sm:$0xff]
        %v328 = vld [vmem:[%s171] sm:$0xff]
        %v329 = vld [vmem:[%s171 + $0x8] sm:$0xff]
        %v330 = vld [vmem:[%s171 + $0x10] sm:$0xff]
        %v331 = vld [vmem:[%s171 + $0x18] sm:$0xff]
        %v332 = vld [vmem:[%s171 + $0x20] sm:$0xff]
        %v333 = vld [vmem:[%s171 + $0x28] sm:$0xff]
        %v334 = vld [vmem:[%s171 + $0x30] sm:$0xff]
        %v335 = vld [vmem:[%s171 + $0x38] sm:$0xff]
        %v336 = vld [vmem:[%s171 + $0x40] sm:$0xff]
        %v337 = vld [vmem:[%s171 + $0x48] sm:$0xff]
        %v338 = vld [vmem:[%s171 + $0x50] sm:$0xff]
        %v339 = vld [vmem:[%s171 + $0x58] sm:$0xff]
        %v340 = vld [vmem:[%s171 + $0x60] sm:$0xff]
        %v341 = vld [vmem:[%s171 + $0x68] sm:$0xff]
        %v342 = vld [vmem:[%s171 + $0x70] sm:$0xff]
        %v343 = vld [vmem:[%s171 + $0x78] sm:$0xff]
        %v344 = vld [vmem:[%s171 + $0x80] sm:$0xff]
        %v345 = vld [vmem:[%s171 + $0x88] sm:$0xff]
        %v346 = vld [vmem:[%s171 + $0x90] sm:$0xff]
        %v347 = vld [vmem:[%s171 + $0x98] sm:$0xff]
        %v348 = vld [vmem:[%s171 + $0xa0] sm:$0xff]
        %v349 = vld [vmem:[%s171 + $0xa8] sm:$0xff]
        %v350 = vld [vmem:[%s171 + $0xb0] sm:$0xff]
        %v351 = vld [vmem:[%s171 + $0xb8] sm:$0xff]
        %v352 = vld [vmem:[%s171 + $0xc0] sm:$0xff]
        %v353 = vld [vmem:[%s171 + $0xc8] sm:$0xff]
        %v354 = vld [vmem:[%s171 + $0xd0] sm:$0xff]
        %v355 = vld [vmem:[%s171 + $0xd8] sm:$0xff]
        %v356 = vld [vmem:[%s171 + $0xe0] sm:$0xff]
        %v357 = vld [vmem:[%s171 + $0xe8] sm:$0xff]
        %v358 = vld [vmem:[%s171 + $0xf0] sm:$0xff]
        %v359 = vld [vmem:[%s171 + $0xf8] sm:$0xff]
        %v360 = vld [vmem:[%s171 + $0x100] sm:$0xff]
        %v361 = vld [vmem:[%s171 + $0x108] sm:$0xff]
        %v362 = vld [vmem:[%s171 + $0x110] sm:$0xff]
        %v363 = vld [vmem:[%s171 + $0x118] sm:$0xff]
        %v364 = vld [vmem:[%s171 + $0x120] sm:$0xff]
        %v365 = vld [vmem:[%s171 + $0x128] sm:$0xff]
        %v366 = vld [vmem:[%s171 + $0x130] sm:$0xff]
        %v367 = vld [vmem:[%s171 + $0x138] sm:$0xff]
        %v368 = vld [vmem:[%s171 + $0x140] sm:$0xff]
        %v369 = vld [vmem:[%s171 + $0x148] sm:$0xff]
        %v370 = vld [vmem:[%s171 + $0x150] sm:$0xff]
        %v371 = vld [vmem:[%s171 + $0x158] sm:$0xff]
        %v372 = vld [vmem:[%s171 + $0x160] sm:$0xff]
        %v373 = vld [vmem:[%s171 + $0x168] sm:$0xff]
        %v374 = vld [vmem:[%s171 + $0x170] sm:$0xff]
        %v375 = vld [vmem:[%s171 + $0x178] sm:$0xff]
        %v376 = vld [vmem:[%s171 + $0x180] sm:$0xff]
        %v377 = vld [vmem:[%s171 + $0x188] sm:$0xff]
        %v378 = vld [vmem:[%s171 + $0x190] sm:$0xff]
        %v379 = vld [vmem:[%s171 + $0x198] sm:$0xff]
        %v380 = vld [vmem:[%s171 + $0x1a0] sm:$0xff]
        %v381 = vld [vmem:[%s171 + $0x1a8] sm:$0xff]
        %v382 = vld [vmem:[%s171 + $0x1b0] sm:$0xff]
        %v383 = vld [vmem:[%s171 + $0x1b8] sm:$0xff]
        %v384 = vld [vmem:[%s171 + $0x1c0] sm:$0xff]
        %v385 = vld [vmem:[%s171 + $0x1c8] sm:$0xff]
        %v386 = vld [vmem:[%s171 + $0x1d0] sm:$0xff]
        %v387 = vld [vmem:[%s171 + $0x1d8] sm:$0xff]
        %v388 = vld [vmem:[%s171 + $0x1e0] sm:$0xff]
        %v389 = vld [vmem:[%s171 + $0x1e8] sm:$0xff]
        %v390 = vld [vmem:[%s171 + $0x1f0] sm:$0xff]
        %v391 = vld [vmem:[%s171 + $0x1f8] sm:$0xff]
        %v392 = vld [vmem:[%s171 + $0x200] sm:$0xff]
        %v393 = vld [vmem:[%s171 + $0x208] sm:$0xff]
        %v394 = vld [vmem:[%s171 + $0x210] sm:$0xff]
        %v395 = vld [vmem:[%s171 + $0x218] sm:$0xff]
        %v396 = vld [vmem:[%s171 + $0x220] sm:$0xff]
        %v397 = vld [vmem:[%s171 + $0x228] sm:$0xff]
        %v398 = vld [vmem:[%s171 + $0x230] sm:$0xff]
        %v399 = vld [vmem:[%s171 + $0x238] sm:$0xff]
        %v400 = vld [vmem:[%s171 + $0x240] sm:$0xff]
        %v401 = vld [vmem:[%s171 + $0x248] sm:$0xff]
        %v402 = vld [vmem:[%s171 + $0x250] sm:$0xff]
        %v403 = vld [vmem:[%s171 + $0x258] sm:$0xff]
        %v404 = vld [vmem:[%s171 + $0x260] sm:$0xff]
        %v405 = vld [vmem:[%s171 + $0x268] sm:$0xff]
        %v406 = vld [vmem:[%s171 + $0x270] sm:$0xff]
        %v407 = vld [vmem:[%s171 + $0x278] sm:$0xff]
        %v408 = vld [vmem:[%s171 + $0x280] sm:$0xff]
        %v409 = vld [vmem:[%s171 + $0x288] sm:$0xff]
        %v410 = vld [vmem:[%s171 + $0x290] sm:$0xff]
        %v411 = vld [vmem:[%s171 + $0x298] sm:$0xff]
        %v412 = vld [vmem:[%s171 + $0x2a0] sm:$0xff]
        %v413 = vld [vmem:[%s171 + $0x2a8] sm:$0xff]
        %v414 = vld [vmem:[%s171 + $0x2b0] sm:$0xff]
        %v415 = vld [vmem:[%s171 + $0x2b8] sm:$0xff]
        %v416 = vld [vmem:[%s171 + $0x2c0] sm:$0xff]
        %v417 = vld [vmem:[%s171 + $0x2c8] sm:$0xff]
        %v418 = vld [vmem:[%s171 + $0x2d0] sm:$0xff]
        %v419 = vld [vmem:[%s171 + $0x2d8] sm:$0xff]
        %v420 = vld [vmem:[%s171 + $0x2e0] sm:$0xff]
        %v421 = vld [vmem:[%s171 + $0x2e8] sm:$0xff]
        %v422 = vld [vmem:[%s171 + $0x2f0] sm:$0xff]
        %v423 = vld [vmem:[%s171 + $0x2f8] sm:$0xff]
        %v424 = vld [vmem:[%s171 + $0x300] sm:$0xff]
        %v425 = vld [vmem:[%s171 + $0x308] sm:$0xff]
        %v426 = vld [vmem:[%s171 + $0x310] sm:$0xff]
        %v427 = vld [vmem:[%s171 + $0x318] sm:$0xff]
        %v428 = vld [vmem:[%s171 + $0x320] sm:$0xff]
        %v429 = vld [vmem:[%s171 + $0x328] sm:$0xff]
        %v430 = vld [vmem:[%s171 + $0x330] sm:$0xff]
        %v431 = vld [vmem:[%s171 + $0x338] sm:$0xff]
        %v432 = vld [vmem:[%s171 + $0x340] sm:$0xff]
        %v433 = vld [vmem:[%s171 + $0x348] sm:$0xff]
        %v434 = vld [vmem:[%s171 + $0x350] sm:$0xff]
        %v435 = vld [vmem:[%s171 + $0x358] sm:$0xff]
        %v436 = vld [vmem:[%s171 + $0x360] sm:$0xff]
        %v437 = vld [vmem:[%s171 + $0x368] sm:$0xff]
        %v438 = vld [vmem:[%s171 + $0x370] sm:$0xff]
        %v439 = vld [vmem:[%s171 + $0x378] sm:$0xff]
        %v440 = vld [vmem:[%s171 + $0x380] sm:$0xff]
        %v441 = vld [vmem:[%s171 + $0x388] sm:$0xff]
        %v442 = vld [vmem:[%s171 + $0x390] sm:$0xff]
        %v443 = vld [vmem:[%s171 + $0x398] sm:$0xff]
        %v444 = vld [vmem:[%s171 + $0x3a0] sm:$0xff]
        %v445 = vld [vmem:[%s171 + $0x3a8] sm:$0xff]
        %v446 = vld [vmem:[%s171 + $0x3b0] sm:$0xff]
        %v447 = vld [vmem:[%s171 + $0x3b8] sm:$0xff]
        %v448 = vld [vmem:[%s171 + $0x3c0] sm:$0xff]
        %v449 = vld [vmem:[%s171 + $0x3c8] sm:$0xff]
        %v450 = vld [vmem:[%s171 + $0x3d0] sm:$0xff]
        %v451 = vld [vmem:[%s171 + $0x3d8] sm:$0xff]
        %v452 = vld [vmem:[%s171 + $0x3e0] sm:$0xff]
        %v453 = vld [vmem:[%s171 + $0x3e8] sm:$0xff]
        %v454 = vld [vmem:[%s171 + $0x3f0] sm:$0xff]
        %v455 = vld [vmem:[%s171 + $0x3f8] sm:$0xff]
        %v456 = vld [vmem:[%s171 + $0x400] sm:$0xff]
        %v457 = vld [vmem:[%s171 + $0x408] sm:$0xff]
        %v458 = vld [vmem:[%s171 + $0x410] sm:$0xff]
        %v459 = vld [vmem:[%s171 + $0x418] sm:$0xff]
        %v460 = vld [vmem:[%s171 + $0x420] sm:$0xff]
        %v461 = vld [vmem:[%s171 + $0x428] sm:$0xff]
        %v462 = vld [vmem:[%s171 + $0x430] sm:$0xff]
        %v463 = vld [vmem:[%s171 + $0x438] sm:$0xff]
        %v464 = vld [vmem:[%s171 + $0x440] sm:$0xff]
        %v465 = vld [vmem:[%s171 + $0x448] sm:$0xff]
        %v466 = vld [vmem:[%s171 + $0x450] sm:$0xff]
        %v467 = vld [vmem:[%s171 + $0x458] sm:$0xff]
        %v468 = vld [vmem:[%s171 + $0x460] sm:$0xff]
        %v469 = vld [vmem:[%s171 + $0x468] sm:$0xff]
        %v470 = vld [vmem:[%s171 + $0x470] sm:$0xff]
        %v471 = vld [vmem:[%s171 + $0x478] sm:$0xff]
        %v472 = vld [vmem:[%s171 + $0x480] sm:$0xff]
        %v473 = vld [vmem:[%s171 + $0x488] sm:$0xff]
        %v474 = vld [vmem:[%s171 + $0x490] sm:$0xff]
        %v475 = vld [vmem:[%s171 + $0x498] sm:$0xff]
        %v476 = vld [vmem:[%s171 + $0x4a0] sm:$0xff]
        %v477 = vld [vmem:[%s171 + $0x4a8] sm:$0xff]
        %v478 = vld [vmem:[%s171 + $0x4b0] sm:$0xff]
        %v479 = vld [vmem:[%s171 + $0x4b8] sm:$0xff]
        %v480 = vld [vmem:[%s171 + $0x4c0] sm:$0xff]
        %v481 = vld [vmem:[%s171 + $0x4c8] sm:$0xff]
        %v482 = vld [vmem:[%s171 + $0x4d0] sm:$0xff]
        %v483 = vld [vmem:[%s171 + $0x4d8] sm:$0xff]
        %v484 = vld [vmem:[%s171 + $0x4e0] sm:$0xff]
        %v485 = vld [vmem:[%s171 + $0x4e8] sm:$0xff]
        %v486 = vld [vmem:[%s171 + $0x4f0] sm:$0xff]
        %v487 = vld [vmem:[%s171 + $0x4f8] sm:$0xff]
        %v488 = vld [vmem:[%s171 + $0x500] sm:$0xff]
        %v489 = vld [vmem:[%s171 + $0x508] sm:$0xff]
        %v490 = vld [vmem:[%s171 + $0x510] sm:$0xff]
        %v491 = vld [vmem:[%s171 + $0x518] sm:$0xff]
        %v492 = vld [vmem:[%s171 + $0x520] sm:$0xff]
        %v493 = vld [vmem:[%s171 + $0x528] sm:$0x1]
        %v494 = vld [vmem:[%s171 + $0x530] sm:$0x1]
        %v495 = vld [vmem:[%s171 + $0x538] sm:$0x1]
        %vm496 = vcmask 465920
        %v498 = vsel %vm496, %v283, 0
        %v501 = vsel %vm496, %v287, 0
        %v504 = vsel %vm496, %v291, 0
        %v507 = vsel %vm496, %v295, 0
        %v510 = vsel %vm496, %v299, 0
        %v513 = vsel %vm496, %v303, 0
        %v516 = vsel %vm496, %v307, 0
        %v519 = vsel %vm496, %v311, 0
        %v522 = vsel %vm496, %v315, 0
        %v525 = vsel %vm496, %v319, 0
        %v528 = vsel %vm496, %v323, 0
        %v531 = vsel %vm496, %v327, 0
        %vm533 = vcmask 1040384
        %v535 = vsel %vm533, %v493, 0
        %v538 = vsel %vm533, %v494, 0
        %v541 = vsel %vm533, %v495, 0
        %543 = vmatprep.subr.mxu0 %v329
        %544 = vmatpush1.msra.mxu0 %v328
        %545 = vmatprep.subr.mxu0 %v332
        %546 = vmatpush1.msra.mxu0 %v331
        %547 = vmatprep.subr.mxu0 %v335
        %548 = vmatpush1.msra.mxu0 %v334
        %549 = vmatprep.subr.mxu0 %v338
        %550 = vmatpush1.msra.mxu0 %v337
        %551 = vmatprep.subr.mxu0 %v341
        %552 = vmatpush1.msra.mxu0 %v340
        %553 = vmatprep.subr.mxu0 %v344
        %554 = vmatpush1.msra.mxu0 %v343
        %555 = vmatprep.subr.mxu0 %v347
        %556 = vmatpush1.msra.mxu0 %v346
        %557 = vmatprep.subr.mxu0 %v350
        %558 = vmatpush1.msra.mxu0 %v349
        %559 = vmatprep.subr.mxu0 %v353
        %560 = vmatpush1.msra.mxu0 %v352
        %561 = vmatprep.subr.mxu0 %v356
        %562 = vmatpush1.msra.mxu0 %v355
        %563 = vmatprep.subr.mxu0 %v359
        %564 = vmatpush1.msra.mxu0 %v358
        %565 = vmatprep.subr.mxu0 %v362
        %566 = vmatpush1.msra.mxu0 %v361
        %567 = vmatprep.subr.mxu0 %v365
        %568 = vmatpush1.msra.mxu0 %v364
        %569 = vmatprep.subr.mxu0 %v368
        %570 = vmatpush1.msra.mxu0 %v367
        %571 = vmatprep.subr.mxu0 %v371
        %572 = vmatpush1.msra.mxu0 %v370
        %573 = vmatprep.subr.mxu0 %v374
        %574 = vmatpush1.msra.mxu0 %v373
        %575 = vmatprep.subr.mxu0 %v377
        %576 = vmatpush1.msra.mxu0 %v376
        %577 = vmatprep.subr.mxu0 %v380
        %578 = vmatpush1.msra.mxu0 %v379
        %579 = vmatprep.subr.mxu0 %v383
        %580 = vmatpush1.msra.mxu0 %v382
        %581 = vmatprep.subr.mxu0 %v386
        %582 = vmatpush1.msra.mxu0 %v385
        %583 = vmatprep.subr.mxu0 %v389
        %584 = vmatpush1.msra.mxu0 %v388
        %585 = vmatprep.subr.mxu0 %v392
        %586 = vmatpush1.msra.mxu0 %v391
        %587 = vmatprep.subr.mxu0 %v395
        %588 = vmatpush1.msra.mxu0 %v394
        %589 = vmatprep.subr.mxu0 %v398
        %590 = vmatpush1.msra.mxu0 %v397
        %591 = vmatprep.subr.mxu0 %v401
        %592 = vmatpush1.msra.mxu0 %v400
        %593 = vmatprep.subr.mxu0 %v404
        %594 = vmatpush1.msra.mxu0 %v403
        %595 = vmatprep.subr.mxu0 %v407
        %596 = vmatpush1.msra.mxu0 %v406
        %597 = vmatprep.subr.mxu0 %v410
        %598 = vmatpush1.msra.mxu0 %v409
        %599 = vmatprep.subr.mxu0 %v413
        %600 = vmatpush1.msra.mxu0 %v412
        %601 = vmatprep.subr.mxu0 %v416
        %602 = vmatpush1.msra.mxu0 %v415
        %603 = vmatprep.subr.mxu0 %v419
        %604 = vmatpush1.msra.mxu0 %v418
        %605 = vmatprep.subr.mxu0 %v422
        %606 = vmatpush1.msra.mxu0 %v421
        %607 = vmatprep.mubr.f32.mxu0 %v281
        %608 = vmatmul.mubr.f32.gmra.mrb[0].mxu0 %v280
        %v609 = vpop.f32.mrb[0].mxu0
        %v610 = vadd.f32 0.0, %v609
        %v611 = vpop.f32.mrb[0].mxu0
        %v612 = vadd.f32 0.0, %v611
        %613 = vmatprep.mubr.f32.mxu0 %v285
        %614 = vmatmul.mubr.f32.gmra.mrb[0].mxu0 %v284
        %v615 = vpop.f32.mrb[0].mxu0
        %v616 = vadd.f32 0.0, %v615
        %v617 = vpop.f32.mrb[0].mxu0
        %v618 = vadd.f32 0.0, %v617
        %619 = vmatprep.mubr.f32.mxu0 %v289
        %620 = vmatmul.mubr.f32.gmra.mrb[0].mxu0 %v288
        %v621 = vpop.f32.mrb[0].mxu0
        %v622 = vadd.f32 0.0, %v621
        %v623 = vpop.f32.mrb[0].mxu0
        %v624 = vadd.f32 0.0, %v623
        %625 = vmatprep.mubr.f32.mxu0 %v293
        %626 = vmatmul.mubr.f32.gmra.mrb[0].mxu0 %v292
        %v627 = vpop.f32.mrb[0].mxu0
        %v628 = vadd.f32 0.0, %v627
        %v629 = vpop.f32.mrb[0].mxu0
        %v630 = vadd.f32 0.0, %v629
        %631 = vmatprep.mubr.f32.mxu0 %v297
        %632 = vmatmul.mubr.f32.gmra.mrb[0].mxu0 %v296
        %v633 = vpop.f32.mrb[0].mxu0
        %v634 = vadd.f32 0.0, %v633
        %v635 = vpop.f32.mrb[0].mxu0
        %v636 = vadd.f32 0.0, %v635
        %637 = vmatprep.mubr.f32.mxu0 %v301
        %638 = vmatmul.mubr.f32.gmra.mrb[0].mxu0 %v300
        %v639 = vpop.f32.mrb[0].mxu0
        %v640 = vadd.f32 0.0, %v639
        %v641 = vpop.f32.mrb[0].mxu0
        %v642 = vadd.f32 0.0, %v641
        %643 = vmatprep.mubr.f32.mxu0 %v305
        %644 = vmatmul.mubr.f32.gmra.mrb[0].mxu0 %v304
        %v645 = vpop.f32.mrb[0].mxu0
        %v646 = vadd.f32 0.0, %v645
        %v647 = vpop.f32.mrb[0].mxu0
        %v648 = vadd.f32 0.0, %v647
        %649 = vmatprep.mubr.f32.mxu0 %v309
        %650 = vmatmul.mubr.f32.gmra.mrb[0].mxu0 %v308
        %v651 = vpop.f32.mrb[0].mxu0
        %v652 = vadd.f32 0.0, %v651
        %v653 = vpop.f32.mrb[0].mxu0
        %v654 = vadd.f32 0.0, %v653
        %655 = vmatprep.mubr.f32.mxu0 %v313
        %656 = vmatmul.mubr.f32.gmra.mrb[0].mxu0 %v312
        %v657 = vpop.f32.mrb[0].mxu0
        %v658 = vadd.f32 0.0, %v657
        %v659 = vpop.f32.mrb[0].mxu0
        %v660 = vadd.f32 0.0, %v659
        %661 = vmatprep.mubr.f32.mxu0 %v317
        %662 = vmatmul.mubr.f32.gmra.mrb[0].mxu0 %v316
        %v663 = vpop.f32.mrb[0].mxu0
        %v664 = vadd.f32 0.0, %v663
        %v665 = vpop.f32.mrb[0].mxu0
        %v666 = vadd.f32 0.0, %v665
        %667 = vmatprep.mubr.f32.mxu0 %v321
        %668 = vmatmul.mubr.f32.gmra.mrb[0].mxu0 %v320
        %v669 = vpop.f32.mrb[0].mxu0
        %v670 = vadd.f32 0.0, %v669
        %v671 = vpop.f32.mrb[0].mxu0
        %v672 = vadd.f32 0.0, %v671
        %673 = vmatprep.mubr.f32.mxu0 %v325
        %674 = vmatmul.mubr.f32.gmra.mrb[0].mxu0 %v324
        %v675 = vpop.f32.mrb[0].mxu0
        %v676 = vadd.f32 0.0, %v675
        %v677 = vpop.f32.mrb[0].mxu0
        %v678 = vadd.f32 0.0, %v677
        %679 = vdwg.mxu0
        %680 = vmatprep.subr.mxu0 %v425
        %681 = vmatpush1.msra.mxu0 %v424
        %682 = vmatprep.subr.mxu0 %v428
        %683 = vmatpush1.msra.mxu0 %v427
        %684 = vmatprep.subr.mxu0 %v431
        %685 = vmatpush1.msra.mxu0 %v430
        %686 = vmatprep.subr.mxu0 %v434
        %687 = vmatpush1.msra.mxu0 %v433
        %688 = vmatprep.subr.mxu0 %v437
        %689 = vmatpush1.msra.mxu0 %v436
        %690 = vmatprep.subr.mxu0 %v440
        %691 = vmatpush1.msra.mxu0 %v439
        %692 = vmatprep.subr.mxu0 %v443
        %693 = vmatpush1.msra.mxu0 %v442
        %694 = vmatprep.subr.mxu0 %v446
        %695 = vmatpush1.msra.mxu0 %v445
        %696 = vmatprep.subr.mxu0 %v449
        %697 = vmatpush1.msra.mxu0 %v448
        %698 = vmatprep.subr.mxu0 %v452
        %699 = vmatpush1.msra.mxu0 %v451
        %700 = vmatprep.subr.mxu0 %v455
        %701 = vmatpush1.msra.mxu0 %v454
        %702 = vmatprep.subr.mxu0 %v458
        %703 = vmatpush1.msra.mxu0 %v457
        %704 = vmatprep.subr.mxu0 %v461
        %705 = vmatpush1.msra.mxu0 %v460
        %706 = vmatprep.subr.mxu0 %v464
        %707 = vmatpush1.msra.mxu0 %v463
        %708 = vmatprep.subr.mxu0 %v467
        %709 = vmatpush1.msra.mxu0 %v466
        %710 = vmatprep.subr.mxu0 %v470
        %711 = vmatpush1.msra.mxu0 %v469
        %712 = vmatprep.subr.mxu0 %v473
        %713 = vmatpush1.msra.mxu0 %v472
        %714 = vmatprep.subr.mxu0 %v476
        %715 = vmatpush1.msra.mxu0 %v475
        %716 = vmatprep.subr.mxu0 %v479
        %717 = vmatpush1.msra.mxu0 %v478
        %718 = vmatprep.subr.mxu0 %v482
        %719 = vmatpush1.msra.mxu0 %v481
        %720 = vmatprep.subr.mxu0 %v485
        %721 = vmatpush1.msra.mxu0 %v484
        %722 = vmatprep.subr.mxu0 %v488
        %723 = vmatpush1.msra.mxu0 %v487
        %724 = vmatprep.subr.mxu0 %v491
        %725 = vmatpush1.msra.mxu0 %v490
        %726 = vmatprep.subr.mxu0 %v538
        %727 = vmatpush1.msra.mxu0 %v535
        %728 = vmatprep.subr.mxu0 0.0
        %729 = vmatpush1.msra.mxu0 0.0
        %730 = vmatprep.subr.mxu0 0.0
        %731 = vmatpush1.msra.mxu0 0.0
        %732 = vmatprep.subr.mxu0 0.0
        %733 = vmatpush1.msra.mxu0 0.0
        %734 = vmatprep.subr.mxu0 0.0
        %735 = vmatpush1.msra.mxu0 0.0
        %736 = vmatprep.subr.mxu0 0.0
        %737 = vmatpush1.msra.mxu0 0.0
        %738 = vmatprep.subr.mxu0 0.0
        %739 = vmatpush1.msra.mxu0 0.0
        %740 = vmatprep.subr.mxu0 0.0
        %741 = vmatpush1.msra.mxu0 0.0
        %742 = vmatprep.subr.mxu0 0.0
        %743 = vmatpush1.msra.mxu0 0.0
        %744 = vmatprep.mubr.f32.mxu0 %v498
        %745 = vmatmul.mubr.f32.gmra.mrb[0].mxu0 %v282
        %v746 = vpop.f32.mrb[0].mxu0
        %v747 = vadd.f32 %v610, %v746
        %v748 = vpop.f32.mrb[0].mxu0
        %v749 = vadd.f32 %v612, %v748
        %750 = vmatprep.mubr.f32.mxu0 %v501
        %751 = vmatmul.mubr.f32.gmra.mrb[0].mxu0 %v286
        %v752 = vpop.f32.mrb[0].mxu0
        %v753 = vadd.f32 %v616, %v752
        %v754 = vpop.f32.mrb[0].mxu0
        %v755 = vadd.f32 %v618, %v754
        %756 = vmatprep.mubr.f32.mxu0 %v504
        %757 = vmatmul.mubr.f32.gmra.mrb[0].mxu0 %v290
        %v758 = vpop.f32.mrb[0].mxu0
        %v759 = vadd.f32 %v622, %v758
        %v760 = vpop.f32.mrb[0].mxu0
        %v761 = vadd.f32 %v624, %v760
        %762 = vmatprep.mubr.f32.mxu0 %v507
        %763 = vmatmul.mubr.f32.gmra.mrb[0].mxu0 %v294
        %v764 = vpop.f32.mrb[0].mxu0
        %v765 = vadd.f32 %v628, %v764
        %v766 = vpop.f32.mrb[0].mxu0
        %v767 = vadd.f32 %v630, %v766
        %768 = vmatprep.mubr.f32.mxu0 %v510
        %769 = vmatmul.mubr.f32.gmra.mrb[0].mxu0 %v298
        %v770 = vpop.f32.mrb[0].mxu0
        %v771 = vadd.f32 %v634, %v770
        %v772 = vpop.f32.mrb[0].mxu0
        %v773 = vadd.f32 %v636, %v772
        %774 = vmatprep.mubr.f32.mxu0 %v513
        %775 = vmatmul.mubr.f32.gmra.mrb[0].mxu0 %v302
        %v776 = vpop.f32.mrb[0].mxu0
        %v777 = vadd.f32 %v640, %v776
        %v778 = vpop.f32.mrb[0].mxu0
        %v779 = vadd.f32 %v642, %v778
        %780 = vmatprep.mubr.f32.mxu0 %v516
        %781 = vmatmul.mubr.f32.gmra.mrb[0].mxu0 %v306
        %v782 = vpop.f32.mrb[0].mxu0
        %v783 = vadd.f32 %v646, %v782
        %v784 = vpop.f32.mrb[0].mxu0
        %v785 = vadd.f32 %v648, %v784
        %786 = vmatprep.mubr.f32.mxu0 %v519
        %787 = vmatmul.mubr.f32.gmra.mrb[0].mxu0 %v310
        %v788 = vpop.f32.mrb[0].mxu0
        %v789 = vadd.f32 %v652, %v788
        %v790 = vpop.f32.mrb[0].mxu0
        %v791 = vadd.f32 %v654, %v790
        %792 = vmatprep.mubr.f32.mxu0 %v522
        %793 = vmatmul.mubr.f32.gmra.mrb[0].mxu0 %v314
        %v794 = vpop.f32.mrb[0].mxu0
        %v795 = vadd.f32 %v658, %v794
        %v796 = vpop.f32.mrb[0].mxu0
        %v797 = vadd.f32 %v660, %v796
        %798 = vmatprep.mubr.f32.mxu0 %v525
        %799 = vmatmul.mubr.f32.gmra.mrb[0].mxu0 %v318
        %v800 = vpop.f32.mrb[0].mxu0
        %v801 = vadd.f32 %v664, %v800
        %v802 = vpop.f32.mrb[0].mxu0
        %v803 = vadd.f32 %v666, %v802
        %804 = vmatprep.mubr.f32.mxu0 %v528
        %805 = vmatmul.mubr.f32.gmra.mrb[0].mxu0 %v322
        %v806 = vpop.f32.mrb[0].mxu0
        %v807 = vadd.f32 %v670, %v806
        %v808 = vpop.f32.mrb[0].mxu0
        %v809 = vadd.f32 %v672, %v808
        %810 = vmatprep.mubr.f32.mxu0 %v531
        %811 = vmatmul.mubr.f32.gmra.mrb[0].mxu0 %v326
        %v812 = vpop.f32.mrb[0].mxu0
        %v813 = vadd.f32 %v676, %v812
        %v814 = vpop.f32.mrb[0].mxu0
        %v815 = vadd.f32 %v678, %v814
        %816 = vdwg.mxu0
        %817 = vmatprep.subr.mxu0 0.0
        %818 = vmatpush1.msra.mxu0 %v330
        %819 = vmatprep.subr.mxu0 0.0
        %820 = vmatpush1.msra.mxu0 %v333
        %821 = vmatprep.subr.mxu0 0.0
        %822 = vmatpush1.msra.mxu0 %v336
        %823 = vmatprep.subr.mxu0 0.0
        %824 = vmatpush1.msra.mxu0 %v339
        %825 = vmatprep.subr.mxu0 0.0
        %826 = vmatpush1.msra.mxu0 %v342
        %827 = vmatprep.subr.mxu0 0.0
        %828 = vmatpush1.msra.mxu0 %v345
        %829 = vmatprep.subr.mxu0 0.0
        %830 = vmatpush1.msra.mxu0 %v348
        %831 = vmatprep.subr.mxu0 0.0
        %832 = vmatpush1.msra.mxu0 %v351
        %833 = vmatprep.subr.mxu0 0.0
        %834 = vmatpush1.msra.mxu0 %v354
        %835 = vmatprep.subr.mxu0 0.0
        %836 = vmatpush1.msra.mxu0 %v357
        %837 = vmatprep.subr.mxu0 0.0
        %838 = vmatpush1.msra.mxu0 %v360
        %839 = vmatprep.subr.mxu0 0.0
        %840 = vmatpush1.msra.mxu0 %v363
        %841 = vmatprep.subr.mxu0 0.0
        %842 = vmatpush1.msra.mxu0 %v366
        %843 = vmatprep.subr.mxu0 0.0
        %844 = vmatpush1.msra.mxu0 %v369
        %845 = vmatprep.subr.mxu0 0.0
        %846 = vmatpush1.msra.mxu0 %v372
        %847 = vmatprep.subr.mxu0 0.0
        %848 = vmatpush1.msra.mxu0 %v375
        %849 = vmatprep.subr.mxu0 0.0
        %850 = vmatpush1.msra.mxu0 %v378
        %851 = vmatprep.subr.mxu0 0.0
        %852 = vmatpush1.msra.mxu0 %v381
        %853 = vmatprep.subr.mxu0 0.0
        %854 = vmatpush1.msra.mxu0 %v384
        %855 = vmatprep.subr.mxu0 0.0
        %856 = vmatpush1.msra.mxu0 %v387
        %857 = vmatprep.subr.mxu0 0.0
        %858 = vmatpush1.msra.mxu0 %v390
        %859 = vmatprep.subr.mxu0 0.0
        %860 = vmatpush1.msra.mxu0 %v393
        %861 = vmatprep.subr.mxu0 0.0
        %862 = vmatpush1.msra.mxu0 %v396
        %863 = vmatprep.subr.mxu0 0.0
        %864 = vmatpush1.msra.mxu0 %v399
        %865 = vmatprep.subr.mxu0 0.0
        %866 = vmatpush1.msra.mxu0 %v402
        %867 = vmatprep.subr.mxu0 0.0
        %868 = vmatpush1.msra.mxu0 %v405
        %869 = vmatprep.subr.mxu0 0.0
        %870 = vmatpush1.msra.mxu0 %v408
        %871 = vmatprep.subr.mxu0 0.0
        %872 = vmatpush1.msra.mxu0 %v411
        %873 = vmatprep.subr.mxu0 0.0
        %874 = vmatpush1.msra.mxu0 %v414
        %875 = vmatprep.subr.mxu0 0.0
        %876 = vmatpush1.msra.mxu0 %v417
        %877 = vmatprep.subr.mxu0 0.0
        %878 = vmatpush1.msra.mxu0 %v420
        %879 = vmatprep.subr.mxu0 0.0
        %880 = vmatpush1.msra.mxu0 %v423
        %881 = vmatprep.mubr.f32.mxu0 %v281
        %882 = vmatmul.mubr.f32.gmra.mrb[0].mxu0 %v280
        %v883 = vpop.f32.mrb[0].mxu0
        %v884 = vadd.f32 0.0, %v883
        %v885 = vpop.f32.mrb[0].mxu0
        %886 = vmatprep.mubr.f32.mxu0 %v285
        %887 = vmatmul.mubr.f32.gmra.mrb[0].mxu0 %v284
        %v888 = vpop.f32.mrb[0].mxu0
        %v889 = vadd.f32 0.0, %v888
        %v890 = vpop.f32.mrb[0].mxu0
        %891 = vmatprep.mubr.f32.mxu0 %v289
        %892 = vmatmul.mubr.f32.gmra.mrb[0].mxu0 %v288
        %v893 = vpop.f32.mrb[0].mxu0
        %v894 = vadd.f32 0.0, %v893
        %v895 = vpop.f32.mrb[0].mxu0
        %896 = vmatprep.mubr.f32.mxu0 %v293
        %897 = vmatmul.mubr.f32.gmra.mrb[0].mxu0 %v292
        %v898 = vpop.f32.mrb[0].mxu0
        %v899 = vadd.f32 0.0, %v898
        %v900 = vpop.f32.mrb[0].mxu0
        %901 = vmatprep.mubr.f32.mxu0 %v297
        %902 = vmatmul.mubr.f32.gmra.mrb[0].mxu0 %v296
        %v903 = vpop.f32.mrb[0].mxu0
        %v904 = vadd.f32 0.0, %v903
        %v905 = vpop.f32.mrb[0].mxu0
        %906 = vmatprep.mubr.f32.mxu0 %v301
        %907 = vmatmul.mubr.f32.gmra.mrb[0].mxu0 %v300
        %v908 = vpop.f32.mrb[0].mxu0
        %v909 = vadd.f32 0.0, %v908
        %v910 = vpop.f32.mrb[0].mxu0
        %911 = vmatprep.mubr.f32.mxu0 %v305
        %912 = vmatmul.mubr.f32.gmra.mrb[0].mxu0 %v304
        %v913 = vpop.f32.mrb[0].mxu0
        %v914 = vadd.f32 0.0, %v913
        %v915 = vpop.f32.mrb[0].mxu0
        %916 = vmatprep.mubr.f32.mxu0 %v309
        %917 = vmatmul.mubr.f32.gmra.mrb[0].mxu0 %v308
        %v918 = vpop.f32.mrb[0].mxu0
        %v919 = vadd.f32 0.0, %v918
        %v920 = vpop.f32.mrb[0].mxu0
        %921 = vmatprep.mubr.f32.mxu0 %v313
        %922 = vmatmul.mubr.f32.gmra.mrb[0].mxu0 %v312
        %v923 = vpop.f32.mrb[0].mxu0
        %v924 = vadd.f32 0.0, %v923
        %v925 = vpop.f32.mrb[0].mxu0
        %926 = vmatprep.mubr.f32.mxu0 %v317
        %927 = vmatmul.mubr.f32.gmra.mrb[0].mxu0 %v316
        %v928 = vpop.f32.mrb[0].mxu0
        %v929 = vadd.f32 0.0, %v928
        %v930 = vpop.f32.mrb[0].mxu0
        %931 = vmatprep.mubr.f32.mxu0 %v321
        %932 = vmatmul.mubr.f32.gmra.mrb[0].mxu0 %v320
        %v933 = vpop.f32.mrb[0].mxu0
        %v934 = vadd.f32 0.0, %v933
        %v935 = vpop.f32.mrb[0].mxu0
        %936 = vmatprep.mubr.f32.mxu0 %v325
        %937 = vmatmul.mubr.f32.gmra.mrb[0].mxu0 %v324
        %v938 = vpop.f32.mrb[0].mxu0
        %v939 = vadd.f32 0.0, %v938
        %v940 = vpop.f32.mrb[0].mxu0
        %941 = vdwg.mxu0
        %942 = vmatprep.subr.mxu0 0.0
        %943 = vmatpush1.msra.mxu0 %v426
        %944 = vmatprep.subr.mxu0 0.0
        %945 = vmatpush1.msra.mxu0 %v429
        %946 = vmatprep.subr.mxu0 0.0
        %947 = vmatpush1.msra.mxu0 %v432
        %948 = vmatprep.subr.mxu0 0.0
        %949 = vmatpush1.msra.mxu0 %v435
        %950 = vmatprep.subr.mxu0 0.0
        %951 = vmatpush1.msra.mxu0 %v438
        %952 = vmatprep.subr.mxu0 0.0
        %953 = vmatpush1.msra.mxu0 %v441
        %954 = vmatprep.subr.mxu0 0.0
        %955 = vmatpush1.msra.mxu0 %v444
        %956 = vmatprep.subr.mxu0 0.0
        %957 = vmatpush1.msra.mxu0 %v447
        %958 = vmatprep.subr.mxu0 0.0
        %959 = vmatpush1.msra.mxu0 %v450
        %960 = vmatprep.subr.mxu0 0.0
        %961 = vmatpush1.msra.mxu0 %v453
        %962 = vmatprep.subr.mxu0 0.0
        %963 = vmatpush1.msra.mxu0 %v456
        %964 = vmatprep.subr.mxu0 0.0
        %965 = vmatpush1.msra.mxu0 %v459
        %966 = vmatprep.subr.mxu0 0.0
        %967 = vmatpush1.msra.mxu0 %v462
        %968 = vmatprep.subr.mxu0 0.0
        %969 = vmatpush1.msra.mxu0 %v465
        %970 = vmatprep.subr.mxu0 0.0
        %971 = vmatpush1.msra.mxu0 %v468
        %972 = vmatprep.subr.mxu0 0.0
        %973 = vmatpush1.msra.mxu0 %v471
        %974 = vmatprep.subr.mxu0 0.0
        %975 = vmatpush1.msra.mxu0 %v474
        %976 = vmatprep.subr.mxu0 0.0
        %977 = vmatpush1.msra.mxu0 %v477
        %978 = vmatprep.subr.mxu0 0.0
        %979 = vmatpush1.msra.mxu0 %v480
        %980 = vmatprep.subr.mxu0 0.0
        %981 = vmatpush1.msra.mxu0 %v483
        %982 = vmatprep.subr.mxu0 0.0
        %983 = vmatpush1.msra.mxu0 %v486
        %984 = vmatprep.subr.mxu0 0.0
        %985 = vmatpush1.msra.mxu0 %v489
        %986 = vmatprep.subr.mxu0 0.0
        %987 = vmatpush1.msra.mxu0 %v492
        %988 = vmatprep.subr.mxu0 0.0
        %989 = vmatpush1.msra.mxu0 %v541
        %990 = vmatprep.subr.mxu0 0.0
        %991 = vmatpush1.msra.mxu0 0.0
        %992 = vmatprep.subr.mxu0 0.0
        %993 = vmatpush1.msra.mxu0 0.0
        %994 = vmatprep.subr.mxu0 0.0
        %995 = vmatpush1.msra.mxu0 0.0
        %996 = vmatprep.subr.mxu0 0.0
        %997 = vmatpush1.msra.mxu0 0.0
        %998 = vmatprep.subr.mxu0 0.0
        %999 = vmatpush1.msra.mxu0 0.0
        %1000 = vmatprep.subr.mxu0 0.0
        %1001 = vmatpush1.msra.mxu0 0.0
        %1002 = vmatprep.subr.mxu0 0.0
        %1003 = vmatpush1.msra.mxu0 0.0
        %1004 = vmatprep.subr.mxu0 0.0
        %1005 = vmatpush1.msra.mxu0 0.0
        %1006 = vmatprep.mubr.f32.mxu0 %v498
        %1007 = vmatmul.mubr.f32.gmra.mrb[0].mxu0 %v282
        %v1008 = vpop.f32.mrb[0].mxu0
        %v1009 = vadd.f32 %v884, %v1008
        %v1010 = vpop.f32.mrb[0].mxu0
        %1011 = vmatprep.mubr.f32.mxu0 %v501
        %1012 = vmatmul.mubr.f32.gmra.mrb[0].mxu0 %v286
        %v1013 = vpop.f32.mrb[0].mxu0
        %v1014 = vadd.f32 %v889, %v1013
        %v1015 = vpop.f32.mrb[0].mxu0
        %1016 = vmatprep.mubr.f32.mxu0 %v504
        %1017 = vmatmul.mubr.f32.gmra.mrb[0].mxu0 %v290
        %v1018 = vpop.f32.mrb[0].mxu0
        %v1019 = vadd.f32 %v894, %v1018
        %v1020 = vpop.f32.mrb[0].mxu0
        %1021 = vmatprep.mubr.f32.mxu0 %v507
        %1022 = vmatmul.mubr.f32.gmra.mrb[0].mxu0 %v294
        %v1023 = vpop.f32.mrb[0].mxu0
        %v1024 = vadd.f32 %v899, %v1023
        %v1025 = vpop.f32.mrb[0].mxu0
        %1026 = vmatprep.mubr.f32.mxu0 %v510
        %1027 = vmatmul.mubr.f32.gmra.mrb[0].mxu0 %v298
        %v1028 = vpop.f32.mrb[0].mxu0
        %v1029 = vadd.f32 %v904, %v1028
        %v1030 = vpop.f32.mrb[0].mxu0
        %1031 = vmatprep.mubr.f32.mxu0 %v513
        %1032 = vmatmul.mubr.f32.gmra.mrb[0].mxu0 %v302
        %v1033 = vpop.f32.mrb[0].mxu0
        %v1034 = vadd.f32 %v909, %v1033
        %v1035 = vpop.f32.mrb[0].mxu0
        %1036 = vmatprep.mubr.f32.mxu0 %v516
        %1037 = vmatmul.mubr.f32.gmra.mrb[0].mxu0 %v306
        %v1038 = vpop.f32.mrb[0].mxu0
        %v1039 = vadd.f32 %v914, %v1038
        %v1040 = vpop.f32.mrb[0].mxu0
        %1041 = vmatprep.mubr.f32.mxu0 %v519
        %1042 = vmatmul.mubr.f32.gmra.mrb[0].mxu0 %v310
        %v1043 = vpop.f32.mrb[0].mxu0
        %v1044 = vadd.f32 %v919, %v1043
        %v1045 = vpop.f32.mrb[0].mxu0
        %1046 = vmatprep.mubr.f32.mxu0 %v522
        %1047 = vmatmul.mubr.f32.gmra.mrb[0].mxu0 %v314
        %v1048 = vpop.f32.mrb[0].mxu0
        %v1049 = vadd.f32 %v924, %v1048
        %v1050 = vpop.f32.mrb[0].mxu0
        %1051 = vmatprep.mubr.f32.mxu0 %v525
        %1052 = vmatmul.mubr.f32.gmra.mrb[0].mxu0 %v318
        %v1053 = vpop.f32.mrb[0].mxu0
        %v1054 = vadd.f32 %v929, %v1053
        %v1055 = vpop.f32.mrb[0].mxu0
        %1056 = vmatprep.mubr.f32.mxu0 %v528
        %1057 = vmatmul.mubr.f32.gmra.mrb[0].mxu0 %v322
        %v1058 = vpop.f32.mrb[0].mxu0
        %v1059 = vadd.f32 %v934, %v1058
        %v1060 = vpop.f32.mrb[0].mxu0
        %1061 = vmatprep.mubr.f32.mxu0 %v531
        %1062 = vmatmul.mubr.f32.gmra.mrb[0].mxu0 %v326
        %v1063 = vpop.f32.mrb[0].mxu0
        %v1064 = vadd.f32 %v939, %v1063
        %v1065 = vpop.f32.mrb[0].mxu0
        %1066 = vdwg.mxu0
        %v1067 = vadd.f32 %v244, %v747
        %v1068 = vadd.f32 %v245, %v749
        %v1069 = vadd.f32 %v246, %v1009
        %v1070 = vadd.f32 %v247, %v753
        %v1071 = vadd.f32 %v248, %v755
        %v1072 = vadd.f32 %v249, %v1014
        %v1073 = vadd.f32 %v250, %v759
        %v1074 = vadd.f32 %v251, %v761
        %v1075 = vadd.f32 %v252, %v1019
        %v1076 = vadd.f32 %v253, %v765
        %v1077 = vadd.f32 %v254, %v767
        %v1078 = vadd.f32 %v255, %v1024
        %v1079 = vadd.f32 %v256, %v771
        %v1080 = vadd.f32 %v257, %v773
        %v1081 = vadd.f32 %v258, %v1029
        %v1082 = vadd.f32 %v259, %v777
        %v1083 = vadd.f32 %v260, %v779
        %v1084 = vadd.f32 %v261, %v1034
        %v1085 = vadd.f32 %v262, %v783
        %v1086 = vadd.f32 %v263, %v785
        %v1087 = vadd.f32 %v264, %v1039
        %v1088 = vadd.f32 %v265, %v789
        %v1089 = vadd.f32 %v266, %v791
        %v1090 = vadd.f32 %v267, %v1044
        %v1091 = vadd.f32 %v268, %v795
        %v1092 = vadd.f32 %v269, %v797
        %v1093 = vadd.f32 %v270, %v1049
        %v1094 = vadd.f32 %v271, %v801
        %v1095 = vadd.f32 %v272, %v803
        %v1096 = vadd.f32 %v273, %v1054
        %v1097 = vadd.f32 %v274, %v807
        %v1098 = vadd.f32 %v275, %v809
        %v1099 = vadd.f32 %v276, %v1059
        %v1100 = vadd.f32 %v277, %v813
        %v1101 = vadd.f32 %v278, %v815
        %v1102 = vadd.f32 %v279, %v1064
        %s1103 = scalar_lea.vmem %s200, 384
        %v1104 = vld [vmem:[%s1103] sm:$0xff]
        %v1105 = vld [vmem:[%s1103 + $0x8] sm:$0xff]
        %v1106 = vld [vmem:[%s1103 + $0x10] sm:$0xff]
        %v1107 = vld [vmem:[%s1103 + $0x18] sm:$0xff]
        %v1108 = vld [vmem:[%s1103 + $0x20] sm:$0xff]
        %v1109 = vld [vmem:[%s1103 + $0x28] sm:$0xff]
        %v1110 = vld [vmem:[%s1103 + $0x30] sm:$0xff]
        %v1111 = vld [vmem:[%s1103 + $0x38] sm:$0xff]
        %v1112 = vld [vmem:[%s1103 + $0x40] sm:$0xff]
        %v1113 = vld [vmem:[%s1103 + $0x48] sm:$0xff]
        %v1114 = vld [vmem:[%s1103 + $0x50] sm:$0xff]
        %v1115 = vld [vmem:[%s1103 + $0x58] sm:$0xff]
        %v1116 = vld [vmem:[%s1103 + $0x60] sm:$0xff]
        %v1117 = vld [vmem:[%s1103 + $0x68] sm:$0xff]
        %v1118 = vld [vmem:[%s1103 + $0x70] sm:$0xff]
        %v1119 = vld [vmem:[%s1103 + $0x78] sm:$0xff]
        %v1120 = vld [vmem:[%s1103 + $0x80] sm:$0xff]
        %v1121 = vld [vmem:[%s1103 + $0x88] sm:$0xff]
        %v1122 = vld [vmem:[%s1103 + $0x90] sm:$0xff]
        %v1123 = vld [vmem:[%s1103 + $0x98] sm:$0xff]
        %v1124 = vld [vmem:[%s1103 + $0xa0] sm:$0xff]
        %v1125 = vld [vmem:[%s1103 + $0xa8] sm:$0xff]
        %v1126 = vld [vmem:[%s1103 + $0xb0] sm:$0xff]
        %v1127 = vld [vmem:[%s1103 + $0xb8] sm:$0xff]
        %v1128 = vld [vmem:[%s1103 + $0xc0] sm:$0xff]
        %v1129 = vld [vmem:[%s1103 + $0xc8] sm:$0xff]
        %v1130 = vld [vmem:[%s1103 + $0xd0] sm:$0xff]
        %v1131 = vld [vmem:[%s1103 + $0xd8] sm:$0xff]
        %v1132 = vld [vmem:[%s1103 + $0xe0] sm:$0xff]
        %v1133 = vld [vmem:[%s1103 + $0xe8] sm:$0xff]
        %v1134 = vld [vmem:[%s1103 + $0xf0] sm:$0xff]
        %v1135 = vld [vmem:[%s1103 + $0xf8] sm:$0xff]
        %v1136 = vld [vmem:[%s1103 + $0x100] sm:$0xff]
        %v1137 = vld [vmem:[%s1103 + $0x108] sm:$0xff]
        %v1138 = vld [vmem:[%s1103 + $0x110] sm:$0xff]
        %v1139 = vld [vmem:[%s1103 + $0x118] sm:$0xff]
        %v1140 = vld [vmem:[%s1103 + $0x120] sm:$0xff]
        %v1141 = vld [vmem:[%s1103 + $0x128] sm:$0xff]
        %v1142 = vld [vmem:[%s1103 + $0x130] sm:$0xff]
        %v1143 = vld [vmem:[%s1103 + $0x138] sm:$0xff]
        %v1144 = vld [vmem:[%s1103 + $0x140] sm:$0xff]
        %v1145 = vld [vmem:[%s1103 + $0x148] sm:$0xff]
        %v1146 = vld [vmem:[%s1103 + $0x150] sm:$0xff]
        %v1147 = vld [vmem:[%s1103 + $0x158] sm:$0xff]
        %v1148 = vld [vmem:[%s1103 + $0x160] sm:$0xff]
        %v1149 = vld [vmem:[%s1103 + $0x168] sm:$0xff]
        %v1150 = vld [vmem:[%s1103 + $0x170] sm:$0xff]
        %v1151 = vld [vmem:[%s1103 + $0x178] sm:$0xff]
        %s1152 = scalar_lea.vmem %s171, 1344 [#allocation2]
        %v1153 = vld [vmem:[%s1152] sm:$0xff]
        %v1154 = vld [vmem:[%s1152 + $0x8] sm:$0xff]
        %v1155 = vld [vmem:[%s1152 + $0x10] sm:$0xff]
        %v1156 = vld [vmem:[%s1152 + $0x18] sm:$0xff]
        %v1157 = vld [vmem:[%s1152 + $0x20] sm:$0xff]
        %v1158 = vld [vmem:[%s1152 + $0x28] sm:$0xff]
        %v1159 = vld [vmem:[%s1152 + $0x30] sm:$0xff]
        %v1160 = vld [vmem:[%s1152 + $0x38] sm:$0xff]
        %v1161 = vld [vmem:[%s1152 + $0x40] sm:$0xff]
        %v1162 = vld [vmem:[%s1152 + $0x48] sm:$0xff]
        %v1163 = vld [vmem:[%s1152 + $0x50] sm:$0xff]
        %v1164 = vld [vmem:[%s1152 + $0x58] sm:$0xff]
        %v1165 = vld [vmem:[%s1152 + $0x60] sm:$0xff]
        %v1166 = vld [vmem:[%s1152 + $0x68] sm:$0xff]
        %v1167 = vld [vmem:[%s1152 + $0x70] sm:$0xff]
        %v1168 = vld [vmem:[%s1152 + $0x78] sm:$0xff]
        %v1169 = vld [vmem:[%s1152 + $0x80] sm:$0xff]
        %v1170 = vld [vmem:[%s1152 + $0x88] sm:$0xff]
        %v1171 = vld [vmem:[%s1152 + $0x90] sm:$0xff]
        %v1172 = vld [vmem:[%s1152 + $0x98] sm:$0xff]
        %v1173 = vld [vmem:[%s1152 + $0xa0] sm:$0xff]
        %v1174 = vld [vmem:[%s1152 + $0xa8] sm:$0xff]
        %v1175 = vld [vmem:[%s1152 + $0xb0] sm:$0xff]
        %v1176 = vld [vmem:[%s1152 + $0xb8] sm:$0xff]
        %v1177 = vld [vmem:[%s1152 + $0xc0] sm:$0xff]
        %v1178 = vld [vmem:[%s1152 + $0xc8] sm:$0xff]
        %v1179 = vld [vmem:[%s1152 + $0xd0] sm:$0xff]
        %v1180 = vld [vmem:[%s1152 + $0xd8] sm:$0xff]
        %v1181 = vld [vmem:[%s1152 + $0xe0] sm:$0xff]
        %v1182 = vld [vmem:[%s1152 + $0xe8] sm:$0xff]
        %v1183 = vld [vmem:[%s1152 + $0xf0] sm:$0xff]
        %v1184 = vld [vmem:[%s1152 + $0xf8] sm:$0xff]
        %v1185 = vld [vmem:[%s1152 + $0x100] sm:$0xff]
        %v1186 = vld [vmem:[%s1152 + $0x108] sm:$0xff]
        %v1187 = vld [vmem:[%s1152 + $0x110] sm:$0xff]
        %v1188 = vld [vmem:[%s1152 + $0x118] sm:$0xff]
        %v1189 = vld [vmem:[%s1152 + $0x120] sm:$0xff]
        %v1190 = vld [vmem:[%s1152 + $0x128] sm:$0xff]
        %v1191 = vld [vmem:[%s1152 + $0x130] sm:$0xff]
        %v1192 = vld [vmem:[%s1152 + $0x138] sm:$0xff]
        %v1193 = vld [vmem:[%s1152 + $0x140] sm:$0xff]
        %v1194 = vld [vmem:[%s1152 + $0x148] sm:$0xff]
        %v1195 = vld [vmem:[%s1152 + $0x150] sm:$0xff]
        %v1196 = vld [vmem:[%s1152 + $0x158] sm:$0xff]
        %v1197 = vld [vmem:[%s1152 + $0x160] sm:$0xff]
        %v1198 = vld [vmem:[%s1152 + $0x168] sm:$0xff]
        %v1199 = vld [vmem:[%s1152 + $0x170] sm:$0xff]
        %v1200 = vld [vmem:[%s1152 + $0x178] sm:$0xff]
        %v1201 = vld [vmem:[%s1152 + $0x180] sm:$0xff]
        %v1202 = vld [vmem:[%s1152 + $0x188] sm:$0xff]
        %v1203 = vld [vmem:[%s1152 + $0x190] sm:$0xff]
        %v1204 = vld [vmem:[%s1152 + $0x198] sm:$0xff]
        %v1205 = vld [vmem:[%s1152 + $0x1a0] sm:$0xff]
        %v1206 = vld [vmem:[%s1152 + $0x1a8] sm:$0xff]
        %v1207 = vld [vmem:[%s1152 + $0x1b0] sm:$0xff]
        %v1208 = vld [vmem:[%s1152 + $0x1b8] sm:$0xff]
        %v1209 = vld [vmem:[%s1152 + $0x1c0] sm:$0xff]
        %v1210 = vld [vmem:[%s1152 + $0x1c8] sm:$0xff]
        %v1211 = vld [vmem:[%s1152 + $0x1d0] sm:$0xff]
        %v1212 = vld [vmem:[%s1152 + $0x1d8] sm:$0xff]
        %v1213 = vld [vmem:[%s1152 + $0x1e0] sm:$0xff]
        %v1214 = vld [vmem:[%s1152 + $0x1e8] sm:$0xff]
        %v1215 = vld [vmem:[%s1152 + $0x1f0] sm:$0xff]
        %v1216 = vld [vmem:[%s1152 + $0x1f8] sm:$0xff]
        %v1217 = vld [vmem:[%s1152 + $0x200] sm:$0xff]
        %v1218 = vld [vmem:[%s1152 + $0x208] sm:$0xff]
        %v1219 = vld [vmem:[%s1152 + $0x210] sm:$0xff]
        %v1220 = vld [vmem:[%s1152 + $0x218] sm:$0xff]
        %v1221 = vld [vmem:[%s1152 + $0x220] sm:$0xff]
        %v1222 = vld [vmem:[%s1152 + $0x228] sm:$0xff]
        %v1223 = vld [vmem:[%s1152 + $0x230] sm:$0xff]
        %v1224 = vld [vmem:[%s1152 + $0x238] sm:$0xff]
        %v1225 = vld [vmem:[%s1152 + $0x240] sm:$0xff]
        %v1226 = vld [vmem:[%s1152 + $0x248] sm:$0xff]
        %v1227 = vld [vmem:[%s1152 + $0x250] sm:$0xff]
        %v1228 = vld [vmem:[%s1152 + $0x258] sm:$0xff]
        %v1229 = vld [vmem:[%s1152 + $0x260] sm:$0xff]
        %v1230 = vld [vmem:[%s1152 + $0x268] sm:$0xff]
        %v1231 = vld [vmem:[%s1152 + $0x270] sm:$0xff]
        %v1232 = vld [vmem:[%s1152 + $0x278] sm:$0xff]
        %v1233 = vld [vmem:[%s1152 + $0x280] sm:$0xff]
        %v1234 = vld [vmem:[%s1152 + $0x288] sm:$0xff]
        %v1235 = vld [vmem:[%s1152 + $0x290] sm:$0xff]
        %v1236 = vld [vmem:[%s1152 + $0x298] sm:$0xff]
        %v1237 = vld [vmem:[%s1152 + $0x2a0] sm:$0xff]
        %v1238 = vld [vmem:[%s1152 + $0x2a8] sm:$0xff]
        %v1239 = vld [vmem:[%s1152 + $0x2b0] sm:$0xff]
        %v1240 = vld [vmem:[%s1152 + $0x2b8] sm:$0xff]
        %v1241 = vld [vmem:[%s1152 + $0x2c0] sm:$0xff]
        %v1242 = vld [vmem:[%s1152 + $0x2c8] sm:$0xff]
        %v1243 = vld [vmem:[%s1152 + $0x2d0] sm:$0xff]
        %v1244 = vld [vmem:[%s1152 + $0x2d8] sm:$0xff]
        %v1245 = vld [vmem:[%s1152 + $0x2e0] sm:$0xff]
        %v1246 = vld [vmem:[%s1152 + $0x2e8] sm:$0xff]
        %v1247 = vld [vmem:[%s1152 + $0x2f0] sm:$0xff]
        %v1248 = vld [vmem:[%s1152 + $0x2f8] sm:$0xff]
        %v1249 = vld [vmem:[%s1152 + $0x300] sm:$0xff]
        %v1250 = vld [vmem:[%s1152 + $0x308] sm:$0xff]
        %v1251 = vld [vmem:[%s1152 + $0x310] sm:$0xff]
        %v1252 = vld [vmem:[%s1152 + $0x318] sm:$0xff]
        %v1253 = vld [vmem:[%s1152 + $0x320] sm:$0xff]
        %v1254 = vld [vmem:[%s1152 + $0x328] sm:$0xff]
        %v1255 = vld [vmem:[%s1152 + $0x330] sm:$0xff]
        %v1256 = vld [vmem:[%s1152 + $0x338] sm:$0xff]
        %v1257 = vld [vmem:[%s1152 + $0x340] sm:$0xff]
        %v1258 = vld [vmem:[%s1152 + $0x348] sm:$0xff]
        %v1259 = vld [vmem:[%s1152 + $0x350] sm:$0xff]
        %v1260 = vld [vmem:[%s1152 + $0x358] sm:$0xff]
        %v1261 = vld [vmem:[%s1152 + $0x360] sm:$0xff]
        %v1262 = vld [vmem:[%s1152 + $0x368] sm:$0xff]
        %v1263 = vld [vmem:[%s1152 + $0x370] sm:$0xff]
        %v1264 = vld [vmem:[%s1152 + $0x378] sm:$0xff]
        %v1265 = vld [vmem:[%s1152 + $0x380] sm:$0xff]
        %v1266 = vld [vmem:[%s1152 + $0x388] sm:$0xff]
        %v1267 = vld [vmem:[%s1152 + $0x390] sm:$0xff]
        %v1268 = vld [vmem:[%s1152 + $0x398] sm:$0xff]
        %v1269 = vld [vmem:[%s1152 + $0x3a0] sm:$0xff]
        %v1270 = vld [vmem:[%s1152 + $0x3a8] sm:$0xff]
        %v1271 = vld [vmem:[%s1152 + $0x3b0] sm:$0xff]
        %v1272 = vld [vmem:[%s1152 + $0x3b8] sm:$0xff]
        %v1273 = vld [vmem:[%s1152 + $0x3c0] sm:$0xff]
        %v1274 = vld [vmem:[%s1152 + $0x3c8] sm:$0xff]
        %v1275 = vld [vmem:[%s1152 + $0x3d0] sm:$0xff]
        %v1276 = vld [vmem:[%s1152 + $0x3d8] sm:$0xff]
        %v1277 = vld [vmem:[%s1152 + $0x3e0] sm:$0xff]
        %v1278 = vld [vmem:[%s1152 + $0x3e8] sm:$0xff]
        %v1279 = vld [vmem:[%s1152 + $0x3f0] sm:$0xff]
        %v1280 = vld [vmem:[%s1152 + $0x3f8] sm:$0xff]
        %v1281 = vld [vmem:[%s1152 + $0x400] sm:$0xff]
        %v1282 = vld [vmem:[%s1152 + $0x408] sm:$0xff]
        %v1283 = vld [vmem:[%s1152 + $0x410] sm:$0xff]
        %v1284 = vld [vmem:[%s1152 + $0x418] sm:$0xff]
        %v1285 = vld [vmem:[%s1152 + $0x420] sm:$0xff]
        %v1286 = vld [vmem:[%s1152 + $0x428] sm:$0xff]
        %v1287 = vld [vmem:[%s1152 + $0x430] sm:$0xff]
        %v1288 = vld [vmem:[%s1152 + $0x438] sm:$0xff]
        %v1289 = vld [vmem:[%s1152 + $0x440] sm:$0xff]
        %v1290 = vld [vmem:[%s1152 + $0x448] sm:$0xff]
        %v1291 = vld [vmem:[%s1152 + $0x450] sm:$0xff]
        %v1292 = vld [vmem:[%s1152 + $0x458] sm:$0xff]
        %v1293 = vld [vmem:[%s1152 + $0x460] sm:$0xff]
        %v1294 = vld [vmem:[%s1152 + $0x468] sm:$0xff]
        %v1295 = vld [vmem:[%s1152 + $0x470] sm:$0xff]
        %v1296 = vld [vmem:[%s1152 + $0x478] sm:$0xff]
        %v1297 = vld [vmem:[%s1152 + $0x480] sm:$0xff]
        %v1298 = vld [vmem:[%s1152 + $0x488] sm:$0xff]
        %v1299 = vld [vmem:[%s1152 + $0x490] sm:$0xff]
        %v1300 = vld [vmem:[%s1152 + $0x498] sm:$0xff]
        %v1301 = vld [vmem:[%s1152 + $0x4a0] sm:$0xff]
        %v1302 = vld [vmem:[%s1152 + $0x4a8] sm:$0xff]
        %v1303 = vld [vmem:[%s1152 + $0x4b0] sm:$0xff]
        %v1304 = vld [vmem:[%s1152 + $0x4b8] sm:$0xff]
        %v1305 = vld [vmem:[%s1152 + $0x4c0] sm:$0xff]
        %v1306 = vld [vmem:[%s1152 + $0x4c8] sm:$0xff]
        %v1307 = vld [vmem:[%s1152 + $0x4d0] sm:$0xff]
        %v1308 = vld [vmem:[%s1152 + $0x4d8] sm:$0xff]
        %v1309 = vld [vmem:[%s1152 + $0x4e0] sm:$0xff]
        %v1310 = vld [vmem:[%s1152 + $0x4e8] sm:$0xff]
        %v1311 = vld [vmem:[%s1152 + $0x4f0] sm:$0xff]
        %v1312 = vld [vmem:[%s1152 + $0x4f8] sm:$0xff]
        %v1313 = vld [vmem:[%s1152 + $0x500] sm:$0xff]
        %v1314 = vld [vmem:[%s1152 + $0x508] sm:$0xff]
        %v1315 = vld [vmem:[%s1152 + $0x510] sm:$0xff]
        %v1316 = vld [vmem:[%s1152 + $0x518] sm:$0xff]
        %v1317 = vld [vmem:[%s1152 + $0x520] sm:$0xff]
        %v1318 = vld [vmem:[%s1152 + $0x528] sm:$0x1]
        %v1319 = vld [vmem:[%s1152 + $0x530] sm:$0x1]
        %v1320 = vld [vmem:[%s1152 + $0x538] sm:$0x1]
        %v1322 = vsel %vm496, %v1107, 0
        %v1325 = vsel %vm496, %v1111, 0
        %v1328 = vsel %vm496, %v1115, 0
        %v1331 = vsel %vm496, %v1119, 0
        %v1334 = vsel %vm496, %v1123, 0
        %v1337 = vsel %vm496, %v1127, 0
        %v1340 = vsel %vm496, %v1131, 0
        %v1343 = vsel %vm496, %v1135, 0
        %v1346 = vsel %vm496, %v1139, 0
        %v1349 = vsel %vm496, %v1143, 0
        %v1352 = vsel %vm496, %v1147, 0
        %v1355 = vsel %vm496, %v1151, 0
        %v1358 = vsel %vm533, %v1318, 0
        %v1361 = vsel %vm533, %v1319, 0
        %v1364 = vsel %vm533, %v1320, 0
        %1366 = vmatprep.subr.mxu0 %v1154
        %1367 = vmatpush1.msra.mxu0 %v1153
        %1368 = vmatprep.subr.mxu0 %v1157
        %1369 = vmatpush1.msra.mxu0 %v1156
        %1370 = vmatprep.subr.mxu0 %v1160
        %1371 = vmatpush1.msra.mxu0 %v1159
        %1372 = vmatprep.subr.mxu0 %v1163
        %1373 = vmatpush1.msra.mxu0 %v1162
        %1374 = vmatprep.subr.mxu0 %v1166
        %1375 = vmatpush1.msra.mxu0 %v1165
        %1376 = vmatprep.subr.mxu0 %v1169
        %1377 = vmatpush1.msra.mxu0 %v1168
        %1378 = vmatprep.subr.mxu0 %v1172
        %1379 = vmatpush1.msra.mxu0 %v1171
        %1380 = vmatprep.subr.mxu0 %v1175
        %1381 = vmatpush1.msra.mxu0 %v1174
        %1382 = vmatprep.subr.mxu0 %v1178
        %1383 = vmatpush1.msra.mxu0 %v1177
        %1384 = vmatprep.subr.mxu0 %v1181
        %1385 = vmatpush1.msra.mxu0 %v1180
        %1386 = vmatprep.subr.mxu0 %v1184
        %1387 = vmatpush1.msra.mxu0 %v1183
        %1388 = vmatprep.subr.mxu0 %v1187
        %1389 = vmatpush1.msra.mxu0 %v1186
        %1390 = vmatprep.subr.mxu0 %v1190
        %1391 = vmatpush1.msra.mxu0 %v1189
        %1392 = vmatprep.subr.mxu0 %v1193
        %1393 = vmatpush1.msra.mxu0 %v1192
        %1394 = vmatprep.subr.mxu0 %v1196
        %1395 = vmatpush1.msra.mxu0 %v1195
        %1396 = vmatprep.subr.mxu0 %v1199
        %1397 = vmatpush1.msra.mxu0 %v1198
        %1398 = vmatprep.subr.mxu0 %v1202
        %1399 = vmatpush1.msra.mxu0 %v1201
        %1400 = vmatprep.subr.mxu0 %v1205
        %1401 = vmatpush1.msra.mxu0 %v1204
        %1402 = vmatprep.subr.mxu0 %v1208
        %1403 = vmatpush1.msra.mxu0 %v1207
        %1404 = vmatprep.subr.mxu0 %v1211
        %1405 = vmatpush1.msra.mxu0 %v1210
        %1406 = vmatprep.subr.mxu0 %v1214
        %1407 = vmatpush1.msra.mxu0 %v1213
        %1408 = vmatprep.subr.mxu0 %v1217
        %1409 = vmatpush1.msra.mxu0 %v1216
        %1410 = vmatprep.subr.mxu0 %v1220
        %1411 = vmatpush1.msra.mxu0 %v1219
        %1412 = vmatprep.subr.mxu0 %v1223
        %1413 = vmatpush1.msra.mxu0 %v1222
        %1414 = vmatprep.subr.mxu0 %v1226
        %1415 = vmatpush1.msra.mxu0 %v1225
        %1416 = vmatprep.subr.mxu0 %v1229
        %1417 = vmatpush1.msra.mxu0 %v1228
        %1418 = vmatprep.subr.mxu0 %v1232
        %1419 = vmatpush1.msra.mxu0 %v1231
        %1420 = vmatprep.subr.mxu0 %v1235
        %1421 = vmatpush1.msra.mxu0 %v1234
        %1422 = vmatprep.subr.mxu0 %v1238
        %1423 = vmatpush1.msra.mxu0 %v1237
        %1424 = vmatprep.subr.mxu0 %v1241
        %1425 = vmatpush1.msra.mxu0 %v1240
        %1426 = vmatprep.subr.mxu0 %v1244
        %1427 = vmatpush1.msra.mxu0 %v1243
        %1428 = vmatprep.subr.mxu0 %v1247
        %1429 = vmatpush1.msra.mxu0 %v1246
        %1430 = vmatprep.mubr.f32.mxu0 %v1105
        %1431 = vmatmul.mubr.f32.gmra.mrb[0].mxu0 %v1104
        %v1432 = vpop.f32.mrb[0].mxu0
        %v1433 = vadd.f32 0.0, %v1432
        %v1434 = vpop.f32.mrb[0].mxu0
        %v1435 = vadd.f32 0.0, %v1434
        %1436 = vmatprep.mubr.f32.mxu0 %v1109
        %1437 = vmatmul.mubr.f32.gmra.mrb[0].mxu0 %v1108
        %v1438 = vpop.f32.mrb[0].mxu0
        %v1439 = vadd.f32 0.0, %v1438
        %v1440 = vpop.f32.mrb[0].mxu0
        %v1441 = vadd.f32 0.0, %v1440
        %1442 = vmatprep.mubr.f32.mxu0 %v1113
        %1443 = vmatmul.mubr.f32.gmra.mrb[0].mxu0 %v1112
        %v1444 = vpop.f32.mrb[0].mxu0
        %v1445 = vadd.f32 0.0, %v1444
        %v1446 = vpop.f32.mrb[0].mxu0
        %v1447 = vadd.f32 0.0, %v1446
        %1448 = vmatprep.mubr.f32.mxu0 %v1117
        %1449 = vmatmul.mubr.f32.gmra.mrb[0].mxu0 %v1116
        %v1450 = vpop.f32.mrb[0].mxu0
        %v1451 = vadd.f32 0.0, %v1450
        %v1452 = vpop.f32.mrb[0].mxu0
        %v1453 = vadd.f32 0.0, %v1452
        %1454 = vmatprep.mubr.f32.mxu0 %v1121
        %1455 = vmatmul.mubr.f32.gmra.mrb[0].mxu0 %v1120
        %v1456 = vpop.f32.mrb[0].mxu0
        %v1457 = vadd.f32 0.0, %v1456
        %v1458 = vpop.f32.mrb[0].mxu0
        %v1459 = vadd.f32 0.0, %v1458
        %1460 = vmatprep.mubr.f32.mxu0 %v1125
        %1461 = vmatmul.mubr.f32.gmra.mrb[0].mxu0 %v1124
        %v1462 = vpop.f32.mrb[0].mxu0
        %v1463 = vadd.f32 0.0, %v1462
        %v1464 = vpop.f32.mrb[0].mxu0
        %v1465 = vadd.f32 0.0, %v1464
        %1466 = vmatprep.mubr.f32.mxu0 %v1129
        %1467 = vmatmul.mubr.f32.gmra.mrb[0].mxu0 %v1128
        %v1468 = vpop.f32.mrb[0].mxu0
        %v1469 = vadd.f32 0.0, %v1468
        %v1470 = vpop.f32.mrb[0].mxu0
        %v1471 = vadd.f32 0.0, %v1470
        %1472 = vmatprep.mubr.f32.mxu0 %v1133
        %1473 = vmatmul.mubr.f32.gmra.mrb[0].mxu0 %v1132
        %v1474 = vpop.f32.mrb[0].mxu0
        %v1475 = vadd.f32 0.0, %v1474
        %v1476 = vpop.f32.mrb[0].mxu0
        %v1477 = vadd.f32 0.0, %v1476
        %1478 = vmatprep.mubr.f32.mxu0 %v1137
        %1479 = vmatmul.mubr.f32.gmra.mrb[0].mxu0 %v1136
        %v1480 = vpop.f32.mrb[0].mxu0
        %v1481 = vadd.f32 0.0, %v1480
        %v1482 = vpop.f32.mrb[0].mxu0
        %v1483 = vadd.f32 0.0, %v1482
        %1484 = vmatprep.mubr.f32.mxu0 %v1141
        %1485 = vmatmul.mubr.f32.gmra.mrb[0].mxu0 %v1140
        %v1486 = vpop.f32.mrb[0].mxu0
        %v1487 = vadd.f32 0.0, %v1486
        %v1488 = vpop.f32.mrb[0].mxu0
        %v1489 = vadd.f32 0.0, %v1488
        %1490 = vmatprep.mubr.f32.mxu0 %v1145
        %1491 = vmatmul.mubr.f32.gmra.mrb[0].mxu0 %v1144
        %v1492 = vpop.f32.mrb[0].mxu0
        %v1493 = vadd.f32 0.0, %v1492
        %v1494 = vpop.f32.mrb[0].mxu0
        %v1495 = vadd.f32 0.0, %v1494
        %1496 = vmatprep.mubr.f32.mxu0 %v1149
        %1497 = vmatmul.mubr.f32.gmra.mrb[0].mxu0 %v1148
        %v1498 = vpop.f32.mrb[0].mxu0
        %v1499 = vadd.f32 0.0, %v1498
        %v1500 = vpop.f32.mrb[0].mxu0
        %v1501 = vadd.f32 0.0, %v1500
        %1502 = vdwg.mxu0
        %1503 = vmatprep.subr.mxu0 %v1250
        %1504 = vmatpush1.msra.mxu0 %v1249
        %1505 = vmatprep.subr.mxu0 %v1253
        %1506 = vmatpush1.msra.mxu0 %v1252
        %1507 = vmatprep.subr.mxu0 %v1256
        %1508 = vmatpush1.msra.mxu0 %v1255
        %1509 = vmatprep.subr.mxu0 %v1259
        %1510 = vmatpush1.msra.mxu0 %v1258
        %1511 = vmatprep.subr.mxu0 %v1262
        %1512 = vmatpush1.msra.mxu0 %v1261
        %1513 = vmatprep.subr.mxu0 %v1265
        %1514 = vmatpush1.msra.mxu0 %v1264
        %1515 = vmatprep.subr.mxu0 %v1268
        %1516 = vmatpush1.msra.mxu0 %v1267
        %1517 = vmatprep.subr.mxu0 %v1271
        %1518 = vmatpush1.msra.mxu0 %v1270
        %1519 = vmatprep.subr.mxu0 %v1274
        %1520 = vmatpush1.msra.mxu0 %v1273
        %1521 = vmatprep.subr.mxu0 %v1277
        %1522 = vmatpush1.msra.mxu0 %v1276
        %1523 = vmatprep.subr.mxu0 %v1280
        %1524 = vmatpush1.msra.mxu0 %v1279
        %1525 = vmatprep.subr.mxu0 %v1283
        %1526 = vmatpush1.msra.mxu0 %v1282
        %1527 = vmatprep.subr.mxu0 %v1286
        %1528 = vmatpush1.msra.mxu0 %v1285
        %1529 = vmatprep.subr.mxu0 %v1289
        %1530 = vmatpush1.msra.mxu0 %v1288
        %1531 = vmatprep.subr.mxu0 %v1292
        %1532 = vmatpush1.msra.mxu0 %v1291
        %1533 = vmatprep.subr.mxu0 %v1295
        %1534 = vmatpush1.msra.mxu0 %v1294
        %1535 = vmatprep.subr.mxu0 %v1298
        %1536 = vmatpush1.msra.mxu0 %v1297
        %1537 = vmatprep.subr.mxu0 %v1301
        %1538 = vmatpush1.msra.mxu0 %v1300
        %1539 = vmatprep.subr.mxu0 %v1304
        %1540 = vmatpush1.msra.mxu0 %v1303
        %1541 = vmatprep.subr.mxu0 %v1307
        %1542 = vmatpush1.msra.mxu0 %v1306
        %1543 = vmatprep.subr.mxu0 %v1310
        %1544 = vmatpush1.msra.mxu0 %v1309
        %1545 = vmatprep.subr.mxu0 %v1313
        %1546 = vmatpush1.msra.mxu0 %v1312
        %1547 = vmatprep.subr.mxu0 %v1316
        %1548 = vmatpush1.msra.mxu0 %v1315
        %1549 = vmatprep.subr.mxu0 %v1361
        %1550 = vmatpush1.msra.mxu0 %v1358
        %1551 = vmatprep.subr.mxu0 0.0
        %1552 = vmatpush1.msra.mxu0 0.0
        %1553 = vmatprep.subr.mxu0 0.0
        %1554 = vmatpush1.msra.mxu0 0.0
        %1555 = vmatprep.subr.mxu0 0.0
        %1556 = vmatpush1.msra.mxu0 0.0
        %1557 = vmatprep.subr.mxu0 0.0
        %1558 = vmatpush1.msra.mxu0 0.0
        %1559 = vmatprep.subr.mxu0 0.0
        %1560 = vmatpush1.msra.mxu0 0.0
        %1561 = vmatprep.subr.mxu0 0.0
        %1562 = vmatpush1.msra.mxu0 0.0
        %1563 = vmatprep.subr.mxu0 0.0
        %1564 = vmatpush1.msra.mxu0 0.0
        %1565 = vmatprep.subr.mxu0 0.0
        %1566 = vmatpush1.msra.mxu0 0.0
        %1567 = vmatprep.mubr.f32.mxu0 %v1322
        %1568 = vmatmul.mubr.f32.gmra.mrb[0].mxu0 %v1106
        %v1569 = vpop.f32.mrb[0].mxu0
        %v1570 = vadd.f32 %v1433, %v1569
        %v1571 = vpop.f32.mrb[0].mxu0
        %v1572 = vadd.f32 %v1435, %v1571
        %1573 = vmatprep.mubr.f32.mxu0 %v1325
        %1574 = vmatmul.mubr.f32.gmra.mrb[0].mxu0 %v1110
        %v1575 = vpop.f32.mrb[0].mxu0
        %v1576 = vadd.f32 %v1439, %v1575
        %v1577 = vpop.f32.mrb[0].mxu0
        %v1578 = vadd.f32 %v1441, %v1577
        %1579 = vmatprep.mubr.f32.mxu0 %v1328
        %1580 = vmatmul.mubr.f32.gmra.mrb[0].mxu0 %v1114
        %v1581 = vpop.f32.mrb[0].mxu0
        %v1582 = vadd.f32 %v1445, %v1581
        %v1583 = vpop.f32.mrb[0].mxu0
        %v1584 = vadd.f32 %v1447, %v1583
        %1585 = vmatprep.mubr.f32.mxu0 %v1331
        %1586 = vmatmul.mubr.f32.gmra.mrb[0].mxu0 %v1118
        %v1587 = vpop.f32.mrb[0].mxu0
        %v1588 = vadd.f32 %v1451, %v1587
        %v1589 = vpop.f32.mrb[0].mxu0
        %v1590 = vadd.f32 %v1453, %v1589
        %1591 = vmatprep.mubr.f32.mxu0 %v1334
        %1592 = vmatmul.mubr.f32.gmra.mrb[0].mxu0 %v1122
        %v1593 = vpop.f32.mrb[0].mxu0
        %v1594 = vadd.f32 %v1457, %v1593
        %v1595 = vpop.f32.mrb[0].mxu0
        %v1596 = vadd.f32 %v1459, %v1595
        %1597 = vmatprep.mubr.f32.mxu0 %v1337
        %1598 = vmatmul.mubr.f32.gmra.mrb[0].mxu0 %v1126
        %v1599 = vpop.f32.mrb[0].mxu0
        %v1600 = vadd.f32 %v1463, %v1599
        %v1601 = vpop.f32.mrb[0].mxu0
        %v1602 = vadd.f32 %v1465, %v1601
        %1603 = vmatprep.mubr.f32.mxu0 %v1340
        %1604 = vmatmul.mubr.f32.gmra.mrb[0].mxu0 %v1130
        %v1605 = vpop.f32.mrb[0].mxu0
        %v1606 = vadd.f32 %v1469, %v1605
        %v1607 = vpop.f32.mrb[0].mxu0
        %v1608 = vadd.f32 %v1471, %v1607
        %1609 = vmatprep.mubr.f32.mxu0 %v1343
        %1610 = vmatmul.mubr.f32.gmra.mrb[0].mxu0 %v1134
        %v1611 = vpop.f32.mrb[0].mxu0
        %v1612 = vadd.f32 %v1475, %v1611
        %v1613 = vpop.f32.mrb[0].mxu0
        %v1614 = vadd.f32 %v1477, %v1613
        %1615 = vmatprep.mubr.f32.mxu0 %v1346
        %1616 = vmatmul.mubr.f32.gmra.mrb[0].mxu0 %v1138
        %v1617 = vpop.f32.mrb[0].mxu0
        %v1618 = vadd.f32 %v1481, %v1617
        %v1619 = vpop.f32.mrb[0].mxu0
        %v1620 = vadd.f32 %v1483, %v1619
        %1621 = vmatprep.mubr.f32.mxu0 %v1349
        %1622 = vmatmul.mubr.f32.gmra.mrb[0].mxu0 %v1142
        %v1623 = vpop.f32.mrb[0].mxu0
        %v1624 = vadd.f32 %v1487, %v1623
        %v1625 = vpop.f32.mrb[0].mxu0
        %v1626 = vadd.f32 %v1489, %v1625
        %1627 = vmatprep.mubr.f32.mxu0 %v1352
        %1628 = vmatmul.mubr.f32.gmra.mrb[0].mxu0 %v1146
        %v1629 = vpop.f32.mrb[0].mxu0
        %v1630 = vadd.f32 %v1493, %v1629
        %v1631 = vpop.f32.mrb[0].mxu0
        %v1632 = vadd.f32 %v1495, %v1631
        %1633 = vmatprep.mubr.f32.mxu0 %v1355
        %1634 = vmatmul.mubr.f32.gmra.mrb[0].mxu0 %v1150
        %v1635 = vpop.f32.mrb[0].mxu0
        %v1636 = vadd.f32 %v1499, %v1635
        %v1637 = vpop.f32.mrb[0].mxu0
        %v1638 = vadd.f32 %v1501, %v1637
        %1639 = vdwg.mxu0
        %1640 = vmatprep.subr.mxu0 0.0
        %1641 = vmatpush1.msra.mxu0 %v1155
        %1642 = vmatprep.subr.mxu0 0.0
        %1643 = vmatpush1.msra.mxu0 %v1158
        %1644 = vmatprep.subr.mxu0 0.0
        %1645 = vmatpush1.msra.mxu0 %v1161
        %1646 = vmatprep.subr.mxu0 0.0
        %1647 = vmatpush1.msra.mxu0 %v1164
        %1648 = vmatprep.subr.mxu0 0.0
        %1649 = vmatpush1.msra.mxu0 %v1167
        %1650 = vmatprep.subr.mxu0 0.0
        %1651 = vmatpush1.msra.mxu0 %v1170
        %1652 = vmatprep.subr.mxu0 0.0
        %1653 = vmatpush1.msra.mxu0 %v1173
        %1654 = vmatprep.subr.mxu0 0.0
        %1655 = vmatpush1.msra.mxu0 %v1176
        %1656 = vmatprep.subr.mxu0 0.0
        %1657 = vmatpush1.msra.mxu0 %v1179
        %1658 = vmatprep.subr.mxu0 0.0
        %1659 = vmatpush1.msra.mxu0 %v1182
        %1660 = vmatprep.subr.mxu0 0.0
        %1661 = vmatpush1.msra.mxu0 %v1185
        %1662 = vmatprep.subr.mxu0 0.0
        %1663 = vmatpush1.msra.mxu0 %v1188
        %1664 = vmatprep.subr.mxu0 0.0
        %1665 = vmatpush1.msra.mxu0 %v1191
        %1666 = vmatprep.subr.mxu0 0.0
        %1667 = vmatpush1.msra.mxu0 %v1194
        %1668 = vmatprep.subr.mxu0 0.0
        %1669 = vmatpush1.msra.mxu0 %v1197
        %1670 = vmatprep.subr.mxu0 0.0
        %1671 = vmatpush1.msra.mxu0 %v1200
        %1672 = vmatprep.subr.mxu0 0.0
        %1673 = vmatpush1.msra.mxu0 %v1203
        %1674 = vmatprep.subr.mxu0 0.0
        %1675 = vmatpush1.msra.mxu0 %v1206
        %1676 = vmatprep.subr.mxu0 0.0
        %1677 = vmatpush1.msra.mxu0 %v1209
        %1678 = vmatprep.subr.mxu0 0.0
        %1679 = vmatpush1.msra.mxu0 %v1212
        %1680 = vmatprep.subr.mxu0 0.0
        %1681 = vmatpush1.msra.mxu0 %v1215
        %1682 = vmatprep.subr.mxu0 0.0
        %1683 = vmatpush1.msra.mxu0 %v1218
        %1684 = vmatprep.subr.mxu0 0.0
        %1685 = vmatpush1.msra.mxu0 %v1221
        %1686 = vmatprep.subr.mxu0 0.0
        %1687 = vmatpush1.msra.mxu0 %v1224
        %1688 = vmatprep.subr.mxu0 0.0
        %1689 = vmatpush1.msra.mxu0 %v1227
        %1690 = vmatprep.subr.mxu0 0.0
        %1691 = vmatpush1.msra.mxu0 %v1230
        %1692 = vmatprep.subr.mxu0 0.0
        %1693 = vmatpush1.msra.mxu0 %v1233
        %1694 = vmatprep.subr.mxu0 0.0
        %1695 = vmatpush1.msra.mxu0 %v1236
        %1696 = vmatprep.subr.mxu0 0.0
        %1697 = vmatpush1.msra.mxu0 %v1239
        %1698 = vmatprep.subr.mxu0 0.0
        %1699 = vmatpush1.msra.mxu0 %v1242
        %1700 = vmatprep.subr.mxu0 0.0
        %1701 = vmatpush1.msra.mxu0 %v1245
        %1702 = vmatprep.subr.mxu0 0.0
        %1703 = vmatpush1.msra.mxu0 %v1248
        %1704 = vmatprep.mubr.f32.mxu0 %v1105
        %1705 = vmatmul.mubr.f32.gmra.mrb[0].mxu0 %v1104
        %v1706 = vpop.f32.mrb[0].mxu0
        %v1707 = vadd.f32 0.0, %v1706
        %v1708 = vpop.f32.mrb[0].mxu0
        %1709 = vmatprep.mubr.f32.mxu0 %v1109
        %1710 = vmatmul.mubr.f32.gmra.mrb[0].mxu0 %v1108
        %v1711 = vpop.f32.mrb[0].mxu0
        %v1712 = vadd.f32 0.0, %v1711
        %v1713 = vpop.f32.mrb[0].mxu0
        %1714 = vmatprep.mubr.f32.mxu0 %v1113
        %1715 = vmatmul.mubr.f32.gmra.mrb[0].mxu0 %v1112
        %v1716 = vpop.f32.mrb[0].mxu0
        %v1717 = vadd.f32 0.0, %v1716
        %v1718 = vpop.f32.mrb[0].mxu0
        %1719 = vmatprep.mubr.f32.mxu0 %v1117
        %1720 = vmatmul.mubr.f32.gmra.mrb[0].mxu0 %v1116
        %v1721 = vpop.f32.mrb[0].mxu0
        %v1722 = vadd.f32 0.0, %v1721
        %v1723 = vpop.f32.mrb[0].mxu0
        %1724 = vmatprep.mubr.f32.mxu0 %v1121
        %1725 = vmatmul.mubr.f32.gmra.mrb[0].mxu0 %v1120
        %v1726 = vpop.f32.mrb[0].mxu0
        %v1727 = vadd.f32 0.0, %v1726
        %v1728 = vpop.f32.mrb[0].mxu0
        %1729 = vmatprep.mubr.f32.mxu0 %v1125
        %1730 = vmatmul.mubr.f32.gmra.mrb[0].mxu0 %v1124
        %v1731 = vpop.f32.mrb[0].mxu0
        %v1732 = vadd.f32 0.0, %v1731
        %v1733 = vpop.f32.mrb[0].mxu0
        %1734 = vmatprep.mubr.f32.mxu0 %v1129
        %1735 = vmatmul.mubr.f32.gmra.mrb[0].mxu0 %v1128
        %v1736 = vpop.f32.mrb[0].mxu0
        %v1737 = vadd.f32 0.0, %v1736
        %v1738 = vpop.f32.mrb[0].mxu0
        %1739 = vmatprep.mubr.f32.mxu0 %v1133
        %1740 = vmatmul.mubr.f32.gmra.mrb[0].mxu0 %v1132
        %v1741 = vpop.f32.mrb[0].mxu0
        %v1742 = vadd.f32 0.0, %v1741
        %v1743 = vpop.f32.mrb[0].mxu0
        %1744 = vmatprep.mubr.f32.mxu0 %v1137
        %1745 = vmatmul.mubr.f32.gmra.mrb[0].mxu0 %v1136
        %v1746 = vpop.f32.mrb[0].mxu0
        %v1747 = vadd.f32 0.0, %v1746
        %v1748 = vpop.f32.mrb[0].mxu0
        %1749 = vmatprep.mubr.f32.mxu0 %v1141
        %1750 = vmatmul.mubr.f32.gmra.mrb[0].mxu0 %v1140
        %v1751 = vpop.f32.mrb[0].mxu0
        %v1752 = vadd.f32 0.0, %v1751
        %v1753 = vpop.f32.mrb[0].mxu0
        %1754 = vmatprep.mubr.f32.mxu0 %v1145
        %1755 = vmatmul.mubr.f32.gmra.mrb[0].mxu0 %v1144
        %v1756 = vpop.f32.mrb[0].mxu0
        %v1757 = vadd.f32 0.0, %v1756
        %v1758 = vpop.f32.mrb[0].mxu0
        %1759 = vmatprep.mubr.f32.mxu0 %v1149
        %1760 = vmatmul.mubr.f32.gmra.mrb[0].mxu0 %v1148
        %v1761 = vpop.f32.mrb[0].mxu0
        %v1762 = vadd.f32 0.0, %v1761
        %v1763 = vpop.f32.mrb[0].mxu0
        %1764 = vdwg.mxu0
        %1765 = vmatprep.subr.mxu0 0.0
        %1766 = vmatpush1.msra.mxu0 %v1251
        %1767 = vmatprep.subr.mxu0 0.0
        %1768 = vmatpush1.msra.mxu0 %v1254
        %1769 = vmatprep.subr.mxu0 0.0
        %1770 = vmatpush1.msra.mxu0 %v1257
        %1771 = vmatprep.subr.mxu0 0.0
        %1772 = vmatpush1.msra.mxu0 %v1260
        %1773 = vmatprep.subr.mxu0 0.0
        %1774 = vmatpush1.msra.mxu0 %v1263
        %1775 = vmatprep.subr.mxu0 0.0
        %1776 = vmatpush1.msra.mxu0 %v1266
        %1777 = vmatprep.subr.mxu0 0.0
        %1778 = vmatpush1.msra.mxu0 %v1269
        %1779 = vmatprep.subr.mxu0 0.0
        %1780 = vmatpush1.msra.mxu0 %v1272
        %1781 = vmatprep.subr.mxu0 0.0
        %1782 = vmatpush1.msra.mxu0 %v1275
        %1783 = vmatprep.subr.mxu0 0.0
        %1784 = vmatpush1.msra.mxu0 %v1278
        %1785 = vmatprep.subr.mxu0 0.0
        %1786 = vmatpush1.msra.mxu0 %v1281
        %1787 = vmatprep.subr.mxu0 0.0
        %1788 = vmatpush1.msra.mxu0 %v1284
        %1789 = vmatprep.subr.mxu0 0.0
        %1790 = vmatpush1.msra.mxu0 %v1287
        %1791 = vmatprep.subr.mxu0 0.0
        %1792 = vmatpush1.msra.mxu0 %v1290
        %1793 = vmatprep.subr.mxu0 0.0
        %1794 = vmatpush1.msra.mxu0 %v1293
        %1795 = vmatprep.subr.mxu0 0.0
        %1796 = vmatpush1.msra.mxu0 %v1296
        %1797 = vmatprep.subr.mxu0 0.0
        %1798 = vmatpush1.msra.mxu0 %v1299
        %1799 = vmatprep.subr.mxu0 0.0
        %1800 = vmatpush1.msra.mxu0 %v1302
        %1801 = vmatprep.subr.mxu0 0.0
        %1802 = vmatpush1.msra.mxu0 %v1305
        %1803 = vmatprep.subr.mxu0 0.0
        %1804 = vmatpush1.msra.mxu0 %v1308
        %1805 = vmatprep.subr.mxu0 0.0
        %1806 = vmatpush1.msra.mxu0 %v1311
        %1807 = vmatprep.subr.mxu0 0.0
        %1808 = vmatpush1.msra.mxu0 %v1314
        %1809 = vmatprep.subr.mxu0 0.0
        %1810 = vmatpush1.msra.mxu0 %v1317
        %1811 = vmatprep.subr.mxu0 0.0
        %1812 = vmatpush1.msra.mxu0 %v1364
        %1813 = vmatprep.subr.mxu0 0.0
        %1814 = vmatpush1.msra.mxu0 0.0
        %1815 = vmatprep.subr.mxu0 0.0
        %1816 = vmatpush1.msra.mxu0 0.0
        %1817 = vmatprep.subr.mxu0 0.0
        %1818 = vmatpush1.msra.mxu0 0.0
        %1819 = vmatprep.subr.mxu0 0.0
        %1820 = vmatpush1.msra.mxu0 0.0
        %1821 = vmatprep.subr.mxu0 0.0
        %1822 = vmatpush1.msra.mxu0 0.0
        %1823 = vmatprep.subr.mxu0 0.0
        %1824 = vmatpush1.msra.mxu0 0.0
        %1825 = vmatprep.subr.mxu0 0.0
        %1826 = vmatpush1.msra.mxu0 0.0
        %1827 = vmatprep.subr.mxu0 0.0
        %1828 = vmatpush1.msra.mxu0 0.0
        %1829 = vmatprep.mubr.f32.mxu0 %v1322
        %1830 = vmatmul.mubr.f32.gmra.mrb[0].mxu0 %v1106
        %v1831 = vpop.f32.mrb[0].mxu0
        %v1832 = vadd.f32 %v1707, %v1831
        %v1833 = vpop.f32.mrb[0].mxu0
        %1834 = vmatprep.mubr.f32.mxu0 %v1325
        %1835 = vmatmul.mubr.f32.gmra.mrb[0].mxu0 %v1110
        %v1836 = vpop.f32.mrb[0].mxu0
        %v1837 = vadd.f32 %v1712, %v1836
        %v1838 = vpop.f32.mrb[0].mxu0
        %1839 = vmatprep.mubr.f32.mxu0 %v1328
        %1840 = vmatmul.mubr.f32.gmra.mrb[0].mxu0 %v1114
        %v1841 = vpop.f32.mrb[0].mxu0
        %v1842 = vadd.f32 %v1717, %v1841
        %v1843 = vpop.f32.mrb[0].mxu0
        %1844 = vmatprep.mubr.f32.mxu0 %v1331
        %1845 = vmatmul.mubr.f32.gmra.mrb[0].mxu0 %v1118
        %v1846 = vpop.f32.mrb[0].mxu0
        %v1847 = vadd.f32 %v1722, %v1846
        %v1848 = vpop.f32.mrb[0].mxu0
        %1849 = vmatprep.mubr.f32.mxu0 %v1334
        %1850 = vmatmul.mubr.f32.gmra.mrb[0].mxu0 %v1122
        %v1851 = vpop.f32.mrb[0].mxu0
        %v1852 = vadd.f32 %v1727, %v1851
        %v1853 = vpop.f32.mrb[0].mxu0
        %1854 = vmatprep.mubr.f32.mxu0 %v1337
        %1855 = vmatmul.mubr.f32.gmra.mrb[0].mxu0 %v1126
        %v1856 = vpop.f32.mrb[0].mxu0
        %v1857 = vadd.f32 %v1732, %v1856
        %v1858 = vpop.f32.mrb[0].mxu0
        %1859 = vmatprep.mubr.f32.mxu0 %v1340
        %1860 = vmatmul.mubr.f32.gmra.mrb[0].mxu0 %v1130
        %v1861 = vpop.f32.mrb[0].mxu0
        %v1862 = vadd.f32 %v1737, %v1861
        %v1863 = vpop.f32.mrb[0].mxu0
        %1864 = vmatprep.mubr.f32.mxu0 %v1343
        %1865 = vmatmul.mubr.f32.gmra.mrb[0].mxu0 %v1134
        %v1866 = vpop.f32.mrb[0].mxu0
        %v1867 = vadd.f32 %v1742, %v1866
        %v1868 = vpop.f32.mrb[0].mxu0
        %1869 = vmatprep.mubr.f32.mxu0 %v1346
        %1870 = vmatmul.mubr.f32.gmra.mrb[0].mxu0 %v1138
        %v1871 = vpop.f32.mrb[0].mxu0
        %v1872 = vadd.f32 %v1747, %v1871
        %v1873 = vpop.f32.mrb[0].mxu0
        %1874 = vmatprep.mubr.f32.mxu0 %v1349
        %1875 = vmatmul.mubr.f32.gmra.mrb[0].mxu0 %v1142
        %v1876 = vpop.f32.mrb[0].mxu0
        %v1877 = vadd.f32 %v1752, %v1876
        %v1878 = vpop.f32.mrb[0].mxu0
        %1879 = vmatprep.mubr.f32.mxu0 %v1352
        %1880 = vmatmul.mubr.f32.gmra.mrb[0].mxu0 %v1146
        %v1881 = vpop.f32.mrb[0].mxu0
        %v1882 = vadd.f32 %v1757, %v1881
        %v1883 = vpop.f32.mrb[0].mxu0
        %1884 = vmatprep.mubr.f32.mxu0 %v1355
        %1885 = vmatmul.mubr.f32.gmra.mrb[0].mxu0 %v1150
        %v1886 = vpop.f32.mrb[0].mxu0
        %v1887 = vadd.f32 %v1762, %v1886
        %v1888 = vpop.f32.mrb[0].mxu0
        %1889 = vdwg.mxu0
        %v1890 = vadd.f32 %v1067, %v1570
        %v1891 = vadd.f32 %v1068, %v1572
        %v1892 = vadd.f32 %v1069, %v1832
        %v1893 = vadd.f32 %v1070, %v1576
        %v1894 = vadd.f32 %v1071, %v1578
        %v1895 = vadd.f32 %v1072, %v1837
        %v1896 = vadd.f32 %v1073, %v1582
        %v1897 = vadd.f32 %v1074, %v1584
        %v1898 = vadd.f32 %v1075, %v1842
        %v1899 = vadd.f32 %v1076, %v1588
        %v1900 = vadd.f32 %v1077, %v1590
        %v1901 = vadd.f32 %v1078, %v1847
        %v1902 = vadd.f32 %v1079, %v1594
        %v1903 = vadd.f32 %v1080, %v1596
        %v1904 = vadd.f32 %v1081, %v1852
        %v1905 = vadd.f32 %v1082, %v1600
        %v1906 = vadd.f32 %v1083, %v1602
        %v1907 = vadd.f32 %v1084, %v1857
        %v1908 = vadd.f32 %v1085, %v1606
        %v1909 = vadd.f32 %v1086, %v1608
        %v1910 = vadd.f32 %v1087, %v1862
        %v1911 = vadd.f32 %v1088, %v1612
        %v1912 = vadd.f32 %v1089, %v1614
        %v1913 = vadd.f32 %v1090, %v1867
        %v1914 = vadd.f32 %v1091, %v1618
        %v1915 = vadd.f32 %v1092, %v1620
        %v1916 = vadd.f32 %v1093, %v1872
        %v1917 = vadd.f32 %v1094, %v1624
        %v1918 = vadd.f32 %v1095, %v1626
        %v1919 = vadd.f32 %v1096, %v1877
        %v1920 = vadd.f32 %v1097, %v1630
        %v1921 = vadd.f32 %v1098, %v1632
        %v1922 = vadd.f32 %v1099, %v1882
        %v1923 = vadd.f32 %v1100, %v1636
        %v1924 = vadd.f32 %v1101, %v1638
        %v1925 = vadd.f32 %v1102, %v1887
        %s1926 = scalar_lea.vmem %s200, 768
        %v1927 = vld [vmem:[%s1926] sm:$0xff]
        %v1928 = vld [vmem:[%s1926 + $0x8] sm:$0xff]
        %v1929 = vld [vmem:[%s1926 + $0x10] sm:$0xff]
        %v1930 = vld [vmem:[%s1926 + $0x18] sm:$0xff]
        %v1931 = vld [vmem:[%s1926 + $0x20] sm:$0xff]
        %v1932 = vld [vmem:[%s1926 + $0x28] sm:$0xff]
        %v1933 = vld [vmem:[%s1926 + $0x30] sm:$0xff]
        %v1934 = vld [vmem:[%s1926 + $0x38] sm:$0xff]
        %v1935 = vld [vmem:[%s1926 + $0x40] sm:$0xff]
        %v1936 = vld [vmem:[%s1926 + $0x48] sm:$0xff]
        %v1937 = vld [vmem:[%s1926 + $0x50] sm:$0xff]
        %v1938 = vld [vmem:[%s1926 + $0x58] sm:$0xff]
        %v1939 = vld [vmem:[%s1926 + $0x60] sm:$0xff]
        %v1940 = vld [vmem:[%s1926 + $0x68] sm:$0xff]
        %v1941 = vld [vmem:[%s1926 + $0x70] sm:$0xff]
        %v1942 = vld [vmem:[%s1926 + $0x78] sm:$0xff]
        %v1943 = vld [vmem:[%s1926 + $0x80] sm:$0xff]
        %v1944 = vld [vmem:[%s1926 + $0x88] sm:$0xff]
        %v1945 = vld [vmem:[%s1926 + $0x90] sm:$0xff]
        %v1946 = vld [vmem:[%s1926 + $0x98] sm:$0xff]
        %v1947 = vld [vmem:[%s1926 + $0xa0] sm:$0xff]
        %v1948 = vld [vmem:[%s1926 + $0xa8] sm:$0xff]
        %v1949 = vld [vmem:[%s1926 + $0xb0] sm:$0xff]
        %v1950 = vld [vmem:[%s1926 + $0xb8] sm:$0xff]
        %v1951 = vld [vmem:[%s1926 + $0xc0] sm:$0xff]
        %v1952 = vld [vmem:[%s1926 + $0xc8] sm:$0xff]
        %v1953 = vld [vmem:[%s1926 + $0xd0] sm:$0xff]
        %v1954 = vld [vmem:[%s1926 + $0xd8] sm:$0xff]
        %v1955 = vld [vmem:[%s1926 + $0xe0] sm:$0xff]
        %v1956 = vld [vmem:[%s1926 + $0xe8] sm:$0xff]
        %v1957 = vld [vmem:[%s1926 + $0xf0] sm:$0xff]
        %v1958 = vld [vmem:[%s1926 + $0xf8] sm:$0xff]
        %v1959 = vld [vmem:[%s1926 + $0x100] sm:$0xff]
        %v1960 = vld [vmem:[%s1926 + $0x108] sm:$0xff]
        %v1961 = vld [vmem:[%s1926 + $0x110] sm:$0xff]
        %v1962 = vld [vmem:[%s1926 + $0x118] sm:$0xff]
        %v1963 = vld [vmem:[%s1926 + $0x120] sm:$0xff]
        %v1964 = vld [vmem:[%s1926 + $0x128] sm:$0xff]
        %v1965 = vld [vmem:[%s1926 + $0x130] sm:$0xff]
        %v1966 = vld [vmem:[%s1926 + $0x138] sm:$0xff]
        %v1967 = vld [vmem:[%s1926 + $0x140] sm:$0xff]
        %v1968 = vld [vmem:[%s1926 + $0x148] sm:$0xff]
        %v1969 = vld [vmem:[%s1926 + $0x150] sm:$0xff]
        %v1970 = vld [vmem:[%s1926 + $0x158] sm:$0xff]
        %v1971 = vld [vmem:[%s1926 + $0x160] sm:$0xff]
        %v1972 = vld [vmem:[%s1926 + $0x168] sm:$0xff]
        %v1973 = vld [vmem:[%s1926 + $0x170] sm:$0xff]
        %v1974 = vld [vmem:[%s1926 + $0x178] sm:$0xff]
        %s1975 = scalar_lea.vmem %s171, 2688 [#allocation2]
        %v1976 = vld [vmem:[%s1975] sm:$0xff]
        %v1977 = vld [vmem:[%s1975 + $0x8] sm:$0xff]
        %v1978 = vld [vmem:[%s1975 + $0x10] sm:$0xff]
        %v1979 = vld [vmem:[%s1975 + $0x18] sm:$0xff]
        %v1980 = vld [vmem:[%s1975 + $0x20] sm:$0xff]
        %v1981 = vld [vmem:[%s1975 + $0x28] sm:$0xff]
        %v1982 = vld [vmem:[%s1975 + $0x30] sm:$0xff]
        %v1983 = vld [vmem:[%s1975 + $0x38] sm:$0xff]
        %v1984 = vld [vmem:[%s1975 + $0x40] sm:$0xff]
        %v1985 = vld [vmem:[%s1975 + $0x48] sm:$0xff]
        %v1986 = vld [vmem:[%s1975 + $0x50] sm:$0xff]
        %v1987 = vld [vmem:[%s1975 + $0x58] sm:$0xff]
        %v1988 = vld [vmem:[%s1975 + $0x60] sm:$0xff]
        %v1989 = vld [vmem:[%s1975 + $0x68] sm:$0xff]
        %v1990 = vld [vmem:[%s1975 + $0x70] sm:$0xff]
        %v1991 = vld [vmem:[%s1975 + $0x78] sm:$0xff]
        %v1992 = vld [vmem:[%s1975 + $0x80] sm:$0xff]
        %v1993 = vld [vmem:[%s1975 + $0x88] sm:$0xff]
        %v1994 = vld [vmem:[%s1975 + $0x90] sm:$0xff]
        %v1995 = vld [vmem:[%s1975 + $0x98] sm:$0xff]
        %v1996 = vld [vmem:[%s1975 + $0xa0] sm:$0xff]
        %v1997 = vld [vmem:[%s1975 + $0xa8] sm:$0xff]
        %v1998 = vld [vmem:[%s1975 + $0xb0] sm:$0xff]
        %v1999 = vld [vmem:[%s1975 + $0xb8] sm:$0xff]
        %v2000 = vld [vmem:[%s1975 + $0xc0] sm:$0xff]
        %v2001 = vld [vmem:[%s1975 + $0xc8] sm:$0xff]
        %v2002 = vld [vmem:[%s1975 + $0xd0] sm:$0xff]
        %v2003 = vld [vmem:[%s1975 + $0xd8] sm:$0xff]
        %v2004 = vld [vmem:[%s1975 + $0xe0] sm:$0xff]
        %v2005 = vld [vmem:[%s1975 + $0xe8] sm:$0xff]
        %v2006 = vld [vmem:[%s1975 + $0xf0] sm:$0xff]
        %v2007 = vld [vmem:[%s1975 + $0xf8] sm:$0xff]
        %v2008 = vld [vmem:[%s1975 + $0x100] sm:$0xff]
        %v2009 = vld [vmem:[%s1975 + $0x108] sm:$0xff]
        %v2010 = vld [vmem:[%s1975 + $0x110] sm:$0xff]
        %v2011 = vld [vmem:[%s1975 + $0x118] sm:$0xff]
        %v2012 = vld [vmem:[%s1975 + $0x120] sm:$0xff]
        %v2013 = vld [vmem:[%s1975 + $0x128] sm:$0xff]
        %v2014 = vld [vmem:[%s1975 + $0x130] sm:$0xff]
        %v2015 = vld [vmem:[%s1975 + $0x138] sm:$0xff]
        %v2016 = vld [vmem:[%s1975 + $0x140] sm:$0xff]
        %v2017 = vld [vmem:[%s1975 + $0x148] sm:$0xff]
        %v2018 = vld [vmem:[%s1975 + $0x150] sm:$0xff]
        %v2019 = vld [vmem:[%s1975 + $0x158] sm:$0xff]
        %v2020 = vld [vmem:[%s1975 + $0x160] sm:$0xff]
        %v2021 = vld [vmem:[%s1975 + $0x168] sm:$0xff]
        %v2022 = vld [vmem:[%s1975 + $0x170] sm:$0xff]
        %v2023 = vld [vmem:[%s1975 + $0x178] sm:$0xff]
        %v2024 = vld [vmem:[%s1975 + $0x180] sm:$0xff]
        %v2025 = vld [vmem:[%s1975 + $0x188] sm:$0xff]
        %v2026 = vld [vmem:[%s1975 + $0x190] sm:$0xff]
        %v2027 = vld [vmem:[%s1975 + $0x198] sm:$0xff]
        %v2028 = vld [vmem:[%s1975 + $0x1a0] sm:$0xff]
        %v2029 = vld [vmem:[%s1975 + $0x1a8] sm:$0xff]
        %v2030 = vld [vmem:[%s1975 + $0x1b0] sm:$0xff]
        %v2031 = vld [vmem:[%s1975 + $0x1b8] sm:$0xff]
        %v2032 = vld [vmem:[%s1975 + $0x1c0] sm:$0xff]
        %v2033 = vld [vmem:[%s1975 + $0x1c8] sm:$0xff]
        %v2034 = vld [vmem:[%s1975 + $0x1d0] sm:$0xff]
        %v2035 = vld [vmem:[%s1975 + $0x1d8] sm:$0xff]
        %v2036 = vld [vmem:[%s1975 + $0x1e0] sm:$0xff]
        %v2037 = vld [vmem:[%s1975 + $0x1e8] sm:$0xff]
        %v2038 = vld [vmem:[%s1975 + $0x1f0] sm:$0xff]
        %v2039 = vld [vmem:[%s1975 + $0x1f8] sm:$0xff]
        %v2040 = vld [vmem:[%s1975 + $0x200] sm:$0xff]
        %v2041 = vld [vmem:[%s1975 + $0x208] sm:$0xff]
        %v2042 = vld [vmem:[%s1975 + $0x210] sm:$0xff]
        %v2043 = vld [vmem:[%s1975 + $0x218] sm:$0xff]
        %v2044 = vld [vmem:[%s1975 + $0x220] sm:$0xff]
        %v2045 = vld [vmem:[%s1975 + $0x228] sm:$0xff]
        %v2046 = vld [vmem:[%s1975 + $0x230] sm:$0xff]
        %v2047 = vld [vmem:[%s1975 + $0x238] sm:$0xff]
        %v2048 = vld [vmem:[%s1975 + $0x240] sm:$0xff]
        %v2049 = vld [vmem:[%s1975 + $0x248] sm:$0xff]
        %v2050 = vld [vmem:[%s1975 + $0x250] sm:$0xff]
        %v2051 = vld [vmem:[%s1975 + $0x258] sm:$0xff]
        %v2052 = vld [vmem:[%s1975 + $0x260] sm:$0xff]
        %v2053 = vld [vmem:[%s1975 + $0x268] sm:$0xff]
        %v2054 = vld [vmem:[%s1975 + $0x270] sm:$0xff]
        %v2055 = vld [vmem:[%s1975 + $0x278] sm:$0xff]
        %v2056 = vld [vmem:[%s1975 + $0x280] sm:$0xff]
        %v2057 = vld [vmem:[%s1975 + $0x288] sm:$0xff]
        %v2058 = vld [vmem:[%s1975 + $0x290] sm:$0xff]
        %v2059 = vld [vmem:[%s1975 + $0x298] sm:$0xff]
        %v2060 = vld [vmem:[%s1975 + $0x2a0] sm:$0xff]
        %v2061 = vld [vmem:[%s1975 + $0x2a8] sm:$0xff]
        %v2062 = vld [vmem:[%s1975 + $0x2b0] sm:$0xff]
        %v2063 = vld [vmem:[%s1975 + $0x2b8] sm:$0xff]
        %v2064 = vld [vmem:[%s1975 + $0x2c0] sm:$0xff]
        %v2065 = vld [vmem:[%s1975 + $0x2c8] sm:$0xff]
        %v2066 = vld [vmem:[%s1975 + $0x2d0] sm:$0xff]
        %v2067 = vld [vmem:[%s1975 + $0x2d8] sm:$0xff]
        %v2068 = vld [vmem:[%s1975 + $0x2e0] sm:$0xff]
        %v2069 = vld [vmem:[%s1975 + $0x2e8] sm:$0xff]
        %v2070 = vld [vmem:[%s1975 + $0x2f0] sm:$0xff]
        %v2071 = vld [vmem:[%s1975 + $0x2f8] sm:$0xff]
        %v2072 = vld [vmem:[%s1975 + $0x300] sm:$0xff]
        %v2073 = vld [vmem:[%s1975 + $0x308] sm:$0xff]
        %v2074 = vld [vmem:[%s1975 + $0x310] sm:$0xff]
        %v2075 = vld [vmem:[%s1975 + $0x318] sm:$0xff]
        %v2076 = vld [vmem:[%s1975 + $0x320] sm:$0xff]
        %v2077 = vld [vmem:[%s1975 + $0x328] sm:$0xff]
        %v2078 = vld [vmem:[%s1975 + $0x330] sm:$0xff]
        %v2079 = vld [vmem:[%s1975 + $0x338] sm:$0xff]
        %v2080 = vld [vmem:[%s1975 + $0x340] sm:$0xff]
        %v2081 = vld [vmem:[%s1975 + $0x348] sm:$0xff]
        %v2082 = vld [vmem:[%s1975 + $0x350] sm:$0xff]
        %v2083 = vld [vmem:[%s1975 + $0x358] sm:$0xff]
        %v2084 = vld [vmem:[%s1975 + $0x360] sm:$0xff]
        %v2085 = vld [vmem:[%s1975 + $0x368] sm:$0xff]
        %v2086 = vld [vmem:[%s1975 + $0x370] sm:$0xff]
        %v2087 = vld [vmem:[%s1975 + $0x378] sm:$0xff]
        %v2088 = vld [vmem:[%s1975 + $0x380] sm:$0xff]
        %v2089 = vld [vmem:[%s1975 + $0x388] sm:$0xff]
        %v2090 = vld [vmem:[%s1975 + $0x390] sm:$0xff]
        %v2091 = vld [vmem:[%s1975 + $0x398] sm:$0xff]
        %v2092 = vld [vmem:[%s1975 + $0x3a0] sm:$0xff]
        %v2093 = vld [vmem:[%s1975 + $0x3a8] sm:$0xff]
        %v2094 = vld [vmem:[%s1975 + $0x3b0] sm:$0xff]
        %v2095 = vld [vmem:[%s1975 + $0x3b8] sm:$0xff]
        %v2096 = vld [vmem:[%s1975 + $0x3c0] sm:$0xff]
        %v2097 = vld [vmem:[%s1975 + $0x3c8] sm:$0xff]
        %v2098 = vld [vmem:[%s1975 + $0x3d0] sm:$0xff]
        %v2099 = vld [vmem:[%s1975 + $0x3d8] sm:$0xff]
        %v2100 = vld [vmem:[%s1975 + $0x3e0] sm:$0xff]
        %v2101 = vld [vmem:[%s1975 + $0x3e8] sm:$0xff]
        %v2102 = vld [vmem:[%s1975 + $0x3f0] sm:$0xff]
        %v2103 = vld [vmem:[%s1975 + $0x3f8] sm:$0xff]
        %v2104 = vld [vmem:[%s1975 + $0x400] sm:$0xff]
        %v2105 = vld [vmem:[%s1975 + $0x408] sm:$0xff]
        %v2106 = vld [vmem:[%s1975 + $0x410] sm:$0xff]
        %v2107 = vld [vmem:[%s1975 + $0x418] sm:$0xff]
        %v2108 = vld [vmem:[%s1975 + $0x420] sm:$0xff]
        %v2109 = vld [vmem:[%s1975 + $0x428] sm:$0xff]
        %v2110 = vld [vmem:[%s1975 + $0x430] sm:$0xff]
        %v2111 = vld [vmem:[%s1975 + $0x438] sm:$0xff]
        %v2112 = vld [vmem:[%s1975 + $0x440] sm:$0xff]
        %v2113 = vld [vmem:[%s1975 + $0x448] sm:$0xff]
        %v2114 = vld [vmem:[%s1975 + $0x450] sm:$0xff]
        %v2115 = vld [vmem:[%s1975 + $0x458] sm:$0xff]
        %v2116 = vld [vmem:[%s1975 + $0x460] sm:$0xff]
        %v2117 = vld [vmem:[%s1975 + $0x468] sm:$0xff]
        %v2118 = vld [vmem:[%s1975 + $0x470] sm:$0xff]
        %v2119 = vld [vmem:[%s1975 + $0x478] sm:$0xff]
        %v2120 = vld [vmem:[%s1975 + $0x480] sm:$0xff]
        %v2121 = vld [vmem:[%s1975 + $0x488] sm:$0xff]
        %v2122 = vld [vmem:[%s1975 + $0x490] sm:$0xff]
        %v2123 = vld [vmem:[%s1975 + $0x498] sm:$0xff]
        %v2124 = vld [vmem:[%s1975 + $0x4a0] sm:$0xff]
        %v2125 = vld [vmem:[%s1975 + $0x4a8] sm:$0xff]
        %v2126 = vld [vmem:[%s1975 + $0x4b0] sm:$0xff]
        %v2127 = vld [vmem:[%s1975 + $0x4b8] sm:$0xff]
        %v2128 = vld [vmem:[%s1975 + $0x4c0] sm:$0xff]
        %v2129 = vld [vmem:[%s1975 + $0x4c8] sm:$0xff]
        %v2130 = vld [vmem:[%s1975 + $0x4d0] sm:$0xff]
        %v2131 = vld [vmem:[%s1975 + $0x4d8] sm:$0xff]
        %v2132 = vld [vmem:[%s1975 + $0x4e0] sm:$0xff]
        %v2133 = vld [vmem:[%s1975 + $0x4e8] sm:$0xff]
        %v2134 = vld [vmem:[%s1975 + $0x4f0] sm:$0xff]
        %v2135 = vld [vmem:[%s1975 + $0x4f8] sm:$0xff]
        %v2136 = vld [vmem:[%s1975 + $0x500] sm:$0xff]
        %v2137 = vld [vmem:[%s1975 + $0x508] sm:$0xff]
        %v2138 = vld [vmem:[%s1975 + $0x510] sm:$0xff]
        %v2139 = vld [vmem:[%s1975 + $0x518] sm:$0xff]
        %v2140 = vld [vmem:[%s1975 + $0x520] sm:$0xff]
        %v2141 = vld [vmem:[%s1975 + $0x528] sm:$0x1]
        %v2142 = vld [vmem:[%s1975 + $0x530] sm:$0x1]
        %v2143 = vld [vmem:[%s1975 + $0x538] sm:$0x1]
        %v2145 = vsel %vm496, %v1930, 0
        %v2148 = vsel %vm496, %v1934, 0
        %v2151 = vsel %vm496, %v1938, 0
        %v2154 = vsel %vm496, %v1942, 0
        %v2157 = vsel %vm496, %v1946, 0
        %v2160 = vsel %vm496, %v1950, 0
        %v2163 = vsel %vm496, %v1954, 0
        %v2166 = vsel %vm496, %v1958, 0
        %v2169 = vsel %vm496, %v1962, 0
        %v2172 = vsel %vm496, %v1966, 0
        %v2175 = vsel %vm496, %v1970, 0
        %v2178 = vsel %vm496, %v1974, 0
        %v2181 = vsel %vm533, %v2141, 0
        %v2184 = vsel %vm533, %v2142, 0
        %v2187 = vsel %vm533, %v2143, 0
        %2189 = vmatprep.subr.mxu0 %v1977
        %2190 = vmatpush1.msra.mxu0 %v1976
        %2191 = vmatprep.subr.mxu0 %v1980
        %2192 = vmatpush1.msra.mxu0 %v1979
        %2193 = vmatprep.subr.mxu0 %v1983
        %2194 = vmatpush1.msra.mxu0 %v1982
        %2195 = vmatprep.subr.mxu0 %v1986
        %2196 = vmatpush1.msra.mxu0 %v1985
        %2197 = vmatprep.subr.mxu0 %v1989
        %2198 = vmatpush1.msra.mxu0 %v1988
        %2199 = vmatprep.subr.mxu0 %v1992
        %2200 = vmatpush1.msra.mxu0 %v1991
        %2201 = vmatprep.subr.mxu0 %v1995
        %2202 = vmatpush1.msra.mxu0 %v1994
        %2203 = vmatprep.subr.mxu0 %v1998
        %2204 = vmatpush1.msra.mxu0 %v1997
        %2205 = vmatprep.subr.mxu0 %v2001
        %2206 = vmatpush1.msra.mxu0 %v2000
        %2207 = vmatprep.subr.mxu0 %v2004
        %2208 = vmatpush1.msra.mxu0 %v2003
        %2209 = vmatprep.subr.mxu0 %v2007
        %2210 = vmatpush1.msra.mxu0 %v2006
        %2211 = vmatprep.subr.mxu0 %v2010
        %2212 = vmatpush1.msra.mxu0 %v2009
        %2213 = vmatprep.subr.mxu0 %v2013
        %2214 = vmatpush1.msra.mxu0 %v2012
        %2215 = vmatprep.subr.mxu0 %v2016
        %2216 = vmatpush1.msra.mxu0 %v2015
        %2217 = vmatprep.subr.mxu0 %v2019
        %2218 = vmatpush1.msra.mxu0 %v2018
        %2219 = vmatprep.subr.mxu0 %v2022
        %2220 = vmatpush1.msra.mxu0 %v2021
        %2221 = vmatprep.subr.mxu0 %v2025
        %2222 = vmatpush1.msra.mxu0 %v2024
        %2223 = vmatprep.subr.mxu0 %v2028
        %2224 = vmatpush1.msra.mxu0 %v2027
        %2225 = vmatprep.subr.mxu0 %v2031
        %2226 = vmatpush1.msra.mxu0 %v2030
        %2227 = vmatprep.subr.mxu0 %v2034
        %2228 = vmatpush1.msra.mxu0 %v2033
        %2229 = vmatprep.subr.mxu0 %v2037
        %2230 = vmatpush1.msra.mxu0 %v2036
        %2231 = vmatprep.subr.mxu0 %v2040
        %2232 = vmatpush1.msra.mxu0 %v2039
        %2233 = vmatprep.subr.mxu0 %v2043
        %2234 = vmatpush1.msra.mxu0 %v2042
        %2235 = vmatprep.subr.mxu0 %v2046
        %2236 = vmatpush1.msra.mxu0 %v2045
        %2237 = vmatprep.subr.mxu0 %v2049
        %2238 = vmatpush1.msra.mxu0 %v2048
        %2239 = vmatprep.subr.mxu0 %v2052
        %2240 = vmatpush1.msra.mxu0 %v2051
        %2241 = vmatprep.subr.mxu0 %v2055
        %2242 = vmatpush1.msra.mxu0 %v2054
        %2243 = vmatprep.subr.mxu0 %v2058
        %2244 = vmatpush1.msra.mxu0 %v2057
        %2245 = vmatprep.subr.mxu0 %v2061
        %2246 = vmatpush1.msra.mxu0 %v2060
        %2247 = vmatprep.subr.mxu0 %v2064
        %2248 = vmatpush1.msra.mxu0 %v2063
        %2249 = vmatprep.subr.mxu0 %v2067
        %2250 = vmatpush1.msra.mxu0 %v2066
        %2251 = vmatprep.subr.mxu0 %v2070
        %2252 = vmatpush1.msra.mxu0 %v2069
        %2253 = vmatprep.mubr.f32.mxu0 %v1928
        %2254 = vmatmul.mubr.f32.gmra.mrb[0].mxu0 %v1927
        %v2255 = vpop.f32.mrb[0].mxu0
        %v2256 = vadd.f32 0.0, %v2255
        %v2257 = vpop.f32.mrb[0].mxu0
        %v2258 = vadd.f32 0.0, %v2257
        %2259 = vmatprep.mubr.f32.mxu0 %v1932
        %2260 = vmatmul.mubr.f32.gmra.mrb[0].mxu0 %v1931
        %v2261 = vpop.f32.mrb[0].mxu0
        %v2262 = vadd.f32 0.0, %v2261
        %v2263 = vpop.f32.mrb[0].mxu0
        %v2264 = vadd.f32 0.0, %v2263
        %2265 = vmatprep.mubr.f32.mxu0 %v1936
        %2266 = vmatmul.mubr.f32.gmra.mrb[0].mxu0 %v1935
        %v2267 = vpop.f32.mrb[0].mxu0
        %v2268 = vadd.f32 0.0, %v2267
        %v2269 = vpop.f32.mrb[0].mxu0
        %v2270 = vadd.f32 0.0, %v2269
        %2271 = vmatprep.mubr.f32.mxu0 %v1940
        %2272 = vmatmul.mubr.f32.gmra.mrb[0].mxu0 %v1939
        %v2273 = vpop.f32.mrb[0].mxu0
        %v2274 = vadd.f32 0.0, %v2273
        %v2275 = vpop.f32.mrb[0].mxu0
        %v2276 = vadd.f32 0.0, %v2275
        %2277 = vmatprep.mubr.f32.mxu0 %v1944
        %2278 = vmatmul.mubr.f32.gmra.mrb[0].mxu0 %v1943
        %v2279 = vpop.f32.mrb[0].mxu0
        %v2280 = vadd.f32 0.0, %v2279
        %v2281 = vpop.f32.mrb[0].mxu0
        %v2282 = vadd.f32 0.0, %v2281
        %2283 = vmatprep.mubr.f32.mxu0 %v1948
        %2284 = vmatmul.mubr.f32.gmra.mrb[0].mxu0 %v1947
        %v2285 = vpop.f32.mrb[0].mxu0
        %v2286 = vadd.f32 0.0, %v2285
        %v2287 = vpop.f32.mrb[0].mxu0
        %v2288 = vadd.f32 0.0, %v2287
        %2289 = vmatprep.mubr.f32.mxu0 %v1952
        %2290 = vmatmul.mubr.f32.gmra.mrb[0].mxu0 %v1951
        %v2291 = vpop.f32.mrb[0].mxu0
        %v2292 = vadd.f32 0.0, %v2291
        %v2293 = vpop.f32.mrb[0].mxu0
        %v2294 = vadd.f32 0.0, %v2293
        %2295 = vmatprep.mubr.f32.mxu0 %v1956
        %2296 = vmatmul.mubr.f32.gmra.mrb[0].mxu0 %v1955
        %v2297 = vpop.f32.mrb[0].mxu0
        %v2298 = vadd.f32 0.0, %v2297
        %v2299 = vpop.f32.mrb[0].mxu0
        %v2300 = vadd.f32 0.0, %v2299
        %2301 = vmatprep.mubr.f32.mxu0 %v1960
        %2302 = vmatmul.mubr.f32.gmra.mrb[0].mxu0 %v1959
        %v2303 = vpop.f32.mrb[0].mxu0
        %v2304 = vadd.f32 0.0, %v2303
        %v2305 = vpop.f32.mrb[0].mxu0
        %v2306 = vadd.f32 0.0, %v2305
        %2307 = vmatprep.mubr.f32.mxu0 %v1964
        %2308 = vmatmul.mubr.f32.gmra.mrb[0].mxu0 %v1963
        %v2309 = vpop.f32.mrb[0].mxu0
        %v2310 = vadd.f32 0.0, %v2309
        %v2311 = vpop.f32.mrb[0].mxu0
        %v2312 = vadd.f32 0.0, %v2311
        %2313 = vmatprep.mubr.f32.mxu0 %v1968
        %2314 = vmatmul.mubr.f32.gmra.mrb[0].mxu0 %v1967
        %v2315 = vpop.f32.mrb[0].mxu0
        %v2316 = vadd.f32 0.0, %v2315
        %v2317 = vpop.f32.mrb[0].mxu0
        %v2318 = vadd.f32 0.0, %v2317
        %2319 = vmatprep.mubr.f32.mxu0 %v1972
        %2320 = vmatmul.mubr.f32.gmra.mrb[0].mxu0 %v1971
        %v2321 = vpop.f32.mrb[0].mxu0
        %v2322 = vadd.f32 0.0, %v2321
        %v2323 = vpop.f32.mrb[0].mxu0
        %v2324 = vadd.f32 0.0, %v2323
        %2325 = vdwg.mxu0
        %2326 = vmatprep.subr.mxu0 %v2073
        %2327 = vmatpush1.msra.mxu0 %v2072
        %2328 = vmatprep.subr.mxu0 %v2076
        %2329 = vmatpush1.msra.mxu0 %v2075
        %2330 = vmatprep.subr.mxu0 %v2079
        %2331 = vmatpush1.msra.mxu0 %v2078
        %2332 = vmatprep.subr.mxu0 %v2082
        %2333 = vmatpush1.msra.mxu0 %v2081
        %2334 = vmatprep.subr.mxu0 %v2085
        %2335 = vmatpush1.msra.mxu0 %v2084
        %2336 = vmatprep.subr.mxu0 %v2088
        %2337 = vmatpush1.msra.mxu0 %v2087
        %2338 = vmatprep.subr.mxu0 %v2091
        %2339 = vmatpush1.msra.mxu0 %v2090
        %2340 = vmatprep.subr.mxu0 %v2094
        %2341 = vmatpush1.msra.mxu0 %v2093
        %2342 = vmatprep.subr.mxu0 %v2097
        %2343 = vmatpush1.msra.mxu0 %v2096
        %2344 = vmatprep.subr.mxu0 %v2100
        %2345 = vmatpush1.msra.mxu0 %v2099
        %2346 = vmatprep.subr.mxu0 %v2103
        %2347 = vmatpush1.msra.mxu0 %v2102
        %2348 = vmatprep.subr.mxu0 %v2106
        %2349 = vmatpush1.msra.mxu0 %v2105
        %2350 = vmatprep.subr.mxu0 %v2109
        %2351 = vmatpush1.msra.mxu0 %v2108
        %2352 = vmatprep.subr.mxu0 %v2112
        %2353 = vmatpush1.msra.mxu0 %v2111
        %2354 = vmatprep.subr.mxu0 %v2115
        %2355 = vmatpush1.msra.mxu0 %v2114
        %2356 = vmatprep.subr.mxu0 %v2118
        %2357 = vmatpush1.msra.mxu0 %v2117
        %2358 = vmatprep.subr.mxu0 %v2121
        %2359 = vmatpush1.msra.mxu0 %v2120
        %2360 = vmatprep.subr.mxu0 %v2124
        %2361 = vmatpush1.msra.mxu0 %v2123
        %2362 = vmatprep.subr.mxu0 %v2127
        %2363 = vmatpush1.msra.mxu0 %v2126
        %2364 = vmatprep.subr.mxu0 %v2130
        %2365 = vmatpush1.msra.mxu0 %v2129
        %2366 = vmatprep.subr.mxu0 %v2133
        %2367 = vmatpush1.msra.mxu0 %v2132
        %2368 = vmatprep.subr.mxu0 %v2136
        %2369 = vmatpush1.msra.mxu0 %v2135
        %2370 = vmatprep.subr.mxu0 %v2139
        %2371 = vmatpush1.msra.mxu0 %v2138
        %2372 = vmatprep.subr.mxu0 %v2184
        %2373 = vmatpush1.msra.mxu0 %v2181
        %2374 = vmatprep.subr.mxu0 0.0
        %2375 = vmatpush1.msra.mxu0 0.0
        %2376 = vmatprep.subr.mxu0 0.0
        %2377 = vmatpush1.msra.mxu0 0.0
        %2378 = vmatprep.subr.mxu0 0.0
        %2379 = vmatpush1.msra.mxu0 0.0
        %2380 = vmatprep.subr.mxu0 0.0
        %2381 = vmatpush1.msra.mxu0 0.0
        %2382 = vmatprep.subr.mxu0 0.0
        %2383 = vmatpush1.msra.mxu0 0.0
        %2384 = vmatprep.subr.mxu0 0.0
        %2385 = vmatpush1.msra.mxu0 0.0
        %2386 = vmatprep.subr.mxu0 0.0
        %2387 = vmatpush1.msra.mxu0 0.0
        %2388 = vmatprep.subr.mxu0 0.0
        %2389 = vmatpush1.msra.mxu0 0.0
        %2390 = vmatprep.mubr.f32.mxu0 %v2145
        %2391 = vmatmul.mubr.f32.gmra.mrb[0].mxu0 %v1929
        %v2392 = vpop.f32.mrb[0].mxu0
        %v2393 = vadd.f32 %v2256, %v2392
        %v2394 = vpop.f32.mrb[0].mxu0
        %v2395 = vadd.f32 %v2258, %v2394
        %2396 = vmatprep.mubr.f32.mxu0 %v2148
        %2397 = vmatmul.mubr.f32.gmra.mrb[0].mxu0 %v1933
        %v2398 = vpop.f32.mrb[0].mxu0
        %v2399 = vadd.f32 %v2262, %v2398
        %v2400 = vpop.f32.mrb[0].mxu0
        %v2401 = vadd.f32 %v2264, %v2400
        %2402 = vmatprep.mubr.f32.mxu0 %v2151
        %2403 = vmatmul.mubr.f32.gmra.mrb[0].mxu0 %v1937
        %v2404 = vpop.f32.mrb[0].mxu0
        %v2405 = vadd.f32 %v2268, %v2404
        %v2406 = vpop.f32.mrb[0].mxu0
        %v2407 = vadd.f32 %v2270, %v2406
        %2408 = vmatprep.mubr.f32.mxu0 %v2154
        %2409 = vmatmul.mubr.f32.gmra.mrb[0].mxu0 %v1941
        %v2410 = vpop.f32.mrb[0].mxu0
        %v2411 = vadd.f32 %v2274, %v2410
        %v2412 = vpop.f32.mrb[0].mxu0
        %v2413 = vadd.f32 %v2276, %v2412
        %2414 = vmatprep.mubr.f32.mxu0 %v2157
        %2415 = vmatmul.mubr.f32.gmra.mrb[0].mxu0 %v1945
        %v2416 = vpop.f32.mrb[0].mxu0
        %v2417 = vadd.f32 %v2280, %v2416
        %v2418 = vpop.f32.mrb[0].mxu0
        %v2419 = vadd.f32 %v2282, %v2418
        %2420 = vmatprep.mubr.f32.mxu0 %v2160
        %2421 = vmatmul.mubr.f32.gmra.mrb[0].mxu0 %v1949
        %v2422 = vpop.f32.mrb[0].mxu0
        %v2423 = vadd.f32 %v2286, %v2422
        %v2424 = vpop.f32.mrb[0].mxu0
        %v2425 = vadd.f32 %v2288, %v2424
        %2426 = vmatprep.mubr.f32.mxu0 %v2163
        %2427 = vmatmul.mubr.f32.gmra.mrb[0].mxu0 %v1953
        %v2428 = vpop.f32.mrb[0].mxu0
        %v2429 = vadd.f32 %v2292, %v2428
        %v2430 = vpop.f32.mrb[0].mxu0
        %v2431 = vadd.f32 %v2294, %v2430
        %2432 = vmatprep.mubr.f32.mxu0 %v2166
        %2433 = vmatmul.mubr.f32.gmra.mrb[0].mxu0 %v1957
        %v2434 = vpop.f32.mrb[0].mxu0
        %v2435 = vadd.f32 %v2298, %v2434
        %v2436 = vpop.f32.mrb[0].mxu0
        %v2437 = vadd.f32 %v2300, %v2436
        %2438 = vmatprep.mubr.f32.mxu0 %v2169
        %2439 = vmatmul.mubr.f32.gmra.mrb[0].mxu0 %v1961
        %v2440 = vpop.f32.mrb[0].mxu0
        %v2441 = vadd.f32 %v2304, %v2440
        %v2442 = vpop.f32.mrb[0].mxu0
        %v2443 = vadd.f32 %v2306, %v2442
        %2444 = vmatprep.mubr.f32.mxu0 %v2172
        %2445 = vmatmul.mubr.f32.gmra.mrb[0].mxu0 %v1965
        %v2446 = vpop.f32.mrb[0].mxu0
        %v2447 = vadd.f32 %v2310, %v2446
        %v2448 = vpop.f32.mrb[0].mxu0
        %v2449 = vadd.f32 %v2312, %v2448
        %2450 = vmatprep.mubr.f32.mxu0 %v2175
        %2451 = vmatmul.mubr.f32.gmra.mrb[0].mxu0 %v1969
        %v2452 = vpop.f32.mrb[0].mxu0
        %v2453 = vadd.f32 %v2316, %v2452
        %v2454 = vpop.f32.mrb[0].mxu0
        %v2455 = vadd.f32 %v2318, %v2454
        %2456 = vmatprep.mubr.f32.mxu0 %v2178
        %2457 = vmatmul.mubr.f32.gmra.mrb[0].mxu0 %v1973
        %v2458 = vpop.f32.mrb[0].mxu0
        %v2459 = vadd.f32 %v2322, %v2458
        %v2460 = vpop.f32.mrb[0].mxu0
        %v2461 = vadd.f32 %v2324, %v2460
        %2462 = vdwg.mxu0
        %2463 = vmatprep.subr.mxu0 0.0
        %2464 = vmatpush1.msra.mxu0 %v1978
        %2465 = vmatprep.subr.mxu0 0.0
        %2466 = vmatpush1.msra.mxu0 %v1981
        %2467 = vmatprep.subr.mxu0 0.0
        %2468 = vmatpush1.msra.mxu0 %v1984
        %2469 = vmatprep.subr.mxu0 0.0
        %2470 = vmatpush1.msra.mxu0 %v1987
        %2471 = vmatprep.subr.mxu0 0.0
        %2472 = vmatpush1.msra.mxu0 %v1990
        %2473 = vmatprep.subr.mxu0 0.0
        %2474 = vmatpush1.msra.mxu0 %v1993
        %2475 = vmatprep.subr.mxu0 0.0
        %2476 = vmatpush1.msra.mxu0 %v1996
        %2477 = vmatprep.subr.mxu0 0.0
        %2478 = vmatpush1.msra.mxu0 %v1999
        %2479 = vmatprep.subr.mxu0 0.0
        %2480 = vmatpush1.msra.mxu0 %v2002
        %2481 = vmatprep.subr.mxu0 0.0
        %2482 = vmatpush1.msra.mxu0 %v2005
        %2483 = vmatprep.subr.mxu0 0.0
        %2484 = vmatpush1.msra.mxu0 %v2008
        %2485 = vmatprep.subr.mxu0 0.0
        %2486 = vmatpush1.msra.mxu0 %v2011
        %2487 = vmatprep.subr.mxu0 0.0
        %2488 = vmatpush1.msra.mxu0 %v2014
        %2489 = vmatprep.subr.mxu0 0.0
        %2490 = vmatpush1.msra.mxu0 %v2017
        %2491 = vmatprep.subr.mxu0 0.0
        %2492 = vmatpush1.msra.mxu0 %v2020
        %2493 = vmatprep.subr.mxu0 0.0
        %2494 = vmatpush1.msra.mxu0 %v2023
        %2495 = vmatprep.subr.mxu0 0.0
        %2496 = vmatpush1.msra.mxu0 %v2026
        %2497 = vmatprep.subr.mxu0 0.0
        %2498 = vmatpush1.msra.mxu0 %v2029
        %2499 = vmatprep.subr.mxu0 0.0
        %2500 = vmatpush1.msra.mxu0 %v2032
        %2501 = vmatprep.subr.mxu0 0.0
        %2502 = vmatpush1.msra.mxu0 %v2035
        %2503 = vmatprep.subr.mxu0 0.0
        %2504 = vmatpush1.msra.mxu0 %v2038
        %2505 = vmatprep.subr.mxu0 0.0
        %2506 = vmatpush1.msra.mxu0 %v2041
        %2507 = vmatprep.subr.mxu0 0.0
        %2508 = vmatpush1.msra.mxu0 %v2044
        %2509 = vmatprep.subr.mxu0 0.0
        %2510 = vmatpush1.msra.mxu0 %v2047
        %2511 = vmatprep.subr.mxu0 0.0
        %2512 = vmatpush1.msra.mxu0 %v2050
        %2513 = vmatprep.subr.mxu0 0.0
        %2514 = vmatpush1.msra.mxu0 %v2053
        %2515 = vmatprep.subr.mxu0 0.0
        %2516 = vmatpush1.msra.mxu0 %v2056
        %2517 = vmatprep.subr.mxu0 0.0
        %2518 = vmatpush1.msra.mxu0 %v2059
        %2519 = vmatprep.subr.mxu0 0.0
        %2520 = vmatpush1.msra.mxu0 %v2062
        %2521 = vmatprep.subr.mxu0 0.0
        %2522 = vmatpush1.msra.mxu0 %v2065
        %2523 = vmatprep.subr.mxu0 0.0
        %2524 = vmatpush1.msra.mxu0 %v2068
        %2525 = vmatprep.subr.mxu0 0.0
        %2526 = vmatpush1.msra.mxu0 %v2071
        %2527 = vmatprep.mubr.f32.mxu0 %v1928
        %2528 = vmatmul.mubr.f32.gmra.mrb[0].mxu0 %v1927
        %v2529 = vpop.f32.mrb[0].mxu0
        %v2530 = vadd.f32 0.0, %v2529
        %v2531 = vpop.f32.mrb[0].mxu0
        %2532 = vmatprep.mubr.f32.mxu0 %v1932
        %2533 = vmatmul.mubr.f32.gmra.mrb[0].mxu0 %v1931
        %v2534 = vpop.f32.mrb[0].mxu0
        %v2535 = vadd.f32 0.0, %v2534
        %v2536 = vpop.f32.mrb[0].mxu0
        %2537 = vmatprep.mubr.f32.mxu0 %v1936
        %2538 = vmatmul.mubr.f32.gmra.mrb[0].mxu0 %v1935
        %v2539 = vpop.f32.mrb[0].mxu0
        %v2540 = vadd.f32 0.0, %v2539
        %v2541 = vpop.f32.mrb[0].mxu0
        %2542 = vmatprep.mubr.f32.mxu0 %v1940
        %2543 = vmatmul.mubr.f32.gmra.mrb[0].mxu0 %v1939
        %v2544 = vpop.f32.mrb[0].mxu0
        %v2545 = vadd.f32 0.0, %v2544
        %v2546 = vpop.f32.mrb[0].mxu0
        %2547 = vmatprep.mubr.f32.mxu0 %v1944
        %2548 = vmatmul.mubr.f32.gmra.mrb[0].mxu0 %v1943
        %v2549 = vpop.f32.mrb[0].mxu0
        %v2550 = vadd.f32 0.0, %v2549
        %v2551 = vpop.f32.mrb[0].mxu0
        %2552 = vmatprep.mubr.f32.mxu0 %v1948
        %2553 = vmatmul.mubr.f32.gmra.mrb[0].mxu0 %v1947
        %v2554 = vpop.f32.mrb[0].mxu0
        %v2555 = vadd.f32 0.0, %v2554
        %v2556 = vpop.f32.mrb[0].mxu0
        %2557 = vmatprep.mubr.f32.mxu0 %v1952
        %2558 = vmatmul.mubr.f32.gmra.mrb[0].mxu0 %v1951
        %v2559 = vpop.f32.mrb[0].mxu0
        %v2560 = vadd.f32 0.0, %v2559
        %v2561 = vpop.f32.mrb[0].mxu0
        %2562 = vmatprep.mubr.f32.mxu0 %v1956
        %2563 = vmatmul.mubr.f32.gmra.mrb[0].mxu0 %v1955
        %v2564 = vpop.f32.mrb[0].mxu0
        %v2565 = vadd.f32 0.0, %v2564
        %v2566 = vpop.f32.mrb[0].mxu0
        %2567 = vmatprep.mubr.f32.mxu0 %v1960
        %2568 = vmatmul.mubr.f32.gmra.mrb[0].mxu0 %v1959
        %v2569 = vpop.f32.mrb[0].mxu0
        %v2570 = vadd.f32 0.0, %v2569
        %v2571 = vpop.f32.mrb[0].mxu0
        %2572 = vmatprep.mubr.f32.mxu0 %v1964
        %2573 = vmatmul.mubr.f32.gmra.mrb[0].mxu0 %v1963
        %v2574 = vpop.f32.mrb[0].mxu0
        %v2575 = vadd.f32 0.0, %v2574
        %v2576 = vpop.f32.mrb[0].mxu0
        %2577 = vmatprep.mubr.f32.mxu0 %v1968
        %2578 = vmatmul.mubr.f32.gmra.mrb[0].mxu0 %v1967
        %v2579 = vpop.f32.mrb[0].mxu0
        %v2580 = vadd.f32 0.0, %v2579
        %v2581 = vpop.f32.mrb[0].mxu0
        %2582 = vmatprep.mubr.f32.mxu0 %v1972
        %2583 = vmatmul.mubr.f32.gmra.mrb[0].mxu0 %v1971
        %v2584 = vpop.f32.mrb[0].mxu0
        %v2585 = vadd.f32 0.0, %v2584
        %v2586 = vpop.f32.mrb[0].mxu0
        %2587 = vdwg.mxu0
        %2588 = vmatprep.subr.mxu0 0.0
        %2589 = vmatpush1.msra.mxu0 %v2074
        %2590 = vmatprep.subr.mxu0 0.0
        %2591 = vmatpush1.msra.mxu0 %v2077
        %2592 = vmatprep.subr.mxu0 0.0
        %2593 = vmatpush1.msra.mxu0 %v2080
        %2594 = vmatprep.subr.mxu0 0.0
        %2595 = vmatpush1.msra.mxu0 %v2083
        %2596 = vmatprep.subr.mxu0 0.0
        %2597 = vmatpush1.msra.mxu0 %v2086
        %2598 = vmatprep.subr.mxu0 0.0
        %2599 = vmatpush1.msra.mxu0 %v2089
        %2600 = vmatprep.subr.mxu0 0.0
        %2601 = vmatpush1.msra.mxu0 %v2092
        %2602 = vmatprep.subr.mxu0 0.0
        %2603 = vmatpush1.msra.mxu0 %v2095
        %2604 = vmatprep.subr.mxu0 0.0
        %2605 = vmatpush1.msra.mxu0 %v2098
        %2606 = vmatprep.subr.mxu0 0.0
        %2607 = vmatpush1.msra.mxu0 %v2101
        %2608 = vmatprep.subr.mxu0 0.0
        %2609 = vmatpush1.msra.mxu0 %v2104
        %2610 = vmatprep.subr.mxu0 0.0
        %2611 = vmatpush1.msra.mxu0 %v2107
        %2612 = vmatprep.subr.mxu0 0.0
        %2613 = vmatpush1.msra.mxu0 %v2110
        %2614 = vmatprep.subr.mxu0 0.0
        %2615 = vmatpush1.msra.mxu0 %v2113
        %2616 = vmatprep.subr.mxu0 0.0
        %2617 = vmatpush1.msra.mxu0 %v2116
        %2618 = vmatprep.subr.mxu0 0.0
        %2619 = vmatpush1.msra.mxu0 %v2119
        %2620 = vmatprep.subr.mxu0 0.0
        %2621 = vmatpush1.msra.mxu0 %v2122
        %2622 = vmatprep.subr.mxu0 0.0
        %2623 = vmatpush1.msra.mxu0 %v2125
        %2624 = vmatprep.subr.mxu0 0.0
        %2625 = vmatpush1.msra.mxu0 %v2128
        %2626 = vmatprep.subr.mxu0 0.0
        %2627 = vmatpush1.msra.mxu0 %v2131
        %2628 = vmatprep.subr.mxu0 0.0
        %2629 = vmatpush1.msra.mxu0 %v2134
        %2630 = vmatprep.subr.mxu0 0.0
        %2631 = vmatpush1.msra.mxu0 %v2137
        %2632 = vmatprep.subr.mxu0 0.0
        %2633 = vmatpush1.msra.mxu0 %v2140
        %2634 = vmatprep.subr.mxu0 0.0
        %2635 = vmatpush1.msra.mxu0 %v2187
        %2636 = vmatprep.subr.mxu0 0.0
        %2637 = vmatpush1.msra.mxu0 0.0
        %2638 = vmatprep.subr.mxu0 0.0
        %2639 = vmatpush1.msra.mxu0 0.0
        %2640 = vmatprep.subr.mxu0 0.0
        %2641 = vmatpush1.msra.mxu0 0.0
        %2642 = vmatprep.subr.mxu0 0.0
        %2643 = vmatpush1.msra.mxu0 0.0
        %2644 = vmatprep.subr.mxu0 0.0
        %2645 = vmatpush1.msra.mxu0 0.0
        %2646 = vmatprep.subr.mxu0 0.0
        %2647 = vmatpush1.msra.mxu0 0.0
        %2648 = vmatprep.subr.mxu0 0.0
        %2649 = vmatpush1.msra.mxu0 0.0
        %2650 = vmatprep.subr.mxu0 0.0
        %2651 = vmatpush1.msra.mxu0 0.0
        %2652 = vmatprep.mubr.f32.mxu0 %v2145
        %2653 = vmatmul.mubr.f32.gmra.mrb[0].mxu0 %v1929
        %v2654 = vpop.f32.mrb[0].mxu0
        %v2655 = vadd.f32 %v2530, %v2654
        %v2656 = vpop.f32.mrb[0].mxu0
        %2657 = vmatprep.mubr.f32.mxu0 %v2148
        %2658 = vmatmul.mubr.f32.gmra.mrb[0].mxu0 %v1933
        %v2659 = vpop.f32.mrb[0].mxu0
        %v2660 = vadd.f32 %v2535, %v2659
        %v2661 = vpop.f32.mrb[0].mxu0
        %2662 = vmatprep.mubr.f32.mxu0 %v2151
        %2663 = vmatmul.mubr.f32.gmra.mrb[0].mxu0 %v1937
        %v2664 = vpop.f32.mrb[0].mxu0
        %v2665 = vadd.f32 %v2540, %v2664
        %v2666 = vpop.f32.mrb[0].mxu0
        %2667 = vmatprep.mubr.f32.mxu0 %v2154
        %2668 = vmatmul.mubr.f32.gmra.mrb[0].mxu0 %v1941
        %v2669 = vpop.f32.mrb[0].mxu0
        %v2670 = vadd.f32 %v2545, %v2669
        %v2671 = vpop.f32.mrb[0].mxu0
        %2672 = vmatprep.mubr.f32.mxu0 %v2157
        %2673 = vmatmul.mubr.f32.gmra.mrb[0].mxu0 %v1945
        %v2674 = vpop.f32.mrb[0].mxu0
        %v2675 = vadd.f32 %v2550, %v2674
        %v2676 = vpop.f32.mrb[0].mxu0
        %2677 = vmatprep.mubr.f32.mxu0 %v2160
        %2678 = vmatmul.mubr.f32.gmra.mrb[0].mxu0 %v1949
        %v2679 = vpop.f32.mrb[0].mxu0
        %v2680 = vadd.f32 %v2555, %v2679
        %v2681 = vpop.f32.mrb[0].mxu0
        %2682 = vmatprep.mubr.f32.mxu0 %v2163
        %2683 = vmatmul.mubr.f32.gmra.mrb[0].mxu0 %v1953
        %v2684 = vpop.f32.mrb[0].mxu0
        %v2685 = vadd.f32 %v2560, %v2684
        %v2686 = vpop.f32.mrb[0].mxu0
        %2687 = vmatprep.mubr.f32.mxu0 %v2166
        %2688 = vmatmul.mubr.f32.gmra.mrb[0].mxu0 %v1957
        %v2689 = vpop.f32.mrb[0].mxu0
        %v2690 = vadd.f32 %v2565, %v2689
        %v2691 = vpop.f32.mrb[0].mxu0
        %2692 = vmatprep.mubr.f32.mxu0 %v2169
        %2693 = vmatmul.mubr.f32.gmra.mrb[0].mxu0 %v1961
        %v2694 = vpop.f32.mrb[0].mxu0
        %v2695 = vadd.f32 %v2570, %v2694
        %v2696 = vpop.f32.mrb[0].mxu0
        %2697 = vmatprep.mubr.f32.mxu0 %v2172
        %2698 = vmatmul.mubr.f32.gmra.mrb[0].mxu0 %v1965
        %v2699 = vpop.f32.mrb[0].mxu0
        %v2700 = vadd.f32 %v2575, %v2699
        %v2701 = vpop.f32.mrb[0].mxu0
        %2702 = vmatprep.mubr.f32.mxu0 %v2175
        %2703 = vmatmul.mubr.f32.gmra.mrb[0].mxu0 %v1969
        %v2704 = vpop.f32.mrb[0].mxu0
        %v2705 = vadd.f32 %v2580, %v2704
        %v2706 = vpop.f32.mrb[0].mxu0
        %2707 = vmatprep.mubr.f32.mxu0 %v2178
        %2708 = vmatmul.mubr.f32.gmra.mrb[0].mxu0 %v1973
        %v2709 = vpop.f32.mrb[0].mxu0
        %v2710 = vadd.f32 %v2585, %v2709
        %v2711 = vpop.f32.mrb[0].mxu0
        %2712 = vdwg.mxu0
        %v2713 = vadd.f32 %v1890, %v2393
        %v2714 = vadd.f32 %v1891, %v2395
        %v2715 = vadd.f32 %v1892, %v2655
        %v2716 = vadd.f32 %v1893, %v2399
        %v2717 = vadd.f32 %v1894, %v2401
        %v2718 = vadd.f32 %v1895, %v2660
        %v2719 = vadd.f32 %v1896, %v2405
        %v2720 = vadd.f32 %v1897, %v2407
        %v2721 = vadd.f32 %v1898, %v2665
        %v2722 = vadd.f32 %v1899, %v2411
        %v2723 = vadd.f32 %v1900, %v2413
        %v2724 = vadd.f32 %v1901, %v2670
        %v2725 = vadd.f32 %v1902, %v2417
        %v2726 = vadd.f32 %v1903, %v2419
        %v2727 = vadd.f32 %v1904, %v2675
        %v2728 = vadd.f32 %v1905, %v2423
        %v2729 = vadd.f32 %v1906, %v2425
        %v2730 = vadd.f32 %v1907, %v2680
        %v2731 = vadd.f32 %v1908, %v2429
        %v2732 = vadd.f32 %v1909, %v2431
        %v2733 = vadd.f32 %v1910, %v2685
        %v2734 = vadd.f32 %v1911, %v2435
        %v2735 = vadd.f32 %v1912, %v2437
        %v2736 = vadd.f32 %v1913, %v2690
        %v2737 = vadd.f32 %v1914, %v2441
        %v2738 = vadd.f32 %v1915, %v2443
        %v2739 = vadd.f32 %v1916, %v2695
        %v2740 = vadd.f32 %v1917, %v2447
        %v2741 = vadd.f32 %v1918, %v2449
        %v2742 = vadd.f32 %v1919, %v2700
        %v2743 = vadd.f32 %v1920, %v2453
        %v2744 = vadd.f32 %v1921, %v2455
        %v2745 = vadd.f32 %v1922, %v2705
        %v2746 = vadd.f32 %v1923, %v2459
        %v2747 = vadd.f32 %v1924, %v2461
        %v2748 = vadd.f32 %v1925, %v2710
        %s2749 = scalar_lea.vmem %s200, 1152
        %v2750 = vld [vmem:[%s2749] sm:$0xff]
        %v2751 = vld [vmem:[%s2749 + $0x8] sm:$0xff]
        %v2752 = vld [vmem:[%s2749 + $0x10] sm:$0xff]
        %v2753 = vld [vmem:[%s2749 + $0x18] sm:$0xff]
        %v2754 = vld [vmem:[%s2749 + $0x20] sm:$0xff]
        %v2755 = vld [vmem:[%s2749 + $0x28] sm:$0xff]
        %v2756 = vld [vmem:[%s2749 + $0x30] sm:$0xff]
        %v2757 = vld [vmem:[%s2749 + $0x38] sm:$0xff]
        %v2758 = vld [vmem:[%s2749 + $0x40] sm:$0xff]
        %v2759 = vld [vmem:[%s2749 + $0x48] sm:$0xff]
        %v2760 = vld [vmem:[%s2749 + $0x50] sm:$0xff]
        %v2761 = vld [vmem:[%s2749 + $0x58] sm:$0xff]
        %v2762 = vld [vmem:[%s2749 + $0x60] sm:$0xff]
        %v2763 = vld [vmem:[%s2749 + $0x68] sm:$0xff]
        %v2764 = vld [vmem:[%s2749 + $0x70] sm:$0xff]
        %v2765 = vld [vmem:[%s2749 + $0x78] sm:$0xff]
        %v2766 = vld [vmem:[%s2749 + $0x80] sm:$0xff]
        %v2767 = vld [vmem:[%s2749 + $0x88] sm:$0xff]
        %v2768 = vld [vmem:[%s2749 + $0x90] sm:$0xff]
        %v2769 = vld [vmem:[%s2749 + $0x98] sm:$0xff]
        %v2770 = vld [vmem:[%s2749 + $0xa0] sm:$0xff]
        %v2771 = vld [vmem:[%s2749 + $0xa8] sm:$0xff]
        %v2772 = vld [vmem:[%s2749 + $0xb0] sm:$0xff]
        %v2773 = vld [vmem:[%s2749 + $0xb8] sm:$0xff]
        %v2774 = vld [vmem:[%s2749 + $0xc0] sm:$0xff]
        %v2775 = vld [vmem:[%s2749 + $0xc8] sm:$0xff]
        %v2776 = vld [vmem:[%s2749 + $0xd0] sm:$0xff]
        %v2777 = vld [vmem:[%s2749 + $0xd8] sm:$0xff]
        %v2778 = vld [vmem:[%s2749 + $0xe0] sm:$0xff]
        %v2779 = vld [vmem:[%s2749 + $0xe8] sm:$0xff]
        %v2780 = vld [vmem:[%s2749 + $0xf0] sm:$0xff]
        %v2781 = vld [vmem:[%s2749 + $0xf8] sm:$0xff]
        %v2782 = vld [vmem:[%s2749 + $0x100] sm:$0xff]
        %v2783 = vld [vmem:[%s2749 + $0x108] sm:$0xff]
        %v2784 = vld [vmem:[%s2749 + $0x110] sm:$0xff]
        %v2785 = vld [vmem:[%s2749 + $0x118] sm:$0xff]
        %v2786 = vld [vmem:[%s2749 + $0x120] sm:$0xff]
        %v2787 = vld [vmem:[%s2749 + $0x128] sm:$0xff]
        %v2788 = vld [vmem:[%s2749 + $0x130] sm:$0xff]
        %v2789 = vld [vmem:[%s2749 + $0x138] sm:$0xff]
        %v2790 = vld [vmem:[%s2749 + $0x140] sm:$0xff]
        %v2791 = vld [vmem:[%s2749 + $0x148] sm:$0xff]
        %v2792 = vld [vmem:[%s2749 + $0x150] sm:$0xff]
        %v2793 = vld [vmem:[%s2749 + $0x158] sm:$0xff]
        %v2794 = vld [vmem:[%s2749 + $0x160] sm:$0xff]
        %v2795 = vld [vmem:[%s2749 + $0x168] sm:$0xff]
        %v2796 = vld [vmem:[%s2749 + $0x170] sm:$0xff]
        %v2797 = vld [vmem:[%s2749 + $0x178] sm:$0xff]
        %s2798 = scalar_lea.vmem %s171, 4032 [#allocation2]
        %v2799 = vld [vmem:[%s2798] sm:$0xff]
        %v2800 = vld [vmem:[%s2798 + $0x8] sm:$0xff]
        %v2801 = vld [vmem:[%s2798 + $0x10] sm:$0xff]
        %v2802 = vld [vmem:[%s2798 + $0x18] sm:$0xff]
        %v2803 = vld [vmem:[%s2798 + $0x20] sm:$0xff]
        %v2804 = vld [vmem:[%s2798 + $0x28] sm:$0xff]
        %v2805 = vld [vmem:[%s2798 + $0x30] sm:$0xff]
        %v2806 = vld [vmem:[%s2798 + $0x38] sm:$0xff]
        %v2807 = vld [vmem:[%s2798 + $0x40] sm:$0xff]
        %v2808 = vld [vmem:[%s2798 + $0x48] sm:$0xff]
        %v2809 = vld [vmem:[%s2798 + $0x50] sm:$0xff]
        %v2810 = vld [vmem:[%s2798 + $0x58] sm:$0xff]
        %v2811 = vld [vmem:[%s2798 + $0x60] sm:$0xff]
        %v2812 = vld [vmem:[%s2798 + $0x68] sm:$0xff]
        %v2813 = vld [vmem:[%s2798 + $0x70] sm:$0xff]
        %v2814 = vld [vmem:[%s2798 + $0x78] sm:$0xff]
        %v2815 = vld [vmem:[%s2798 + $0x80] sm:$0xff]
        %v2816 = vld [vmem:[%s2798 + $0x88] sm:$0xff]
        %v2817 = vld [vmem:[%s2798 + $0x90] sm:$0xff]
        %v2818 = vld [vmem:[%s2798 + $0x98] sm:$0xff]
        %v2819 = vld [vmem:[%s2798 + $0xa0] sm:$0xff]
        %v2820 = vld [vmem:[%s2798 + $0xa8] sm:$0xff]
        %v2821 = vld [vmem:[%s2798 + $0xb0] sm:$0xff]
        %v2822 = vld [vmem:[%s2798 + $0xb8] sm:$0xff]
        %v2823 = vld [vmem:[%s2798 + $0xc0] sm:$0xff]
        %v2824 = vld [vmem:[%s2798 + $0xc8] sm:$0xff]
        %v2825 = vld [vmem:[%s2798 + $0xd0] sm:$0xff]
        %v2826 = vld [vmem:[%s2798 + $0xd8] sm:$0xff]
        %v2827 = vld [vmem:[%s2798 + $0xe0] sm:$0xff]
        %v2828 = vld [vmem:[%s2798 + $0xe8] sm:$0xff]
        %v2829 = vld [vmem:[%s2798 + $0xf0] sm:$0xff]
        %v2830 = vld [vmem:[%s2798 + $0xf8] sm:$0xff]
        %v2831 = vld [vmem:[%s2798 + $0x100] sm:$0xff]
        %v2832 = vld [vmem:[%s2798 + $0x108] sm:$0xff]
        %v2833 = vld [vmem:[%s2798 + $0x110] sm:$0xff]
        %v2834 = vld [vmem:[%s2798 + $0x118] sm:$0xff]
        %v2835 = vld [vmem:[%s2798 + $0x120] sm:$0xff]
        %v2836 = vld [vmem:[%s2798 + $0x128] sm:$0xff]
        %v2837 = vld [vmem:[%s2798 + $0x130] sm:$0xff]
        %v2838 = vld [vmem:[%s2798 + $0x138] sm:$0xff]
        %v2839 = vld [vmem:[%s2798 + $0x140] sm:$0xff]
        %v2840 = vld [vmem:[%s2798 + $0x148] sm:$0xff]
        %v2841 = vld [vmem:[%s2798 + $0x150] sm:$0xff]
        %v2842 = vld [vmem:[%s2798 + $0x158] sm:$0xff]
        %v2843 = vld [vmem:[%s2798 + $0x160] sm:$0xff]
        %v2844 = vld [vmem:[%s2798 + $0x168] sm:$0xff]
        %v2845 = vld [vmem:[%s2798 + $0x170] sm:$0xff]
        %v2846 = vld [vmem:[%s2798 + $0x178] sm:$0xff]
        %v2847 = vld [vmem:[%s2798 + $0x180] sm:$0xff]
        %v2848 = vld [vmem:[%s2798 + $0x188] sm:$0xff]
        %v2849 = vld [vmem:[%s2798 + $0x190] sm:$0xff]
        %v2850 = vld [vmem:[%s2798 + $0x198] sm:$0xff]
        %v2851 = vld [vmem:[%s2798 + $0x1a0] sm:$0xff]
        %v2852 = vld [vmem:[%s2798 + $0x1a8] sm:$0xff]
        %v2853 = vld [vmem:[%s2798 + $0x1b0] sm:$0xff]
        %v2854 = vld [vmem:[%s2798 + $0x1b8] sm:$0xff]
        %v2855 = vld [vmem:[%s2798 + $0x1c0] sm:$0xff]
        %v2856 = vld [vmem:[%s2798 + $0x1c8] sm:$0xff]
        %v2857 = vld [vmem:[%s2798 + $0x1d0] sm:$0xff]
        %v2858 = vld [vmem:[%s2798 + $0x1d8] sm:$0xff]
        %v2859 = vld [vmem:[%s2798 + $0x1e0] sm:$0xff]
        %v2860 = vld [vmem:[%s2798 + $0x1e8] sm:$0xff]
        %v2861 = vld [vmem:[%s2798 + $0x1f0] sm:$0xff]
        %v2862 = vld [vmem:[%s2798 + $0x1f8] sm:$0xff]
        %v2863 = vld [vmem:[%s2798 + $0x200] sm:$0xff]
        %v2864 = vld [vmem:[%s2798 + $0x208] sm:$0xff]
        %v2865 = vld [vmem:[%s2798 + $0x210] sm:$0xff]
        %v2866 = vld [vmem:[%s2798 + $0x218] sm:$0xff]
        %v2867 = vld [vmem:[%s2798 + $0x220] sm:$0xff]
        %v2868 = vld [vmem:[%s2798 + $0x228] sm:$0xff]
        %v2869 = vld [vmem:[%s2798 + $0x230] sm:$0xff]
        %v2870 = vld [vmem:[%s2798 + $0x238] sm:$0xff]
        %v2871 = vld [vmem:[%s2798 + $0x240] sm:$0xff]
        %v2872 = vld [vmem:[%s2798 + $0x248] sm:$0xff]
        %v2873 = vld [vmem:[%s2798 + $0x250] sm:$0xff]
        %v2874 = vld [vmem:[%s2798 + $0x258] sm:$0xff]
        %v2875 = vld [vmem:[%s2798 + $0x260] sm:$0xff]
        %v2876 = vld [vmem:[%s2798 + $0x268] sm:$0xff]
        %v2877 = vld [vmem:[%s2798 + $0x270] sm:$0xff]
        %v2878 = vld [vmem:[%s2798 + $0x278] sm:$0xff]
        %v2879 = vld [vmem:[%s2798 + $0x280] sm:$0xff]
        %v2880 = vld [vmem:[%s2798 + $0x288] sm:$0xff]
        %v2881 = vld [vmem:[%s2798 + $0x290] sm:$0xff]
        %v2882 = vld [vmem:[%s2798 + $0x298] sm:$0xff]
        %v2883 = vld [vmem:[%s2798 + $0x2a0] sm:$0xff]
        %v2884 = vld [vmem:[%s2798 + $0x2a8] sm:$0xff]
        %v2885 = vld [vmem:[%s2798 + $0x2b0] sm:$0xff]
        %v2886 = vld [vmem:[%s2798 + $0x2b8] sm:$0xff]
        %v2887 = vld [vmem:[%s2798 + $0x2c0] sm:$0xff]
        %v2888 = vld [vmem:[%s2798 + $0x2c8] sm:$0xff]
        %v2889 = vld [vmem:[%s2798 + $0x2d0] sm:$0xff]
        %v2890 = vld [vmem:[%s2798 + $0x2d8] sm:$0xff]
        %v2891 = vld [vmem:[%s2798 + $0x2e0] sm:$0xff]
        %v2892 = vld [vmem:[%s2798 + $0x2e8] sm:$0xff]
        %v2893 = vld [vmem:[%s2798 + $0x2f0] sm:$0xff]
        %v2894 = vld [vmem:[%s2798 + $0x2f8] sm:$0xff]
        %v2895 = vld [vmem:[%s2798 + $0x300] sm:$0xff]
        %v2896 = vld [vmem:[%s2798 + $0x308] sm:$0xff]
        %v2897 = vld [vmem:[%s2798 + $0x310] sm:$0xff]
        %v2898 = vld [vmem:[%s2798 + $0x318] sm:$0xff]
        %v2899 = vld [vmem:[%s2798 + $0x320] sm:$0xff]
        %v2900 = vld [vmem:[%s2798 + $0x328] sm:$0xff]
        %v2901 = vld [vmem:[%s2798 + $0x330] sm:$0xff]
        %v2902 = vld [vmem:[%s2798 + $0x338] sm:$0xff]
        %v2903 = vld [vmem:[%s2798 + $0x340] sm:$0xff]
        %v2904 = vld [vmem:[%s2798 + $0x348] sm:$0xff]
        %v2905 = vld [vmem:[%s2798 + $0x350] sm:$0xff]
        %v2906 = vld [vmem:[%s2798 + $0x358] sm:$0xff]
        %v2907 = vld [vmem:[%s2798 + $0x360] sm:$0xff]
        %v2908 = vld [vmem:[%s2798 + $0x368] sm:$0xff]
        %v2909 = vld [vmem:[%s2798 + $0x370] sm:$0xff]
        %v2910 = vld [vmem:[%s2798 + $0x378] sm:$0xff]
        %v2911 = vld [vmem:[%s2798 + $0x380] sm:$0xff]
        %v2912 = vld [vmem:[%s2798 + $0x388] sm:$0xff]
        %v2913 = vld [vmem:[%s2798 + $0x390] sm:$0xff]
        %v2914 = vld [vmem:[%s2798 + $0x398] sm:$0xff]
        %v2915 = vld [vmem:[%s2798 + $0x3a0] sm:$0xff]
        %v2916 = vld [vmem:[%s2798 + $0x3a8] sm:$0xff]
        %v2917 = vld [vmem:[%s2798 + $0x3b0] sm:$0xff]
        %v2918 = vld [vmem:[%s2798 + $0x3b8] sm:$0xff]
        %v2919 = vld [vmem:[%s2798 + $0x3c0] sm:$0xff]
        %v2920 = vld [vmem:[%s2798 + $0x3c8] sm:$0xff]
        %v2921 = vld [vmem:[%s2798 + $0x3d0] sm:$0xff]
        %v2922 = vld [vmem:[%s2798 + $0x3d8] sm:$0xff]
        %v2923 = vld [vmem:[%s2798 + $0x3e0] sm:$0xff]
        %v2924 = vld [vmem:[%s2798 + $0x3e8] sm:$0xff]
        %v2925 = vld [vmem:[%s2798 + $0x3f0] sm:$0xff]
        %v2926 = vld [vmem:[%s2798 + $0x3f8] sm:$0xff]
        %v2927 = vld [vmem:[%s2798 + $0x400] sm:$0xff]
        %v2928 = vld [vmem:[%s2798 + $0x408] sm:$0xff]
        %v2929 = vld [vmem:[%s2798 + $0x410] sm:$0xff]
        %v2930 = vld [vmem:[%s2798 + $0x418] sm:$0xff]
        %v2931 = vld [vmem:[%s2798 + $0x420] sm:$0xff]
        %v2932 = vld [vmem:[%s2798 + $0x428] sm:$0xff]
        %v2933 = vld [vmem:[%s2798 + $0x430] sm:$0xff]
        %v2934 = vld [vmem:[%s2798 + $0x438] sm:$0xff]
        %v2935 = vld [vmem:[%s2798 + $0x440] sm:$0xff]
        %v2936 = vld [vmem:[%s2798 + $0x448] sm:$0xff]
        %v2937 = vld [vmem:[%s2798 + $0x450] sm:$0xff]
        %v2938 = vld [vmem:[%s2798 + $0x458] sm:$0xff]
        %v2939 = vld [vmem:[%s2798 + $0x460] sm:$0xff]
        %v2940 = vld [vmem:[%s2798 + $0x468] sm:$0xff]
        %v2941 = vld [vmem:[%s2798 + $0x470] sm:$0xff]
        %v2942 = vld [vmem:[%s2798 + $0x478] sm:$0xff]
        %v2943 = vld [vmem:[%s2798 + $0x480] sm:$0xff]
        %v2944 = vld [vmem:[%s2798 + $0x488] sm:$0xff]
        %v2945 = vld [vmem:[%s2798 + $0x490] sm:$0xff]
        %v2946 = vld [vmem:[%s2798 + $0x498] sm:$0xff]
        %v2947 = vld [vmem:[%s2798 + $0x4a0] sm:$0xff]
        %v2948 = vld [vmem:[%s2798 + $0x4a8] sm:$0xff]
        %v2949 = vld [vmem:[%s2798 + $0x4b0] sm:$0xff]
        %v2950 = vld [vmem:[%s2798 + $0x4b8] sm:$0xff]
        %v2951 = vld [vmem:[%s2798 + $0x4c0] sm:$0xff]
        %v2952 = vld [vmem:[%s2798 + $0x4c8] sm:$0xff]
        %v2953 = vld [vmem:[%s2798 + $0x4d0] sm:$0xff]
        %v2954 = vld [vmem:[%s2798 + $0x4d8] sm:$0xff]
        %v2955 = vld [vmem:[%s2798 + $0x4e0] sm:$0xff]
        %v2956 = vld [vmem:[%s2798 + $0x4e8] sm:$0xff]
        %v2957 = vld [vmem:[%s2798 + $0x4f0] sm:$0xff]
        %v2958 = vld [vmem:[%s2798 + $0x4f8] sm:$0xff]
        %v2959 = vld [vmem:[%s2798 + $0x500] sm:$0xff]
        %v2960 = vld [vmem:[%s2798 + $0x508] sm:$0xff]
        %v2961 = vld [vmem:[%s2798 + $0x510] sm:$0xff]
        %v2962 = vld [vmem:[%s2798 + $0x518] sm:$0xff]
        %v2963 = vld [vmem:[%s2798 + $0x520] sm:$0xff]
        %v2964 = vld [vmem:[%s2798 + $0x528] sm:$0x1]
        %v2965 = vld [vmem:[%s2798 + $0x530] sm:$0x1]
        %v2966 = vld [vmem:[%s2798 + $0x538] sm:$0x1]
        %v2968 = vsel %vm496, %v2753, 0
        %v2971 = vsel %vm496, %v2757, 0
        %v2974 = vsel %vm496, %v2761, 0
        %v2977 = vsel %vm496, %v2765, 0
        %v2980 = vsel %vm496, %v2769, 0
        %v2983 = vsel %vm496, %v2773, 0
        %v2986 = vsel %vm496, %v2777, 0
        %v2989 = vsel %vm496, %v2781, 0
        %v2992 = vsel %vm496, %v2785, 0
        %v2995 = vsel %vm496, %v2789, 0
        %v2998 = vsel %vm496, %v2793, 0
        %v3001 = vsel %vm496, %v2797, 0
        %v3004 = vsel %vm533, %v2964, 0
        %v3007 = vsel %vm533, %v2965, 0
        %v3010 = vsel %vm533, %v2966, 0
        %3012 = vmatprep.subr.mxu0 %v2800
        %3013 = vmatpush1.msra.mxu0 %v2799
        %3014 = vmatprep.subr.mxu0 %v2803
        %3015 = vmatpush1.msra.mxu0 %v2802
        %3016 = vmatprep.subr.mxu0 %v2806
        %3017 = vmatpush1.msra.mxu0 %v2805
        %3018 = vmatprep.subr.mxu0 %v2809
        %3019 = vmatpush1.msra.mxu0 %v2808
        %3020 = vmatprep.subr.mxu0 %v2812
        %3021 = vmatpush1.msra.mxu0 %v2811
        %3022 = vmatprep.subr.mxu0 %v2815
        %3023 = vmatpush1.msra.mxu0 %v2814
        %3024 = vmatprep.subr.mxu0 %v2818
        %3025 = vmatpush1.msra.mxu0 %v2817
        %3026 = vmatprep.subr.mxu0 %v2821
        %3027 = vmatpush1.msra.mxu0 %v2820
        %3028 = vmatprep.subr.mxu0 %v2824
        %3029 = vmatpush1.msra.mxu0 %v2823
        %3030 = vmatprep.subr.mxu0 %v2827
        %3031 = vmatpush1.msra.mxu0 %v2826
        %3032 = vmatprep.subr.mxu0 %v2830
        %3033 = vmatpush1.msra.mxu0 %v2829
        %3034 = vmatprep.subr.mxu0 %v2833
        %3035 = vmatpush1.msra.mxu0 %v2832
        %3036 = vmatprep.subr.mxu0 %v2836
        %3037 = vmatpush1.msra.mxu0 %v2835
        %3038 = vmatprep.subr.mxu0 %v2839
        %3039 = vmatpush1.msra.mxu0 %v2838
        %3040 = vmatprep.subr.mxu0 %v2842
        %3041 = vmatpush1.msra.mxu0 %v2841
        %3042 = vmatprep.subr.mxu0 %v2845
        %3043 = vmatpush1.msra.mxu0 %v2844
        %3044 = vmatprep.subr.mxu0 %v2848
        %3045 = vmatpush1.msra.mxu0 %v2847
        %3046 = vmatprep.subr.mxu0 %v2851
        %3047 = vmatpush1.msra.mxu0 %v2850
        %3048 = vmatprep.subr.mxu0 %v2854
        %3049 = vmatpush1.msra.mxu0 %v2853
        %3050 = vmatprep.subr.mxu0 %v2857
        %3051 = vmatpush1.msra.mxu0 %v2856
        %3052 = vmatprep.subr.mxu0 %v2860
        %3053 = vmatpush1.msra.mxu0 %v2859
        %3054 = vmatprep.subr.mxu0 %v2863
        %3055 = vmatpush1.msra.mxu0 %v2862
        %3056 = vmatprep.subr.mxu0 %v2866
        %3057 = vmatpush1.msra.mxu0 %v2865
        %3058 = vmatprep.subr.mxu0 %v2869
        %3059 = vmatpush1.msra.mxu0 %v2868
        %3060 = vmatprep.subr.mxu0 %v2872
        %3061 = vmatpush1.msra.mxu0 %v2871
        %3062 = vmatprep.subr.mxu0 %v2875
        %3063 = vmatpush1.msra.mxu0 %v2874
        %3064 = vmatprep.subr.mxu0 %v2878
        %3065 = vmatpush1.msra.mxu0 %v2877
        %3066 = vmatprep.subr.mxu0 %v2881
        %3067 = vmatpush1.msra.mxu0 %v2880
        %3068 = vmatprep.subr.mxu0 %v2884
        %3069 = vmatpush1.msra.mxu0 %v2883
        %3070 = vmatprep.subr.mxu0 %v2887
        %3071 = vmatpush1.msra.mxu0 %v2886
        %3072 = vmatprep.subr.mxu0 %v2890
        %3073 = vmatpush1.msra.mxu0 %v2889
        %3074 = vmatprep.subr.mxu0 %v2893
        %3075 = vmatpush1.msra.mxu0 %v2892
        %3076 = vmatprep.mubr.f32.mxu0 %v2751
        %3077 = vmatmul.mubr.f32.gmra.mrb[0].mxu0 %v2750
        %v3078 = vpop.f32.mrb[0].mxu0
        %v3079 = vadd.f32 0.0, %v3078
        %v3080 = vpop.f32.mrb[0].mxu0
        %v3081 = vadd.f32 0.0, %v3080
        %3082 = vmatprep.mubr.f32.mxu0 %v2755
        %3083 = vmatmul.mubr.f32.gmra.mrb[0].mxu0 %v2754
        %v3084 = vpop.f32.mrb[0].mxu0
        %v3085 = vadd.f32 0.0, %v3084
        %v3086 = vpop.f32.mrb[0].mxu0
        %v3087 = vadd.f32 0.0, %v3086
        %3088 = vmatprep.mubr.f32.mxu0 %v2759
        %3089 = vmatmul.mubr.f32.gmra.mrb[0].mxu0 %v2758
        %v3090 = vpop.f32.mrb[0].mxu0
        %v3091 = vadd.f32 0.0, %v3090
        %v3092 = vpop.f32.mrb[0].mxu0
        %v3093 = vadd.f32 0.0, %v3092
        %3094 = vmatprep.mubr.f32.mxu0 %v2763
        %3095 = vmatmul.mubr.f32.gmra.mrb[0].mxu0 %v2762
        %v3096 = vpop.f32.mrb[0].mxu0
        %v3097 = vadd.f32 0.0, %v3096
        %v3098 = vpop.f32.mrb[0].mxu0
        %v3099 = vadd.f32 0.0, %v3098
        %3100 = vmatprep.mubr.f32.mxu0 %v2767
        %3101 = vmatmul.mubr.f32.gmra.mrb[0].mxu0 %v2766
        %v3102 = vpop.f32.mrb[0].mxu0
        %v3103 = vadd.f32 0.0, %v3102
        %v3104 = vpop.f32.mrb[0].mxu0
        %v3105 = vadd.f32 0.0, %v3104
        %3106 = vmatprep.mubr.f32.mxu0 %v2771
        %3107 = vmatmul.mubr.f32.gmra.mrb[0].mxu0 %v2770
        %v3108 = vpop.f32.mrb[0].mxu0
        %v3109 = vadd.f32 0.0, %v3108
        %v3110 = vpop.f32.mrb[0].mxu0
        %v3111 = vadd.f32 0.0, %v3110
        %3112 = vmatprep.mubr.f32.mxu0 %v2775
        %3113 = vmatmul.mubr.f32.gmra.mrb[0].mxu0 %v2774
        %v3114 = vpop.f32.mrb[0].mxu0
        %v3115 = vadd.f32 0.0, %v3114
        %v3116 = vpop.f32.mrb[0].mxu0
        %v3117 = vadd.f32 0.0, %v3116
        %3118 = vmatprep.mubr.f32.mxu0 %v2779
        %3119 = vmatmul.mubr.f32.gmra.mrb[0].mxu0 %v2778
        %v3120 = vpop.f32.mrb[0].mxu0
        %v3121 = vadd.f32 0.0, %v3120
        %v3122 = vpop.f32.mrb[0].mxu0
        %v3123 = vadd.f32 0.0, %v3122
        %3124 = vmatprep.mubr.f32.mxu0 %v2783
        %3125 = vmatmul.mubr.f32.gmra.mrb[0].mxu0 %v2782
        %v3126 = vpop.f32.mrb[0].mxu0
        %v3127 = vadd.f32 0.0, %v3126
        %v3128 = vpop.f32.mrb[0].mxu0
        %v3129 = vadd.f32 0.0, %v3128
        %3130 = vmatprep.mubr.f32.mxu0 %v2787
        %3131 = vmatmul.mubr.f32.gmra.mrb[0].mxu0 %v2786
        %v3132 = vpop.f32.mrb[0].mxu0
        %v3133 = vadd.f32 0.0, %v3132
        %v3134 = vpop.f32.mrb[0].mxu0
        %v3135 = vadd.f32 0.0, %v3134
        %3136 = vmatprep.mubr.f32.mxu0 %v2791
        %3137 = vmatmul.mubr.f32.gmra.mrb[0].mxu0 %v2790
        %v3138 = vpop.f32.mrb[0].mxu0
        %v3139 = vadd.f32 0.0, %v3138
        %v3140 = vpop.f32.mrb[0].mxu0
        %v3141 = vadd.f32 0.0, %v3140
        %3142 = vmatprep.mubr.f32.mxu0 %v2795
        %3143 = vmatmul.mubr.f32.gmra.mrb[0].mxu0 %v2794
        %v3144 = vpop.f32.mrb[0].mxu0
        %v3145 = vadd.f32 0.0, %v3144
        %v3146 = vpop.f32.mrb[0].mxu0
        %v3147 = vadd.f32 0.0, %v3146
        %3148 = vdwg.mxu0
        %3149 = vmatprep.subr.mxu0 %v2896
        %3150 = vmatpush1.msra.mxu0 %v2895
        %3151 = vmatprep.subr.mxu0 %v2899
        %3152 = vmatpush1.msra.mxu0 %v2898
        %3153 = vmatprep.subr.mxu0 %v2902
        %3154 = vmatpush1.msra.mxu0 %v2901
        %3155 = vmatprep.subr.mxu0 %v2905
        %3156 = vmatpush1.msra.mxu0 %v2904
        %3157 = vmatprep.subr.mxu0 %v2908
        %3158 = vmatpush1.msra.mxu0 %v2907
        %3159 = vmatprep.subr.mxu0 %v2911
        %3160 = vmatpush1.msra.mxu0 %v2910
        %3161 = vmatprep.subr.mxu0 %v2914
        %3162 = vmatpush1.msra.mxu0 %v2913
        %3163 = vmatprep.subr.mxu0 %v2917
        %3164 = vmatpush1.msra.mxu0 %v2916
        %3165 = vmatprep.subr.mxu0 %v2920
        %3166 = vmatpush1.msra.mxu0 %v2919
        %3167 = vmatprep.subr.mxu0 %v2923
        %3168 = vmatpush1.msra.mxu0 %v2922
        %3169 = vmatprep.subr.mxu0 %v2926
        %3170 = vmatpush1.msra.mxu0 %v2925
        %3171 = vmatprep.subr.mxu0 %v2929
        %3172 = vmatpush1.msra.mxu0 %v2928
        %3173 = vmatprep.subr.mxu0 %v2932
        %3174 = vmatpush1.msra.mxu0 %v2931
        %3175 = vmatprep.subr.mxu0 %v2935
        %3176 = vmatpush1.msra.mxu0 %v2934
        %3177 = vmatprep.subr.mxu0 %v2938
        %3178 = vmatpush1.msra.mxu0 %v2937
        %3179 = vmatprep.subr.mxu0 %v2941
        %3180 = vmatpush1.msra.mxu0 %v2940
        %3181 = vmatprep.subr.mxu0 %v2944
        %3182 = vmatpush1.msra.mxu0 %v2943
        %3183 = vmatprep.subr.mxu0 %v2947
        %3184 = vmatpush1.msra.mxu0 %v2946
        %3185 = vmatprep.subr.mxu0 %v2950
        %3186 = vmatpush1.msra.mxu0 %v2949
        %3187 = vmatprep.subr.mxu0 %v2953
        %3188 = vmatpush1.msra.mxu0 %v2952
        %3189 = vmatprep.subr.mxu0 %v2956
        %3190 = vmatpush1.msra.mxu0 %v2955
        %3191 = vmatprep.subr.mxu0 %v2959
        %3192 = vmatpush1.msra.mxu0 %v2958
        %3193 = vmatprep.subr.mxu0 %v2962
        %3194 = vmatpush1.msra.mxu0 %v2961
        %3195 = vmatprep.subr.mxu0 %v3007
        %3196 = vmatpush1.msra.mxu0 %v3004
        %3197 = vmatprep.subr.mxu0 0.0
        %3198 = vmatpush1.msra.mxu0 0.0
        %3199 = vmatprep.subr.mxu0 0.0
        %3200 = vmatpush1.msra.mxu0 0.0
        %3201 = vmatprep.subr.mxu0 0.0
        %3202 = vmatpush1.msra.mxu0 0.0
        %3203 = vmatprep.subr.mxu0 0.0
        %3204 = vmatpush1.msra.mxu0 0.0
        %3205 = vmatprep.subr.mxu0 0.0
        %3206 = vmatpush1.msra.mxu0 0.0
        %3207 = vmatprep.subr.mxu0 0.0
        %3208 = vmatpush1.msra.mxu0 0.0
        %3209 = vmatprep.subr.mxu0 0.0
        %3210 = vmatpush1.msra.mxu0 0.0
        %3211 = vmatprep.subr.mxu0 0.0
        %3212 = vmatpush1.msra.mxu0 0.0
        %3213 = vmatprep.mubr.f32.mxu0 %v2968
        %3214 = vmatmul.mubr.f32.gmra.mrb[0].mxu0 %v2752
        %v3215 = vpop.f32.mrb[0].mxu0
        %v3216 = vadd.f32 %v3079, %v3215
        %v3217 = vpop.f32.mrb[0].mxu0
        %v3218 = vadd.f32 %v3081, %v3217
        %3219 = vmatprep.mubr.f32.mxu0 %v2971
        %3220 = vmatmul.mubr.f32.gmra.mrb[0].mxu0 %v2756
        %v3221 = vpop.f32.mrb[0].mxu0
        %v3222 = vadd.f32 %v3085, %v3221
        %v3223 = vpop.f32.mrb[0].mxu0
        %v3224 = vadd.f32 %v3087, %v3223
        %3225 = vmatprep.mubr.f32.mxu0 %v2974
        %3226 = vmatmul.mubr.f32.gmra.mrb[0].mxu0 %v2760
        %v3227 = vpop.f32.mrb[0].mxu0
        %v3228 = vadd.f32 %v3091, %v3227
        %v3229 = vpop.f32.mrb[0].mxu0
        %v3230 = vadd.f32 %v3093, %v3229
        %3231 = vmatprep.mubr.f32.mxu0 %v2977
        %3232 = vmatmul.mubr.f32.gmra.mrb[0].mxu0 %v2764
        %v3233 = vpop.f32.mrb[0].mxu0
        %v3234 = vadd.f32 %v3097, %v3233
        %v3235 = vpop.f32.mrb[0].mxu0
        %v3236 = vadd.f32 %v3099, %v3235
        %3237 = vmatprep.mubr.f32.mxu0 %v2980
        %3238 = vmatmul.mubr.f32.gmra.mrb[0].mxu0 %v2768
        %v3239 = vpop.f32.mrb[0].mxu0
        %v3240 = vadd.f32 %v3103, %v3239
        %v3241 = vpop.f32.mrb[0].mxu0
        %v3242 = vadd.f32 %v3105, %v3241
        %3243 = vmatprep.mubr.f32.mxu0 %v2983
        %3244 = vmatmul.mubr.f32.gmra.mrb[0].mxu0 %v2772
        %v3245 = vpop.f32.mrb[0].mxu0
        %v3246 = vadd.f32 %v3109, %v3245
        %v3247 = vpop.f32.mrb[0].mxu0
        %v3248 = vadd.f32 %v3111, %v3247
        %3249 = vmatprep.mubr.f32.mxu0 %v2986
        %3250 = vmatmul.mubr.f32.gmra.mrb[0].mxu0 %v2776
        %v3251 = vpop.f32.mrb[0].mxu0
        %v3252 = vadd.f32 %v3115, %v3251
        %v3253 = vpop.f32.mrb[0].mxu0
        %v3254 = vadd.f32 %v3117, %v3253
        %3255 = vmatprep.mubr.f32.mxu0 %v2989
        %3256 = vmatmul.mubr.f32.gmra.mrb[0].mxu0 %v2780
        %v3257 = vpop.f32.mrb[0].mxu0
        %v3258 = vadd.f32 %v3121, %v3257
        %v3259 = vpop.f32.mrb[0].mxu0
        %v3260 = vadd.f32 %v3123, %v3259
        %3261 = vmatprep.mubr.f32.mxu0 %v2992
        %3262 = vmatmul.mubr.f32.gmra.mrb[0].mxu0 %v2784
        %v3263 = vpop.f32.mrb[0].mxu0
        %v3264 = vadd.f32 %v3127, %v3263
        %v3265 = vpop.f32.mrb[0].mxu0
        %v3266 = vadd.f32 %v3129, %v3265
        %3267 = vmatprep.mubr.f32.mxu0 %v2995
        %3268 = vmatmul.mubr.f32.gmra.mrb[0].mxu0 %v2788
        %v3269 = vpop.f32.mrb[0].mxu0
        %v3270 = vadd.f32 %v3133, %v3269
        %v3271 = vpop.f32.mrb[0].mxu0
        %v3272 = vadd.f32 %v3135, %v3271
        %3273 = vmatprep.mubr.f32.mxu0 %v2998
        %3274 = vmatmul.mubr.f32.gmra.mrb[0].mxu0 %v2792
        %v3275 = vpop.f32.mrb[0].mxu0
        %v3276 = vadd.f32 %v3139, %v3275
        %v3277 = vpop.f32.mrb[0].mxu0
        %v3278 = vadd.f32 %v3141, %v3277
        %3279 = vmatprep.mubr.f32.mxu0 %v3001
        %3280 = vmatmul.mubr.f32.gmra.mrb[0].mxu0 %v2796
        %v3281 = vpop.f32.mrb[0].mxu0
        %v3282 = vadd.f32 %v3145, %v3281
        %v3283 = vpop.f32.mrb[0].mxu0
        %v3284 = vadd.f32 %v3147, %v3283
        %3285 = vdwg.mxu0
        %3286 = vmatprep.subr.mxu0 0.0
        %3287 = vmatpush1.msra.mxu0 %v2801
        %3288 = vmatprep.subr.mxu0 0.0
        %3289 = vmatpush1.msra.mxu0 %v2804
        %3290 = vmatprep.subr.mxu0 0.0
        %3291 = vmatpush1.msra.mxu0 %v2807
        %3292 = vmatprep.subr.mxu0 0.0
        %3293 = vmatpush1.msra.mxu0 %v2810
        %3294 = vmatprep.subr.mxu0 0.0
        %3295 = vmatpush1.msra.mxu0 %v2813
        %3296 = vmatprep.subr.mxu0 0.0
        %3297 = vmatpush1.msra.mxu0 %v2816
        %3298 = vmatprep.subr.mxu0 0.0
        %3299 = vmatpush1.msra.mxu0 %v2819
        %3300 = vmatprep.subr.mxu0 0.0
        %3301 = vmatpush1.msra.mxu0 %v2822
        %3302 = vmatprep.subr.mxu0 0.0
        %3303 = vmatpush1.msra.mxu0 %v2825
        %3304 = vmatprep.subr.mxu0 0.0
        %3305 = vmatpush1.msra.mxu0 %v2828
        %3306 = vmatprep.subr.mxu0 0.0
        %3307 = vmatpush1.msra.mxu0 %v2831
        %3308 = vmatprep.subr.mxu0 0.0
        %3309 = vmatpush1.msra.mxu0 %v2834
        %3310 = vmatprep.subr.mxu0 0.0
        %3311 = vmatpush1.msra.mxu0 %v2837
        %3312 = vmatprep.subr.mxu0 0.0
        %3313 = vmatpush1.msra.mxu0 %v2840
        %3314 = vmatprep.subr.mxu0 0.0
        %3315 = vmatpush1.msra.mxu0 %v2843
        %3316 = vmatprep.subr.mxu0 0.0
        %3317 = vmatpush1.msra.mxu0 %v2846
        %3318 = vmatprep.subr.mxu0 0.0
        %3319 = vmatpush1.msra.mxu0 %v2849
        %3320 = vmatprep.subr.mxu0 0.0
        %3321 = vmatpush1.msra.mxu0 %v2852
        %3322 = vmatprep.subr.mxu0 0.0
        %3323 = vmatpush1.msra.mxu0 %v2855
        %3324 = vmatprep.subr.mxu0 0.0
        %3325 = vmatpush1.msra.mxu0 %v2858
        %3326 = vmatprep.subr.mxu0 0.0
        %3327 = vmatpush1.msra.mxu0 %v2861
        %3328 = vmatprep.subr.mxu0 0.0
        %3329 = vmatpush1.msra.mxu0 %v2864
        %3330 = vmatprep.subr.mxu0 0.0
        %3331 = vmatpush1.msra.mxu0 %v2867
        %3332 = vmatprep.subr.mxu0 0.0
        %3333 = vmatpush1.msra.mxu0 %v2870
        %3334 = vmatprep.subr.mxu0 0.0
        %3335 = vmatpush1.msra.mxu0 %v2873
        %3336 = vmatprep.subr.mxu0 0.0
        %3337 = vmatpush1.msra.mxu0 %v2876
        %3338 = vmatprep.subr.mxu0 0.0
        %3339 = vmatpush1.msra.mxu0 %v2879
        %3340 = vmatprep.subr.mxu0 0.0
        %3341 = vmatpush1.msra.mxu0 %v2882
        %3342 = vmatprep.subr.mxu0 0.0
        %3343 = vmatpush1.msra.mxu0 %v2885
        %3344 = vmatprep.subr.mxu0 0.0
        %3345 = vmatpush1.msra.mxu0 %v2888
        %3346 = vmatprep.subr.mxu0 0.0
        %3347 = vmatpush1.msra.mxu0 %v2891
        %3348 = vmatprep.subr.mxu0 0.0
        %3349 = vmatpush1.msra.mxu0 %v2894
        %3350 = vmatprep.mubr.f32.mxu0 %v2751
        %3351 = vmatmul.mubr.f32.gmra.mrb[0].mxu0 %v2750
        %v3352 = vpop.f32.mrb[0].mxu0
        %v3353 = vadd.f32 0.0, %v3352
        %v3354 = vpop.f32.mrb[0].mxu0
        %3355 = vmatprep.mubr.f32.mxu0 %v2755
        %3356 = vmatmul.mubr.f32.gmra.mrb[0].mxu0 %v2754
        %v3357 = vpop.f32.mrb[0].mxu0
        %v3358 = vadd.f32 0.0, %v3357
        %v3359 = vpop.f32.mrb[0].mxu0
        %3360 = vmatprep.mubr.f32.mxu0 %v2759
        %3361 = vmatmul.mubr.f32.gmra.mrb[0].mxu0 %v2758
        %v3362 = vpop.f32.mrb[0].mxu0
        %v3363 = vadd.f32 0.0, %v3362
        %v3364 = vpop.f32.mrb[0].mxu0
        %3365 = vmatprep.mubr.f32.mxu0 %v2763
        %3366 = vmatmul.mubr.f32.gmra.mrb[0].mxu0 %v2762
        %v3367 = vpop.f32.mrb[0].mxu0
        %v3368 = vadd.f32 0.0, %v3367
        %v3369 = vpop.f32.mrb[0].mxu0
        %3370 = vmatprep.mubr.f32.mxu0 %v2767
        %3371 = vmatmul.mubr.f32.gmra.mrb[0].mxu0 %v2766
        %v3372 = vpop.f32.mrb[0].mxu0
        %v3373 = vadd.f32 0.0, %v3372
        %v3374 = vpop.f32.mrb[0].mxu0
        %3375 = vmatprep.mubr.f32.mxu0 %v2771
        %3376 = vmatmul.mubr.f32.gmra.mrb[0].mxu0 %v2770
        %v3377 = vpop.f32.mrb[0].mxu0
        %v3378 = vadd.f32 0.0, %v3377
        %v3379 = vpop.f32.mrb[0].mxu0
        %3380 = vmatprep.mubr.f32.mxu0 %v2775
        %3381 = vmatmul.mubr.f32.gmra.mrb[0].mxu0 %v2774
        %v3382 = vpop.f32.mrb[0].mxu0
        %v3383 = vadd.f32 0.0, %v3382
        %v3384 = vpop.f32.mrb[0].mxu0
        %3385 = vmatprep.mubr.f32.mxu0 %v2779
        %3386 = vmatmul.mubr.f32.gmra.mrb[0].mxu0 %v2778
        %v3387 = vpop.f32.mrb[0].mxu0
        %v3388 = vadd.f32 0.0, %v3387
        %v3389 = vpop.f32.mrb[0].mxu0
        %3390 = vmatprep.mubr.f32.mxu0 %v2783
        %3391 = vmatmul.mubr.f32.gmra.mrb[0].mxu0 %v2782
        %v3392 = vpop.f32.mrb[0].mxu0
        %v3393 = vadd.f32 0.0, %v3392
        %v3394 = vpop.f32.mrb[0].mxu0
        %3395 = vmatprep.mubr.f32.mxu0 %v2787
        %3396 = vmatmul.mubr.f32.gmra.mrb[0].mxu0 %v2786
        %v3397 = vpop.f32.mrb[0].mxu0
        %v3398 = vadd.f32 0.0, %v3397
        %v3399 = vpop.f32.mrb[0].mxu0
        %3400 = vmatprep.mubr.f32.mxu0 %v2791
        %3401 = vmatmul.mubr.f32.gmra.mrb[0].mxu0 %v2790
        %v3402 = vpop.f32.mrb[0].mxu0
        %v3403 = vadd.f32 0.0, %v3402
        %v3404 = vpop.f32.mrb[0].mxu0
        %3405 = vmatprep.mubr.f32.mxu0 %v2795
        %3406 = vmatmul.mubr.f32.gmra.mrb[0].mxu0 %v2794
        %v3407 = vpop.f32.mrb[0].mxu0
        %v3408 = vadd.f32 0.0, %v3407
        %v3409 = vpop.f32.mrb[0].mxu0
        %3410 = vdwg.mxu0
        %3411 = vmatprep.subr.mxu0 0.0
        %3412 = vmatpush1.msra.mxu0 %v2897
        %3413 = vmatprep.subr.mxu0 0.0
        %3414 = vmatpush1.msra.mxu0 %v2900
        %3415 = vmatprep.subr.mxu0 0.0
        %3416 = vmatpush1.msra.mxu0 %v2903
        %3417 = vmatprep.subr.mxu0 0.0
        %3418 = vmatpush1.msra.mxu0 %v2906
        %3419 = vmatprep.subr.mxu0 0.0
        %3420 = vmatpush1.msra.mxu0 %v2909
        %3421 = vmatprep.subr.mxu0 0.0
        %3422 = vmatpush1.msra.mxu0 %v2912
        %3423 = vmatprep.subr.mxu0 0.0
        %3424 = vmatpush1.msra.mxu0 %v2915
        %3425 = vmatprep.subr.mxu0 0.0
        %3426 = vmatpush1.msra.mxu0 %v2918
        %3427 = vmatprep.subr.mxu0 0.0
        %3428 = vmatpush1.msra.mxu0 %v2921
        %3429 = vmatprep.subr.mxu0 0.0
        %3430 = vmatpush1.msra.mxu0 %v2924
        %3431 = vmatprep.subr.mxu0 0.0
        %3432 = vmatpush1.msra.mxu0 %v2927
        %3433 = vmatprep.subr.mxu0 0.0
        %3434 = vmatpush1.msra.mxu0 %v2930
        %3435 = vmatprep.subr.mxu0 0.0
        %3436 = vmatpush1.msra.mxu0 %v2933
        %3437 = vmatprep.subr.mxu0 0.0
        %3438 = vmatpush1.msra.mxu0 %v2936
        %3439 = vmatprep.subr.mxu0 0.0
        %3440 = vmatpush1.msra.mxu0 %v2939
        %3441 = vmatprep.subr.mxu0 0.0
        %3442 = vmatpush1.msra.mxu0 %v2942
        %3443 = vmatprep.subr.mxu0 0.0
        %3444 = vmatpush1.msra.mxu0 %v2945
        %3445 = vmatprep.subr.mxu0 0.0
        %3446 = vmatpush1.msra.mxu0 %v2948
        %3447 = vmatprep.subr.mxu0 0.0
        %3448 = vmatpush1.msra.mxu0 %v2951
        %3449 = vmatprep.subr.mxu0 0.0
        %3450 = vmatpush1.msra.mxu0 %v2954
        %3451 = vmatprep.subr.mxu0 0.0
        %3452 = vmatpush1.msra.mxu0 %v2957
        %3453 = vmatprep.subr.mxu0 0.0
        %3454 = vmatpush1.msra.mxu0 %v2960
        %3455 = vmatprep.subr.mxu0 0.0
        %3456 = vmatpush1.msra.mxu0 %v2963
        %3457 = vmatprep.subr.mxu0 0.0
        %3458 = vmatpush1.msra.mxu0 %v3010
        %3459 = vmatprep.subr.mxu0 0.0
        %3460 = vmatpush1.msra.mxu0 0.0
        %3461 = vmatprep.subr.mxu0 0.0
        %3462 = vmatpush1.msra.mxu0 0.0
        %3463 = vmatprep.subr.mxu0 0.0
        %3464 = vmatpush1.msra.mxu0 0.0
        %3465 = vmatprep.subr.mxu0 0.0
        %3466 = vmatpush1.msra.mxu0 0.0
        %3467 = vmatprep.subr.mxu0 0.0
        %3468 = vmatpush1.msra.mxu0 0.0
        %3469 = vmatprep.subr.mxu0 0.0
        %3470 = vmatpush1.msra.mxu0 0.0
        %3471 = vmatprep.subr.mxu0 0.0
        %3472 = vmatpush1.msra.mxu0 0.0
        %3473 = vmatprep.subr.mxu0 0.0
        %3474 = vmatpush1.msra.mxu0 0.0
        %3475 = vmatprep.mubr.f32.mxu0 %v2968
        %3476 = vmatmul.mubr.f32.gmra.mrb[0].mxu0 %v2752
        %v3477 = vpop.f32.mrb[0].mxu0
        %v3478 = vadd.f32 %v3353, %v3477
        %v3479 = vpop.f32.mrb[0].mxu0
        %3480 = vmatprep.mubr.f32.mxu0 %v2971
        %3481 = vmatmul.mubr.f32.gmra.mrb[0].mxu0 %v2756
        %v3482 = vpop.f32.mrb[0].mxu0
        %v3483 = vadd.f32 %v3358, %v3482
        %v3484 = vpop.f32.mrb[0].mxu0
        %3485 = vmatprep.mubr.f32.mxu0 %v2974
        %3486 = vmatmul.mubr.f32.gmra.mrb[0].mxu0 %v2760
        %v3487 = vpop.f32.mrb[0].mxu0
        %v3488 = vadd.f32 %v3363, %v3487
        %v3489 = vpop.f32.mrb[0].mxu0
        %3490 = vmatprep.mubr.f32.mxu0 %v2977
        %3491 = vmatmul.mubr.f32.gmra.mrb[0].mxu0 %v2764
        %v3492 = vpop.f32.mrb[0].mxu0
        %v3493 = vadd.f32 %v3368, %v3492
        %v3494 = vpop.f32.mrb[0].mxu0
        %3495 = vmatprep.mubr.f32.mxu0 %v2980
        %3496 = vmatmul.mubr.f32.gmra.mrb[0].mxu0 %v2768
        %v3497 = vpop.f32.mrb[0].mxu0
        %v3498 = vadd.f32 %v3373, %v3497
        %v3499 = vpop.f32.mrb[0].mxu0
        %3500 = vmatprep.mubr.f32.mxu0 %v2983
        %3501 = vmatmul.mubr.f32.gmra.mrb[0].mxu0 %v2772
        %v3502 = vpop.f32.mrb[0].mxu0
        %v3503 = vadd.f32 %v3378, %v3502
        %v3504 = vpop.f32.mrb[0].mxu0
        %3505 = vmatprep.mubr.f32.mxu0 %v2986
        %3506 = vmatmul.mubr.f32.gmra.mrb[0].mxu0 %v2776
        %v3507 = vpop.f32.mrb[0].mxu0
        %v3508 = vadd.f32 %v3383, %v3507
        %v3509 = vpop.f32.mrb[0].mxu0
        %3510 = vmatprep.mubr.f32.mxu0 %v2989
        %3511 = vmatmul.mubr.f32.gmra.mrb[0].mxu0 %v2780
        %v3512 = vpop.f32.mrb[0].mxu0
        %v3513 = vadd.f32 %v3388, %v3512
        %v3514 = vpop.f32.mrb[0].mxu0
        %3515 = vmatprep.mubr.f32.mxu0 %v2992
        %3516 = vmatmul.mubr.f32.gmra.mrb[0].mxu0 %v2784
        %v3517 = vpop.f32.mrb[0].mxu0
        %v3518 = vadd.f32 %v3393, %v3517
        %v3519 = vpop.f32.mrb[0].mxu0
        %3520 = vmatprep.mubr.f32.mxu0 %v2995
        %3521 = vmatmul.mubr.f32.gmra.mrb[0].mxu0 %v2788
        %v3522 = vpop.f32.mrb[0].mxu0
        %v3523 = vadd.f32 %v3398, %v3522
        %v3524 = vpop.f32.mrb[0].mxu0
        %3525 = vmatprep.mubr.f32.mxu0 %v2998
        %3526 = vmatmul.mubr.f32.gmra.mrb[0].mxu0 %v2792
        %v3527 = vpop.f32.mrb[0].mxu0
        %v3528 = vadd.f32 %v3403, %v3527
        %v3529 = vpop.f32.mrb[0].mxu0
        %3530 = vmatprep.mubr.f32.mxu0 %v3001
        %3531 = vmatmul.mubr.f32.gmra.mrb[0].mxu0 %v2796
        %v3532 = vpop.f32.mrb[0].mxu0
        %v3533 = vadd.f32 %v3408, %v3532
        %v3534 = vpop.f32.mrb[0].mxu0
        %3535 = vdwg.mxu0
        %v3536 = vadd.f32 %v2713, %v3216
        %v3537 = vadd.f32 %v2714, %v3218
        %v3538 = vadd.f32 %v2715, %v3478
        %v3539 = vadd.f32 %v2716, %v3222
        %v3540 = vadd.f32 %v2717, %v3224
        %v3541 = vadd.f32 %v2718, %v3483
        %v3542 = vadd.f32 %v2719, %v3228
        %v3543 = vadd.f32 %v2720, %v3230
        %v3544 = vadd.f32 %v2721, %v3488
        %v3545 = vadd.f32 %v2722, %v3234
        %v3546 = vadd.f32 %v2723, %v3236
        %v3547 = vadd.f32 %v2724, %v3493
        %v3548 = vadd.f32 %v2725, %v3240
        %v3549 = vadd.f32 %v2726, %v3242
        %v3550 = vadd.f32 %v2727, %v3498
        %v3551 = vadd.f32 %v2728, %v3246
        %v3552 = vadd.f32 %v2729, %v3248
        %v3553 = vadd.f32 %v2730, %v3503
        %v3554 = vadd.f32 %v2731, %v3252
        %v3555 = vadd.f32 %v2732, %v3254
        %v3556 = vadd.f32 %v2733, %v3508
        %v3557 = vadd.f32 %v2734, %v3258
        %v3558 = vadd.f32 %v2735, %v3260
        %v3559 = vadd.f32 %v2736, %v3513
        %v3560 = vadd.f32 %v2737, %v3264
        %v3561 = vadd.f32 %v2738, %v3266
        %v3562 = vadd.f32 %v2739, %v3518
        %v3563 = vadd.f32 %v2740, %v3270
        %v3564 = vadd.f32 %v2741, %v3272
        %v3565 = vadd.f32 %v2742, %v3523
        %v3566 = vadd.f32 %v2743, %v3276
        %v3567 = vadd.f32 %v2744, %v3278
        %v3568 = vadd.f32 %v2745, %v3528
        %v3569 = vadd.f32 %v2746, %v3282
        %v3570 = vadd.f32 %v2747, %v3284
        %v3571 = vadd.f32 %v2748, %v3533
        %s3572 = scalar_lea.vmem %s200, 1536
        %v3573 = vld [vmem:[%s3572] sm:$0xff]
        %v3574 = vld [vmem:[%s3572 + $0x8] sm:$0xff]
        %v3575 = vld [vmem:[%s3572 + $0x10] sm:$0xff]
        %v3576 = vld [vmem:[%s3572 + $0x18] sm:$0xff]
        %v3577 = vld [vmem:[%s3572 + $0x20] sm:$0xff]
        %v3578 = vld [vmem:[%s3572 + $0x28] sm:$0xff]
        %v3579 = vld [vmem:[%s3572 + $0x30] sm:$0xff]
        %v3580 = vld [vmem:[%s3572 + $0x38] sm:$0xff]
        %v3581 = vld [vmem:[%s3572 + $0x40] sm:$0xff]
        %v3582 = vld [vmem:[%s3572 + $0x48] sm:$0xff]
        %v3583 = vld [vmem:[%s3572 + $0x50] sm:$0xff]
        %v3584 = vld [vmem:[%s3572 + $0x58] sm:$0xff]
        %v3585 = vld [vmem:[%s3572 + $0x60] sm:$0xff]
        %v3586 = vld [vmem:[%s3572 + $0x68] sm:$0xff]
        %v3587 = vld [vmem:[%s3572 + $0x70] sm:$0xff]
        %v3588 = vld [vmem:[%s3572 + $0x78] sm:$0xff]
        %v3589 = vld [vmem:[%s3572 + $0x80] sm:$0xff]
        %v3590 = vld [vmem:[%s3572 + $0x88] sm:$0xff]
        %v3591 = vld [vmem:[%s3572 + $0x90] sm:$0xff]
        %v3592 = vld [vmem:[%s3572 + $0x98] sm:$0xff]
        %v3593 = vld [vmem:[%s3572 + $0xa0] sm:$0xff]
        %v3594 = vld [vmem:[%s3572 + $0xa8] sm:$0xff]
        %v3595 = vld [vmem:[%s3572 + $0xb0] sm:$0xff]
        %v3596 = vld [vmem:[%s3572 + $0xb8] sm:$0xff]
        %v3597 = vld [vmem:[%s3572 + $0xc0] sm:$0xff]
        %v3598 = vld [vmem:[%s3572 + $0xc8] sm:$0xff]
        %v3599 = vld [vmem:[%s3572 + $0xd0] sm:$0xff]
        %v3600 = vld [vmem:[%s3572 + $0xd8] sm:$0xff]
        %v3601 = vld [vmem:[%s3572 + $0xe0] sm:$0xff]
        %v3602 = vld [vmem:[%s3572 + $0xe8] sm:$0xff]
        %v3603 = vld [vmem:[%s3572 + $0xf0] sm:$0xff]
        %v3604 = vld [vmem:[%s3572 + $0xf8] sm:$0xff]
        %v3605 = vld [vmem:[%s3572 + $0x100] sm:$0xff]
        %v3606 = vld [vmem:[%s3572 + $0x108] sm:$0xff]
        %v3607 = vld [vmem:[%s3572 + $0x110] sm:$0xff]
        %v3608 = vld [vmem:[%s3572 + $0x118] sm:$0xff]
        %v3609 = vld [vmem:[%s3572 + $0x120] sm:$0xff]
        %v3610 = vld [vmem:[%s3572 + $0x128] sm:$0xff]
        %v3611 = vld [vmem:[%s3572 + $0x130] sm:$0xff]
        %v3612 = vld [vmem:[%s3572 + $0x138] sm:$0xff]
        %v3613 = vld [vmem:[%s3572 + $0x140] sm:$0xff]
        %v3614 = vld [vmem:[%s3572 + $0x148] sm:$0xff]
        %v3615 = vld [vmem:[%s3572 + $0x150] sm:$0xff]
        %v3616 = vld [vmem:[%s3572 + $0x158] sm:$0xff]
        %v3617 = vld [vmem:[%s3572 + $0x160] sm:$0xff]
        %v3618 = vld [vmem:[%s3572 + $0x168] sm:$0xff]
        %v3619 = vld [vmem:[%s3572 + $0x170] sm:$0xff]
        %v3620 = vld [vmem:[%s3572 + $0x178] sm:$0xff]
        %s3621 = scalar_lea.vmem %s171, 5376 [#allocation2]
        %v3622 = vld [vmem:[%s3621] sm:$0xff]
        %v3623 = vld [vmem:[%s3621 + $0x8] sm:$0xff]
        %v3624 = vld [vmem:[%s3621 + $0x10] sm:$0xff]
        %v3625 = vld [vmem:[%s3621 + $0x18] sm:$0xff]
        %v3626 = vld [vmem:[%s3621 + $0x20] sm:$0xff]
        %v3627 = vld [vmem:[%s3621 + $0x28] sm:$0xff]
        %v3628 = vld [vmem:[%s3621 + $0x30] sm:$0xff]
        %v3629 = vld [vmem:[%s3621 + $0x38] sm:$0xff]
        %v3630 = vld [vmem:[%s3621 + $0x40] sm:$0xff]
        %v3631 = vld [vmem:[%s3621 + $0x48] sm:$0xff]
        %v3632 = vld [vmem:[%s3621 + $0x50] sm:$0xff]
        %v3633 = vld [vmem:[%s3621 + $0x58] sm:$0xff]
        %v3634 = vld [vmem:[%s3621 + $0x60] sm:$0xff]
        %v3635 = vld [vmem:[%s3621 + $0x68] sm:$0xff]
        %v3636 = vld [vmem:[%s3621 + $0x70] sm:$0xff]
        %v3637 = vld [vmem:[%s3621 + $0x78] sm:$0xff]
        %v3638 = vld [vmem:[%s3621 + $0x80] sm:$0xff]
        %v3639 = vld [vmem:[%s3621 + $0x88] sm:$0xff]
        %v3640 = vld [vmem:[%s3621 + $0x90] sm:$0xff]
        %v3641 = vld [vmem:[%s3621 + $0x98] sm:$0xff]
        %v3642 = vld [vmem:[%s3621 + $0xa0] sm:$0xff]
        %v3643 = vld [vmem:[%s3621 + $0xa8] sm:$0xff]
        %v3644 = vld [vmem:[%s3621 + $0xb0] sm:$0xff]
        %v3645 = vld [vmem:[%s3621 + $0xb8] sm:$0xff]
        %v3646 = vld [vmem:[%s3621 + $0xc0] sm:$0xff]
        %v3647 = vld [vmem:[%s3621 + $0xc8] sm:$0xff]
        %v3648 = vld [vmem:[%s3621 + $0xd0] sm:$0xff]
        %v3649 = vld [vmem:[%s3621 + $0xd8] sm:$0xff]
        %v3650 = vld [vmem:[%s3621 + $0xe0] sm:$0xff]
        %v3651 = vld [vmem:[%s3621 + $0xe8] sm:$0xff]
        %v3652 = vld [vmem:[%s3621 + $0xf0] sm:$0xff]
        %v3653 = vld [vmem:[%s3621 + $0xf8] sm:$0xff]
        %v3654 = vld [vmem:[%s3621 + $0x100] sm:$0xff]
        %v3655 = vld [vmem:[%s3621 + $0x108] sm:$0xff]
        %v3656 = vld [vmem:[%s3621 + $0x110] sm:$0xff]
        %v3657 = vld [vmem:[%s3621 + $0x118] sm:$0xff]
        %v3658 = vld [vmem:[%s3621 + $0x120] sm:$0xff]
        %v3659 = vld [vmem:[%s3621 + $0x128] sm:$0xff]
        %v3660 = vld [vmem:[%s3621 + $0x130] sm:$0xff]
        %v3661 = vld [vmem:[%s3621 + $0x138] sm:$0xff]
        %v3662 = vld [vmem:[%s3621 + $0x140] sm:$0xff]
        %v3663 = vld [vmem:[%s3621 + $0x148] sm:$0xff]
        %v3664 = vld [vmem:[%s3621 + $0x150] sm:$0xff]
        %v3665 = vld [vmem:[%s3621 + $0x158] sm:$0xff]
        %v3666 = vld [vmem:[%s3621 + $0x160] sm:$0xff]
        %v3667 = vld [vmem:[%s3621 + $0x168] sm:$0xff]
        %v3668 = vld [vmem:[%s3621 + $0x170] sm:$0xff]
        %v3669 = vld [vmem:[%s3621 + $0x178] sm:$0xff]
        %v3670 = vld [vmem:[%s3621 + $0x180] sm:$0xff]
        %v3671 = vld [vmem:[%s3621 + $0x188] sm:$0xff]
        %v3672 = vld [vmem:[%s3621 + $0x190] sm:$0xff]
        %v3673 = vld [vmem:[%s3621 + $0x198] sm:$0xff]
        %v3674 = vld [vmem:[%s3621 + $0x1a0] sm:$0xff]
        %v3675 = vld [vmem:[%s3621 + $0x1a8] sm:$0xff]
        %v3676 = vld [vmem:[%s3621 + $0x1b0] sm:$0xff]
        %v3677 = vld [vmem:[%s3621 + $0x1b8] sm:$0xff]
        %v3678 = vld [vmem:[%s3621 + $0x1c0] sm:$0xff]
        %v3679 = vld [vmem:[%s3621 + $0x1c8] sm:$0xff]
        %v3680 = vld [vmem:[%s3621 + $0x1d0] sm:$0xff]
        %v3681 = vld [vmem:[%s3621 + $0x1d8] sm:$0xff]
        %v3682 = vld [vmem:[%s3621 + $0x1e0] sm:$0xff]
        %v3683 = vld [vmem:[%s3621 + $0x1e8] sm:$0xff]
        %v3684 = vld [vmem:[%s3621 + $0x1f0] sm:$0xff]
        %v3685 = vld [vmem:[%s3621 + $0x1f8] sm:$0xff]
        %v3686 = vld [vmem:[%s3621 + $0x200] sm:$0xff]
        %v3687 = vld [vmem:[%s3621 + $0x208] sm:$0xff]
        %v3688 = vld [vmem:[%s3621 + $0x210] sm:$0xff]
        %v3689 = vld [vmem:[%s3621 + $0x218] sm:$0xff]
        %v3690 = vld [vmem:[%s3621 + $0x220] sm:$0xff]
        %v3691 = vld [vmem:[%s3621 + $0x228] sm:$0xff]
        %v3692 = vld [vmem:[%s3621 + $0x230] sm:$0xff]
        %v3693 = vld [vmem:[%s3621 + $0x238] sm:$0xff]
        %v3694 = vld [vmem:[%s3621 + $0x240] sm:$0xff]
        %v3695 = vld [vmem:[%s3621 + $0x248] sm:$0xff]
        %v3696 = vld [vmem:[%s3621 + $0x250] sm:$0xff]
        %v3697 = vld [vmem:[%s3621 + $0x258] sm:$0xff]
        %v3698 = vld [vmem:[%s3621 + $0x260] sm:$0xff]
        %v3699 = vld [vmem:[%s3621 + $0x268] sm:$0xff]
        %v3700 = vld [vmem:[%s3621 + $0x270] sm:$0xff]
        %v3701 = vld [vmem:[%s3621 + $0x278] sm:$0xff]
        %v3702 = vld [vmem:[%s3621 + $0x280] sm:$0xff]
        %v3703 = vld [vmem:[%s3621 + $0x288] sm:$0xff]
        %v3704 = vld [vmem:[%s3621 + $0x290] sm:$0xff]
        %v3705 = vld [vmem:[%s3621 + $0x298] sm:$0xff]
        %v3706 = vld [vmem:[%s3621 + $0x2a0] sm:$0xff]
        %v3707 = vld [vmem:[%s3621 + $0x2a8] sm:$0xff]
        %v3708 = vld [vmem:[%s3621 + $0x2b0] sm:$0xff]
        %v3709 = vld [vmem:[%s3621 + $0x2b8] sm:$0xff]
        %v3710 = vld [vmem:[%s3621 + $0x2c0] sm:$0xff]
        %v3711 = vld [vmem:[%s3621 + $0x2c8] sm:$0xff]
        %v3712 = vld [vmem:[%s3621 + $0x2d0] sm:$0xff]
        %v3713 = vld [vmem:[%s3621 + $0x2d8] sm:$0xff]
        %v3714 = vld [vmem:[%s3621 + $0x2e0] sm:$0xff]
        %v3715 = vld [vmem:[%s3621 + $0x2e8] sm:$0xff]
        %v3716 = vld [vmem:[%s3621 + $0x2f0] sm:$0xff]
        %v3717 = vld [vmem:[%s3621 + $0x2f8] sm:$0xff]
        %v3718 = vld [vmem:[%s3621 + $0x300] sm:$0xff]
        %v3719 = vld [vmem:[%s3621 + $0x308] sm:$0xff]
        %v3720 = vld [vmem:[%s3621 + $0x310] sm:$0xff]
        %v3721 = vld [vmem:[%s3621 + $0x318] sm:$0xff]
        %v3722 = vld [vmem:[%s3621 + $0x320] sm:$0xff]
        %v3723 = vld [vmem:[%s3621 + $0x328] sm:$0xff]
        %v3724 = vld [vmem:[%s3621 + $0x330] sm:$0xff]
        %v3725 = vld [vmem:[%s3621 + $0x338] sm:$0xff]
        %v3726 = vld [vmem:[%s3621 + $0x340] sm:$0xff]
        %v3727 = vld [vmem:[%s3621 + $0x348] sm:$0xff]
        %v3728 = vld [vmem:[%s3621 + $0x350] sm:$0xff]
        %v3729 = vld [vmem:[%s3621 + $0x358] sm:$0xff]
        %v3730 = vld [vmem:[%s3621 + $0x360] sm:$0xff]
        %v3731 = vld [vmem:[%s3621 + $0x368] sm:$0xff]
        %v3732 = vld [vmem:[%s3621 + $0x370] sm:$0xff]
        %v3733 = vld [vmem:[%s3621 + $0x378] sm:$0xff]
        %v3734 = vld [vmem:[%s3621 + $0x380] sm:$0xff]
        %v3735 = vld [vmem:[%s3621 + $0x388] sm:$0xff]
        %v3736 = vld [vmem:[%s3621 + $0x390] sm:$0xff]
        %v3737 = vld [vmem:[%s3621 + $0x398] sm:$0xff]
        %v3738 = vld [vmem:[%s3621 + $0x3a0] sm:$0xff]
        %v3739 = vld [vmem:[%s3621 + $0x3a8] sm:$0xff]
        %v3740 = vld [vmem:[%s3621 + $0x3b0] sm:$0xff]
        %v3741 = vld [vmem:[%s3621 + $0x3b8] sm:$0xff]
        %v3742 = vld [vmem:[%s3621 + $0x3c0] sm:$0xff]
        %v3743 = vld [vmem:[%s3621 + $0x3c8] sm:$0xff]
        %v3744 = vld [vmem:[%s3621 + $0x3d0] sm:$0xff]
        %v3745 = vld [vmem:[%s3621 + $0x3d8] sm:$0xff]
        %v3746 = vld [vmem:[%s3621 + $0x3e0] sm:$0xff]
        %v3747 = vld [vmem:[%s3621 + $0x3e8] sm:$0xff]
        %v3748 = vld [vmem:[%s3621 + $0x3f0] sm:$0xff]
        %v3749 = vld [vmem:[%s3621 + $0x3f8] sm:$0xff]
        %v3750 = vld [vmem:[%s3621 + $0x400] sm:$0xff]
        %v3751 = vld [vmem:[%s3621 + $0x408] sm:$0xff]
        %v3752 = vld [vmem:[%s3621 + $0x410] sm:$0xff]
        %v3753 = vld [vmem:[%s3621 + $0x418] sm:$0xff]
        %v3754 = vld [vmem:[%s3621 + $0x420] sm:$0xff]
        %v3755 = vld [vmem:[%s3621 + $0x428] sm:$0xff]
        %v3756 = vld [vmem:[%s3621 + $0x430] sm:$0xff]
        %v3757 = vld [vmem:[%s3621 + $0x438] sm:$0xff]
        %v3758 = vld [vmem:[%s3621 + $0x440] sm:$0xff]
        %v3759 = vld [vmem:[%s3621 + $0x448] sm:$0xff]
        %v3760 = vld [vmem:[%s3621 + $0x450] sm:$0xff]
        %v3761 = vld [vmem:[%s3621 + $0x458] sm:$0xff]
        %v3762 = vld [vmem:[%s3621 + $0x460] sm:$0xff]
        %v3763 = vld [vmem:[%s3621 + $0x468] sm:$0xff]
        %v3764 = vld [vmem:[%s3621 + $0x470] sm:$0xff]
        %v3765 = vld [vmem:[%s3621 + $0x478] sm:$0xff]
        %v3766 = vld [vmem:[%s3621 + $0x480] sm:$0xff]
        %v3767 = vld [vmem:[%s3621 + $0x488] sm:$0xff]
        %v3768 = vld [vmem:[%s3621 + $0x490] sm:$0xff]
        %v3769 = vld [vmem:[%s3621 + $0x498] sm:$0xff]
        %v3770 = vld [vmem:[%s3621 + $0x4a0] sm:$0xff]
        %v3771 = vld [vmem:[%s3621 + $0x4a8] sm:$0xff]
        %v3772 = vld [vmem:[%s3621 + $0x4b0] sm:$0xff]
        %v3773 = vld [vmem:[%s3621 + $0x4b8] sm:$0xff]
        %v3774 = vld [vmem:[%s3621 + $0x4c0] sm:$0xff]
        %v3775 = vld [vmem:[%s3621 + $0x4c8] sm:$0xff]
        %v3776 = vld [vmem:[%s3621 + $0x4d0] sm:$0xff]
        %v3777 = vld [vmem:[%s3621 + $0x4d8] sm:$0xff]
        %v3778 = vld [vmem:[%s3621 + $0x4e0] sm:$0xff]
        %v3779 = vld [vmem:[%s3621 + $0x4e8] sm:$0xff]
        %v3780 = vld [vmem:[%s3621 + $0x4f0] sm:$0xff]
        %v3781 = vld [vmem:[%s3621 + $0x4f8] sm:$0xff]
        %v3782 = vld [vmem:[%s3621 + $0x500] sm:$0xff]
        %v3783 = vld [vmem:[%s3621 + $0x508] sm:$0xff]
        %v3784 = vld [vmem:[%s3621 + $0x510] sm:$0xff]
        %v3785 = vld [vmem:[%s3621 + $0x518] sm:$0xff]
        %v3786 = vld [vmem:[%s3621 + $0x520] sm:$0xff]
        %v3787 = vld [vmem:[%s3621 + $0x528] sm:$0x1]
        %v3788 = vld [vmem:[%s3621 + $0x530] sm:$0x1]
        %v3789 = vld [vmem:[%s3621 + $0x538] sm:$0x1]
        %v3791 = vsel %vm496, %v3576, 0
        %v3794 = vsel %vm496, %v3580, 0
        %v3797 = vsel %vm496, %v3584, 0
        %v3800 = vsel %vm496, %v3588, 0
        %v3803 = vsel %vm496, %v3592, 0
        %v3806 = vsel %vm496, %v3596, 0
        %v3809 = vsel %vm496, %v3600, 0
        %v3812 = vsel %vm496, %v3604, 0
        %v3815 = vsel %vm496, %v3608, 0
        %v3818 = vsel %vm496, %v3612, 0
        %v3821 = vsel %vm496, %v3616, 0
        %v3824 = vsel %vm496, %v3620, 0
        %v3827 = vsel %vm533, %v3787, 0
        %v3830 = vsel %vm533, %v3788, 0
        %v3833 = vsel %vm533, %v3789, 0
        %3835 = vmatprep.subr.mxu0 %v3623
        %3836 = vmatpush1.msra.mxu0 %v3622
        %3837 = vmatprep.subr.mxu0 %v3626
        %3838 = vmatpush1.msra.mxu0 %v3625
        %3839 = vmatprep.subr.mxu0 %v3629
        %3840 = vmatpush1.msra.mxu0 %v3628
        %3841 = vmatprep.subr.mxu0 %v3632
        %3842 = vmatpush1.msra.mxu0 %v3631
        %3843 = vmatprep.subr.mxu0 %v3635
        %3844 = vmatpush1.msra.mxu0 %v3634
        %3845 = vmatprep.subr.mxu0 %v3638
        %3846 = vmatpush1.msra.mxu0 %v3637
        %3847 = vmatprep.subr.mxu0 %v3641
        %3848 = vmatpush1.msra.mxu0 %v3640
        %3849 = vmatprep.subr.mxu0 %v3644
        %3850 = vmatpush1.msra.mxu0 %v3643
        %3851 = vmatprep.subr.mxu0 %v3647
        %3852 = vmatpush1.msra.mxu0 %v3646
        %3853 = vmatprep.subr.mxu0 %v3650
        %3854 = vmatpush1.msra.mxu0 %v3649
        %3855 = vmatprep.subr.mxu0 %v3653
        %3856 = vmatpush1.msra.mxu0 %v3652
        %3857 = vmatprep.subr.mxu0 %v3656
        %3858 = vmatpush1.msra.mxu0 %v3655
        %3859 = vmatprep.subr.mxu0 %v3659
        %3860 = vmatpush1.msra.mxu0 %v3658
        %3861 = vmatprep.subr.mxu0 %v3662
        %3862 = vmatpush1.msra.mxu0 %v3661
        %3863 = vmatprep.subr.mxu0 %v3665
        %3864 = vmatpush1.msra.mxu0 %v3664
        %3865 = vmatprep.subr.mxu0 %v3668
        %3866 = vmatpush1.msra.mxu0 %v3667
        %3867 = vmatprep.subr.mxu0 %v3671
        %3868 = vmatpush1.msra.mxu0 %v3670
        %3869 = vmatprep.subr.mxu0 %v3674
        %3870 = vmatpush1.msra.mxu0 %v3673
        %3871 = vmatprep.subr.mxu0 %v3677
        %3872 = vmatpush1.msra.mxu0 %v3676
        %3873 = vmatprep.subr.mxu0 %v3680
        %3874 = vmatpush1.msra.mxu0 %v3679
        %3875 = vmatprep.subr.mxu0 %v3683
        %3876 = vmatpush1.msra.mxu0 %v3682
        %3877 = vmatprep.subr.mxu0 %v3686
        %3878 = vmatpush1.msra.mxu0 %v3685
        %3879 = vmatprep.subr.mxu0 %v3689
        %3880 = vmatpush1.msra.mxu0 %v3688
        %3881 = vmatprep.subr.mxu0 %v3692
        %3882 = vmatpush1.msra.mxu0 %v3691
        %3883 = vmatprep.subr.mxu0 %v3695
        %3884 = vmatpush1.msra.mxu0 %v3694
        %3885 = vmatprep.subr.mxu0 %v3698
        %3886 = vmatpush1.msra.mxu0 %v3697
        %3887 = vmatprep.subr.mxu0 %v3701
        %3888 = vmatpush1.msra.mxu0 %v3700
        %3889 = vmatprep.subr.mxu0 %v3704
        %3890 = vmatpush1.msra.mxu0 %v3703
        %3891 = vmatprep.subr.mxu0 %v3707
        %3892 = vmatpush1.msra.mxu0 %v3706
        %3893 = vmatprep.subr.mxu0 %v3710
        %3894 = vmatpush1.msra.mxu0 %v3709
        %3895 = vmatprep.subr.mxu0 %v3713
        %3896 = vmatpush1.msra.mxu0 %v3712
        %3897 = vmatprep.subr.mxu0 %v3716
        %3898 = vmatpush1.msra.mxu0 %v3715
        %3899 = vmatprep.mubr.f32.mxu0 %v3574
        %3900 = vmatmul.mubr.f32.gmra.mrb[0].mxu0 %v3573
        %v3901 = vpop.f32.mrb[0].mxu0
        %v3902 = vadd.f32 0.0, %v3901
        %v3903 = vpop.f32.mrb[0].mxu0
        %v3904 = vadd.f32 0.0, %v3903
        %3905 = vmatprep.mubr.f32.mxu0 %v3578
        %3906 = vmatmul.mubr.f32.gmra.mrb[0].mxu0 %v3577
        %v3907 = vpop.f32.mrb[0].mxu0
        %v3908 = vadd.f32 0.0, %v3907
        %v3909 = vpop.f32.mrb[0].mxu0
        %v3910 = vadd.f32 0.0, %v3909
        %3911 = vmatprep.mubr.f32.mxu0 %v3582
        %3912 = vmatmul.mubr.f32.gmra.mrb[0].mxu0 %v3581
        %v3913 = vpop.f32.mrb[0].mxu0
        %v3914 = vadd.f32 0.0, %v3913
        %v3915 = vpop.f32.mrb[0].mxu0
        %v3916 = vadd.f32 0.0, %v3915
        %3917 = vmatprep.mubr.f32.mxu0 %v3586
        %3918 = vmatmul.mubr.f32.gmra.mrb[0].mxu0 %v3585
        %v3919 = vpop.f32.mrb[0].mxu0
        %v3920 = vadd.f32 0.0, %v3919
        %v3921 = vpop.f32.mrb[0].mxu0
        %v3922 = vadd.f32 0.0, %v3921
        %3923 = vmatprep.mubr.f32.mxu0 %v3590
        %3924 = vmatmul.mubr.f32.gmra.mrb[0].mxu0 %v3589
        %v3925 = vpop.f32.mrb[0].mxu0
        %v3926 = vadd.f32 0.0, %v3925
        %v3927 = vpop.f32.mrb[0].mxu0
        %v3928 = vadd.f32 0.0, %v3927
        %3929 = vmatprep.mubr.f32.mxu0 %v3594
        %3930 = vmatmul.mubr.f32.gmra.mrb[0].mxu0 %v3593
        %v3931 = vpop.f32.mrb[0].mxu0
        %v3932 = vadd.f32 0.0, %v3931
        %v3933 = vpop.f32.mrb[0].mxu0
        %v3934 = vadd.f32 0.0, %v3933
        %3935 = vmatprep.mubr.f32.mxu0 %v3598
        %3936 = vmatmul.mubr.f32.gmra.mrb[0].mxu0 %v3597
        %v3937 = vpop.f32.mrb[0].mxu0
        %v3938 = vadd.f32 0.0, %v3937
        %v3939 = vpop.f32.mrb[0].mxu0
        %v3940 = vadd.f32 0.0, %v3939
        %3941 = vmatprep.mubr.f32.mxu0 %v3602
        %3942 = vmatmul.mubr.f32.gmra.mrb[0].mxu0 %v3601
        %v3943 = vpop.f32.mrb[0].mxu0
        %v3944 = vadd.f32 0.0, %v3943
        %v3945 = vpop.f32.mrb[0].mxu0
        %v3946 = vadd.f32 0.0, %v3945
        %3947 = vmatprep.mubr.f32.mxu0 %v3606
        %3948 = vmatmul.mubr.f32.gmra.mrb[0].mxu0 %v3605
        %v3949 = vpop.f32.mrb[0].mxu0
        %v3950 = vadd.f32 0.0, %v3949
        %v3951 = vpop.f32.mrb[0].mxu0
        %v3952 = vadd.f32 0.0, %v3951
        %3953 = vmatprep.mubr.f32.mxu0 %v3610
        %3954 = vmatmul.mubr.f32.gmra.mrb[0].mxu0 %v3609
        %v3955 = vpop.f32.mrb[0].mxu0
        %v3956 = vadd.f32 0.0, %v3955
        %v3957 = vpop.f32.mrb[0].mxu0
        %v3958 = vadd.f32 0.0, %v3957
        %3959 = vmatprep.mubr.f32.mxu0 %v3614
        %3960 = vmatmul.mubr.f32.gmra.mrb[0].mxu0 %v3613
        %v3961 = vpop.f32.mrb[0].mxu0
        %v3962 = vadd.f32 0.0, %v3961
        %v3963 = vpop.f32.mrb[0].mxu0
        %v3964 = vadd.f32 0.0, %v3963
        %3965 = vmatprep.mubr.f32.mxu0 %v3618
        %3966 = vmatmul.mubr.f32.gmra.mrb[0].mxu0 %v3617
        %v3967 = vpop.f32.mrb[0].mxu0
        %v3968 = vadd.f32 0.0, %v3967
        %v3969 = vpop.f32.mrb[0].mxu0
        %v3970 = vadd.f32 0.0, %v3969
        %3971 = vdwg.mxu0
        %3972 = vmatprep.subr.mxu0 %v3719
        %3973 = vmatpush1.msra.mxu0 %v3718
        %3974 = vmatprep.subr.mxu0 %v3722
        %3975 = vmatpush1.msra.mxu0 %v3721
        %3976 = vmatprep.subr.mxu0 %v3725
        %3977 = vmatpush1.msra.mxu0 %v3724
        %3978 = vmatprep.subr.mxu0 %v3728
        %3979 = vmatpush1.msra.mxu0 %v3727
        %3980 = vmatprep.subr.mxu0 %v3731
        %3981 = vmatpush1.msra.mxu0 %v3730
        %3982 = vmatprep.subr.mxu0 %v3734
        %3983 = vmatpush1.msra.mxu0 %v3733
        %3984 = vmatprep.subr.mxu0 %v3737
        %3985 = vmatpush1.msra.mxu0 %v3736
        %3986 = vmatprep.subr.mxu0 %v3740
        %3987 = vmatpush1.msra.mxu0 %v3739
        %3988 = vmatprep.subr.mxu0 %v3743
        %3989 = vmatpush1.msra.mxu0 %v3742
        %3990 = vmatprep.subr.mxu0 %v3746
        %3991 = vmatpush1.msra.mxu0 %v3745
        %3992 = vmatprep.subr.mxu0 %v3749
        %3993 = vmatpush1.msra.mxu0 %v3748
        %3994 = vmatprep.subr.mxu0 %v3752
        %3995 = vmatpush1.msra.mxu0 %v3751
        %3996 = vmatprep.subr.mxu0 %v3755
        %3997 = vmatpush1.msra.mxu0 %v3754
        %3998 = vmatprep.subr.mxu0 %v3758
        %3999 = vmatpush1.msra.mxu0 %v3757
        %4000 = vmatprep.subr.mxu0 %v3761
        %4001 = vmatpush1.msra.mxu0 %v3760
        %4002 = vmatprep.subr.mxu0 %v3764
        %4003 = vmatpush1.msra.mxu0 %v3763
        %4004 = vmatprep.subr.mxu0 %v3767
        %4005 = vmatpush1.msra.mxu0 %v3766
        %4006 = vmatprep.subr.mxu0 %v3770
        %4007 = vmatpush1.msra.mxu0 %v3769
        %4008 = vmatprep.subr.mxu0 %v3773
        %4009 = vmatpush1.msra.mxu0 %v3772
        %4010 = vmatprep.subr.mxu0 %v3776
        %4011 = vmatpush1.msra.mxu0 %v3775
        %4012 = vmatprep.subr.mxu0 %v3779
        %4013 = vmatpush1.msra.mxu0 %v3778
        %4014 = vmatprep.subr.mxu0 %v3782
        %4015 = vmatpush1.msra.mxu0 %v3781
        %4016 = vmatprep.subr.mxu0 %v3785
        %4017 = vmatpush1.msra.mxu0 %v3784
        %4018 = vmatprep.subr.mxu0 %v3830
        %4019 = vmatpush1.msra.mxu0 %v3827
        %4020 = vmatprep.subr.mxu0 0.0
        %4021 = vmatpush1.msra.mxu0 0.0
        %4022 = vmatprep.subr.mxu0 0.0
        %4023 = vmatpush1.msra.mxu0 0.0
        %4024 = vmatprep.subr.mxu0 0.0
        %4025 = vmatpush1.msra.mxu0 0.0
        %4026 = vmatprep.subr.mxu0 0.0
        %4027 = vmatpush1.msra.mxu0 0.0
        %4028 = vmatprep.subr.mxu0 0.0
        %4029 = vmatpush1.msra.mxu0 0.0
        %4030 = vmatprep.subr.mxu0 0.0
        %4031 = vmatpush1.msra.mxu0 0.0
        %4032 = vmatprep.subr.mxu0 0.0
        %4033 = vmatpush1.msra.mxu0 0.0
        %4034 = vmatprep.subr.mxu0 0.0
        %4035 = vmatpush1.msra.mxu0 0.0
        %4036 = vmatprep.mubr.f32.mxu0 %v3791
        %4037 = vmatmul.mubr.f32.gmra.mrb[0].mxu0 %v3575
        %v4038 = vpop.f32.mrb[0].mxu0
        %v4039 = vadd.f32 %v3902, %v4038
        %v4040 = vpop.f32.mrb[0].mxu0
        %v4041 = vadd.f32 %v3904, %v4040
        %4042 = vmatprep.mubr.f32.mxu0 %v3794
        %4043 = vmatmul.mubr.f32.gmra.mrb[0].mxu0 %v3579
        %v4044 = vpop.f32.mrb[0].mxu0
        %v4045 = vadd.f32 %v3908, %v4044
        %v4046 = vpop.f32.mrb[0].mxu0
        %v4047 = vadd.f32 %v3910, %v4046
        %4048 = vmatprep.mubr.f32.mxu0 %v3797
        %4049 = vmatmul.mubr.f32.gmra.mrb[0].mxu0 %v3583
        %v4050 = vpop.f32.mrb[0].mxu0
        %v4051 = vadd.f32 %v3914, %v4050
        %v4052 = vpop.f32.mrb[0].mxu0
        %v4053 = vadd.f32 %v3916, %v4052
        %4054 = vmatprep.mubr.f32.mxu0 %v3800
        %4055 = vmatmul.mubr.f32.gmra.mrb[0].mxu0 %v3587
        %v4056 = vpop.f32.mrb[0].mxu0
        %v4057 = vadd.f32 %v3920, %v4056
        %v4058 = vpop.f32.mrb[0].mxu0
        %v4059 = vadd.f32 %v3922, %v4058
        %4060 = vmatprep.mubr.f32.mxu0 %v3803
        %4061 = vmatmul.mubr.f32.gmra.mrb[0].mxu0 %v3591
        %v4062 = vpop.f32.mrb[0].mxu0
        %v4063 = vadd.f32 %v3926, %v4062
        %v4064 = vpop.f32.mrb[0].mxu0
        %v4065 = vadd.f32 %v3928, %v4064
        %4066 = vmatprep.mubr.f32.mxu0 %v3806
        %4067 = vmatmul.mubr.f32.gmra.mrb[0].mxu0 %v3595
        %v4068 = vpop.f32.mrb[0].mxu0
        %v4069 = vadd.f32 %v3932, %v4068
        %v4070 = vpop.f32.mrb[0].mxu0
        %v4071 = vadd.f32 %v3934, %v4070
        %4072 = vmatprep.mubr.f32.mxu0 %v3809
        %4073 = vmatmul.mubr.f32.gmra.mrb[0].mxu0 %v3599
        %v4074 = vpop.f32.mrb[0].mxu0
        %v4075 = vadd.f32 %v3938, %v4074
        %v4076 = vpop.f32.mrb[0].mxu0
        %v4077 = vadd.f32 %v3940, %v4076
        %4078 = vmatprep.mubr.f32.mxu0 %v3812
        %4079 = vmatmul.mubr.f32.gmra.mrb[0].mxu0 %v3603
        %v4080 = vpop.f32.mrb[0].mxu0
        %v4081 = vadd.f32 %v3944, %v4080
        %v4082 = vpop.f32.mrb[0].mxu0
        %v4083 = vadd.f32 %v3946, %v4082
        %4084 = vmatprep.mubr.f32.mxu0 %v3815
        %4085 = vmatmul.mubr.f32.gmra.mrb[0].mxu0 %v3607
        %v4086 = vpop.f32.mrb[0].mxu0
        %v4087 = vadd.f32 %v3950, %v4086
        %v4088 = vpop.f32.mrb[0].mxu0
        %v4089 = vadd.f32 %v3952, %v4088
        %4090 = vmatprep.mubr.f32.mxu0 %v3818
        %4091 = vmatmul.mubr.f32.gmra.mrb[0].mxu0 %v3611
        %v4092 = vpop.f32.mrb[0].mxu0
        %v4093 = vadd.f32 %v3956, %v4092
        %v4094 = vpop.f32.mrb[0].mxu0
        %v4095 = vadd.f32 %v3958, %v4094
        %4096 = vmatprep.mubr.f32.mxu0 %v3821
        %4097 = vmatmul.mubr.f32.gmra.mrb[0].mxu0 %v3615
        %v4098 = vpop.f32.mrb[0].mxu0
        %v4099 = vadd.f32 %v3962, %v4098
        %v4100 = vpop.f32.mrb[0].mxu0
        %v4101 = vadd.f32 %v3964, %v4100
        %4102 = vmatprep.mubr.f32.mxu0 %v3824
        %4103 = vmatmul.mubr.f32.gmra.mrb[0].mxu0 %v3619
        %v4104 = vpop.f32.mrb[0].mxu0
        %v4105 = vadd.f32 %v3968, %v4104
        %v4106 = vpop.f32.mrb[0].mxu0
        %v4107 = vadd.f32 %v3970, %v4106
        %4108 = vdwg.mxu0
        %4109 = vmatprep.subr.mxu0 0.0
        %4110 = vmatpush1.msra.mxu0 %v3624
        %4111 = vmatprep.subr.mxu0 0.0
        %4112 = vmatpush1.msra.mxu0 %v3627
        %4113 = vmatprep.subr.mxu0 0.0
        %4114 = vmatpush1.msra.mxu0 %v3630
        %4115 = vmatprep.subr.mxu0 0.0
        %4116 = vmatpush1.msra.mxu0 %v3633
        %4117 = vmatprep.subr.mxu0 0.0
        %4118 = vmatpush1.msra.mxu0 %v3636
        %4119 = vmatprep.subr.mxu0 0.0
        %4120 = vmatpush1.msra.mxu0 %v3639
        %4121 = vmatprep.subr.mxu0 0.0
        %4122 = vmatpush1.msra.mxu0 %v3642
        %4123 = vmatprep.subr.mxu0 0.0
        %4124 = vmatpush1.msra.mxu0 %v3645
        %4125 = vmatprep.subr.mxu0 0.0
        %4126 = vmatpush1.msra.mxu0 %v3648
        %4127 = vmatprep.subr.mxu0 0.0
        %4128 = vmatpush1.msra.mxu0 %v3651
        %4129 = vmatprep.subr.mxu0 0.0
        %4130 = vmatpush1.msra.mxu0 %v3654
        %4131 = vmatprep.subr.mxu0 0.0
        %4132 = vmatpush1.msra.mxu0 %v3657
        %4133 = vmatprep.subr.mxu0 0.0
        %4134 = vmatpush1.msra.mxu0 %v3660
        %4135 = vmatprep.subr.mxu0 0.0
        %4136 = vmatpush1.msra.mxu0 %v3663
        %4137 = vmatprep.subr.mxu0 0.0
        %4138 = vmatpush1.msra.mxu0 %v3666
        %4139 = vmatprep.subr.mxu0 0.0
        %4140 = vmatpush1.msra.mxu0 %v3669
        %4141 = vmatprep.subr.mxu0 0.0
        %4142 = vmatpush1.msra.mxu0 %v3672
        %4143 = vmatprep.subr.mxu0 0.0
        %4144 = vmatpush1.msra.mxu0 %v3675
        %4145 = vmatprep.subr.mxu0 0.0
        %4146 = vmatpush1.msra.mxu0 %v3678
        %4147 = vmatprep.subr.mxu0 0.0
        %4148 = vmatpush1.msra.mxu0 %v3681
        %4149 = vmatprep.subr.mxu0 0.0
        %4150 = vmatpush1.msra.mxu0 %v3684
        %4151 = vmatprep.subr.mxu0 0.0
        %4152 = vmatpush1.msra.mxu0 %v3687
        %4153 = vmatprep.subr.mxu0 0.0
        %4154 = vmatpush1.msra.mxu0 %v3690
        %4155 = vmatprep.subr.mxu0 0.0
        %4156 = vmatpush1.msra.mxu0 %v3693
        %4157 = vmatprep.subr.mxu0 0.0
        %4158 = vmatpush1.msra.mxu0 %v3696
        %4159 = vmatprep.subr.mxu0 0.0
        %4160 = vmatpush1.msra.mxu0 %v3699
        %4161 = vmatprep.subr.mxu0 0.0
        %4162 = vmatpush1.msra.mxu0 %v3702
        %4163 = vmatprep.subr.mxu0 0.0
        %4164 = vmatpush1.msra.mxu0 %v3705
        %4165 = vmatprep.subr.mxu0 0.0
        %4166 = vmatpush1.msra.mxu0 %v3708
        %4167 = vmatprep.subr.mxu0 0.0
        %4168 = vmatpush1.msra.mxu0 %v3711
        %4169 = vmatprep.subr.mxu0 0.0
        %4170 = vmatpush1.msra.mxu0 %v3714
        %4171 = vmatprep.subr.mxu0 0.0
        %4172 = vmatpush1.msra.mxu0 %v3717
        %4173 = vmatprep.mubr.f32.mxu0 %v3574
        %4174 = vmatmul.mubr.f32.gmra.mrb[0].mxu0 %v3573
        %v4175 = vpop.f32.mrb[0].mxu0
        %v4176 = vadd.f32 0.0, %v4175
        %v4177 = vpop.f32.mrb[0].mxu0
        %4178 = vmatprep.mubr.f32.mxu0 %v3578
        %4179 = vmatmul.mubr.f32.gmra.mrb[0].mxu0 %v3577
        %v4180 = vpop.f32.mrb[0].mxu0
        %v4181 = vadd.f32 0.0, %v4180
        %v4182 = vpop.f32.mrb[0].mxu0
        %4183 = vmatprep.mubr.f32.mxu0 %v3582
        %4184 = vmatmul.mubr.f32.gmra.mrb[0].mxu0 %v3581
        %v4185 = vpop.f32.mrb[0].mxu0
        %v4186 = vadd.f32 0.0, %v4185
        %v4187 = vpop.f32.mrb[0].mxu0
        %4188 = vmatprep.mubr.f32.mxu0 %v3586
        %4189 = vmatmul.mubr.f32.gmra.mrb[0].mxu0 %v3585
        %v4190 = vpop.f32.mrb[0].mxu0
        %v4191 = vadd.f32 0.0, %v4190
        %v4192 = vpop.f32.mrb[0].mxu0
        %4193 = vmatprep.mubr.f32.mxu0 %v3590
        %4194 = vmatmul.mubr.f32.gmra.mrb[0].mxu0 %v3589
        %v4195 = vpop.f32.mrb[0].mxu0
        %v4196 = vadd.f32 0.0, %v4195
        %v4197 = vpop.f32.mrb[0].mxu0
        %4198 = vmatprep.mubr.f32.mxu0 %v3594
        %4199 = vmatmul.mubr.f32.gmra.mrb[0].mxu0 %v3593
        %v4200 = vpop.f32.mrb[0].mxu0
        %v4201 = vadd.f32 0.0, %v4200
        %v4202 = vpop.f32.mrb[0].mxu0
        %4203 = vmatprep.mubr.f32.mxu0 %v3598
        %4204 = vmatmul.mubr.f32.gmra.mrb[0].mxu0 %v3597
        %v4205 = vpop.f32.mrb[0].mxu0
        %v4206 = vadd.f32 0.0, %v4205
        %v4207 = vpop.f32.mrb[0].mxu0
        %4208 = vmatprep.mubr.f32.mxu0 %v3602
        %4209 = vmatmul.mubr.f32.gmra.mrb[0].mxu0 %v3601
        %v4210 = vpop.f32.mrb[0].mxu0
        %v4211 = vadd.f32 0.0, %v4210
        %v4212 = vpop.f32.mrb[0].mxu0
        %4213 = vmatprep.mubr.f32.mxu0 %v3606
        %4214 = vmatmul.mubr.f32.gmra.mrb[0].mxu0 %v3605
        %v4215 = vpop.f32.mrb[0].mxu0
        %v4216 = vadd.f32 0.0, %v4215
        %v4217 = vpop.f32.mrb[0].mxu0
        %4218 = vmatprep.mubr.f32.mxu0 %v3610
        %4219 = vmatmul.mubr.f32.gmra.mrb[0].mxu0 %v3609
        %v4220 = vpop.f32.mrb[0].mxu0
        %v4221 = vadd.f32 0.0, %v4220
        %v4222 = vpop.f32.mrb[0].mxu0
        %4223 = vmatprep.mubr.f32.mxu0 %v3614
        %4224 = vmatmul.mubr.f32.gmra.mrb[0].mxu0 %v3613
        %v4225 = vpop.f32.mrb[0].mxu0
        %v4226 = vadd.f32 0.0, %v4225
        %v4227 = vpop.f32.mrb[0].mxu0
        %4228 = vmatprep.mubr.f32.mxu0 %v3618
        %4229 = vmatmul.mubr.f32.gmra.mrb[0].mxu0 %v3617
        %v4230 = vpop.f32.mrb[0].mxu0
        %v4231 = vadd.f32 0.0, %v4230
        %v4232 = vpop.f32.mrb[0].mxu0
        %4233 = vdwg.mxu0
        %4234 = vmatprep.subr.mxu0 0.0
        %4235 = vmatpush1.msra.mxu0 %v3720
        %4236 = vmatprep.subr.mxu0 0.0
        %4237 = vmatpush1.msra.mxu0 %v3723
        %4238 = vmatprep.subr.mxu0 0.0
        %4239 = vmatpush1.msra.mxu0 %v3726
        %4240 = vmatprep.subr.mxu0 0.0
        %4241 = vmatpush1.msra.mxu0 %v3729
        %4242 = vmatprep.subr.mxu0 0.0
        %4243 = vmatpush1.msra.mxu0 %v3732
        %4244 = vmatprep.subr.mxu0 0.0
        %4245 = vmatpush1.msra.mxu0 %v3735
        %4246 = vmatprep.subr.mxu0 0.0
        %4247 = vmatpush1.msra.mxu0 %v3738
        %4248 = vmatprep.subr.mxu0 0.0
        %4249 = vmatpush1.msra.mxu0 %v3741
        %4250 = vmatprep.subr.mxu0 0.0
        %4251 = vmatpush1.msra.mxu0 %v3744
        %4252 = vmatprep.subr.mxu0 0.0
        %4253 = vmatpush1.msra.mxu0 %v3747
        %4254 = vmatprep.subr.mxu0 0.0
        %4255 = vmatpush1.msra.mxu0 %v3750
        %4256 = vmatprep.subr.mxu0 0.0
        %4257 = vmatpush1.msra.mxu0 %v3753
        %4258 = vmatprep.subr.mxu0 0.0
        %4259 = vmatpush1.msra.mxu0 %v3756
        %4260 = vmatprep.subr.mxu0 0.0
        %4261 = vmatpush1.msra.mxu0 %v3759
        %4262 = vmatprep.subr.mxu0 0.0
        %4263 = vmatpush1.msra.mxu0 %v3762
        %4264 = vmatprep.subr.mxu0 0.0
        %4265 = vmatpush1.msra.mxu0 %v3765
        %4266 = vmatprep.subr.mxu0 0.0
        %4267 = vmatpush1.msra.mxu0 %v3768
        %4268 = vmatprep.subr.mxu0 0.0
        %4269 = vmatpush1.msra.mxu0 %v3771
        %4270 = vmatprep.subr.mxu0 0.0
        %4271 = vmatpush1.msra.mxu0 %v3774
        %4272 = vmatprep.subr.mxu0 0.0
        %4273 = vmatpush1.msra.mxu0 %v3777
        %4274 = vmatprep.subr.mxu0 0.0
        %4275 = vmatpush1.msra.mxu0 %v3780
        %4276 = vmatprep.subr.mxu0 0.0
        %4277 = vmatpush1.msra.mxu0 %v3783
        %4278 = vmatprep.subr.mxu0 0.0
        %4279 = vmatpush1.msra.mxu0 %v3786
        %4280 = vmatprep.subr.mxu0 0.0
        %4281 = vmatpush1.msra.mxu0 %v3833
        %4282 = vmatprep.subr.mxu0 0.0
        %4283 = vmatpush1.msra.mxu0 0.0
        %4284 = vmatprep.subr.mxu0 0.0
        %4285 = vmatpush1.msra.mxu0 0.0
        %4286 = vmatprep.subr.mxu0 0.0
        %4287 = vmatpush1.msra.mxu0 0.0
        %4288 = vmatprep.subr.mxu0 0.0
        %4289 = vmatpush1.msra.mxu0 0.0
        %4290 = vmatprep.subr.mxu0 0.0
        %4291 = vmatpush1.msra.mxu0 0.0
        %4292 = vmatprep.subr.mxu0 0.0
        %4293 = vmatpush1.msra.mxu0 0.0
        %4294 = vmatprep.subr.mxu0 0.0
        %4295 = vmatpush1.msra.mxu0 0.0
        %4296 = vmatprep.subr.mxu0 0.0
        %4297 = vmatpush1.msra.mxu0 0.0
        %4298 = vmatprep.mubr.f32.mxu0 %v3791
        %4299 = vmatmul.mubr.f32.gmra.mrb[0].mxu0 %v3575
        %v4300 = vpop.f32.mrb[0].mxu0
        %v4301 = vadd.f32 %v4176, %v4300
        %v4302 = vpop.f32.mrb[0].mxu0
        %4303 = vmatprep.mubr.f32.mxu0 %v3794
        %4304 = vmatmul.mubr.f32.gmra.mrb[0].mxu0 %v3579
        %v4305 = vpop.f32.mrb[0].mxu0
        %v4306 = vadd.f32 %v4181, %v4305
        %v4307 = vpop.f32.mrb[0].mxu0
        %4308 = vmatprep.mubr.f32.mxu0 %v3797
        %4309 = vmatmul.mubr.f32.gmra.mrb[0].mxu0 %v3583
        %v4310 = vpop.f32.mrb[0].mxu0
        %v4311 = vadd.f32 %v4186, %v4310
        %v4312 = vpop.f32.mrb[0].mxu0
        %4313 = vmatprep.mubr.f32.mxu0 %v3800
        %4314 = vmatmul.mubr.f32.gmra.mrb[0].mxu0 %v3587
        %v4315 = vpop.f32.mrb[0].mxu0
        %v4316 = vadd.f32 %v4191, %v4315
        %v4317 = vpop.f32.mrb[0].mxu0
        %4318 = vmatprep.mubr.f32.mxu0 %v3803
        %4319 = vmatmul.mubr.f32.gmra.mrb[0].mxu0 %v3591
        %v4320 = vpop.f32.mrb[0].mxu0
        %v4321 = vadd.f32 %v4196, %v4320
        %v4322 = vpop.f32.mrb[0].mxu0
        %4323 = vmatprep.mubr.f32.mxu0 %v3806
        %4324 = vmatmul.mubr.f32.gmra.mrb[0].mxu0 %v3595
        %v4325 = vpop.f32.mrb[0].mxu0
        %v4326 = vadd.f32 %v4201, %v4325
        %v4327 = vpop.f32.mrb[0].mxu0
        %4328 = vmatprep.mubr.f32.mxu0 %v3809
        %4329 = vmatmul.mubr.f32.gmra.mrb[0].mxu0 %v3599
        %v4330 = vpop.f32.mrb[0].mxu0
        %v4331 = vadd.f32 %v4206, %v4330
        %v4332 = vpop.f32.mrb[0].mxu0
        %4333 = vmatprep.mubr.f32.mxu0 %v3812
        %4334 = vmatmul.mubr.f32.gmra.mrb[0].mxu0 %v3603
        %v4335 = vpop.f32.mrb[0].mxu0
        %v4336 = vadd.f32 %v4211, %v4335
        %v4337 = vpop.f32.mrb[0].mxu0
        %4338 = vmatprep.mubr.f32.mxu0 %v3815
        %4339 = vmatmul.mubr.f32.gmra.mrb[0].mxu0 %v3607
        %v4340 = vpop.f32.mrb[0].mxu0
        %v4341 = vadd.f32 %v4216, %v4340
        %v4342 = vpop.f32.mrb[0].mxu0
        %4343 = vmatprep.mubr.f32.mxu0 %v3818
        %4344 = vmatmul.mubr.f32.gmra.mrb[0].mxu0 %v3611
        %v4345 = vpop.f32.mrb[0].mxu0
        %v4346 = vadd.f32 %v4221, %v4345
        %v4347 = vpop.f32.mrb[0].mxu0
        %4348 = vmatprep.mubr.f32.mxu0 %v3821
        %4349 = vmatmul.mubr.f32.gmra.mrb[0].mxu0 %v3615
        %v4350 = vpop.f32.mrb[0].mxu0
        %v4351 = vadd.f32 %v4226, %v4350
        %v4352 = vpop.f32.mrb[0].mxu0
        %4353 = vmatprep.mubr.f32.mxu0 %v3824
        %4354 = vmatmul.mubr.f32.gmra.mrb[0].mxu0 %v3619
        %v4355 = vpop.f32.mrb[0].mxu0
        %v4356 = vadd.f32 %v4231, %v4355
        %v4357 = vpop.f32.mrb[0].mxu0
        %4358 = vdwg.mxu0
        %v4359 = vadd.f32 %v3536, %v4039
        %v4360 = vadd.f32 %v3537, %v4041
        %v4361 = vadd.f32 %v3538, %v4301
        %v4362 = vadd.f32 %v3539, %v4045
        %v4363 = vadd.f32 %v3540, %v4047
        %v4364 = vadd.f32 %v3541, %v4306
        %v4365 = vadd.f32 %v3542, %v4051
        %v4366 = vadd.f32 %v3543, %v4053
        %v4367 = vadd.f32 %v3544, %v4311
        %v4368 = vadd.f32 %v3545, %v4057
        %v4369 = vadd.f32 %v3546, %v4059
        %v4370 = vadd.f32 %v3547, %v4316
        %v4371 = vadd.f32 %v3548, %v4063
        %v4372 = vadd.f32 %v3549, %v4065
        %v4373 = vadd.f32 %v3550, %v4321
        %v4374 = vadd.f32 %v3551, %v4069
        %v4375 = vadd.f32 %v3552, %v4071
        %v4376 = vadd.f32 %v3553, %v4326
        %v4377 = vadd.f32 %v3554, %v4075
        %v4378 = vadd.f32 %v3555, %v4077
        %v4379 = vadd.f32 %v3556, %v4331
        %v4380 = vadd.f32 %v3557, %v4081
        %v4381 = vadd.f32 %v3558, %v4083
        %v4382 = vadd.f32 %v3559, %v4336
        %v4383 = vadd.f32 %v3560, %v4087
        %v4384 = vadd.f32 %v3561, %v4089
        %v4385 = vadd.f32 %v3562, %v4341
        %v4386 = vadd.f32 %v3563, %v4093
        %v4387 = vadd.f32 %v3564, %v4095
        %v4388 = vadd.f32 %v3565, %v4346
        %v4389 = vadd.f32 %v3566, %v4099
        %v4390 = vadd.f32 %v3567, %v4101
        %v4391 = vadd.f32 %v3568, %v4351
        %v4392 = vadd.f32 %v3569, %v4105
        %v4393 = vadd.f32 %v3570, %v4107
        %v4394 = vadd.f32 %v3571, %v4356
        %4395 = vst [vmem:[%s3] sm:$0xff] %v4359
        %4396 = vst [vmem:[%s3 + $0x8] sm:$0xff] %v4360
        %vm4397 = vcmask 261120
        %4398 = vst.msk [vmem:[%s3 + $0x10] sm:$0xff] %vm4397, %v4361
        %4399 = vst [vmem:[%s3 + $0x18] sm:$0xff] %v4362
        %4400 = vst [vmem:[%s3 + $0x20] sm:$0xff] %v4363
        %4401 = vst.msk [vmem:[%s3 + $0x28] sm:$0xff] %vm4397, %v4364
        %4402 = vst [vmem:[%s3 + $0x30] sm:$0xff] %v4365
        %4403 = vst [vmem:[%s3 + $0x38] sm:$0xff] %v4366
        %4404 = vst.msk [vmem:[%s3 + $0x40] sm:$0xff] %vm4397, %v4367
        %4405 = vst [vmem:[%s3 + $0x48] sm:$0xff] %v4368
        %4406 = vst [vmem:[%s3 + $0x50] sm:$0xff] %v4369
        %4407 = vst.msk [vmem:[%s3 + $0x58] sm:$0xff] %vm4397, %v4370
        %4408 = vst [vmem:[%s3 + $0x60] sm:$0xff] %v4371
        %4409 = vst [vmem:[%s3 + $0x68] sm:$0xff] %v4372
        %4410 = vst.msk [vmem:[%s3 + $0x70] sm:$0xff] %vm4397, %v4373
        %4411 = vst [vmem:[%s3 + $0x78] sm:$0xff] %v4374
        %4412 = vst [vmem:[%s3 + $0x80] sm:$0xff] %v4375
        %4413 = vst.msk [vmem:[%s3 + $0x88] sm:$0xff] %vm4397, %v4376
        %4414 = vst [vmem:[%s3 + $0x90] sm:$0xff] %v4377
        %4415 = vst [vmem:[%s3 + $0x98] sm:$0xff] %v4378
        %4416 = vst.msk [vmem:[%s3 + $0xa0] sm:$0xff] %vm4397, %v4379
        %4417 = vst [vmem:[%s3 + $0xa8] sm:$0xff] %v4380
        %4418 = vst [vmem:[%s3 + $0xb0] sm:$0xff] %v4381
        %4419 = vst.msk [vmem:[%s3 + $0xb8] sm:$0xff] %vm4397, %v4382
        %4420 = vst [vmem:[%s3 + $0xc0] sm:$0xff] %v4383
        %4421 = vst [vmem:[%s3 + $0xc8] sm:$0xff] %v4384
        %4422 = vst.msk [vmem:[%s3 + $0xd0] sm:$0xff] %vm4397, %v4385
        %4423 = vst [vmem:[%s3 + $0xd8] sm:$0xff] %v4386
        %4424 = vst [vmem:[%s3 + $0xe0] sm:$0xff] %v4387
        %4425 = vst.msk [vmem:[%s3 + $0xe8] sm:$0xff] %vm4397, %v4388
        %4426 = vst [vmem:[%s3 + $0xf0] sm:$0xff] %v4389
        %4427 = vst [vmem:[%s3 + $0xf8] sm:$0xff] %v4390
        %4428 = vst.msk [vmem:[%s3 + $0x100] sm:$0xff] %vm4397, %v4391
        %4429 = vst [vmem:[%s3 + $0x108] sm:$0xff] %v4392
        %4430 = vst [vmem:[%s3 + $0x110] sm:$0xff] %v4393
        %4431 = vst.msk [vmem:[%s3 + $0x118] sm:$0xff] %vm4397, %v4394
        %p4432 = scmp.eq.s32.totalorder %s17, 19
        // Predicated region
        $region41: #{net_forward.6} parent=31 // pred_check
          %p4433 = pneg %p4432
        $region42: #{net_forward.6} parent=31 // pred_check_branch
          %4435 = sbr.rel (%p4433) target = $region44
        $region43: #{net_forward.6} parent=31 // pred_region
          %v4436 = vld [vmem:[%s3] sm:$0xff]
          %v4437 = vld [vmem:[%s3 + $0x8] sm:$0xff]
          %v4438 = vld [vmem:[%s3 + $0x10] sm:$0xff]
          %v4439 = vld [vmem:[%s3 + $0x18] sm:$0xff]
          %v4440 = vld [vmem:[%s3 + $0x20] sm:$0xff]
          %v4441 = vld [vmem:[%s3 + $0x28] sm:$0xff]
          %v4442 = vld [vmem:[%s3 + $0x30] sm:$0xff]
          %v4443 = vld [vmem:[%s3 + $0x38] sm:$0xff]
          %v4444 = vld [vmem:[%s3 + $0x40] sm:$0xff]
          %v4445 = vld [vmem:[%s3 + $0x48] sm:$0xff]
          %v4446 = vld [vmem:[%s3 + $0x50] sm:$0xff]
          %v4447 = vld [vmem:[%s3 + $0x58] sm:$0xff]
          %v4448 = vld [vmem:[%s3 + $0x60] sm:$0xff]
          %v4449 = vld [vmem:[%s3 + $0x68] sm:$0xff]
          %v4450 = vld [vmem:[%s3 + $0x70] sm:$0xff]
          %v4451 = vld [vmem:[%s3 + $0x78] sm:$0xff]
          %v4452 = vld [vmem:[%s3 + $0x80] sm:$0xff]
          %v4453 = vld [vmem:[%s3 + $0x88] sm:$0xff]
          %v4454 = vld [vmem:[%s3 + $0x90] sm:$0xff]
          %v4455 = vld [vmem:[%s3 + $0x98] sm:$0xff]
          %v4456 = vld [vmem:[%s3 + $0xa0] sm:$0xff]
          %v4457 = vld [vmem:[%s3 + $0xa8] sm:$0xff]
          %v4458 = vld [vmem:[%s3 + $0xb0] sm:$0xff]
          %v4459 = vld [vmem:[%s3 + $0xb8] sm:$0xff]
          %v4460 = vld [vmem:[%s3 + $0xc0] sm:$0xff]
          %v4461 = vld [vmem:[%s3 + $0xc8] sm:$0xff]
          %v4462 = vld [vmem:[%s3 + $0xd0] sm:$0xff]
          %v4463 = vld [vmem:[%s3 + $0xd8] sm:$0xff]
          %v4464 = vld [vmem:[%s3 + $0xe0] sm:$0xff]
          %v4465 = vld [vmem:[%s3 + $0xe8] sm:$0xff]
          %v4466 = vld [vmem:[%s3 + $0xf0] sm:$0xff]
          %v4467 = vld [vmem:[%s3 + $0xf8] sm:$0xff]
          %v4468 = vld [vmem:[%s3 + $0x100] sm:$0xff]
          %v4469 = vld [vmem:[%s3 + $0x108] sm:$0xff]
          %v4470 = vld [vmem:[%s3 + $0x110] sm:$0xff]
          %v4471 = vld [vmem:[%s3 + $0x118] sm:$0xff]
          %v4472 = vld [vmem:[%s2] sm:$0x7]
          %v4474 = vlaneseq
          %v4475 = vshrl.u32 %v4474, 7
          %v4476 = vsub.s32 0, %v4475
          %v4477 = vrot.slane %v4472, %v4476
          %v4478 = vlaneseq
          %v4479 = vshrl.u32 %v4478, 7
          %v4480 = vsub.s32 1, %v4479
          %v4481 = vrot.slane %v4472, %v4480
          %v4482 = vlaneseq
          %v4483 = vshrl.u32 %v4482, 7
          %v4484 = vsub.s32 2, %v4483
          %v4485 = vrot.slane %v4472, %v4484
          %v4489 = vadd.f32 %v4436, %v4477
          %v4490 = vadd.f32 %v4437, %v4481
          %v4491 = vadd.f32 %v4438, %v4485
          %v4492 = vadd.f32 %v4439, %v4477
          %v4493 = vadd.f32 %v4440, %v4481
          %v4494 = vadd.f32 %v4441, %v4485
          %v4495 = vadd.f32 %v4442, %v4477
          %v4496 = vadd.f32 %v4443, %v4481
          %v4497 = vadd.f32 %v4444, %v4485
          %v4498 = vadd.f32 %v4445, %v4477
          %v4499 = vadd.f32 %v4446, %v4481
          %v4500 = vadd.f32 %v4447, %v4485
          %v4501 = vadd.f32 %v4448, %v4477
          %v4502 = vadd.f32 %v4449, %v4481
          %v4503 = vadd.f32 %v4450, %v4485
          %v4504 = vadd.f32 %v4451, %v4477
          %v4505 = vadd.f32 %v4452, %v4481
          %v4506 = vadd.f32 %v4453, %v4485
          %v4507 = vadd.f32 %v4454, %v4477
          %v4508 = vadd.f32 %v4455, %v4481
          %v4509 = vadd.f32 %v4456, %v4485
          %v4510 = vadd.f32 %v4457, %v4477
          %v4511 = vadd.f32 %v4458, %v4481
          %v4512 = vadd.f32 %v4459, %v4485
          %v4513 = vadd.f32 %v4460, %v4477
          %v4514 = vadd.f32 %v4461, %v4481
          %v4515 = vadd.f32 %v4462, %v4485
          %v4516 = vadd.f32 %v4463, %v4477
          %v4517 = vadd.f32 %v4464, %v4481
          %v4518 = vadd.f32 %v4465, %v4485
          %v4519 = vadd.f32 %v4466, %v4477
          %v4520 = vadd.f32 %v4467, %v4481
          %v4521 = vadd.f32 %v4468, %v4485
          %v4522 = vadd.f32 %v4469, %v4477
          %v4523 = vadd.f32 %v4470, %v4481
          %v4524 = vadd.f32 %v4471, %v4485
          %v4525 = vmax.f32 %v4489, 0.0
          %v4526 = vmax.f32 %v4490, 0.0
          %v4527 = vmax.f32 %v4491, 0.0
          %v4528 = vmax.f32 %v4492, 0.0
          %v4529 = vmax.f32 %v4493, 0.0
          %v4530 = vmax.f32 %v4494, 0.0
          %v4531 = vmax.f32 %v4495, 0.0
          %v4532 = vmax.f32 %v4496, 0.0
          %v4533 = vmax.f32 %v4497, 0.0
          %v4534 = vmax.f32 %v4498, 0.0
          %v4535 = vmax.f32 %v4499, 0.0
          %v4536 = vmax.f32 %v4500, 0.0
          %v4537 = vmax.f32 %v4501, 0.0
          %v4538 = vmax.f32 %v4502, 0.0
          %v4539 = vmax.f32 %v4503, 0.0
          %v4540 = vmax.f32 %v4504, 0.0
          %v4541 = vmax.f32 %v4505, 0.0
          %v4542 = vmax.f32 %v4506, 0.0
          %v4543 = vmax.f32 %v4507, 0.0
          %v4544 = vmax.f32 %v4508, 0.0
          %v4545 = vmax.f32 %v4509, 0.0
          %v4546 = vmax.f32 %v4510, 0.0
          %v4547 = vmax.f32 %v4511, 0.0
          %v4548 = vmax.f32 %v4512, 0.0
          %v4549 = vmax.f32 %v4513, 0.0
          %v4550 = vmax.f32 %v4514, 0.0
          %v4551 = vmax.f32 %v4515, 0.0
          %v4552 = vmax.f32 %v4516, 0.0
          %v4553 = vmax.f32 %v4517, 0.0
          %v4554 = vmax.f32 %v4518, 0.0
          %v4555 = vmax.f32 %v4519, 0.0
          %v4556 = vmax.f32 %v4520, 0.0
          %v4557 = vmax.f32 %v4521, 0.0
          %v4558 = vmax.f32 %v4522, 0.0
          %v4559 = vmax.f32 %v4523, 0.0
          %v4560 = vmax.f32 %v4524, 0.0
          %4561 = vst [vmem:[%s3] sm:$0xff] %v4525
          %4562 = vst [vmem:[%s3 + $0x8] sm:$0xff] %v4526
          %4563 = vst.msk [vmem:[%s3 + $0x10] sm:$0xff] %vm4397, %v4527
          %4564 = vst [vmem:[%s3 + $0x18] sm:$0xff] %v4528
          %4565 = vst [vmem:[%s3 + $0x20] sm:$0xff] %v4529
          %4566 = vst.msk [vmem:[%s3 + $0x28] sm:$0xff] %vm4397, %v4530
          %4567 = vst [vmem:[%s3 + $0x30] sm:$0xff] %v4531
          %4568 = vst [vmem:[%s3 + $0x38] sm:$0xff] %v4532
          %4569 = vst.msk [vmem:[%s3 + $0x40] sm:$0xff] %vm4397, %v4533
          %4570 = vst [vmem:[%s3 + $0x48] sm:$0xff] %v4534
          %4571 = vst [vmem:[%s3 + $0x50] sm:$0xff] %v4535
          %4572 = vst.msk [vmem:[%s3 + $0x58] sm:$0xff] %vm4397, %v4536
          %4573 = vst [vmem:[%s3 + $0x60] sm:$0xff] %v4537
          %4574 = vst [vmem:[%s3 + $0x68] sm:$0xff] %v4538
          %4575 = vst.msk [vmem:[%s3 + $0x70] sm:$0xff] %vm4397, %v4539
          %4576 = vst [vmem:[%s3 + $0x78] sm:$0xff] %v4540
          %4577 = vst [vmem:[%s3 + $0x80] sm:$0xff] %v4541
          %4578 = vst.msk [vmem:[%s3 + $0x88] sm:$0xff] %vm4397, %v4542
          %4579 = vst [vmem:[%s3 + $0x90] sm:$0xff] %v4543
          %4580 = vst [vmem:[%s3 + $0x98] sm:$0xff] %v4544
          %4581 = vst.msk [vmem:[%s3 + $0xa0] sm:$0xff] %vm4397, %v4545
          %4582 = vst [vmem:[%s3 + $0xa8] sm:$0xff] %v4546
          %4583 = vst [vmem:[%s3 + $0xb0] sm:$0xff] %v4547
          %4584 = vst.msk [vmem:[%s3 + $0xb8] sm:$0xff] %vm4397, %v4548
          %4585 = vst [vmem:[%s3 + $0xc0] sm:$0xff] %v4549
          %4586 = vst [vmem:[%s3 + $0xc8] sm:$0xff] %v4550
          %4587 = vst.msk [vmem:[%s3 + $0xd0] sm:$0xff] %vm4397, %v4551
          %4588 = vst [vmem:[%s3 + $0xd8] sm:$0xff] %v4552
          %4589 = vst [vmem:[%s3 + $0xe0] sm:$0xff] %v4553
          %4590 = vst.msk [vmem:[%s3 + $0xe8] sm:$0xff] %vm4397, %v4554
          %4591 = vst [vmem:[%s3 + $0xf0] sm:$0xff] %v4555
          %4592 = vst [vmem:[%s3 + $0xf8] sm:$0xff] %v4556
          %4593 = vst.msk [vmem:[%s3 + $0x100] sm:$0xff] %vm4397, %v4557
          %4594 = vst [vmem:[%s3 + $0x108] sm:$0xff] %v4558
          %4595 = vst [vmem:[%s3 + $0x110] sm:$0xff] %v4559
          %4596 = vst.msk [vmem:[%s3 + $0x118] sm:$0xff] %vm4397, %v4560
        $region44: #{net_forward.6} parent=31 // pred_fallthru
          _
        // Predicated region
        $region45: #{net_forward.6} parent=31 // pred_check
          %p4597 = pneg %p103
        $region46: #{net_forward.6} parent=31 // pred_check_branch
          %4599 = sbr.rel (%p4597) target = $region48
        $region47: #{net_forward.6} parent=31 // pred_region
          _
        $region48: #{net_forward.6} parent=31 // pred_fallthru
          _
        // Predicated region
        $region49: #{net_forward.6} parent=31 // pred_check
          %p4600 = pneg %p103
        $region50: #{net_forward.6} parent=31 // pred_check_branch
          %4602 = sbr.rel (%p4600) target = $region52
        $region51: #{net_forward.6} parent=31 // pred_region
          _
        $region52: #{net_forward.6} parent=31 // pred_fallthru
          _
      $region32: #{net_forward.6} parent=5 // pred_fallthru
        _
      %p4603 = scmp.le.s32.totalorder 2, %s12
      // Predicated region
      $region53: #{net_forward.6} parent=5 // pred_check
        %p4604 = pneg %p4603
      $region54: #{net_forward.6} parent=5 // pred_check_branch
        %4606 = sbr.rel (%p4604) target = $region56
      $region55: #{net_forward.6} parent=5 // pred_region
        %s4607 = ssub.s32 %s12, 2
      $region56: #{net_forward.6} parent=5 // pred_fallthru
        _
    $region6: #{net_forward.6} parent=1 // loop_footer
      %s16 = sadd.s32 1, %s12
    $region7: #{net_forward.6} parent=1 // loop_footer_branch
      %11 = sbr.rel target = $region3
    $region8: #{net_forward.6} parent=1 // loop_exit
      _
    %4608 = vsyncpa [#allocation3], 1
    %s4609 = scalar_lea.sflag [#allocation3], 1
    %4610 = vsyncpa %s4609, 1

// kernel: net_forward.7
$region0: #{net_forward.7}
  #allocation0 [shape = 'u32[]', space=smem, size = 0x4, offset = 0x4, fixed_abs, tag = 'smem constant byte address 0x4 - core index']
  #allocation1 [shape = 'u32[144,128]{1,0:T(1,128)}', space=vmem, size = 0x12000, scoped, tag = 'internal scratch']
  %s0 = inlined_call_operand.vmem [shape: f32[48,144], index: 0, kind: input, shape index: {}]
  %s1 = inlined_call_operand.vmem [shape: f32[48,144], index: 1, kind: input, shape index: {}]
  %s2 = inlined_call_operand.vmem [shape: f32[48,144], index: 2, kind: input, shape index: {}]
  %s3 = inlined_call_operand.vmem [shape: f32[48,144], index: 3, kind: input, shape index: {}]
  %s4 = inlined_call_operand.vmem [shape: f32[48,144], index: 4, kind: output, shape index: {}]
  %s5 = sld [smem:[#allocation0]]
  $region26: #{net_forward.7} parent=0
    _
  %s7 = ssub.s32 1, %s5
  %s8 = scalar_select 0, %s7, %s5
  // Predicated region
  $region2: #{net_forward.7} parent=0 // pred_check
    _
  $region3: #{net_forward.7} parent=0 // pred_check_branch
    %10 = sbr.rel (0) target = $region5
  $region4: #{net_forward.7} parent=0 // pred_region
    _
  $region5: #{net_forward.7} parent=0 // pred_fallthru
    _
  // Predicated region
  $region6: #{net_forward.7} parent=0 // pred_check
    _
  $region7: #{net_forward.7} parent=0 // pred_check_branch
    %12 = sbr.rel (0) target = $region9
  $region8: #{net_forward.7} parent=0 // pred_region
    _
  $region9: #{net_forward.7} parent=0 // pred_fallthru
    _
  // Predicated region
  $region10: #{net_forward.7} parent=0 // pred_check
    _
  $region11: #{net_forward.7} parent=0 // pred_check_branch
    %14 = sbr.rel (0) target = $region13
  $region12: #{net_forward.7} parent=0 // pred_region
    _
  $region13: #{net_forward.7} parent=0 // pred_fallthru
    _
  // Predicated region
  $region14: #{net_forward.7} parent=0 // pred_check
    _
  $region15: #{net_forward.7} parent=0 // pred_check_branch
    %16 = sbr.rel (0) target = $region17
  $region16: #{net_forward.7} parent=0 // pred_region
    _
  $region17: #{net_forward.7} parent=0 // pred_fallthru
    _
  %v17 = vld [vmem:[%s0] sm:$0xff]
  %v18 = vld [vmem:[%s0 + $0x8] sm:$0xff]
  %v19 = vld [vmem:[%s0 + $0x10] sm:$0xff]
  %v20 = vld [vmem:[%s0 + $0x18] sm:$0xff]
  %v21 = vld [vmem:[%s0 + $0x20] sm:$0xff]
  %v22 = vld [vmem:[%s0 + $0x28] sm:$0xff]
  %v23 = vld [vmem:[%s0 + $0x30] sm:$0xff]
  %v24 = vld [vmem:[%s0 + $0x38] sm:$0xff]
  %v25 = vld [vmem:[%s0 + $0x40] sm:$0xff]
  %v26 = vld [vmem:[%s0 + $0x48] sm:$0xff]
  %v27 = vld [vmem:[%s0 + $0x50] sm:$0xff]
  %v28 = vld [vmem:[%s0 + $0x58] sm:$0xff]
  %v29 = vld [vmem:[%s1] sm:$0xff]
  %v30 = vld [vmem:[%s1 + $0x8] sm:$0xff]
  %v31 = vld [vmem:[%s1 + $0x10] sm:$0xff]
  %v32 = vld [vmem:[%s1 + $0x18] sm:$0xff]
  %v33 = vld [vmem:[%s1 + $0x20] sm:$0xff]
  %v34 = vld [vmem:[%s1 + $0x28] sm:$0xff]
  %v35 = vld [vmem:[%s1 + $0x30] sm:$0xff]
  %v36 = vld [vmem:[%s1 + $0x38] sm:$0xff]
  %v37 = vld [vmem:[%s1 + $0x40] sm:$0xff]
  %v38 = vld [vmem:[%s1 + $0x48] sm:$0xff]
  %v39 = vld [vmem:[%s1 + $0x50] sm:$0xff]
  %v40 = vld [vmem:[%s1 + $0x58] sm:$0xff]
  %v41 = vmax.f32 %v17, %v29
  %v42 = vmax.f32 %v18, %v30
  %v43 = vmax.f32 %v19, %v31
  %v44 = vmax.f32 %v20, %v32
  %v45 = vmax.f32 %v21, %v33
  %v46 = vmax.f32 %v22, %v34
  %v47 = vmax.f32 %v23, %v35
  %v48 = vmax.f32 %v24, %v36
  %v49 = vmax.f32 %v25, %v37
  %v50 = vmax.f32 %v26, %v38
  %v51 = vmax.f32 %v27, %v39
  %v52 = vmax.f32 %v28, %v40
  %v53 = vld [vmem:[%s2] sm:$0xff]
  %v54 = vld [vmem:[%s2 + $0x8] sm:$0xff]
  %v55 = vld [vmem:[%s2 + $0x10] sm:$0xff]
  %v56 = vld [vmem:[%s2 + $0x18] sm:$0xff]
  %v57 = vld [vmem:[%s2 + $0x20] sm:$0xff]
  %v58 = vld [vmem:[%s2 + $0x28] sm:$0xff]
  %v59 = vld [vmem:[%s2 + $0x30] sm:$0xff]
  %v60 = vld [vmem:[%s2 + $0x38] sm:$0xff]
  %v61 = vld [vmem:[%s2 + $0x40] sm:$0xff]
  %v62 = vld [vmem:[%s2 + $0x48] sm:$0xff]
  %v63 = vld [vmem:[%s2 + $0x50] sm:$0xff]
  %v64 = vld [vmem:[%s2 + $0x58] sm:$0xff]
  %v65 = vld [vmem:[%s3] sm:$0xff]
  %v66 = vld [vmem:[%s3 + $0x8] sm:$0xff]
  %v67 = vld [vmem:[%s3 + $0x10] sm:$0xff]
  %v68 = vld [vmem:[%s3 + $0x18] sm:$0xff]
  %v69 = vld [vmem:[%s3 + $0x20] sm:$0xff]
  %v70 = vld [vmem:[%s3 + $0x28] sm:$0xff]
  %v71 = vld [vmem:[%s3 + $0x30] sm:$0xff]
  %v72 = vld [vmem:[%s3 + $0x38] sm:$0xff]
  %v73 = vld [vmem:[%s3 + $0x40] sm:$0xff]
  %v74 = vld [vmem:[%s3 + $0x48] sm:$0xff]
  %v75 = vld [vmem:[%s3 + $0x50] sm:$0xff]
  %v76 = vld [vmem:[%s3 + $0x58] sm:$0xff]
  %v77 = vmax.f32 %v53, %v65
  %v78 = vmax.f32 %v54, %v66
  %v79 = vmax.f32 %v55, %v67
  %v80 = vmax.f32 %v56, %v68
  %v81 = vmax.f32 %v57, %v69
  %v82 = vmax.f32 %v58, %v70
  %v83 = vmax.f32 %v59, %v71
  %v84 = vmax.f32 %v60, %v72
  %v85 = vmax.f32 %v61, %v73
  %v86 = vmax.f32 %v62, %v74
  %v87 = vmax.f32 %v63, %v75
  %v88 = vmax.f32 %v64, %v76
  %v89 = vmax.f32 %v41, %v77
  %v90 = vmax.f32 %v42, %v78
  %v91 = vmax.f32 %v43, %v79
  %v92 = vmax.f32 %v44, %v80
  %v93 = vmax.f32 %v45, %v81
  %v94 = vmax.f32 %v46, %v82
  %v95 = vmax.f32 %v47, %v83
  %v96 = vmax.f32 %v48, %v84
  %v97 = vmax.f32 %v49, %v85
  %v98 = vmax.f32 %v50, %v86
  %v99 = vmax.f32 %v51, %v87
  %v100 = vmax.f32 %v52, %v88
  %101 = vst [vmem:[%s4] sm:$0xff] %v89
  %vm102 = vcmask 130048
  %103 = vst.msk [vmem:[%s4 + $0x8] sm:$0xff] %vm102, %v90
  %104 = vst [vmem:[%s4 + $0x10] sm:$0xff] %v91
  %105 = vst.msk [vmem:[%s4 + $0x18] sm:$0xff] %vm102, %v92
  %106 = vst [vmem:[%s4 + $0x20] sm:$0xff] %v93
  %107 = vst.msk [vmem:[%s4 + $0x28] sm:$0xff] %vm102, %v94
  %108 = vst [vmem:[%s4 + $0x30] sm:$0xff] %v95
  %109 = vst.msk [vmem:[%s4 + $0x38] sm:$0xff] %vm102, %v96
  %110 = vst [vmem:[%s4 + $0x40] sm:$0xff] %v97
  %111 = vst.msk [vmem:[%s4 + $0x48] sm:$0xff] %vm102, %v98
  %112 = vst [vmem:[%s4 + $0x50] sm:$0xff] %v99
  %113 = vst.msk [vmem:[%s4 + $0x58] sm:$0xff] %vm102, %v100
  // Predicated region
  $region18: #{net_forward.7} parent=0 // pred_check
    _
  $region19: #{net_forward.7} parent=0 // pred_check_branch
    %115 = sbr.rel (0) target = $region21
  $region20: #{net_forward.7} parent=0 // pred_region
    _
  $region21: #{net_forward.7} parent=0 // pred_fallthru
    _
  // Predicated region
  $region22: #{net_forward.7} parent=0 // pred_check
    _
  $region23: #{net_forward.7} parent=0 // pred_check_branch
    %117 = sbr.rel (0) target = $region25
  $region24: #{net_forward.7} parent=0 // pred_region
    _
  $region25: #{net_forward.7} parent=0 // pred_fallthru
    _

// kernel: net_forward.8
$region0: #{net_forward.8}
  #allocation0 [shape = 'u32[]', space=smem, size = 0x4, offset = 0x4, fixed_abs, tag = 'smem constant byte address 0x4 - core index']
  #allocation1 [shape = 'u32[144,128]{1,0:T(1,128)}', space=vmem, size = 0x12000, scoped, tag = 'internal scratch']
  %s0 = inlined_call_operand.vmem [shape: f32[800,150], index: 0, kind: input, shape index: {}]
  %s1 = inlined_call_operand.vmem [shape: f32[150,16], index: 1, kind: input, shape index: {}]
  %s2 = inlined_call_operand.vmem [shape: f32[1,16], index: 2, kind: input, shape index: {}]
  %s3 = inlined_call_operand.vmem [shape: f32[800,16], index: 3, kind: output, shape index: {}]
  %s4 = sld [smem:[#allocation0]]
  $region22: #{net_forward.8} parent=0
    _
  %s6 = ssub.s32 1, %s4
  %s7 = scalar_select 0, %s6, %s4
  // Predicated region
  $region2: #{net_forward.8} parent=0 // pred_check
    _
  $region3: #{net_forward.8} parent=0 // pred_check_branch
    %9 = sbr.rel (0) target = $region5
  $region4: #{net_forward.8} parent=0 // pred_region
    _
  $region5: #{net_forward.8} parent=0 // pred_fallthru
    _
  // Predicated region
  $region6: #{net_forward.8} parent=0 // pred_check
    _
  $region7: #{net_forward.8} parent=0 // pred_check_branch
    %11 = sbr.rel (0) target = $region9
  $region8: #{net_forward.8} parent=0 // pred_region
    _
  $region9: #{net_forward.8} parent=0 // pred_fallthru
    _
  // Predicated region
  $region10: #{net_forward.8} parent=0 // pred_check
    _
  $region11: #{net_forward.8} parent=0 // pred_check_branch
    %13 = sbr.rel (0) target = $region13
  $region12: #{net_forward.8} parent=0 // pred_region
    _
  $region13: #{net_forward.8} parent=0 // pred_fallthru
    _
  %v14 = vld [vmem:[%s0] sm:$0xff]
  %v15 = vld [vmem:[%s0 + $0x8] sm:$0xff]
  %v16 = vld [vmem:[%s0 + $0x10] sm:$0xff]
  %v17 = vld [vmem:[%s0 + $0x18] sm:$0xff]
  %v18 = vld [vmem:[%s0 + $0x20] sm:$0xff]
  %v19 = vld [vmem:[%s0 + $0x28] sm:$0xff]
  %v20 = vld [vmem:[%s0 + $0x30] sm:$0xff]
  %v21 = vld [vmem:[%s0 + $0x38] sm:$0xff]
  %v22 = vld [vmem:[%s0 + $0x40] sm:$0xff]
  %v23 = vld [vmem:[%s0 + $0x48] sm:$0xff]
  %v24 = vld [vmem:[%s0 + $0x50] sm:$0xff]
  %v25 = vld [vmem:[%s0 + $0x58] sm:$0xff]
  %v26 = vld [vmem:[%s0 + $0x60] sm:$0xff]
  %v27 = vld [vmem:[%s0 + $0x68] sm:$0xff]
  %v28 = vld [vmem:[%s0 + $0x70] sm:$0xff]
  %v29 = vld [vmem:[%s0 + $0x78] sm:$0xff]
  %v30 = vld [vmem:[%s0 + $0x80] sm:$0xff]
  %v31 = vld [vmem:[%s0 + $0x88] sm:$0xff]
  %v32 = vld [vmem:[%s0 + $0x90] sm:$0xff]
  %v33 = vld [vmem:[%s0 + $0x98] sm:$0xff]
  %v34 = vld [vmem:[%s0 + $0xa0] sm:$0xff]
  %v35 = vld [vmem:[%s0 + $0xa8] sm:$0xff]
  %v36 = vld [vmem:[%s0 + $0xb0] sm:$0xff]
  %v37 = vld [vmem:[%s0 + $0xb8] sm:$0xff]
  %v38 = vld [vmem:[%s0 + $0xc0] sm:$0xff]
  %v39 = vld [vmem:[%s0 + $0xc8] sm:$0xff]
  %v40 = vld [vmem:[%s0 + $0xd0] sm:$0xff]
  %v41 = vld [vmem:[%s0 + $0xd8] sm:$0xff]
  %v42 = vld [vmem:[%s0 + $0xe0] sm:$0xff]
  %v43 = vld [vmem:[%s0 + $0xe8] sm:$0xff]
  %v44 = vld [vmem:[%s0 + $0xf0] sm:$0xff]
  %v45 = vld [vmem:[%s0 + $0xf8] sm:$0xff]
  %v46 = vld [vmem:[%s0 + $0x100] sm:$0xff]
  %v47 = vld [vmem:[%s0 + $0x108] sm:$0xff]
  %v48 = vld [vmem:[%s0 + $0x110] sm:$0xff]
  %v49 = vld [vmem:[%s0 + $0x118] sm:$0xff]
  %v50 = vld [vmem:[%s0 + $0x120] sm:$0xff]
  %v51 = vld [vmem:[%s0 + $0x128] sm:$0xff]
  %v52 = vld [vmem:[%s0 + $0x130] sm:$0xff]
  %v53 = vld [vmem:[%s0 + $0x138] sm:$0xff]
  %v54 = vld [vmem:[%s0 + $0x140] sm:$0xff]
  %v55 = vld [vmem:[%s0 + $0x148] sm:$0xff]
  %v56 = vld [vmem:[%s0 + $0x150] sm:$0xff]
  %v57 = vld [vmem:[%s0 + $0x158] sm:$0xff]
  %v58 = vld [vmem:[%s0 + $0x160] sm:$0xff]
  %v59 = vld [vmem:[%s0 + $0x168] sm:$0xff]
  %v60 = vld [vmem:[%s0 + $0x170] sm:$0xff]
  %v61 = vld [vmem:[%s0 + $0x178] sm:$0xff]
  %v62 = vld [vmem:[%s0 + $0x180] sm:$0xff]
  %v63 = vld [vmem:[%s0 + $0x188] sm:$0xff]
  %v64 = vld [vmem:[%s0 + $0x190] sm:$0xff]
  %v65 = vld [vmem:[%s0 + $0x198] sm:$0xff]
  %v66 = vld [vmem:[%s0 + $0x1a0] sm:$0xff]
  %v67 = vld [vmem:[%s0 + $0x1a8] sm:$0xff]
  %v68 = vld [vmem:[%s0 + $0x1b0] sm:$0xff]
  %v69 = vld [vmem:[%s0 + $0x1b8] sm:$0xff]
  %v70 = vld [vmem:[%s0 + $0x1c0] sm:$0xff]
  %v71 = vld [vmem:[%s0 + $0x1c8] sm:$0xff]
  %v72 = vld [vmem:[%s0 + $0x1d0] sm:$0xff]
  %v73 = vld [vmem:[%s0 + $0x1d8] sm:$0xff]
  %v74 = vld [vmem:[%s0 + $0x1e0] sm:$0xff]
  %v75 = vld [vmem:[%s0 + $0x1e8] sm:$0xff]
  %v76 = vld [vmem:[%s0 + $0x1f0] sm:$0xff]
  %v77 = vld [vmem:[%s0 + $0x1f8] sm:$0xff]
  %v78 = vld [vmem:[%s0 + $0x200] sm:$0xff]
  %v79 = vld [vmem:[%s0 + $0x208] sm:$0xff]
  %v80 = vld [vmem:[%s0 + $0x210] sm:$0xff]
  %v81 = vld [vmem:[%s0 + $0x218] sm:$0xff]
  %v82 = vld [vmem:[%s0 + $0x220] sm:$0xff]
  %v83 = vld [vmem:[%s0 + $0x228] sm:$0xff]
  %v84 = vld [vmem:[%s0 + $0x230] sm:$0xff]
  %v85 = vld [vmem:[%s0 + $0x238] sm:$0xff]
  %v86 = vld [vmem:[%s0 + $0x240] sm:$0xff]
  %v87 = vld [vmem:[%s0 + $0x248] sm:$0xff]
  %v88 = vld [vmem:[%s0 + $0x250] sm:$0xff]
  %v89 = vld [vmem:[%s0 + $0x258] sm:$0xff]
  %v90 = vld [vmem:[%s0 + $0x260] sm:$0xff]
  %v91 = vld [vmem:[%s0 + $0x268] sm:$0xff]
  %v92 = vld [vmem:[%s0 + $0x270] sm:$0xff]
  %v93 = vld [vmem:[%s0 + $0x278] sm:$0xff]
  %v94 = vld [vmem:[%s0 + $0x280] sm:$0xff]
  %v95 = vld [vmem:[%s0 + $0x288] sm:$0xff]
  %v96 = vld [vmem:[%s0 + $0x290] sm:$0xff]
  %v97 = vld [vmem:[%s0 + $0x298] sm:$0xff]
  %v98 = vld [vmem:[%s0 + $0x2a0] sm:$0xff]
  %v99 = vld [vmem:[%s0 + $0x2a8] sm:$0xff]
  %v100 = vld [vmem:[%s0 + $0x2b0] sm:$0xff]
  %v101 = vld [vmem:[%s0 + $0x2b8] sm:$0xff]
  %v102 = vld [vmem:[%s0 + $0x2c0] sm:$0xff]
  %v103 = vld [vmem:[%s0 + $0x2c8] sm:$0xff]
  %v104 = vld [vmem:[%s0 + $0x2d0] sm:$0xff]
  %v105 = vld [vmem:[%s0 + $0x2d8] sm:$0xff]
  %v106 = vld [vmem:[%s0 + $0x2e0] sm:$0xff]
  %v107 = vld [vmem:[%s0 + $0x2e8] sm:$0xff]
  %v108 = vld [vmem:[%s0 + $0x2f0] sm:$0xff]
  %v109 = vld [vmem:[%s0 + $0x2f8] sm:$0xff]
  %v110 = vld [vmem:[%s0 + $0x300] sm:$0xff]
  %v111 = vld [vmem:[%s0 + $0x308] sm:$0xff]
  %v112 = vld [vmem:[%s0 + $0x310] sm:$0xff]
  %v113 = vld [vmem:[%s0 + $0x318] sm:$0xff]
  %v114 = vld [vmem:[%s0 + $0x320] sm:$0xff]
  %v115 = vld [vmem:[%s0 + $0x328] sm:$0xff]
  %v116 = vld [vmem:[%s0 + $0x330] sm:$0xff]
  %v117 = vld [vmem:[%s0 + $0x338] sm:$0xff]
  %v118 = vld [vmem:[%s0 + $0x340] sm:$0xff]
  %v119 = vld [vmem:[%s0 + $0x348] sm:$0xff]
  %v120 = vld [vmem:[%s0 + $0x350] sm:$0xff]
  %v121 = vld [vmem:[%s0 + $0x358] sm:$0xff]
  %v122 = vld [vmem:[%s0 + $0x360] sm:$0xff]
  %v123 = vld [vmem:[%s0 + $0x368] sm:$0xff]
  %v124 = vld [vmem:[%s0 + $0x370] sm:$0xff]
  %v125 = vld [vmem:[%s0 + $0x378] sm:$0xff]
  %v126 = vld [vmem:[%s0 + $0x380] sm:$0xff]
  %v127 = vld [vmem:[%s0 + $0x388] sm:$0xff]
  %v128 = vld [vmem:[%s0 + $0x390] sm:$0xff]
  %v129 = vld [vmem:[%s0 + $0x398] sm:$0xff]
  %v130 = vld [vmem:[%s0 + $0x3a0] sm:$0xff]
  %v131 = vld [vmem:[%s0 + $0x3a8] sm:$0xff]
  %v132 = vld [vmem:[%s0 + $0x3b0] sm:$0xff]
  %v133 = vld [vmem:[%s0 + $0x3b8] sm:$0xff]
  %v134 = vld [vmem:[%s0 + $0x3c0] sm:$0xff]
  %v135 = vld [vmem:[%s0 + $0x3c8] sm:$0xff]
  %v136 = vld [vmem:[%s0 + $0x3d0] sm:$0xff]
  %v137 = vld [vmem:[%s0 + $0x3d8] sm:$0xff]
  %v138 = vld [vmem:[%s0 + $0x3e0] sm:$0xff]
  %v139 = vld [vmem:[%s0 + $0x3e8] sm:$0xff]
  %v140 = vld [vmem:[%s0 + $0x3f0] sm:$0xff]
  %v141 = vld [vmem:[%s0 + $0x3f8] sm:$0xff]
  %v142 = vld [vmem:[%s0 + $0x400] sm:$0xff]
  %v143 = vld [vmem:[%s0 + $0x408] sm:$0xff]
  %v144 = vld [vmem:[%s0 + $0x410] sm:$0xff]
  %v145 = vld [vmem:[%s0 + $0x418] sm:$0xff]
  %v146 = vld [vmem:[%s0 + $0x420] sm:$0xff]
  %v147 = vld [vmem:[%s0 + $0x428] sm:$0xff]
  %v148 = vld [vmem:[%s0 + $0x430] sm:$0xff]
  %v149 = vld [vmem:[%s0 + $0x438] sm:$0xff]
  %v150 = vld [vmem:[%s0 + $0x440] sm:$0xff]
  %v151 = vld [vmem:[%s0 + $0x448] sm:$0xff]
  %v152 = vld [vmem:[%s0 + $0x450] sm:$0xff]
  %v153 = vld [vmem:[%s0 + $0x458] sm:$0xff]
  %v154 = vld [vmem:[%s0 + $0x460] sm:$0xff]
  %v155 = vld [vmem:[%s0 + $0x468] sm:$0xff]
  %v156 = vld [vmem:[%s0 + $0x470] sm:$0xff]
  %v157 = vld [vmem:[%s0 + $0x478] sm:$0xff]
  %v158 = vld [vmem:[%s0 + $0x480] sm:$0xff]
  %v159 = vld [vmem:[%s0 + $0x488] sm:$0xff]
  %v160 = vld [vmem:[%s0 + $0x490] sm:$0xff]
  %v161 = vld [vmem:[%s0 + $0x498] sm:$0xff]
  %v162 = vld [vmem:[%s0 + $0x4a0] sm:$0xff]
  %v163 = vld [vmem:[%s0 + $0x4a8] sm:$0xff]
  %v164 = vld [vmem:[%s0 + $0x4b0] sm:$0xff]
  %v165 = vld [vmem:[%s0 + $0x4b8] sm:$0xff]
  %v166 = vld [vmem:[%s0 + $0x4c0] sm:$0xff]
  %v167 = vld [vmem:[%s0 + $0x4c8] sm:$0xff]
  %v168 = vld [vmem:[%s0 + $0x4d0] sm:$0xff]
  %v169 = vld [vmem:[%s0 + $0x4d8] sm:$0xff]
  %v170 = vld [vmem:[%s0 + $0x4e0] sm:$0xff]
  %v171 = vld [vmem:[%s0 + $0x4e8] sm:$0xff]
  %v172 = vld [vmem:[%s0 + $0x4f0] sm:$0xff]
  %v173 = vld [vmem:[%s0 + $0x4f8] sm:$0xff]
  %v174 = vld [vmem:[%s0 + $0x500] sm:$0xff]
  %v175 = vld [vmem:[%s0 + $0x508] sm:$0xff]
  %v176 = vld [vmem:[%s0 + $0x510] sm:$0xff]
  %v177 = vld [vmem:[%s0 + $0x518] sm:$0xff]
  %v178 = vld [vmem:[%s0 + $0x520] sm:$0xff]
  %v179 = vld [vmem:[%s0 + $0x528] sm:$0xff]
  %v180 = vld [vmem:[%s0 + $0x530] sm:$0xff]
  %v181 = vld [vmem:[%s0 + $0x538] sm:$0xff]
  %v182 = vld [vmem:[%s0 + $0x540] sm:$0xff]
  %v183 = vld [vmem:[%s0 + $0x548] sm:$0xff]
  %v184 = vld [vmem:[%s0 + $0x550] sm:$0xff]
  %v185 = vld [vmem:[%s0 + $0x558] sm:$0xff]
  %v186 = vld [vmem:[%s0 + $0x560] sm:$0xff]
  %v187 = vld [vmem:[%s0 + $0x568] sm:$0xff]
  %v188 = vld [vmem:[%s0 + $0x570] sm:$0xff]
  %v189 = vld [vmem:[%s0 + $0x578] sm:$0xff]
  %v190 = vld [vmem:[%s0 + $0x580] sm:$0xff]
  %v191 = vld [vmem:[%s0 + $0x588] sm:$0xff]
  %v192 = vld [vmem:[%s0 + $0x590] sm:$0xff]
  %v193 = vld [vmem:[%s0 + $0x598] sm:$0xff]
  %v194 = vld [vmem:[%s0 + $0x5a0] sm:$0xff]
  %v195 = vld [vmem:[%s0 + $0x5a8] sm:$0xff]
  %v196 = vld [vmem:[%s0 + $0x5b0] sm:$0xff]
  %v197 = vld [vmem:[%s0 + $0x5b8] sm:$0xff]
  %v198 = vld [vmem:[%s0 + $0x5c0] sm:$0xff]
  %v199 = vld [vmem:[%s0 + $0x5c8] sm:$0xff]
  %v200 = vld [vmem:[%s0 + $0x5d0] sm:$0xff]
  %v201 = vld [vmem:[%s0 + $0x5d8] sm:$0xff]
  %v202 = vld [vmem:[%s0 + $0x5e0] sm:$0xff]
  %v203 = vld [vmem:[%s0 + $0x5e8] sm:$0xff]
  %v204 = vld [vmem:[%s0 + $0x5f0] sm:$0xff]
  %v205 = vld [vmem:[%s0 + $0x5f8] sm:$0xff]
  %v206 = vld [vmem:[%s0 + $0x600] sm:$0xff]
  %v207 = vld [vmem:[%s0 + $0x608] sm:$0xff]
  %v208 = vld [vmem:[%s0 + $0x610] sm:$0xff]
  %v209 = vld [vmem:[%s0 + $0x618] sm:$0xff]
  %v210 = vld [vmem:[%s0 + $0x620] sm:$0xff]
  %v211 = vld [vmem:[%s0 + $0x628] sm:$0xff]
  %v212 = vld [vmem:[%s0 + $0x630] sm:$0xff]
  %v213 = vld [vmem:[%s0 + $0x638] sm:$0xff]
  %v214 = vld [vmem:[%s1] sm:$0xff]
  %v215 = vld [vmem:[%s1 + $0x8] sm:$0xff]
  %v216 = vld [vmem:[%s1 + $0x10] sm:$0xff]
  %v217 = vld [vmem:[%s1 + $0x18] sm:$0xff]
  %v218 = vld [vmem:[%s1 + $0x20] sm:$0xff]
  %v219 = vld [vmem:[%s1 + $0x28] sm:$0xff]
  %v220 = vld [vmem:[%s1 + $0x30] sm:$0xff]
  %v221 = vld [vmem:[%s1 + $0x38] sm:$0xff]
  %v222 = vld [vmem:[%s1 + $0x40] sm:$0xff]
  %v223 = vld [vmem:[%s1 + $0x48] sm:$0xff]
  %v224 = vld [vmem:[%s1 + $0x50] sm:$0xff]
  %v225 = vld [vmem:[%s1 + $0x58] sm:$0xff]
  %v226 = vld [vmem:[%s1 + $0x60] sm:$0xff]
  %v227 = vld [vmem:[%s1 + $0x68] sm:$0xff]
  %v228 = vld [vmem:[%s1 + $0x70] sm:$0xff]
  %v229 = vld [vmem:[%s1 + $0x78] sm:$0xff]
  %v230 = vld [vmem:[%s1 + $0x80] sm:$0xff]
  %v231 = vld [vmem:[%s1 + $0x88] sm:$0xff]
  %v232 = vld [vmem:[%s1 + $0x90] sm:$0x3f]
  %v233 = vld [vmem:[%s2] sm:$0x1]
  %v235 = vlaneseq
  %v236 = vshrl.u32 %v235, 7
  %v237 = vsub.s32 0, %v236
  %v238 = vrot.slane %v233, %v237
  %vm240 = vcmask 179200
  %v242 = vsel %vm240, %v15, 0
  %v245 = vsel %vm240, %v17, 0
  %v248 = vsel %vm240, %v19, 0
  %v251 = vsel %vm240, %v21, 0
  %v254 = vsel %vm240, %v23, 0
  %v257 = vsel %vm240, %v25, 0
  %v260 = vsel %vm240, %v27, 0
  %v263 = vsel %vm240, %v29, 0
  %v266 = vsel %vm240, %v31, 0
  %v269 = vsel %vm240, %v33, 0
  %v272 = vsel %vm240, %v35, 0
  %v275 = vsel %vm240, %v37, 0
  %v278 = vsel %vm240, %v39, 0
  %v281 = vsel %vm240, %v41, 0
  %v284 = vsel %vm240, %v43, 0
  %v287 = vsel %vm240, %v45, 0
  %v290 = vsel %vm240, %v47, 0
  %v293 = vsel %vm240, %v49, 0
  %v296 = vsel %vm240, %v51, 0
  %v299 = vsel %vm240, %v53, 0
  %v302 = vsel %vm240, %v55, 0
  %v305 = vsel %vm240, %v57, 0
  %v308 = vsel %vm240, %v59, 0
  %v311 = vsel %vm240, %v61, 0
  %v314 = vsel %vm240, %v63, 0
  %v317 = vsel %vm240, %v65, 0
  %v320 = vsel %vm240, %v67, 0
  %v323 = vsel %vm240, %v69, 0
  %v326 = vsel %vm240, %v71, 0
  %v329 = vsel %vm240, %v73, 0
  %v332 = vsel %vm240, %v75, 0
  %v335 = vsel %vm240, %v77, 0
  %v338 = vsel %vm240, %v79, 0
  %v341 = vsel %vm240, %v81, 0
  %v344 = vsel %vm240, %v83, 0
  %v347 = vsel %vm240, %v85, 0
  %v350 = vsel %vm240, %v87, 0
  %v353 = vsel %vm240, %v89, 0
  %v356 = vsel %vm240, %v91, 0
  %v359 = vsel %vm240, %v93, 0
  %v362 = vsel %vm240, %v95, 0
  %v365 = vsel %vm240, %v97, 0
  %v368 = vsel %vm240, %v99, 0
  %v371 = vsel %vm240, %v101, 0
  %v374 = vsel %vm240, %v103, 0
  %v377 = vsel %vm240, %v105, 0
  %v380 = vsel %vm240, %v107, 0
  %v383 = vsel %vm240, %v109, 0
  %v386 = vsel %vm240, %v111, 0
  %v389 = vsel %vm240, %v113, 0
  %v392 = vsel %vm240, %v115, 0
  %v395 = vsel %vm240, %v117, 0
  %v398 = vsel %vm240, %v119, 0
  %v401 = vsel %vm240, %v121, 0
  %v404 = vsel %vm240, %v123, 0
  %v407 = vsel %vm240, %v125, 0
  %v410 = vsel %vm240, %v127, 0
  %v413 = vsel %vm240, %v129, 0
  %v416 = vsel %vm240, %v131, 0
  %v419 = vsel %vm240, %v133, 0
  %v422 = vsel %vm240, %v135, 0
  %v425 = vsel %vm240, %v137, 0
  %v428 = vsel %vm240, %v139, 0
  %v431 = vsel %vm240, %v141, 0
  %v434 = vsel %vm240, %v143, 0
  %v437 = vsel %vm240, %v145, 0
  %v440 = vsel %vm240, %v147, 0
  %v443 = vsel %vm240, %v149, 0
  %v446 = vsel %vm240, %v151, 0
  %v449 = vsel %vm240, %v153, 0
  %v452 = vsel %vm240, %v155, 0
  %v455 = vsel %vm240, %v157, 0
  %v458 = vsel %vm240, %v159, 0
  %v461 = vsel %vm240, %v161, 0
  %v464 = vsel %vm240, %v163, 0
  %v467 = vsel %vm240, %v165, 0
  %v470 = vsel %vm240, %v167, 0
  %v473 = vsel %vm240, %v169, 0
  %v476 = vsel %vm240, %v171, 0
  %v479 = vsel %vm240, %v173, 0
  %v482 = vsel %vm240, %v175, 0
  %v485 = vsel %vm240, %v177, 0
  %v488 = vsel %vm240, %v179, 0
  %v491 = vsel %vm240, %v181, 0
  %v494 = vsel %vm240, %v183, 0
  %v497 = vsel %vm240, %v185, 0
  %v500 = vsel %vm240, %v187, 0
  %v503 = vsel %vm240, %v189, 0
  %v506 = vsel %vm240, %v191, 0
  %v509 = vsel %vm240, %v193, 0
  %v512 = vsel %vm240, %v195, 0
  %v515 = vsel %vm240, %v197, 0
  %v518 = vsel %vm240, %v199, 0
  %v521 = vsel %vm240, %v201, 0
  %v524 = vsel %vm240, %v203, 0
  %v527 = vsel %vm240, %v205, 0
  %v530 = vsel %vm240, %v207, 0
  %v533 = vsel %vm240, %v209, 0
  %v536 = vsel %vm240, %v211, 0
  %v539 = vsel %vm240, %v213, 0
  %vm541 = vcmask 1045504
  %v543 = vsel %vm541, %v232, 0
  %545 = vmatprep.subr.mxu0 0.0
  %546 = vmatpush1.msra.mxu0 %v214
  %547 = vmatprep.subr.mxu0 0.0
  %548 = vmatpush1.msra.mxu0 %v215
  %549 = vmatprep.subr.mxu0 0.0
  %550 = vmatpush1.msra.mxu0 %v216
  %551 = vmatprep.subr.mxu0 0.0
  %552 = vmatpush1.msra.mxu0 %v217
  %553 = vmatprep.subr.mxu0 0.0
  %554 = vmatpush1.msra.mxu0 %v218
  %555 = vmatprep.subr.mxu0 0.0
  %556 = vmatpush1.msra.mxu0 %v219
  %557 = vmatprep.subr.mxu0 0.0
  %558 = vmatpush1.msra.mxu0 %v220
  %559 = vmatprep.subr.mxu0 0.0
  %560 = vmatpush1.msra.mxu0 %v221
  %561 = vmatprep.subr.mxu0 0.0
  %562 = vmatpush1.msra.mxu0 %v222
  %563 = vmatprep.subr.mxu0 0.0
  %564 = vmatpush1.msra.mxu0 %v223
  %565 = vmatprep.subr.mxu0 0.0
  %566 = vmatpush1.msra.mxu0 %v224
  %567 = vmatprep.subr.mxu0 0.0
  %568 = vmatpush1.msra.mxu0 %v225
  %569 = vmatprep.subr.mxu0 0.0
  %570 = vmatpush1.msra.mxu0 %v226
  %571 = vmatprep.subr.mxu0 0.0
  %572 = vmatpush1.msra.mxu0 %v227
  %573 = vmatprep.subr.mxu0 0.0
  %574 = vmatpush1.msra.mxu0 %v228
  %575 = vmatprep.subr.mxu0 0.0
  %576 = vmatpush1.msra.mxu0 %v229
  %577 = vmatprep.subr.mxu0 0.0
  %578 = vmatpush1.msra.mxu0 %v230
  %579 = vmatprep.subr.mxu0 0.0
  %580 = vmatpush1.msra.mxu0 %v231
  %581 = vmatprep.subr.mxu0 0.0
  %582 = vmatpush1.msra.mxu0 %v543
  %583 = vmatprep.subr.mxu0 0.0
  %584 = vmatpush1.msra.mxu0 0.0
  %585 = vmatprep.subr.mxu0 0.0
  %586 = vmatpush1.msra.mxu0 0.0
  %587 = vmatprep.subr.mxu0 0.0
  %588 = vmatpush1.msra.mxu0 0.0
  %589 = vmatprep.subr.mxu0 0.0
  %590 = vmatpush1.msra.mxu0 0.0
  %591 = vmatprep.subr.mxu0 0.0
  %592 = vmatpush1.msra.mxu0 0.0
  %593 = vmatprep.subr.mxu0 0.0
  %594 = vmatpush1.msra.mxu0 0.0
  %595 = vmatprep.subr.mxu0 0.0
  %596 = vmatpush1.msra.mxu0 0.0
  %597 = vmatprep.subr.mxu0 0.0
  %598 = vmatpush1.msra.mxu0 0.0
  %599 = vmatprep.subr.mxu0 0.0
  %600 = vmatpush1.msra.mxu0 0.0
  %601 = vmatprep.subr.mxu0 0.0
  %602 = vmatpush1.msra.mxu0 0.0
  %603 = vmatprep.subr.mxu0 0.0
  %604 = vmatpush1.msra.mxu0 0.0
  %605 = vmatprep.subr.mxu0 0.0
  %606 = vmatpush1.msra.mxu0 0.0
  %607 = vmatprep.subr.mxu0 0.0
  %608 = vmatpush1.msra.mxu0 0.0
  %609 = vmatprep.mubr.f32.mxu0 %v242
  %610 = vmatmul.mubr.f32.gmra.mrb[0].mxu0 %v14
  %v611 = vpop.f32.mrb[0].mxu0
  %v612 = vadd.f32 %v238, %v611
  %v613 = vpop.f32.mrb[0].mxu0
  %614 = vmatprep.mubr.f32.mxu0 %v245
  %615 = vmatmul.mubr.f32.gmra.mrb[0].mxu0 %v16
  %v616 = vpop.f32.mrb[0].mxu0
  %v617 = vadd.f32 %v238, %v616
  %v618 = vpop.f32.mrb[0].mxu0
  %619 = vmatprep.mubr.f32.mxu0 %v248
  %620 = vmatmul.mubr.f32.gmra.mrb[0].mxu0 %v18
  %v621 = vpop.f32.mrb[0].mxu0
  %v622 = vadd.f32 %v238, %v621
  %v623 = vpop.f32.mrb[0].mxu0
  %624 = vmatprep.mubr.f32.mxu0 %v251
  %625 = vmatmul.mubr.f32.gmra.mrb[0].mxu0 %v20
  %v626 = vpop.f32.mrb[0].mxu0
  %v627 = vadd.f32 %v238, %v626
  %v628 = vpop.f32.mrb[0].mxu0
  %629 = vmatprep.mubr.f32.mxu0 %v254
  %630 = vmatmul.mubr.f32.gmra.mrb[0].mxu0 %v22
  %v631 = vpop.f32.mrb[0].mxu0
  %v632 = vadd.f32 %v238, %v631
  %v633 = vpop.f32.mrb[0].mxu0
  %634 = vmatprep.mubr.f32.mxu0 %v257
  %635 = vmatmul.mubr.f32.gmra.mrb[0].mxu0 %v24
  %v636 = vpop.f32.mrb[0].mxu0
  %v637 = vadd.f32 %v238, %v636
  %v638 = vpop.f32.mrb[0].mxu0
  %639 = vmatprep.mubr.f32.mxu0 %v260
  %640 = vmatmul.mubr.f32.gmra.mrb[0].mxu0 %v26
  %v641 = vpop.f32.mrb[0].mxu0
  %v642 = vadd.f32 %v238, %v641
  %v643 = vpop.f32.mrb[0].mxu0
  %644 = vmatprep.mubr.f32.mxu0 %v263
  %645 = vmatmul.mubr.f32.gmra.mrb[0].mxu0 %v28
  %v646 = vpop.f32.mrb[0].mxu0
  %v647 = vadd.f32 %v238, %v646
  %v648 = vpop.f32.mrb[0].mxu0
  %649 = vmatprep.mubr.f32.mxu0 %v266
  %650 = vmatmul.mubr.f32.gmra.mrb[0].mxu0 %v30
  %v651 = vpop.f32.mrb[0].mxu0
  %v652 = vadd.f32 %v238, %v651
  %v653 = vpop.f32.mrb[0].mxu0
  %654 = vmatprep.mubr.f32.mxu0 %v269
  %655 = vmatmul.mubr.f32.gmra.mrb[0].mxu0 %v32
  %v656 = vpop.f32.mrb[0].mxu0
  %v657 = vadd.f32 %v238, %v656
  %v658 = vpop.f32.mrb[0].mxu0
  %659 = vmatprep.mubr.f32.mxu0 %v272
  %660 = vmatmul.mubr.f32.gmra.mrb[0].mxu0 %v34
  %v661 = vpop.f32.mrb[0].mxu0
  %v662 = vadd.f32 %v238, %v661
  %v663 = vpop.f32.mrb[0].mxu0
  %664 = vmatprep.mubr.f32.mxu0 %v275
  %665 = vmatmul.mubr.f32.gmra.mrb[0].mxu0 %v36
  %v666 = vpop.f32.mrb[0].mxu0
  %v667 = vadd.f32 %v238, %v666
  %v668 = vpop.f32.mrb[0].mxu0
  %669 = vmatprep.mubr.f32.mxu0 %v278
  %670 = vmatmul.mubr.f32.gmra.mrb[0].mxu0 %v38
  %v671 = vpop.f32.mrb[0].mxu0
  %v672 = vadd.f32 %v238, %v671
  %v673 = vpop.f32.mrb[0].mxu0
  %674 = vmatprep.mubr.f32.mxu0 %v281
  %675 = vmatmul.mubr.f32.gmra.mrb[0].mxu0 %v40
  %v676 = vpop.f32.mrb[0].mxu0
  %v677 = vadd.f32 %v238, %v676
  %v678 = vpop.f32.mrb[0].mxu0
  %679 = vmatprep.mubr.f32.mxu0 %v284
  %680 = vmatmul.mubr.f32.gmra.mrb[0].mxu0 %v42
  %v681 = vpop.f32.mrb[0].mxu0
  %v682 = vadd.f32 %v238, %v681
  %v683 = vpop.f32.mrb[0].mxu0
  %684 = vmatprep.mubr.f32.mxu0 %v287
  %685 = vmatmul.mubr.f32.gmra.mrb[0].mxu0 %v44
  %v686 = vpop.f32.mrb[0].mxu0
  %v687 = vadd.f32 %v238, %v686
  %v688 = vpop.f32.mrb[0].mxu0
  %689 = vmatprep.mubr.f32.mxu0 %v290
  %690 = vmatmul.mubr.f32.gmra.mrb[0].mxu0 %v46
  %v691 = vpop.f32.mrb[0].mxu0
  %v692 = vadd.f32 %v238, %v691
  %v693 = vpop.f32.mrb[0].mxu0
  %694 = vmatprep.mubr.f32.mxu0 %v293
  %695 = vmatmul.mubr.f32.gmra.mrb[0].mxu0 %v48
  %v696 = vpop.f32.mrb[0].mxu0
  %v697 = vadd.f32 %v238, %v696
  %v698 = vpop.f32.mrb[0].mxu0
  %699 = vmatprep.mubr.f32.mxu0 %v296
  %700 = vmatmul.mubr.f32.gmra.mrb[0].mxu0 %v50
  %v701 = vpop.f32.mrb[0].mxu0
  %v702 = vadd.f32 %v238, %v701
  %v703 = vpop.f32.mrb[0].mxu0
  %704 = vmatprep.mubr.f32.mxu0 %v299
  %705 = vmatmul.mubr.f32.gmra.mrb[0].mxu0 %v52
  %v706 = vpop.f32.mrb[0].mxu0
  %v707 = vadd.f32 %v238, %v706
  %v708 = vpop.f32.mrb[0].mxu0
  %709 = vmatprep.mubr.f32.mxu0 %v302
  %710 = vmatmul.mubr.f32.gmra.mrb[0].mxu0 %v54
  %v711 = vpop.f32.mrb[0].mxu0
  %v712 = vadd.f32 %v238, %v711
  %v713 = vpop.f32.mrb[0].mxu0
  %714 = vmatprep.mubr.f32.mxu0 %v305
  %715 = vmatmul.mubr.f32.gmra.mrb[0].mxu0 %v56
  %v716 = vpop.f32.mrb[0].mxu0
  %v717 = vadd.f32 %v238, %v716
  %v718 = vpop.f32.mrb[0].mxu0
  %719 = vmatprep.mubr.f32.mxu0 %v308
  %720 = vmatmul.mubr.f32.gmra.mrb[0].mxu0 %v58
  %v721 = vpop.f32.mrb[0].mxu0
  %v722 = vadd.f32 %v238, %v721
  %v723 = vpop.f32.mrb[0].mxu0
  %724 = vmatprep.mubr.f32.mxu0 %v311
  %725 = vmatmul.mubr.f32.gmra.mrb[0].mxu0 %v60
  %v726 = vpop.f32.mrb[0].mxu0
  %v727 = vadd.f32 %v238, %v726
  %v728 = vpop.f32.mrb[0].mxu0
  %729 = vmatprep.mubr.f32.mxu0 %v314
  %730 = vmatmul.mubr.f32.gmra.mrb[0].mxu0 %v62
  %v731 = vpop.f32.mrb[0].mxu0
  %v732 = vadd.f32 %v238, %v731
  %v733 = vpop.f32.mrb[0].mxu0
  %734 = vmatprep.mubr.f32.mxu0 %v317
  %735 = vmatmul.mubr.f32.gmra.mrb[0].mxu0 %v64
  %v736 = vpop.f32.mrb[0].mxu0
  %v737 = vadd.f32 %v238, %v736
  %v738 = vpop.f32.mrb[0].mxu0
  %739 = vmatprep.mubr.f32.mxu0 %v320
  %740 = vmatmul.mubr.f32.gmra.mrb[0].mxu0 %v66
  %v741 = vpop.f32.mrb[0].mxu0
  %v742 = vadd.f32 %v238, %v741
  %v743 = vpop.f32.mrb[0].mxu0
  %744 = vmatprep.mubr.f32.mxu0 %v323
  %745 = vmatmul.mubr.f32.gmra.mrb[0].mxu0 %v68
  %v746 = vpop.f32.mrb[0].mxu0
  %v747 = vadd.f32 %v238, %v746
  %v748 = vpop.f32.mrb[0].mxu0
  %749 = vmatprep.mubr.f32.mxu0 %v326
  %750 = vmatmul.mubr.f32.gmra.mrb[0].mxu0 %v70
  %v751 = vpop.f32.mrb[0].mxu0
  %v752 = vadd.f32 %v238, %v751
  %v753 = vpop.f32.mrb[0].mxu0
  %754 = vmatprep.mubr.f32.mxu0 %v329
  %755 = vmatmul.mubr.f32.gmra.mrb[0].mxu0 %v72
  %v756 = vpop.f32.mrb[0].mxu0
  %v757 = vadd.f32 %v238, %v756
  %v758 = vpop.f32.mrb[0].mxu0
  %759 = vmatprep.mubr.f32.mxu0 %v332
  %760 = vmatmul.mubr.f32.gmra.mrb[0].mxu0 %v74
  %v761 = vpop.f32.mrb[0].mxu0
  %v762 = vadd.f32 %v238, %v761
  %v763 = vpop.f32.mrb[0].mxu0
  %764 = vmatprep.mubr.f32.mxu0 %v335
  %765 = vmatmul.mubr.f32.gmra.mrb[0].mxu0 %v76
  %v766 = vpop.f32.mrb[0].mxu0
  %v767 = vadd.f32 %v238, %v766
  %v768 = vpop.f32.mrb[0].mxu0
  %769 = vmatprep.mubr.f32.mxu0 %v338
  %770 = vmatmul.mubr.f32.gmra.mrb[0].mxu0 %v78
  %v771 = vpop.f32.mrb[0].mxu0
  %v772 = vadd.f32 %v238, %v771
  %v773 = vpop.f32.mrb[0].mxu0
  %774 = vmatprep.mubr.f32.mxu0 %v341
  %775 = vmatmul.mubr.f32.gmra.mrb[0].mxu0 %v80
  %v776 = vpop.f32.mrb[0].mxu0
  %v777 = vadd.f32 %v238, %v776
  %v778 = vpop.f32.mrb[0].mxu0
  %779 = vmatprep.mubr.f32.mxu0 %v344
  %780 = vmatmul.mubr.f32.gmra.mrb[0].mxu0 %v82
  %v781 = vpop.f32.mrb[0].mxu0
  %v782 = vadd.f32 %v238, %v781
  %v783 = vpop.f32.mrb[0].mxu0
  %784 = vmatprep.mubr.f32.mxu0 %v347
  %785 = vmatmul.mubr.f32.gmra.mrb[0].mxu0 %v84
  %v786 = vpop.f32.mrb[0].mxu0
  %v787 = vadd.f32 %v238, %v786
  %v788 = vpop.f32.mrb[0].mxu0
  %789 = vmatprep.mubr.f32.mxu0 %v350
  %790 = vmatmul.mubr.f32.gmra.mrb[0].mxu0 %v86
  %v791 = vpop.f32.mrb[0].mxu0
  %v792 = vadd.f32 %v238, %v791
  %v793 = vpop.f32.mrb[0].mxu0
  %794 = vmatprep.mubr.f32.mxu0 %v353
  %795 = vmatmul.mubr.f32.gmra.mrb[0].mxu0 %v88
  %v796 = vpop.f32.mrb[0].mxu0
  %v797 = vadd.f32 %v238, %v796
  %v798 = vpop.f32.mrb[0].mxu0
  %799 = vmatprep.mubr.f32.mxu0 %v356
  %800 = vmatmul.mubr.f32.gmra.mrb[0].mxu0 %v90
  %v801 = vpop.f32.mrb[0].mxu0
  %v802 = vadd.f32 %v238, %v801
  %v803 = vpop.f32.mrb[0].mxu0
  %804 = vmatprep.mubr.f32.mxu0 %v359
  %805 = vmatmul.mubr.f32.gmra.mrb[0].mxu0 %v92
  %v806 = vpop.f32.mrb[0].mxu0
  %v807 = vadd.f32 %v238, %v806
  %v808 = vpop.f32.mrb[0].mxu0
  %809 = vmatprep.mubr.f32.mxu0 %v362
  %810 = vmatmul.mubr.f32.gmra.mrb[0].mxu0 %v94
  %v811 = vpop.f32.mrb[0].mxu0
  %v812 = vadd.f32 %v238, %v811
  %v813 = vpop.f32.mrb[0].mxu0
  %814 = vmatprep.mubr.f32.mxu0 %v365
  %815 = vmatmul.mubr.f32.gmra.mrb[0].mxu0 %v96
  %v816 = vpop.f32.mrb[0].mxu0
  %v817 = vadd.f32 %v238, %v816
  %v818 = vpop.f32.mrb[0].mxu0
  %819 = vmatprep.mubr.f32.mxu0 %v368
  %820 = vmatmul.mubr.f32.gmra.mrb[0].mxu0 %v98
  %v821 = vpop.f32.mrb[0].mxu0
  %v822 = vadd.f32 %v238, %v821
  %v823 = vpop.f32.mrb[0].mxu0
  %824 = vmatprep.mubr.f32.mxu0 %v371
  %825 = vmatmul.mubr.f32.gmra.mrb[0].mxu0 %v100
  %v826 = vpop.f32.mrb[0].mxu0
  %v827 = vadd.f32 %v238, %v826
  %v828 = vpop.f32.mrb[0].mxu0
  %829 = vmatprep.mubr.f32.mxu0 %v374
  %830 = vmatmul.mubr.f32.gmra.mrb[0].mxu0 %v102
  %v831 = vpop.f32.mrb[0].mxu0
  %v832 = vadd.f32 %v238, %v831
  %v833 = vpop.f32.mrb[0].mxu0
  %834 = vmatprep.mubr.f32.mxu0 %v377
  %835 = vmatmul.mubr.f32.gmra.mrb[0].mxu0 %v104
  %v836 = vpop.f32.mrb[0].mxu0
  %v837 = vadd.f32 %v238, %v836
  %v838 = vpop.f32.mrb[0].mxu0
  %839 = vmatprep.mubr.f32.mxu0 %v380
  %840 = vmatmul.mubr.f32.gmra.mrb[0].mxu0 %v106
  %v841 = vpop.f32.mrb[0].mxu0
  %v842 = vadd.f32 %v238, %v841
  %v843 = vpop.f32.mrb[0].mxu0
  %844 = vmatprep.mubr.f32.mxu0 %v383
  %845 = vmatmul.mubr.f32.gmra.mrb[0].mxu0 %v108
  %v846 = vpop.f32.mrb[0].mxu0
  %v847 = vadd.f32 %v238, %v846
  %v848 = vpop.f32.mrb[0].mxu0
  %849 = vmatprep.mubr.f32.mxu0 %v386
  %850 = vmatmul.mubr.f32.gmra.mrb[0].mxu0 %v110
  %v851 = vpop.f32.mrb[0].mxu0
  %v852 = vadd.f32 %v238, %v851
  %v853 = vpop.f32.mrb[0].mxu0
  %854 = vmatprep.mubr.f32.mxu0 %v389
  %855 = vmatmul.mubr.f32.gmra.mrb[0].mxu0 %v112
  %v856 = vpop.f32.mrb[0].mxu0
  %v857 = vadd.f32 %v238, %v856
  %v858 = vpop.f32.mrb[0].mxu0
  %859 = vmatprep.mubr.f32.mxu0 %v392
  %860 = vmatmul.mubr.f32.gmra.mrb[0].mxu0 %v114
  %v861 = vpop.f32.mrb[0].mxu0
  %v862 = vadd.f32 %v238, %v861
  %v863 = vpop.f32.mrb[0].mxu0
  %864 = vmatprep.mubr.f32.mxu0 %v395
  %865 = vmatmul.mubr.f32.gmra.mrb[0].mxu0 %v116
  %v866 = vpop.f32.mrb[0].mxu0
  %v867 = vadd.f32 %v238, %v866
  %v868 = vpop.f32.mrb[0].mxu0
  %869 = vmatprep.mubr.f32.mxu0 %v398
  %870 = vmatmul.mubr.f32.gmra.mrb[0].mxu0 %v118
  %v871 = vpop.f32.mrb[0].mxu0
  %v872 = vadd.f32 %v238, %v871
  %v873 = vpop.f32.mrb[0].mxu0
  %874 = vmatprep.mubr.f32.mxu0 %v401
  %875 = vmatmul.mubr.f32.gmra.mrb[0].mxu0 %v120
  %v876 = vpop.f32.mrb[0].mxu0
  %v877 = vadd.f32 %v238, %v876
  %v878 = vpop.f32.mrb[0].mxu0
  %879 = vmatprep.mubr.f32.mxu0 %v404
  %880 = vmatmul.mubr.f32.gmra.mrb[0].mxu0 %v122
  %v881 = vpop.f32.mrb[0].mxu0
  %v882 = vadd.f32 %v238, %v881
  %v883 = vpop.f32.mrb[0].mxu0
  %884 = vmatprep.mubr.f32.mxu0 %v407
  %885 = vmatmul.mubr.f32.gmra.mrb[0].mxu0 %v124
  %v886 = vpop.f32.mrb[0].mxu0
  %v887 = vadd.f32 %v238, %v886
  %v888 = vpop.f32.mrb[0].mxu0
  %889 = vmatprep.mubr.f32.mxu0 %v410
  %890 = vmatmul.mubr.f32.gmra.mrb[0].mxu0 %v126
  %v891 = vpop.f32.mrb[0].mxu0
  %v892 = vadd.f32 %v238, %v891
  %v893 = vpop.f32.mrb[0].mxu0
  %894 = vmatprep.mubr.f32.mxu0 %v413
  %895 = vmatmul.mubr.f32.gmra.mrb[0].mxu0 %v128
  %v896 = vpop.f32.mrb[0].mxu0
  %v897 = vadd.f32 %v238, %v896
  %v898 = vpop.f32.mrb[0].mxu0
  %899 = vmatprep.mubr.f32.mxu0 %v416
  %900 = vmatmul.mubr.f32.gmra.mrb[0].mxu0 %v130
  %v901 = vpop.f32.mrb[0].mxu0
  %v902 = vadd.f32 %v238, %v901
  %v903 = vpop.f32.mrb[0].mxu0
  %904 = vmatprep.mubr.f32.mxu0 %v419
  %905 = vmatmul.mubr.f32.gmra.mrb[0].mxu0 %v132
  %v906 = vpop.f32.mrb[0].mxu0
  %v907 = vadd.f32 %v238, %v906
  %v908 = vpop.f32.mrb[0].mxu0
  %909 = vmatprep.mubr.f32.mxu0 %v422
  %910 = vmatmul.mubr.f32.gmra.mrb[0].mxu0 %v134
  %v911 = vpop.f32.mrb[0].mxu0
  %v912 = vadd.f32 %v238, %v911
  %v913 = vpop.f32.mrb[0].mxu0
  %914 = vmatprep.mubr.f32.mxu0 %v425
  %915 = vmatmul.mubr.f32.gmra.mrb[0].mxu0 %v136
  %v916 = vpop.f32.mrb[0].mxu0
  %v917 = vadd.f32 %v238, %v916
  %v918 = vpop.f32.mrb[0].mxu0
  %919 = vmatprep.mubr.f32.mxu0 %v428
  %920 = vmatmul.mubr.f32.gmra.mrb[0].mxu0 %v138
  %v921 = vpop.f32.mrb[0].mxu0
  %v922 = vadd.f32 %v238, %v921
  %v923 = vpop.f32.mrb[0].mxu0
  %924 = vmatprep.mubr.f32.mxu0 %v431
  %925 = vmatmul.mubr.f32.gmra.mrb[0].mxu0 %v140
  %v926 = vpop.f32.mrb[0].mxu0
  %v927 = vadd.f32 %v238, %v926
  %v928 = vpop.f32.mrb[0].mxu0
  %929 = vmatprep.mubr.f32.mxu0 %v434
  %930 = vmatmul.mubr.f32.gmra.mrb[0].mxu0 %v142
  %v931 = vpop.f32.mrb[0].mxu0
  %v932 = vadd.f32 %v238, %v931
  %v933 = vpop.f32.mrb[0].mxu0
  %934 = vmatprep.mubr.f32.mxu0 %v437
  %935 = vmatmul.mubr.f32.gmra.mrb[0].mxu0 %v144
  %v936 = vpop.f32.mrb[0].mxu0
  %v937 = vadd.f32 %v238, %v936
  %v938 = vpop.f32.mrb[0].mxu0
  %939 = vmatprep.mubr.f32.mxu0 %v440
  %940 = vmatmul.mubr.f32.gmra.mrb[0].mxu0 %v146
  %v941 = vpop.f32.mrb[0].mxu0
  %v942 = vadd.f32 %v238, %v941
  %v943 = vpop.f32.mrb[0].mxu0
  %944 = vmatprep.mubr.f32.mxu0 %v443
  %945 = vmatmul.mubr.f32.gmra.mrb[0].mxu0 %v148
  %v946 = vpop.f32.mrb[0].mxu0
  %v947 = vadd.f32 %v238, %v946
  %v948 = vpop.f32.mrb[0].mxu0
  %949 = vmatprep.mubr.f32.mxu0 %v446
  %950 = vmatmul.mubr.f32.gmra.mrb[0].mxu0 %v150
  %v951 = vpop.f32.mrb[0].mxu0
  %v952 = vadd.f32 %v238, %v951
  %v953 = vpop.f32.mrb[0].mxu0
  %954 = vmatprep.mubr.f32.mxu0 %v449
  %955 = vmatmul.mubr.f32.gmra.mrb[0].mxu0 %v152
  %v956 = vpop.f32.mrb[0].mxu0
  %v957 = vadd.f32 %v238, %v956
  %v958 = vpop.f32.mrb[0].mxu0
  %959 = vmatprep.mubr.f32.mxu0 %v452
  %960 = vmatmul.mubr.f32.gmra.mrb[0].mxu0 %v154
  %v961 = vpop.f32.mrb[0].mxu0
  %v962 = vadd.f32 %v238, %v961
  %v963 = vpop.f32.mrb[0].mxu0
  %964 = vmatprep.mubr.f32.mxu0 %v455
  %965 = vmatmul.mubr.f32.gmra.mrb[0].mxu0 %v156
  %v966 = vpop.f32.mrb[0].mxu0
  %v967 = vadd.f32 %v238, %v966
  %v968 = vpop.f32.mrb[0].mxu0
  %969 = vmatprep.mubr.f32.mxu0 %v458
  %970 = vmatmul.mubr.f32.gmra.mrb[0].mxu0 %v158
  %v971 = vpop.f32.mrb[0].mxu0
  %v972 = vadd.f32 %v238, %v971
  %v973 = vpop.f32.mrb[0].mxu0
  %974 = vmatprep.mubr.f32.mxu0 %v461
  %975 = vmatmul.mubr.f32.gmra.mrb[0].mxu0 %v160
  %v976 = vpop.f32.mrb[0].mxu0
  %v977 = vadd.f32 %v238, %v976
  %v978 = vpop.f32.mrb[0].mxu0
  %979 = vmatprep.mubr.f32.mxu0 %v464
  %980 = vmatmul.mubr.f32.gmra.mrb[0].mxu0 %v162
  %v981 = vpop.f32.mrb[0].mxu0
  %v982 = vadd.f32 %v238, %v981
  %v983 = vpop.f32.mrb[0].mxu0
  %984 = vmatprep.mubr.f32.mxu0 %v467
  %985 = vmatmul.mubr.f32.gmra.mrb[0].mxu0 %v164
  %v986 = vpop.f32.mrb[0].mxu0
  %v987 = vadd.f32 %v238, %v986
  %v988 = vpop.f32.mrb[0].mxu0
  %989 = vmatprep.mubr.f32.mxu0 %v470
  %990 = vmatmul.mubr.f32.gmra.mrb[0].mxu0 %v166
  %v991 = vpop.f32.mrb[0].mxu0
  %v992 = vadd.f32 %v238, %v991
  %v993 = vpop.f32.mrb[0].mxu0
  %994 = vmatprep.mubr.f32.mxu0 %v473
  %995 = vmatmul.mubr.f32.gmra.mrb[0].mxu0 %v168
  %v996 = vpop.f32.mrb[0].mxu0
  %v997 = vadd.f32 %v238, %v996
  %v998 = vpop.f32.mrb[0].mxu0
  %999 = vmatprep.mubr.f32.mxu0 %v476
  %1000 = vmatmul.mubr.f32.gmra.mrb[0].mxu0 %v170
  %v1001 = vpop.f32.mrb[0].mxu0
  %v1002 = vadd.f32 %v238, %v1001
  %v1003 = vpop.f32.mrb[0].mxu0
  %1004 = vmatprep.mubr.f32.mxu0 %v479
  %1005 = vmatmul.mubr.f32.gmra.mrb[0].mxu0 %v172
  %v1006 = vpop.f32.mrb[0].mxu0
  %v1007 = vadd.f32 %v238, %v1006
  %v1008 = vpop.f32.mrb[0].mxu0
  %1009 = vmatprep.mubr.f32.mxu0 %v482
  %1010 = vmatmul.mubr.f32.gmra.mrb[0].mxu0 %v174
  %v1011 = vpop.f32.mrb[0].mxu0
  %v1012 = vadd.f32 %v238, %v1011
  %v1013 = vpop.f32.mrb[0].mxu0
  %1014 = vmatprep.mubr.f32.mxu0 %v485
  %1015 = vmatmul.mubr.f32.gmra.mrb[0].mxu0 %v176
  %v1016 = vpop.f32.mrb[0].mxu0
  %v1017 = vadd.f32 %v238, %v1016
  %v1018 = vpop.f32.mrb[0].mxu0
  %1019 = vmatprep.mubr.f32.mxu0 %v488
  %1020 = vmatmul.mubr.f32.gmra.mrb[0].mxu0 %v178
  %v1021 = vpop.f32.mrb[0].mxu0
  %v1022 = vadd.f32 %v238, %v1021
  %v1023 = vpop.f32.mrb[0].mxu0
  %1024 = vmatprep.mubr.f32.mxu0 %v491
  %1025 = vmatmul.mubr.f32.gmra.mrb[0].mxu0 %v180
  %v1026 = vpop.f32.mrb[0].mxu0
  %v1027 = vadd.f32 %v238, %v1026
  %v1028 = vpop.f32.mrb[0].mxu0
  %1029 = vmatprep.mubr.f32.mxu0 %v494
  %1030 = vmatmul.mubr.f32.gmra.mrb[0].mxu0 %v182
  %v1031 = vpop.f32.mrb[0].mxu0
  %v1032 = vadd.f32 %v238, %v1031
  %v1033 = vpop.f32.mrb[0].mxu0
  %1034 = vmatprep.mubr.f32.mxu0 %v497
  %1035 = vmatmul.mubr.f32.gmra.mrb[0].mxu0 %v184
  %v1036 = vpop.f32.mrb[0].mxu0
  %v1037 = vadd.f32 %v238, %v1036
  %v1038 = vpop.f32.mrb[0].mxu0
  %1039 = vmatprep.mubr.f32.mxu0 %v500
  %1040 = vmatmul.mubr.f32.gmra.mrb[0].mxu0 %v186
  %v1041 = vpop.f32.mrb[0].mxu0
  %v1042 = vadd.f32 %v238, %v1041
  %v1043 = vpop.f32.mrb[0].mxu0
  %1044 = vmatprep.mubr.f32.mxu0 %v503
  %1045 = vmatmul.mubr.f32.gmra.mrb[0].mxu0 %v188
  %v1046 = vpop.f32.mrb[0].mxu0
  %v1047 = vadd.f32 %v238, %v1046
  %v1048 = vpop.f32.mrb[0].mxu0
  %1049 = vmatprep.mubr.f32.mxu0 %v506
  %1050 = vmatmul.mubr.f32.gmra.mrb[0].mxu0 %v190
  %v1051 = vpop.f32.mrb[0].mxu0
  %v1052 = vadd.f32 %v238, %v1051
  %v1053 = vpop.f32.mrb[0].mxu0
  %1054 = vmatprep.mubr.f32.mxu0 %v509
  %1055 = vmatmul.mubr.f32.gmra.mrb[0].mxu0 %v192
  %v1056 = vpop.f32.mrb[0].mxu0
  %v1057 = vadd.f32 %v238, %v1056
  %v1058 = vpop.f32.mrb[0].mxu0
  %1059 = vmatprep.mubr.f32.mxu0 %v512
  %1060 = vmatmul.mubr.f32.gmra.mrb[0].mxu0 %v194
  %v1061 = vpop.f32.mrb[0].mxu0
  %v1062 = vadd.f32 %v238, %v1061
  %v1063 = vpop.f32.mrb[0].mxu0
  %1064 = vmatprep.mubr.f32.mxu0 %v515
  %1065 = vmatmul.mubr.f32.gmra.mrb[0].mxu0 %v196
  %v1066 = vpop.f32.mrb[0].mxu0
  %v1067 = vadd.f32 %v238, %v1066
  %v1068 = vpop.f32.mrb[0].mxu0
  %1069 = vmatprep.mubr.f32.mxu0 %v518
  %1070 = vmatmul.mubr.f32.gmra.mrb[0].mxu0 %v198
  %v1071 = vpop.f32.mrb[0].mxu0
  %v1072 = vadd.f32 %v238, %v1071
  %v1073 = vpop.f32.mrb[0].mxu0
  %1074 = vmatprep.mubr.f32.mxu0 %v521
  %1075 = vmatmul.mubr.f32.gmra.mrb[0].mxu0 %v200
  %v1076 = vpop.f32.mrb[0].mxu0
  %v1077 = vadd.f32 %v238, %v1076
  %v1078 = vpop.f32.mrb[0].mxu0
  %1079 = vmatprep.mubr.f32.mxu0 %v524
  %1080 = vmatmul.mubr.f32.gmra.mrb[0].mxu0 %v202
  %v1081 = vpop.f32.mrb[0].mxu0
  %v1082 = vadd.f32 %v238, %v1081
  %v1083 = vpop.f32.mrb[0].mxu0
  %1084 = vmatprep.mubr.f32.mxu0 %v527
  %1085 = vmatmul.mubr.f32.gmra.mrb[0].mxu0 %v204
  %v1086 = vpop.f32.mrb[0].mxu0
  %v1087 = vadd.f32 %v238, %v1086
  %v1088 = vpop.f32.mrb[0].mxu0
  %1089 = vmatprep.mubr.f32.mxu0 %v530
  %1090 = vmatmul.mubr.f32.gmra.mrb[0].mxu0 %v206
  %v1091 = vpop.f32.mrb[0].mxu0
  %v1092 = vadd.f32 %v238, %v1091
  %v1093 = vpop.f32.mrb[0].mxu0
  %1094 = vmatprep.mubr.f32.mxu0 %v533
  %1095 = vmatmul.mubr.f32.gmra.mrb[0].mxu0 %v208
  %v1096 = vpop.f32.mrb[0].mxu0
  %v1097 = vadd.f32 %v238, %v1096
  %v1098 = vpop.f32.mrb[0].mxu0
  %1099 = vmatprep.mubr.f32.mxu0 %v536
  %1100 = vmatmul.mubr.f32.gmra.mrb[0].mxu0 %v210
  %v1101 = vpop.f32.mrb[0].mxu0
  %v1102 = vadd.f32 %v238, %v1101
  %v1103 = vpop.f32.mrb[0].mxu0
  %1104 = vmatprep.mubr.f32.mxu0 %v539
  %1105 = vmatmul.mubr.f32.gmra.mrb[0].mxu0 %v212
  %v1106 = vpop.f32.mrb[0].mxu0
  %v1107 = vadd.f32 %v238, %v1106
  %v1108 = vpop.f32.mrb[0].mxu0
  %1109 = vdwg.mxu0
  %v1110 = vmax.f32 %v612, 0.0
  %v1111 = vmax.f32 %v617, 0.0
  %v1112 = vmax.f32 %v622, 0.0
  %v1113 = vmax.f32 %v627, 0.0
  %v1114 = vmax.f32 %v632, 0.0
  %v1115 = vmax.f32 %v637, 0.0
  %v1116 = vmax.f32 %v642, 0.0
  %v1117 = vmax.f32 %v647, 0.0
  %v1118 = vmax.f32 %v652, 0.0
  %v1119 = vmax.f32 %v657, 0.0
  %v1120 = vmax.f32 %v662, 0.0
  %v1121 = vmax.f32 %v667, 0.0
  %v1122 = vmax.f32 %v672, 0.0
  %v1123 = vmax.f32 %v677, 0.0
  %v1124 = vmax.f32 %v682, 0.0
  %v1125 = vmax.f32 %v687, 0.0
  %v1126 = vmax.f32 %v692, 0.0
  %v1127 = vmax.f32 %v697, 0.0
  %v1128 = vmax.f32 %v702, 0.0
  %v1129 = vmax.f32 %v707, 0.0
  %v1130 = vmax.f32 %v712, 0.0
  %v1131 = vmax.f32 %v717, 0.0
  %v1132 = vmax.f32 %v722, 0.0
  %v1133 = vmax.f32 %v727, 0.0
  %v1134 = vmax.f32 %v732, 0.0
  %v1135 = vmax.f32 %v737, 0.0
  %v1136 = vmax.f32 %v742, 0.0
  %v1137 = vmax.f32 %v747, 0.0
  %v1138 = vmax.f32 %v752, 0.0
  %v1139 = vmax.f32 %v757, 0.0
  %v1140 = vmax.f32 %v762, 0.0
  %v1141 = vmax.f32 %v767, 0.0
  %v1142 = vmax.f32 %v772, 0.0
  %v1143 = vmax.f32 %v777, 0.0
  %v1144 = vmax.f32 %v782, 0.0
  %v1145 = vmax.f32 %v787, 0.0
  %v1146 = vmax.f32 %v792, 0.0
  %v1147 = vmax.f32 %v797, 0.0
  %v1148 = vmax.f32 %v802, 0.0
  %v1149 = vmax.f32 %v807, 0.0
  %v1150 = vmax.f32 %v812, 0.0
  %v1151 = vmax.f32 %v817, 0.0
  %v1152 = vmax.f32 %v822, 0.0
  %v1153 = vmax.f32 %v827, 0.0
  %v1154 = vmax.f32 %v832, 0.0
  %v1155 = vmax.f32 %v837, 0.0
  %v1156 = vmax.f32 %v842, 0.0
  %v1157 = vmax.f32 %v847, 0.0
  %v1158 = vmax.f32 %v852, 0.0
  %v1159 = vmax.f32 %v857, 0.0
  %v1160 = vmax.f32 %v862, 0.0
  %v1161 = vmax.f32 %v867, 0.0
  %v1162 = vmax.f32 %v872, 0.0
  %v1163 = vmax.f32 %v877, 0.0
  %v1164 = vmax.f32 %v882, 0.0
  %v1165 = vmax.f32 %v887, 0.0
  %v1166 = vmax.f32 %v892, 0.0
  %v1167 = vmax.f32 %v897, 0.0
  %v1168 = vmax.f32 %v902, 0.0
  %v1169 = vmax.f32 %v907, 0.0
  %v1170 = vmax.f32 %v912, 0.0
  %v1171 = vmax.f32 %v917, 0.0
  %v1172 = vmax.f32 %v922, 0.0
  %v1173 = vmax.f32 %v927, 0.0
  %v1174 = vmax.f32 %v932, 0.0
  %v1175 = vmax.f32 %v937, 0.0
  %v1176 = vmax.f32 %v942, 0.0
  %v1177 = vmax.f32 %v947, 0.0
  %v1178 = vmax.f32 %v952, 0.0
  %v1179 = vmax.f32 %v957, 0.0
  %v1180 = vmax.f32 %v962, 0.0
  %v1181 = vmax.f32 %v967, 0.0
  %v1182 = vmax.f32 %v972, 0.0
  %v1183 = vmax.f32 %v977, 0.0
  %v1184 = vmax.f32 %v982, 0.0
  %v1185 = vmax.f32 %v987, 0.0
  %v1186 = vmax.f32 %v992, 0.0
  %v1187 = vmax.f32 %v997, 0.0
  %v1188 = vmax.f32 %v1002, 0.0
  %v1189 = vmax.f32 %v1007, 0.0
  %v1190 = vmax.f32 %v1012, 0.0
  %v1191 = vmax.f32 %v1017, 0.0
  %v1192 = vmax.f32 %v1022, 0.0
  %v1193 = vmax.f32 %v1027, 0.0
  %v1194 = vmax.f32 %v1032, 0.0
  %v1195 = vmax.f32 %v1037, 0.0
  %v1196 = vmax.f32 %v1042, 0.0
  %v1197 = vmax.f32 %v1047, 0.0
  %v1198 = vmax.f32 %v1052, 0.0
  %v1199 = vmax.f32 %v1057, 0.0
  %v1200 = vmax.f32 %v1062, 0.0
  %v1201 = vmax.f32 %v1067, 0.0
  %v1202 = vmax.f32 %v1072, 0.0
  %v1203 = vmax.f32 %v1077, 0.0
  %v1204 = vmax.f32 %v1082, 0.0
  %v1205 = vmax.f32 %v1087, 0.0
  %v1206 = vmax.f32 %v1092, 0.0
  %v1207 = vmax.f32 %v1097, 0.0
  %v1208 = vmax.f32 %v1102, 0.0
  %v1209 = vmax.f32 %v1107, 0.0
  %vm1210 = vcmask 130048
  %1211 = vst.msk [vmem:[%s3] sm:$0xff] %vm1210, %v1110
  %1212 = vst.msk [vmem:[%s3 + $0x8] sm:$0xff] %vm1210, %v1111
  %1213 = vst.msk [vmem:[%s3 + $0x10] sm:$0xff] %vm1210, %v1112
  %1214 = vst.msk [vmem:[%s3 + $0x18] sm:$0xff] %vm1210, %v1113
  %1215 = vst.msk [vmem:[%s3 + $0x20] sm:$0xff] %vm1210, %v1114
  %1216 = vst.msk [vmem:[%s3 + $0x28] sm:$0xff] %vm1210, %v1115
  %1217 = vst.msk [vmem:[%s3 + $0x30] sm:$0xff] %vm1210, %v1116
  %1218 = vst.msk [vmem:[%s3 + $0x38] sm:$0xff] %vm1210, %v1117
  %1219 = vst.msk [vmem:[%s3 + $0x40] sm:$0xff] %vm1210, %v1118
  %1220 = vst.msk [vmem:[%s3 + $0x48] sm:$0xff] %vm1210, %v1119
  %1221 = vst.msk [vmem:[%s3 + $0x50] sm:$0xff] %vm1210, %v1120
  %1222 = vst.msk [vmem:[%s3 + $0x58] sm:$0xff] %vm1210, %v1121
  %1223 = vst.msk [vmem:[%s3 + $0x60] sm:$0xff] %vm1210, %v1122
  %1224 = vst.msk [vmem:[%s3 + $0x68] sm:$0xff] %vm1210, %v1123
  %1225 = vst.msk [vmem:[%s3 + $0x70] sm:$0xff] %vm1210, %v1124
  %1226 = vst.msk [vmem:[%s3 + $0x78] sm:$0xff] %vm1210, %v1125
  %1227 = vst.msk [vmem:[%s3 + $0x80] sm:$0xff] %vm1210, %v1126
  %1228 = vst.msk [vmem:[%s3 + $0x88] sm:$0xff] %vm1210, %v1127
  %1229 = vst.msk [vmem:[%s3 + $0x90] sm:$0xff] %vm1210, %v1128
  %1230 = vst.msk [vmem:[%s3 + $0x98] sm:$0xff] %vm1210, %v1129
  %1231 = vst.msk [vmem:[%s3 + $0xa0] sm:$0xff] %vm1210, %v1130
  %1232 = vst.msk [vmem:[%s3 + $0xa8] sm:$0xff] %vm1210, %v1131
  %1233 = vst.msk [vmem:[%s3 + $0xb0] sm:$0xff] %vm1210, %v1132
  %1234 = vst.msk [vmem:[%s3 + $0xb8] sm:$0xff] %vm1210, %v1133
  %1235 = vst.msk [vmem:[%s3 + $0xc0] sm:$0xff] %vm1210, %v1134
  %1236 = vst.msk [vmem:[%s3 + $0xc8] sm:$0xff] %vm1210, %v1135
  %1237 = vst.msk [vmem:[%s3 + $0xd0] sm:$0xff] %vm1210, %v1136
  %1238 = vst.msk [vmem:[%s3 + $0xd8] sm:$0xff] %vm1210, %v1137
  %1239 = vst.msk [vmem:[%s3 + $0xe0] sm:$0xff] %vm1210, %v1138
  %1240 = vst.msk [vmem:[%s3 + $0xe8] sm:$0xff] %vm1210, %v1139
  %1241 = vst.msk [vmem:[%s3 + $0xf0] sm:$0xff] %vm1210, %v1140
  %1242 = vst.msk [vmem:[%s3 + $0xf8] sm:$0xff] %vm1210, %v1141
  %1243 = vst.msk [vmem:[%s3 + $0x100] sm:$0xff] %vm1210, %v1142
  %1244 = vst.msk [vmem:[%s3 + $0x108] sm:$0xff] %vm1210, %v1143
  %1245 = vst.msk [vmem:[%s3 + $0x110] sm:$0xff] %vm1210, %v1144
  %1246 = vst.msk [vmem:[%s3 + $0x118] sm:$0xff] %vm1210, %v1145
  %1247 = vst.msk [vmem:[%s3 + $0x120] sm:$0xff] %vm1210, %v1146
  %1248 = vst.msk [vmem:[%s3 + $0x128] sm:$0xff] %vm1210, %v1147
  %1249 = vst.msk [vmem:[%s3 + $0x130] sm:$0xff] %vm1210, %v1148
  %1250 = vst.msk [vmem:[%s3 + $0x138] sm:$0xff] %vm1210, %v1149
  %1251 = vst.msk [vmem:[%s3 + $0x140] sm:$0xff] %vm1210, %v1150
  %1252 = vst.msk [vmem:[%s3 + $0x148] sm:$0xff] %vm1210, %v1151
  %1253 = vst.msk [vmem:[%s3 + $0x150] sm:$0xff] %vm1210, %v1152
  %1254 = vst.msk [vmem:[%s3 + $0x158] sm:$0xff] %vm1210, %v1153
  %1255 = vst.msk [vmem:[%s3 + $0x160] sm:$0xff] %vm1210, %v1154
  %1256 = vst.msk [vmem:[%s3 + $0x168] sm:$0xff] %vm1210, %v1155
  %1257 = vst.msk [vmem:[%s3 + $0x170] sm:$0xff] %vm1210, %v1156
  %1258 = vst.msk [vmem:[%s3 + $0x178] sm:$0xff] %vm1210, %v1157
  %1259 = vst.msk [vmem:[%s3 + $0x180] sm:$0xff] %vm1210, %v1158
  %1260 = vst.msk [vmem:[%s3 + $0x188] sm:$0xff] %vm1210, %v1159
  %1261 = vst.msk [vmem:[%s3 + $0x190] sm:$0xff] %vm1210, %v1160
  %1262 = vst.msk [vmem:[%s3 + $0x198] sm:$0xff] %vm1210, %v1161
  %1263 = vst.msk [vmem:[%s3 + $0x1a0] sm:$0xff] %vm1210, %v1162
  %1264 = vst.msk [vmem:[%s3 + $0x1a8] sm:$0xff] %vm1210, %v1163
  %1265 = vst.msk [vmem:[%s3 + $0x1b0] sm:$0xff] %vm1210, %v1164
  %1266 = vst.msk [vmem:[%s3 + $0x1b8] sm:$0xff] %vm1210, %v1165
  %1267 = vst.msk [vmem:[%s3 + $0x1c0] sm:$0xff] %vm1210, %v1166
  %1268 = vst.msk [vmem:[%s3 + $0x1c8] sm:$0xff] %vm1210, %v1167
  %1269 = vst.msk [vmem:[%s3 + $0x1d0] sm:$0xff] %vm1210, %v1168
  %1270 = vst.msk [vmem:[%s3 + $0x1d8] sm:$0xff] %vm1210, %v1169
  %1271 = vst.msk [vmem:[%s3 + $0x1e0] sm:$0xff] %vm1210, %v1170
  %1272 = vst.msk [vmem:[%s3 + $0x1e8] sm:$0xff] %vm1210, %v1171
  %1273 = vst.msk [vmem:[%s3 + $0x1f0] sm:$0xff] %vm1210, %v1172
  %1274 = vst.msk [vmem:[%s3 + $0x1f8] sm:$0xff] %vm1210, %v1173
  %1275 = vst.msk [vmem:[%s3 + $0x200] sm:$0xff] %vm1210, %v1174
  %1276 = vst.msk [vmem:[%s3 + $0x208] sm:$0xff] %vm1210, %v1175
  %1277 = vst.msk [vmem:[%s3 + $0x210] sm:$0xff] %vm1210, %v1176
  %1278 = vst.msk [vmem:[%s3 + $0x218] sm:$0xff] %vm1210, %v1177
  %1279 = vst.msk [vmem:[%s3 + $0x220] sm:$0xff] %vm1210, %v1178
  %1280 = vst.msk [vmem:[%s3 + $0x228] sm:$0xff] %vm1210, %v1179
  %1281 = vst.msk [vmem:[%s3 + $0x230] sm:$0xff] %vm1210, %v1180
  %1282 = vst.msk [vmem:[%s3 + $0x238] sm:$0xff] %vm1210, %v1181
  %1283 = vst.msk [vmem:[%s3 + $0x240] sm:$0xff] %vm1210, %v1182
  %1284 = vst.msk [vmem:[%s3 + $0x248] sm:$0xff] %vm1210, %v1183
  %1285 = vst.msk [vmem:[%s3 + $0x250] sm:$0xff] %vm1210, %v1184
  %1286 = vst.msk [vmem:[%s3 + $0x258] sm:$0xff] %vm1210, %v1185
  %1287 = vst.msk [vmem:[%s3 + $0x260] sm:$0xff] %vm1210, %v1186
  %1288 = vst.msk [vmem:[%s3 + $0x268] sm:$0xff] %vm1210, %v1187
  %1289 = vst.msk [vmem:[%s3 + $0x270] sm:$0xff] %vm1210, %v1188
  %1290 = vst.msk [vmem:[%s3 + $0x278] sm:$0xff] %vm1210, %v1189
  %1291 = vst.msk [vmem:[%s3 + $0x280] sm:$0xff] %vm1210, %v1190
  %1292 = vst.msk [vmem:[%s3 + $0x288] sm:$0xff] %vm1210, %v1191
  %1293 = vst.msk [vmem:[%s3 + $0x290] sm:$0xff] %vm1210, %v1192
  %1294 = vst.msk [vmem:[%s3 + $0x298] sm:$0xff] %vm1210, %v1193
  %1295 = vst.msk [vmem:[%s3 + $0x2a0] sm:$0xff] %vm1210, %v1194
  %1296 = vst.msk [vmem:[%s3 + $0x2a8] sm:$0xff] %vm1210, %v1195
  %1297 = vst.msk [vmem:[%s3 + $0x2b0] sm:$0xff] %vm1210, %v1196
  %1298 = vst.msk [vmem:[%s3 + $0x2b8] sm:$0xff] %vm1210, %v1197
  %1299 = vst.msk [vmem:[%s3 + $0x2c0] sm:$0xff] %vm1210, %v1198
  %1300 = vst.msk [vmem:[%s3 + $0x2c8] sm:$0xff] %vm1210, %v1199
  %1301 = vst.msk [vmem:[%s3 + $0x2d0] sm:$0xff] %vm1210, %v1200
  %1302 = vst.msk [vmem:[%s3 + $0x2d8] sm:$0xff] %vm1210, %v1201
  %1303 = vst.msk [vmem:[%s3 + $0x2e0] sm:$0xff] %vm1210, %v1202
  %1304 = vst.msk [vmem:[%s3 + $0x2e8] sm:$0xff] %vm1210, %v1203
  %1305 = vst.msk [vmem:[%s3 + $0x2f0] sm:$0xff] %vm1210, %v1204
  %1306 = vst.msk [vmem:[%s3 + $0x2f8] sm:$0xff] %vm1210, %v1205
  %1307 = vst.msk [vmem:[%s3 + $0x300] sm:$0xff] %vm1210, %v1206
  %1308 = vst.msk [vmem:[%s3 + $0x308] sm:$0xff] %vm1210, %v1207
  %1309 = vst.msk [vmem:[%s3 + $0x310] sm:$0xff] %vm1210, %v1208
  %1310 = vst.msk [vmem:[%s3 + $0x318] sm:$0xff] %vm1210, %v1209
  // Predicated region
  $region14: #{net_forward.8} parent=0 // pred_check
    _
  $region15: #{net_forward.8} parent=0 // pred_check_branch
    %1312 = sbr.rel (0) target = $region17
  $region16: #{net_forward.8} parent=0 // pred_region
    _
  $region17: #{net_forward.8} parent=0 // pred_fallthru
    _
  // Predicated region
  $region18: #{net_forward.8} parent=0 // pred_check
    _
  $region19: #{net_forward.8} parent=0 // pred_check_branch
    %1314 = sbr.rel (0) target = $region21
  $region20: #{net_forward.8} parent=0 // pred_region
    _
  $region21: #{net_forward.8} parent=0 // pred_fallthru
    _

// kernel: net_forward.9
$region0: #{net_forward.9}
  #allocation0 [shape = 'u32[]', space=smem, size = 0x4, offset = 0x4, fixed_abs, tag = 'smem constant byte address 0x4 - core index']
  #allocation1 [shape = 'u32[144,128]{1,0:T(1,128)}', space=vmem, size = 0x12000, scoped, tag = 'internal scratch']
  %s0 = inlined_call_operand.vmem [shape: f32[20,160], index: 0, kind: input, shape index: {}]
  %s1 = inlined_call_operand.vmem [shape: f32[20,160], index: 1, kind: input, shape index: {}]
  %s2 = inlined_call_operand.vmem [shape: f32[20,160], index: 2, kind: input, shape index: {}]
  %s3 = inlined_call_operand.vmem [shape: f32[20,160], index: 3, kind: input, shape index: {}]
  %s4 = inlined_call_operand.vmem [shape: f32[20,160], index: 4, kind: output, shape index: {}]
  %s5 = sld [smem:[#allocation0]]
  $region26: #{net_forward.9} parent=0
    _
  %s7 = ssub.s32 1, %s5
  %s8 = scalar_select 0, %s7, %s5
  // Predicated region
  $region2: #{net_forward.9} parent=0 // pred_check
    _
  $region3: #{net_forward.9} parent=0 // pred_check_branch
    %10 = sbr.rel (0) target = $region5
  $region4: #{net_forward.9} parent=0 // pred_region
    _
  $region5: #{net_forward.9} parent=0 // pred_fallthru
    _
  // Predicated region
  $region6: #{net_forward.9} parent=0 // pred_check
    _
  $region7: #{net_forward.9} parent=0 // pred_check_branch
    %12 = sbr.rel (0) target = $region9
  $region8: #{net_forward.9} parent=0 // pred_region
    _
  $region9: #{net_forward.9} parent=0 // pred_fallthru
    _
  // Predicated region
  $region10: #{net_forward.9} parent=0 // pred_check
    _
  $region11: #{net_forward.9} parent=0 // pred_check_branch
    %14 = sbr.rel (0) target = $region13
  $region12: #{net_forward.9} parent=0 // pred_region
    _
  $region13: #{net_forward.9} parent=0 // pred_fallthru
    _
  // Predicated region
  $region14: #{net_forward.9} parent=0 // pred_check
    _
  $region15: #{net_forward.9} parent=0 // pred_check_branch
    %16 = sbr.rel (0) target = $region17
  $region16: #{net_forward.9} parent=0 // pred_region
    _
  $region17: #{net_forward.9} parent=0 // pred_fallthru
    _
  %v17 = vld [vmem:[%s0] sm:$0xff]
  %v18 = vld [vmem:[%s0 + $0x8] sm:$0xff]
  %v19 = vld [vmem:[%s0 + $0x10] sm:$0xff]
  %v20 = vld [vmem:[%s0 + $0x18] sm:$0xff]
  %v21 = vld [vmem:[%s0 + $0x20] sm:$0xf]
  %v22 = vld [vmem:[%s0 + $0x28] sm:$0xf]
  %v23 = vld [vmem:[%s1] sm:$0xff]
  %v24 = vld [vmem:[%s1 + $0x8] sm:$0xff]
  %v25 = vld [vmem:[%s1 + $0x10] sm:$0xff]
  %v26 = vld [vmem:[%s1 + $0x18] sm:$0xff]
  %v27 = vld [vmem:[%s1 + $0x20] sm:$0xf]
  %v28 = vld [vmem:[%s1 + $0x28] sm:$0xf]
  %v29 = vmax.f32 %v17, %v23
  %v30 = vmax.f32 %v18, %v24
  %v31 = vmax.f32 %v19, %v25
  %v32 = vmax.f32 %v20, %v26
  %v33 = vmax.f32 %v21, %v27
  %v34 = vmax.f32 %v22, %v28
  %v35 = vld [vmem:[%s2] sm:$0xff]
  %v36 = vld [vmem:[%s2 + $0x8] sm:$0xff]
  %v37 = vld [vmem:[%s2 + $0x10] sm:$0xff]
  %v38 = vld [vmem:[%s2 + $0x18] sm:$0xff]
  %v39 = vld [vmem:[%s2 + $0x20] sm:$0xf]
  %v40 = vld [vmem:[%s2 + $0x28] sm:$0xf]
  %v41 = vld [vmem:[%s3] sm:$0xff]
  %v42 = vld [vmem:[%s3 + $0x8] sm:$0xff]
  %v43 = vld [vmem:[%s3 + $0x10] sm:$0xff]
  %v44 = vld [vmem:[%s3 + $0x18] sm:$0xff]
  %v45 = vld [vmem:[%s3 + $0x20] sm:$0xf]
  %v46 = vld [vmem:[%s3 + $0x28] sm:$0xf]
  %v47 = vmax.f32 %v35, %v41
  %v48 = vmax.f32 %v36, %v42
  %v49 = vmax.f32 %v37, %v43
  %v50 = vmax.f32 %v38, %v44
  %v51 = vmax.f32 %v39, %v45
  %v52 = vmax.f32 %v40, %v46
  %v53 = vmax.f32 %v29, %v47
  %v54 = vmax.f32 %v30, %v48
  %v55 = vmax.f32 %v31, %v49
  %v56 = vmax.f32 %v32, %v50
  %v57 = vmax.f32 %v33, %v51
  %v58 = vmax.f32 %v34, %v52
  %59 = vst [vmem:[%s4] sm:$0xff] %v53
  %vm60 = vcmask 261120
  %61 = vst.msk [vmem:[%s4 + $0x8] sm:$0xff] %vm60, %v54
  %62 = vst [vmem:[%s4 + $0x10] sm:$0xff] %v55
  %63 = vst.msk [vmem:[%s4 + $0x18] sm:$0xff] %vm60, %v56
  %64 = vst [vmem:[%s4 + $0x20] sm:$0xf] %v57
  %vm65 = vcmask 257024
  %66 = vst.msk [vmem:[%s4 + $0x28] sm:$0xf] %vm65, %v58
  // Predicated region
  $region18: #{net_forward.9} parent=0 // pred_check
    _
  $region19: #{net_forward.9} parent=0 // pred_check_branch
    %68 = sbr.rel (0) target = $region21
  $region20: #{net_forward.9} parent=0 // pred_region
    _
  $region21: #{net_forward.9} parent=0 // pred_fallthru
    _
  // Predicated region
  $region22: #{net_forward.9} parent=0 // pred_check
    _
  $region23: #{net_forward.9} parent=0 // pred_check_branch
    %70 = sbr.rel (0) target = $region25
  $region24: #{net_forward.9} parent=0 // pred_region
    _
  $region25: #{net_forward.9} parent=0 // pred_fallthru
    _

// kernel: net_forward.10
$region0: #{net_forward.10}
  #allocation0 [shape = 'u32[]', space=smem, size = 0x4, offset = 0x4, fixed_abs, tag = 'smem constant byte address 0x4 - core index']
  #allocation1 [shape = 'u32[144,128]{1,0:T(1,128)}', space=vmem, size = 0x12000, scoped, tag = 'internal scratch']
  %s0 = inlined_call_operand.vmem [shape: f32[2,1600], index: 0, kind: input, shape index: {}]
  %s1 = inlined_call_operand.vmem [shape: f32[1600,84], index: 1, kind: input, shape index: {}]
  %s2 = inlined_call_operand.vmem [shape: f32[1,84], index: 2, kind: input, shape index: {}]
  %s3 = inlined_call_operand.vmem [shape: f32[2,84], index: 3, kind: output, shape index: {}]
  %s4 = sld [smem:[#allocation0]]
  $region22: #{net_forward.10} parent=0
    _
  %s6 = ssub.s32 1, %s4
  %s7 = scalar_select 0, %s6, %s4
  // Predicated region
  $region2: #{net_forward.10} parent=0 // pred_check
    _
  $region3: #{net_forward.10} parent=0 // pred_check_branch
    %9 = sbr.rel (0) target = $region5
  $region4: #{net_forward.10} parent=0 // pred_region
    _
  $region5: #{net_forward.10} parent=0 // pred_fallthru
    _
  // Predicated region
  $region6: #{net_forward.10} parent=0 // pred_check
    _
  $region7: #{net_forward.10} parent=0 // pred_check_branch
    %11 = sbr.rel (0) target = $region9
  $region8: #{net_forward.10} parent=0 // pred_region
    _
  $region9: #{net_forward.10} parent=0 // pred_fallthru
    _
  // Predicated region
  $region10: #{net_forward.10} parent=0 // pred_check
    _
  $region11: #{net_forward.10} parent=0 // pred_check_branch
    %13 = sbr.rel (0) target = $region13
  $region12: #{net_forward.10} parent=0 // pred_region
    _
  $region13: #{net_forward.10} parent=0 // pred_fallthru
    _
  %v14 = vld [vmem:[%s0] sm:$0xff]
  %v15 = vld [vmem:[%s0 + $0x8] sm:$0xff]
  %v16 = vld [vmem:[%s0 + $0x10] sm:$0xff]
  %v17 = vld [vmem:[%s0 + $0x18] sm:$0x3]
  %v18 = vld [vmem:[%s1] sm:$0xff]
  %v19 = vld [vmem:[%s1 + $0x8] sm:$0xff]
  %v20 = vld [vmem:[%s1 + $0x10] sm:$0xff]
  %v21 = vld [vmem:[%s1 + $0x18] sm:$0xff]
  %v22 = vld [vmem:[%s1 + $0x20] sm:$0xff]
  %v23 = vld [vmem:[%s1 + $0x28] sm:$0xff]
  %v24 = vld [vmem:[%s1 + $0x30] sm:$0xff]
  %v25 = vld [vmem:[%s1 + $0x38] sm:$0xff]
  %v26 = vld [vmem:[%s1 + $0x40] sm:$0xff]
  %v27 = vld [vmem:[%s1 + $0x48] sm:$0xff]
  %v28 = vld [vmem:[%s1 + $0x50] sm:$0xff]
  %v29 = vld [vmem:[%s1 + $0x58] sm:$0xff]
  %v30 = vld [vmem:[%s1 + $0x60] sm:$0xff]
  %v31 = vld [vmem:[%s1 + $0x68] sm:$0xff]
  %v32 = vld [vmem:[%s1 + $0x70] sm:$0xff]
  %v33 = vld [vmem:[%s1 + $0x78] sm:$0xff]
  %v34 = vld [vmem:[%s1 + $0x80] sm:$0xff]
  %v35 = vld [vmem:[%s1 + $0x88] sm:$0xff]
  %v36 = vld [vmem:[%s1 + $0x90] sm:$0xff]
  %v37 = vld [vmem:[%s1 + $0x98] sm:$0xff]
  %v38 = vld [vmem:[%s1 + $0xa0] sm:$0xff]
  %v39 = vld [vmem:[%s1 + $0xa8] sm:$0xff]
  %v40 = vld [vmem:[%s1 + $0xb0] sm:$0xff]
  %v41 = vld [vmem:[%s1 + $0xb8] sm:$0xff]
  %v42 = vld [vmem:[%s1 + $0xc0] sm:$0xff]
  %v43 = vld [vmem:[%s1 + $0xc8] sm:$0xff]
  %v44 = vld [vmem:[%s1 + $0xd0] sm:$0xff]
  %v45 = vld [vmem:[%s1 + $0xd8] sm:$0xff]
  %v46 = vld [vmem:[%s1 + $0xe0] sm:$0xff]
  %v47 = vld [vmem:[%s1 + $0xe8] sm:$0xff]
  %v48 = vld [vmem:[%s1 + $0xf0] sm:$0xff]
  %v49 = vld [vmem:[%s1 + $0xf8] sm:$0xff]
  %v50 = vld [vmem:[%s1 + $0x100] sm:$0xff]
  %v51 = vld [vmem:[%s1 + $0x108] sm:$0xff]
  %v52 = vld [vmem:[%s1 + $0x110] sm:$0xff]
  %v53 = vld [vmem:[%s1 + $0x118] sm:$0xff]
  %v54 = vld [vmem:[%s1 + $0x120] sm:$0xff]
  %v55 = vld [vmem:[%s1 + $0x128] sm:$0xff]
  %v56 = vld [vmem:[%s1 + $0x130] sm:$0xff]
  %v57 = vld [vmem:[%s1 + $0x138] sm:$0xff]
  %v58 = vld [vmem:[%s1 + $0x140] sm:$0xff]
  %v59 = vld [vmem:[%s1 + $0x148] sm:$0xff]
  %v60 = vld [vmem:[%s1 + $0x150] sm:$0xff]
  %v61 = vld [vmem:[%s1 + $0x158] sm:$0xff]
  %v62 = vld [vmem:[%s1 + $0x160] sm:$0xff]
  %v63 = vld [vmem:[%s1 + $0x168] sm:$0xff]
  %v64 = vld [vmem:[%s1 + $0x170] sm:$0xff]
  %v65 = vld [vmem:[%s1 + $0x178] sm:$0xff]
  %v66 = vld [vmem:[%s1 + $0x180] sm:$0xff]
  %v67 = vld [vmem:[%s1 + $0x188] sm:$0xff]
  %v68 = vld [vmem:[%s1 + $0x190] sm:$0xff]
  %v69 = vld [vmem:[%s1 + $0x198] sm:$0xff]
  %v70 = vld [vmem:[%s1 + $0x1a0] sm:$0xff]
  %v71 = vld [vmem:[%s1 + $0x1a8] sm:$0xff]
  %v72 = vld [vmem:[%s1 + $0x1b0] sm:$0xff]
  %v73 = vld [vmem:[%s1 + $0x1b8] sm:$0xff]
  %v74 = vld [vmem:[%s1 + $0x1c0] sm:$0xff]
  %v75 = vld [vmem:[%s1 + $0x1c8] sm:$0xff]
  %v76 = vld [vmem:[%s1 + $0x1d0] sm:$0xff]
  %v77 = vld [vmem:[%s1 + $0x1d8] sm:$0xff]
  %v78 = vld [vmem:[%s1 + $0x1e0] sm:$0xff]
  %v79 = vld [vmem:[%s1 + $0x1e8] sm:$0xff]
  %v80 = vld [vmem:[%s1 + $0x1f0] sm:$0xff]
  %v81 = vld [vmem:[%s1 + $0x1f8] sm:$0xff]
  %v82 = vld [vmem:[%s1 + $0x200] sm:$0xff]
  %v83 = vld [vmem:[%s1 + $0x208] sm:$0xff]
  %v84 = vld [vmem:[%s1 + $0x210] sm:$0xff]
  %v85 = vld [vmem:[%s1 + $0x218] sm:$0xff]
  %v86 = vld [vmem:[%s1 + $0x220] sm:$0xff]
  %v87 = vld [vmem:[%s1 + $0x228] sm:$0xff]
  %v88 = vld [vmem:[%s1 + $0x230] sm:$0xff]
  %v89 = vld [vmem:[%s1 + $0x238] sm:$0xff]
  %v90 = vld [vmem:[%s1 + $0x240] sm:$0xff]
  %v91 = vld [vmem:[%s1 + $0x248] sm:$0xff]
  %v92 = vld [vmem:[%s1 + $0x250] sm:$0xff]
  %v93 = vld [vmem:[%s1 + $0x258] sm:$0xff]
  %v94 = vld [vmem:[%s1 + $0x260] sm:$0xff]
  %v95 = vld [vmem:[%s1 + $0x268] sm:$0xff]
  %v96 = vld [vmem:[%s1 + $0x270] sm:$0xff]
  %v97 = vld [vmem:[%s1 + $0x278] sm:$0xff]
  %v98 = vld [vmem:[%s1 + $0x280] sm:$0xff]
  %v99 = vld [vmem:[%s1 + $0x288] sm:$0xff]
  %v100 = vld [vmem:[%s1 + $0x290] sm:$0xff]
  %v101 = vld [vmem:[%s1 + $0x298] sm:$0xff]
  %v102 = vld [vmem:[%s1 + $0x2a0] sm:$0xff]
  %v103 = vld [vmem:[%s1 + $0x2a8] sm:$0xff]
  %v104 = vld [vmem:[%s1 + $0x2b0] sm:$0xff]
  %v105 = vld [vmem:[%s1 + $0x2b8] sm:$0xff]
  %v106 = vld [vmem:[%s1 + $0x2c0] sm:$0xff]
  %v107 = vld [vmem:[%s1 + $0x2c8] sm:$0xff]
  %v108 = vld [vmem:[%s1 + $0x2d0] sm:$0xff]
  %v109 = vld [vmem:[%s1 + $0x2d8] sm:$0xff]
  %v110 = vld [vmem:[%s1 + $0x2e0] sm:$0xff]
  %v111 = vld [vmem:[%s1 + $0x2e8] sm:$0xff]
  %v112 = vld [vmem:[%s1 + $0x2f0] sm:$0xff]
  %v113 = vld [vmem:[%s1 + $0x2f8] sm:$0xff]
  %v114 = vld [vmem:[%s1 + $0x300] sm:$0xff]
  %v115 = vld [vmem:[%s1 + $0x308] sm:$0xff]
  %v116 = vld [vmem:[%s1 + $0x310] sm:$0xff]
  %v117 = vld [vmem:[%s1 + $0x318] sm:$0xff]
  %v118 = vld [vmem:[%s1 + $0x320] sm:$0xff]
  %v119 = vld [vmem:[%s1 + $0x328] sm:$0xff]
  %v120 = vld [vmem:[%s1 + $0x330] sm:$0xff]
  %v121 = vld [vmem:[%s1 + $0x338] sm:$0xff]
  %v122 = vld [vmem:[%s1 + $0x340] sm:$0xff]
  %v123 = vld [vmem:[%s1 + $0x348] sm:$0xff]
  %v124 = vld [vmem:[%s1 + $0x350] sm:$0xff]
  %v125 = vld [vmem:[%s1 + $0x358] sm:$0xff]
  %v126 = vld [vmem:[%s1 + $0x360] sm:$0xff]
  %v127 = vld [vmem:[%s1 + $0x368] sm:$0xff]
  %v128 = vld [vmem:[%s1 + $0x370] sm:$0xff]
  %v129 = vld [vmem:[%s1 + $0x378] sm:$0xff]
  %v130 = vld [vmem:[%s1 + $0x380] sm:$0xff]
  %v131 = vld [vmem:[%s1 + $0x388] sm:$0xff]
  %v132 = vld [vmem:[%s1 + $0x390] sm:$0xff]
  %v133 = vld [vmem:[%s1 + $0x398] sm:$0xff]
  %v134 = vld [vmem:[%s1 + $0x3a0] sm:$0xff]
  %v135 = vld [vmem:[%s1 + $0x3a8] sm:$0xff]
  %v136 = vld [vmem:[%s1 + $0x3b0] sm:$0xff]
  %v137 = vld [vmem:[%s1 + $0x3b8] sm:$0xff]
  %v138 = vld [vmem:[%s1 + $0x3c0] sm:$0xff]
  %v139 = vld [vmem:[%s1 + $0x3c8] sm:$0xff]
  %v140 = vld [vmem:[%s1 + $0x3d0] sm:$0xff]
  %v141 = vld [vmem:[%s1 + $0x3d8] sm:$0xff]
  %v142 = vld [vmem:[%s1 + $0x3e0] sm:$0xff]
  %v143 = vld [vmem:[%s1 + $0x3e8] sm:$0xff]
  %v144 = vld [vmem:[%s1 + $0x3f0] sm:$0xff]
  %v145 = vld [vmem:[%s1 + $0x3f8] sm:$0xff]
  %v146 = vld [vmem:[%s1 + $0x400] sm:$0xff]
  %v147 = vld [vmem:[%s1 + $0x408] sm:$0xff]
  %v148 = vld [vmem:[%s1 + $0x410] sm:$0xff]
  %v149 = vld [vmem:[%s1 + $0x418] sm:$0xff]
  %v150 = vld [vmem:[%s1 + $0x420] sm:$0xff]
  %v151 = vld [vmem:[%s1 + $0x428] sm:$0xff]
  %v152 = vld [vmem:[%s1 + $0x430] sm:$0xff]
  %v153 = vld [vmem:[%s1 + $0x438] sm:$0xff]
  %v154 = vld [vmem:[%s1 + $0x440] sm:$0xff]
  %v155 = vld [vmem:[%s1 + $0x448] sm:$0xff]
  %v156 = vld [vmem:[%s1 + $0x450] sm:$0xff]
  %v157 = vld [vmem:[%s1 + $0x458] sm:$0xff]
  %v158 = vld [vmem:[%s1 + $0x460] sm:$0xff]
  %v159 = vld [vmem:[%s1 + $0x468] sm:$0xff]
  %v160 = vld [vmem:[%s1 + $0x470] sm:$0xff]
  %v161 = vld [vmem:[%s1 + $0x478] sm:$0xff]
  %v162 = vld [vmem:[%s1 + $0x480] sm:$0xff]
  %v163 = vld [vmem:[%s1 + $0x488] sm:$0xff]
  %v164 = vld [vmem:[%s1 + $0x490] sm:$0xff]
  %v165 = vld [vmem:[%s1 + $0x498] sm:$0xff]
  %v166 = vld [vmem:[%s1 + $0x4a0] sm:$0xff]
  %v167 = vld [vmem:[%s1 + $0x4a8] sm:$0xff]
  %v168 = vld [vmem:[%s1 + $0x4b0] sm:$0xff]
  %v169 = vld [vmem:[%s1 + $0x4b8] sm:$0xff]
  %v170 = vld [vmem:[%s1 + $0x4c0] sm:$0xff]
  %v171 = vld [vmem:[%s1 + $0x4c8] sm:$0xff]
  %v172 = vld [vmem:[%s1 + $0x4d0] sm:$0xff]
  %v173 = vld [vmem:[%s1 + $0x4d8] sm:$0xff]
  %v174 = vld [vmem:[%s1 + $0x4e0] sm:$0xff]
  %v175 = vld [vmem:[%s1 + $0x4e8] sm:$0xff]
  %v176 = vld [vmem:[%s1 + $0x4f0] sm:$0xff]
  %v177 = vld [vmem:[%s1 + $0x4f8] sm:$0xff]
  %v178 = vld [vmem:[%s1 + $0x500] sm:$0xff]
  %v179 = vld [vmem:[%s1 + $0x508] sm:$0xff]
  %v180 = vld [vmem:[%s1 + $0x510] sm:$0xff]
  %v181 = vld [vmem:[%s1 + $0x518] sm:$0xff]
  %v182 = vld [vmem:[%s1 + $0x520] sm:$0xff]
  %v183 = vld [vmem:[%s1 + $0x528] sm:$0xff]
  %v184 = vld [vmem:[%s1 + $0x530] sm:$0xff]
  %v185 = vld [vmem:[%s1 + $0x538] sm:$0xff]
  %v186 = vld [vmem:[%s1 + $0x540] sm:$0xff]
  %v187 = vld [vmem:[%s1 + $0x548] sm:$0xff]
  %v188 = vld [vmem:[%s1 + $0x550] sm:$0xff]
  %v189 = vld [vmem:[%s1 + $0x558] sm:$0xff]
  %v190 = vld [vmem:[%s1 + $0x560] sm:$0xff]
  %v191 = vld [vmem:[%s1 + $0x568] sm:$0xff]
  %v192 = vld [vmem:[%s1 + $0x570] sm:$0xff]
  %v193 = vld [vmem:[%s1 + $0x578] sm:$0xff]
  %v194 = vld [vmem:[%s1 + $0x580] sm:$0xff]
  %v195 = vld [vmem:[%s1 + $0x588] sm:$0xff]
  %v196 = vld [vmem:[%s1 + $0x590] sm:$0xff]
  %v197 = vld [vmem:[%s1 + $0x598] sm:$0xff]
  %v198 = vld [vmem:[%s1 + $0x5a0] sm:$0xff]
  %v199 = vld [vmem:[%s1 + $0x5a8] sm:$0xff]
  %v200 = vld [vmem:[%s1 + $0x5b0] sm:$0xff]
  %v201 = vld [vmem:[%s1 + $0x5b8] sm:$0xff]
  %v202 = vld [vmem:[%s1 + $0x5c0] sm:$0xff]
  %v203 = vld [vmem:[%s1 + $0x5c8] sm:$0xff]
  %v204 = vld [vmem:[%s1 + $0x5d0] sm:$0xff]
  %v205 = vld [vmem:[%s1 + $0x5d8] sm:$0xff]
  %v206 = vld [vmem:[%s1 + $0x5e0] sm:$0xff]
  %v207 = vld [vmem:[%s1 + $0x5e8] sm:$0xff]
  %v208 = vld [vmem:[%s1 + $0x5f0] sm:$0xff]
  %v209 = vld [vmem:[%s1 + $0x5f8] sm:$0xff]
  %v210 = vld [vmem:[%s1 + $0x600] sm:$0xff]
  %v211 = vld [vmem:[%s1 + $0x608] sm:$0xff]
  %v212 = vld [vmem:[%s1 + $0x610] sm:$0xff]
  %v213 = vld [vmem:[%s1 + $0x618] sm:$0xff]
  %v214 = vld [vmem:[%s1 + $0x620] sm:$0xff]
  %v215 = vld [vmem:[%s1 + $0x628] sm:$0xff]
  %v216 = vld [vmem:[%s1 + $0x630] sm:$0xff]
  %v217 = vld [vmem:[%s1 + $0x638] sm:$0xff]
  %v218 = vld [vmem:[%s2] sm:$0x1]
  %v220 = vlaneseq
  %v221 = vshrl.u32 %v220, 7
  %v222 = vsub.s32 0, %v221
  %v223 = vrot.slane %v218, %v222
  %v229 = vcombine.high %v14, %v14
  %v231 = vunpack.c.l.s4 1983009808
  %v232 = vunpack.c.0.s8 %v231
  %v233 = vlaneseq
  %v234 = vshrl.u32 %v233, 7
  %v235 = vsub.s32 %v232, %v234
  %v236 = vrot.slane %v14, %v235
  %v238 = vunpack.c.l.s4 1983009808
  %v239 = vunpack.c.0.s8 %v238
  %v240 = vlaneseq
  %v241 = vshrl.u32 %v240, 7
  %v242 = vsub.s32 %v239, %v241
  %v243 = vrot.slane %v229, %v242
  %v244 = vcombine.high %v236, %v236
  %v245 = vcombine.high %v243, %v243
  %v246 = vcombine.high %v15, %v15
  %v248 = vunpack.c.l.s4 1983009808
  %v249 = vunpack.c.0.s8 %v248
  %v250 = vlaneseq
  %v251 = vshrl.u32 %v250, 7
  %v252 = vsub.s32 %v249, %v251
  %v253 = vrot.slane %v15, %v252
  %v255 = vunpack.c.l.s4 1983009808
  %v256 = vunpack.c.0.s8 %v255
  %v257 = vlaneseq
  %v258 = vshrl.u32 %v257, 7
  %v259 = vsub.s32 %v256, %v258
  %v260 = vrot.slane %v246, %v259
  %v261 = vcombine.high %v253, %v253
  %v262 = vcombine.high %v260, %v260
  %v263 = vcombine.high %v16, %v16
  %v265 = vunpack.c.l.s4 1983009808
  %v266 = vunpack.c.0.s8 %v265
  %v267 = vlaneseq
  %v268 = vshrl.u32 %v267, 7
  %v269 = vsub.s32 %v266, %v268
  %v270 = vrot.slane %v16, %v269
  %v272 = vunpack.c.l.s4 1983009808
  %v273 = vunpack.c.0.s8 %v272
  %v274 = vlaneseq
  %v275 = vshrl.u32 %v274, 7
  %v276 = vsub.s32 %v273, %v275
  %v277 = vrot.slane %v263, %v276
  %v278 = vcombine.high %v270, %v270
  %v279 = vcombine.high %v277, %v277
  %v281 = vunpack.c.l.s4 1983009808
  %v282 = vunpack.c.0.s8 %v281
  %v283 = vlaneseq
  %v284 = vshrl.u32 %v283, 7
  %v285 = vsub.s32 %v282, %v284
  %v286 = vrot.slane %v17, %v285
  %vm299 = vcmask 523264
  %v300 = vsel %vm299, %v286, 0
  %302 = vmatprep.subr.mxu0 0.0
  %303 = vmatpush1.msra.mxu0 %v18
  %304 = vmatprep.subr.mxu0 0.0
  %305 = vmatpush1.msra.mxu0 %v19
  %306 = vmatprep.subr.mxu0 0.0
  %307 = vmatpush1.msra.mxu0 %v20
  %308 = vmatprep.subr.mxu0 0.0
  %309 = vmatpush1.msra.mxu0 %v21
  %310 = vmatprep.subr.mxu0 0.0
  %311 = vmatpush1.msra.mxu0 %v22
  %312 = vmatprep.subr.mxu0 0.0
  %313 = vmatpush1.msra.mxu0 %v23
  %314 = vmatprep.subr.mxu0 0.0
  %315 = vmatpush1.msra.mxu0 %v24
  %316 = vmatprep.subr.mxu0 0.0
  %317 = vmatpush1.msra.mxu0 %v25
  %318 = vmatprep.subr.mxu0 0.0
  %319 = vmatpush1.msra.mxu0 %v26
  %320 = vmatprep.subr.mxu0 0.0
  %321 = vmatpush1.msra.mxu0 %v27
  %322 = vmatprep.subr.mxu0 0.0
  %323 = vmatpush1.msra.mxu0 %v28
  %324 = vmatprep.subr.mxu0 0.0
  %325 = vmatpush1.msra.mxu0 %v29
  %326 = vmatprep.subr.mxu0 0.0
  %327 = vmatpush1.msra.mxu0 %v30
  %328 = vmatprep.subr.mxu0 0.0
  %329 = vmatpush1.msra.mxu0 %v31
  %330 = vmatprep.subr.mxu0 0.0
  %331 = vmatpush1.msra.mxu0 %v32
  %332 = vmatprep.subr.mxu0 0.0
  %333 = vmatpush1.msra.mxu0 %v33
  %334 = vmatprep.subr.mxu0 0.0
  %335 = vmatpush1.msra.mxu0 %v34
  %336 = vmatprep.subr.mxu0 0.0
  %337 = vmatpush1.msra.mxu0 %v35
  %338 = vmatprep.subr.mxu0 0.0
  %339 = vmatpush1.msra.mxu0 %v36
  %340 = vmatprep.subr.mxu0 0.0
  %341 = vmatpush1.msra.mxu0 %v37
  %342 = vmatprep.subr.mxu0 0.0
  %343 = vmatpush1.msra.mxu0 %v38
  %344 = vmatprep.subr.mxu0 0.0
  %345 = vmatpush1.msra.mxu0 %v39
  %346 = vmatprep.subr.mxu0 0.0
  %347 = vmatpush1.msra.mxu0 %v40
  %348 = vmatprep.subr.mxu0 0.0
  %349 = vmatpush1.msra.mxu0 %v41
  %350 = vmatprep.subr.mxu0 0.0
  %351 = vmatpush1.msra.mxu0 %v42
  %352 = vmatprep.subr.mxu0 0.0
  %353 = vmatpush1.msra.mxu0 %v43
  %354 = vmatprep.subr.mxu0 0.0
  %355 = vmatpush1.msra.mxu0 %v44
  %356 = vmatprep.subr.mxu0 0.0
  %357 = vmatpush1.msra.mxu0 %v45
  %358 = vmatprep.subr.mxu0 0.0
  %359 = vmatpush1.msra.mxu0 %v46
  %360 = vmatprep.subr.mxu0 0.0
  %361 = vmatpush1.msra.mxu0 %v47
  %362 = vmatprep.subr.mxu0 0.0
  %363 = vmatpush1.msra.mxu0 %v48
  %364 = vmatprep.subr.mxu0 0.0
  %365 = vmatpush1.msra.mxu0 %v49
  %366 = vmatprep.mubr.f32.mxu0 %v244
  %367 = vmatmul.mubr.f32.gmra.mrb[0].mxu0 %v236
  %v368 = vpop.f32.mrb[0].mxu0
  %v369 = vadd.f32 %v223, %v368
  %v370 = vpop.f32.mrb[0].mxu0
  %371 = vdwg.mxu0
  %372 = vmatprep.subr.mxu0 0.0
  %373 = vmatpush1.msra.mxu0 %v50
  %374 = vmatprep.subr.mxu0 0.0
  %375 = vmatpush1.msra.mxu0 %v51
  %376 = vmatprep.subr.mxu0 0.0
  %377 = vmatpush1.msra.mxu0 %v52
  %378 = vmatprep.subr.mxu0 0.0
  %379 = vmatpush1.msra.mxu0 %v53
  %380 = vmatprep.subr.mxu0 0.0
  %381 = vmatpush1.msra.mxu0 %v54
  %382 = vmatprep.subr.mxu0 0.0
  %383 = vmatpush1.msra.mxu0 %v55
  %384 = vmatprep.subr.mxu0 0.0
  %385 = vmatpush1.msra.mxu0 %v56
  %386 = vmatprep.subr.mxu0 0.0
  %387 = vmatpush1.msra.mxu0 %v57
  %388 = vmatprep.subr.mxu0 0.0
  %389 = vmatpush1.msra.mxu0 %v58
  %390 = vmatprep.subr.mxu0 0.0
  %391 = vmatpush1.msra.mxu0 %v59
  %392 = vmatprep.subr.mxu0 0.0
  %393 = vmatpush1.msra.mxu0 %v60
  %394 = vmatprep.subr.mxu0 0.0
  %395 = vmatpush1.msra.mxu0 %v61
  %396 = vmatprep.subr.mxu0 0.0
  %397 = vmatpush1.msra.mxu0 %v62
  %398 = vmatprep.subr.mxu0 0.0
  %399 = vmatpush1.msra.mxu0 %v63
  %400 = vmatprep.subr.mxu0 0.0
  %401 = vmatpush1.msra.mxu0 %v64
  %402 = vmatprep.subr.mxu0 0.0
  %403 = vmatpush1.msra.mxu0 %v65
  %404 = vmatprep.subr.mxu0 0.0
  %405 = vmatpush1.msra.mxu0 %v66
  %406 = vmatprep.subr.mxu0 0.0
  %407 = vmatpush1.msra.mxu0 %v67
  %408 = vmatprep.subr.mxu0 0.0
  %409 = vmatpush1.msra.mxu0 %v68
  %410 = vmatprep.subr.mxu0 0.0
  %411 = vmatpush1.msra.mxu0 %v69
  %412 = vmatprep.subr.mxu0 0.0
  %413 = vmatpush1.msra.mxu0 %v70
  %414 = vmatprep.subr.mxu0 0.0
  %415 = vmatpush1.msra.mxu0 %v71
  %416 = vmatprep.subr.mxu0 0.0
  %417 = vmatpush1.msra.mxu0 %v72
  %418 = vmatprep.subr.mxu0 0.0
  %419 = vmatpush1.msra.mxu0 %v73
  %420 = vmatprep.subr.mxu0 0.0
  %421 = vmatpush1.msra.mxu0 %v74
  %422 = vmatprep.subr.mxu0 0.0
  %423 = vmatpush1.msra.mxu0 %v75
  %424 = vmatprep.subr.mxu0 0.0
  %425 = vmatpush1.msra.mxu0 %v76
  %426 = vmatprep.subr.mxu0 0.0
  %427 = vmatpush1.msra.mxu0 %v77
  %428 = vmatprep.subr.mxu0 0.0
  %429 = vmatpush1.msra.mxu0 %v78
  %430 = vmatprep.subr.mxu0 0.0
  %431 = vmatpush1.msra.mxu0 %v79
  %432 = vmatprep.subr.mxu0 0.0
  %433 = vmatpush1.msra.mxu0 %v80
  %434 = vmatprep.subr.mxu0 0.0
  %435 = vmatpush1.msra.mxu0 %v81
  %436 = vmatprep.mubr.f32.mxu0 %v245
  %437 = vmatmul.mubr.f32.gmra.mrb[0].mxu0 %v243
  %v438 = vpop.f32.mrb[0].mxu0
  %v439 = vadd.f32 %v369, %v438
  %v440 = vpop.f32.mrb[0].mxu0
  %441 = vdwg.mxu0
  %442 = vmatprep.subr.mxu0 0.0
  %443 = vmatpush1.msra.mxu0 %v82
  %444 = vmatprep.subr.mxu0 0.0
  %445 = vmatpush1.msra.mxu0 %v83
  %446 = vmatprep.subr.mxu0 0.0
  %447 = vmatpush1.msra.mxu0 %v84
  %448 = vmatprep.subr.mxu0 0.0
  %449 = vmatpush1.msra.mxu0 %v85
  %450 = vmatprep.subr.mxu0 0.0
  %451 = vmatpush1.msra.mxu0 %v86
  %452 = vmatprep.subr.mxu0 0.0
  %453 = vmatpush1.msra.mxu0 %v87
  %454 = vmatprep.subr.mxu0 0.0
  %455 = vmatpush1.msra.mxu0 %v88
  %456 = vmatprep.subr.mxu0 0.0
  %457 = vmatpush1.msra.mxu0 %v89
  %458 = vmatprep.subr.mxu0 0.0
  %459 = vmatpush1.msra.mxu0 %v90
  %460 = vmatprep.subr.mxu0 0.0
  %461 = vmatpush1.msra.mxu0 %v91
  %462 = vmatprep.subr.mxu0 0.0
  %463 = vmatpush1.msra.mxu0 %v92
  %464 = vmatprep.subr.mxu0 0.0
  %465 = vmatpush1.msra.mxu0 %v93
  %466 = vmatprep.subr.mxu0 0.0
  %467 = vmatpush1.msra.mxu0 %v94
  %468 = vmatprep.subr.mxu0 0.0
  %469 = vmatpush1.msra.mxu0 %v95
  %470 = vmatprep.subr.mxu0 0.0
  %471 = vmatpush1.msra.mxu0 %v96
  %472 = vmatprep.subr.mxu0 0.0
  %473 = vmatpush1.msra.mxu0 %v97
  %474 = vmatprep.subr.mxu0 0.0
  %475 = vmatpush1.msra.mxu0 %v98
  %476 = vmatprep.subr.mxu0 0.0
  %477 = vmatpush1.msra.mxu0 %v99
  %478 = vmatprep.subr.mxu0 0.0
  %479 = vmatpush1.msra.mxu0 %v100
  %480 = vmatprep.subr.mxu0 0.0
  %481 = vmatpush1.msra.mxu0 %v101
  %482 = vmatprep.subr.mxu0 0.0
  %483 = vmatpush1.msra.mxu0 %v102
  %484 = vmatprep.subr.mxu0 0.0
  %485 = vmatpush1.msra.mxu0 %v103
  %486 = vmatprep.subr.mxu0 0.0
  %487 = vmatpush1.msra.mxu0 %v104
  %488 = vmatprep.subr.mxu0 0.0
  %489 = vmatpush1.msra.mxu0 %v105
  %490 = vmatprep.subr.mxu0 0.0
  %491 = vmatpush1.msra.mxu0 %v106
  %492 = vmatprep.subr.mxu0 0.0
  %493 = vmatpush1.msra.mxu0 %v107
  %494 = vmatprep.subr.mxu0 0.0
  %495 = vmatpush1.msra.mxu0 %v108
  %496 = vmatprep.subr.mxu0 0.0
  %497 = vmatpush1.msra.mxu0 %v109
  %498 = vmatprep.subr.mxu0 0.0
  %499 = vmatpush1.msra.mxu0 %v110
  %500 = vmatprep.subr.mxu0 0.0
  %501 = vmatpush1.msra.mxu0 %v111
  %502 = vmatprep.subr.mxu0 0.0
  %503 = vmatpush1.msra.mxu0 %v112
  %504 = vmatprep.subr.mxu0 0.0
  %505 = vmatpush1.msra.mxu0 %v113
  %506 = vmatprep.mubr.f32.mxu0 %v261
  %507 = vmatmul.mubr.f32.gmra.mrb[0].mxu0 %v253
  %v508 = vpop.f32.mrb[0].mxu0
  %v509 = vadd.f32 %v439, %v508
  %v510 = vpop.f32.mrb[0].mxu0
  %511 = vdwg.mxu0
  %512 = vmatprep.subr.mxu0 0.0
  %513 = vmatpush1.msra.mxu0 %v114
  %514 = vmatprep.subr.mxu0 0.0
  %515 = vmatpush1.msra.mxu0 %v115
  %516 = vmatprep.subr.mxu0 0.0
  %517 = vmatpush1.msra.mxu0 %v116
  %518 = vmatprep.subr.mxu0 0.0
  %519 = vmatpush1.msra.mxu0 %v117
  %520 = vmatprep.subr.mxu0 0.0
  %521 = vmatpush1.msra.mxu0 %v118
  %522 = vmatprep.subr.mxu0 0.0
  %523 = vmatpush1.msra.mxu0 %v119
  %524 = vmatprep.subr.mxu0 0.0
  %525 = vmatpush1.msra.mxu0 %v120
  %526 = vmatprep.subr.mxu0 0.0
  %527 = vmatpush1.msra.mxu0 %v121
  %528 = vmatprep.subr.mxu0 0.0
  %529 = vmatpush1.msra.mxu0 %v122
  %530 = vmatprep.subr.mxu0 0.0
  %531 = vmatpush1.msra.mxu0 %v123
  %532 = vmatprep.subr.mxu0 0.0
  %533 = vmatpush1.msra.mxu0 %v124
  %534 = vmatprep.subr.mxu0 0.0
  %535 = vmatpush1.msra.mxu0 %v125
  %536 = vmatprep.subr.mxu0 0.0
  %537 = vmatpush1.msra.mxu0 %v126
  %538 = vmatprep.subr.mxu0 0.0
  %539 = vmatpush1.msra.mxu0 %v127
  %540 = vmatprep.subr.mxu0 0.0
  %541 = vmatpush1.msra.mxu0 %v128
  %542 = vmatprep.subr.mxu0 0.0
  %543 = vmatpush1.msra.mxu0 %v129
  %544 = vmatprep.subr.mxu0 0.0
  %545 = vmatpush1.msra.mxu0 %v130
  %546 = vmatprep.subr.mxu0 0.0
  %547 = vmatpush1.msra.mxu0 %v131
  %548 = vmatprep.subr.mxu0 0.0
  %549 = vmatpush1.msra.mxu0 %v132
  %550 = vmatprep.subr.mxu0 0.0
  %551 = vmatpush1.msra.mxu0 %v133
  %552 = vmatprep.subr.mxu0 0.0
  %553 = vmatpush1.msra.mxu0 %v134
  %554 = vmatprep.subr.mxu0 0.0
  %555 = vmatpush1.msra.mxu0 %v135
  %556 = vmatprep.subr.mxu0 0.0
  %557 = vmatpush1.msra.mxu0 %v136
  %558 = vmatprep.subr.mxu0 0.0
  %559 = vmatpush1.msra.mxu0 %v137
  %560 = vmatprep.subr.mxu0 0.0
  %561 = vmatpush1.msra.mxu0 %v138
  %562 = vmatprep.subr.mxu0 0.0
  %563 = vmatpush1.msra.mxu0 %v139
  %564 = vmatprep.subr.mxu0 0.0
  %565 = vmatpush1.msra.mxu0 %v140
  %566 = vmatprep.subr.mxu0 0.0
  %567 = vmatpush1.msra.mxu0 %v141
  %568 = vmatprep.subr.mxu0 0.0
  %569 = vmatpush1.msra.mxu0 %v142
  %570 = vmatprep.subr.mxu0 0.0
  %571 = vmatpush1.msra.mxu0 %v143
  %572 = vmatprep.subr.mxu0 0.0
  %573 = vmatpush1.msra.mxu0 %v144
  %574 = vmatprep.subr.mxu0 0.0
  %575 = vmatpush1.msra.mxu0 %v145
  %576 = vmatprep.mubr.f32.mxu0 %v262
  %577 = vmatmul.mubr.f32.gmra.mrb[0].mxu0 %v260
  %v578 = vpop.f32.mrb[0].mxu0
  %v579 = vadd.f32 %v509, %v578
  %v580 = vpop.f32.mrb[0].mxu0
  %581 = vdwg.mxu0
  %582 = vmatprep.subr.mxu0 0.0
  %583 = vmatpush1.msra.mxu0 %v146
  %584 = vmatprep.subr.mxu0 0.0
  %585 = vmatpush1.msra.mxu0 %v147
  %586 = vmatprep.subr.mxu0 0.0
  %587 = vmatpush1.msra.mxu0 %v148
  %588 = vmatprep.subr.mxu0 0.0
  %589 = vmatpush1.msra.mxu0 %v149
  %590 = vmatprep.subr.mxu0 0.0
  %591 = vmatpush1.msra.mxu0 %v150
  %592 = vmatprep.subr.mxu0 0.0
  %593 = vmatpush1.msra.mxu0 %v151
  %594 = vmatprep.subr.mxu0 0.0
  %595 = vmatpush1.msra.mxu0 %v152
  %596 = vmatprep.subr.mxu0 0.0
  %597 = vmatpush1.msra.mxu0 %v153
  %598 = vmatprep.subr.mxu0 0.0
  %599 = vmatpush1.msra.mxu0 %v154
  %600 = vmatprep.subr.mxu0 0.0
  %601 = vmatpush1.msra.mxu0 %v155
  %602 = vmatprep.subr.mxu0 0.0
  %603 = vmatpush1.msra.mxu0 %v156
  %604 = vmatprep.subr.mxu0 0.0
  %605 = vmatpush1.msra.mxu0 %v157
  %606 = vmatprep.subr.mxu0 0.0
  %607 = vmatpush1.msra.mxu0 %v158
  %608 = vmatprep.subr.mxu0 0.0
  %609 = vmatpush1.msra.mxu0 %v159
  %610 = vmatprep.subr.mxu0 0.0
  %611 = vmatpush1.msra.mxu0 %v160
  %612 = vmatprep.subr.mxu0 0.0
  %613 = vmatpush1.msra.mxu0 %v161
  %614 = vmatprep.subr.mxu0 0.0
  %615 = vmatpush1.msra.mxu0 %v162
  %616 = vmatprep.subr.mxu0 0.0
  %617 = vmatpush1.msra.mxu0 %v163
  %618 = vmatprep.subr.mxu0 0.0
  %619 = vmatpush1.msra.mxu0 %v164
  %620 = vmatprep.subr.mxu0 0.0
  %621 = vmatpush1.msra.mxu0 %v165
  %622 = vmatprep.subr.mxu0 0.0
  %623 = vmatpush1.msra.mxu0 %v166
  %624 = vmatprep.subr.mxu0 0.0
  %625 = vmatpush1.msra.mxu0 %v167
  %626 = vmatprep.subr.mxu0 0.0
  %627 = vmatpush1.msra.mxu0 %v168
  %628 = vmatprep.subr.mxu0 0.0
  %629 = vmatpush1.msra.mxu0 %v169
  %630 = vmatprep.subr.mxu0 0.0
  %631 = vmatpush1.msra.mxu0 %v170
  %632 = vmatprep.subr.mxu0 0.0
  %633 = vmatpush1.msra.mxu0 %v171
  %634 = vmatprep.subr.mxu0 0.0
  %635 = vmatpush1.msra.mxu0 %v172
  %636 = vmatprep.subr.mxu0 0.0
  %637 = vmatpush1.msra.mxu0 %v173
  %638 = vmatprep.subr.mxu0 0.0
  %639 = vmatpush1.msra.mxu0 %v174
  %640 = vmatprep.subr.mxu0 0.0
  %641 = vmatpush1.msra.mxu0 %v175
  %642 = vmatprep.subr.mxu0 0.0
  %643 = vmatpush1.msra.mxu0 %v176
  %644 = vmatprep.subr.mxu0 0.0
  %645 = vmatpush1.msra.mxu0 %v177
  %646 = vmatprep.mubr.f32.mxu0 %v278
  %647 = vmatmul.mubr.f32.gmra.mrb[0].mxu0 %v270
  %v648 = vpop.f32.mrb[0].mxu0
  %v649 = vadd.f32 %v579, %v648
  %v650 = vpop.f32.mrb[0].mxu0
  %651 = vdwg.mxu0
  %652 = vmatprep.subr.mxu0 0.0
  %653 = vmatpush1.msra.mxu0 %v178
  %654 = vmatprep.subr.mxu0 0.0
  %655 = vmatpush1.msra.mxu0 %v179
  %656 = vmatprep.subr.mxu0 0.0
  %657 = vmatpush1.msra.mxu0 %v180
  %658 = vmatprep.subr.mxu0 0.0
  %659 = vmatpush1.msra.mxu0 %v181
  %660 = vmatprep.subr.mxu0 0.0
  %661 = vmatpush1.msra.mxu0 %v182
  %662 = vmatprep.subr.mxu0 0.0
  %663 = vmatpush1.msra.mxu0 %v183
  %664 = vmatprep.subr.mxu0 0.0
  %665 = vmatpush1.msra.mxu0 %v184
  %666 = vmatprep.subr.mxu0 0.0
  %667 = vmatpush1.msra.mxu0 %v185
  %668 = vmatprep.subr.mxu0 0.0
  %669 = vmatpush1.msra.mxu0 %v186
  %670 = vmatprep.subr.mxu0 0.0
  %671 = vmatpush1.msra.mxu0 %v187
  %672 = vmatprep.subr.mxu0 0.0
  %673 = vmatpush1.msra.mxu0 %v188
  %674 = vmatprep.subr.mxu0 0.0
  %675 = vmatpush1.msra.mxu0 %v189
  %676 = vmatprep.subr.mxu0 0.0
  %677 = vmatpush1.msra.mxu0 %v190
  %678 = vmatprep.subr.mxu0 0.0
  %679 = vmatpush1.msra.mxu0 %v191
  %680 = vmatprep.subr.mxu0 0.0
  %681 = vmatpush1.msra.mxu0 %v192
  %682 = vmatprep.subr.mxu0 0.0
  %683 = vmatpush1.msra.mxu0 %v193
  %684 = vmatprep.subr.mxu0 0.0
  %685 = vmatpush1.msra.mxu0 %v194
  %686 = vmatprep.subr.mxu0 0.0
  %687 = vmatpush1.msra.mxu0 %v195
  %688 = vmatprep.subr.mxu0 0.0
  %689 = vmatpush1.msra.mxu0 %v196
  %690 = vmatprep.subr.mxu0 0.0
  %691 = vmatpush1.msra.mxu0 %v197
  %692 = vmatprep.subr.mxu0 0.0
  %693 = vmatpush1.msra.mxu0 %v198
  %694 = vmatprep.subr.mxu0 0.0
  %695 = vmatpush1.msra.mxu0 %v199
  %696 = vmatprep.subr.mxu0 0.0
  %697 = vmatpush1.msra.mxu0 %v200
  %698 = vmatprep.subr.mxu0 0.0
  %699 = vmatpush1.msra.mxu0 %v201
  %700 = vmatprep.subr.mxu0 0.0
  %701 = vmatpush1.msra.mxu0 %v202
  %702 = vmatprep.subr.mxu0 0.0
  %703 = vmatpush1.msra.mxu0 %v203
  %704 = vmatprep.subr.mxu0 0.0
  %705 = vmatpush1.msra.mxu0 %v204
  %706 = vmatprep.subr.mxu0 0.0
  %707 = vmatpush1.msra.mxu0 %v205
  %708 = vmatprep.subr.mxu0 0.0
  %709 = vmatpush1.msra.mxu0 %v206
  %710 = vmatprep.subr.mxu0 0.0
  %711 = vmatpush1.msra.mxu0 %v207
  %712 = vmatprep.subr.mxu0 0.0
  %713 = vmatpush1.msra.mxu0 %v208
  %714 = vmatprep.subr.mxu0 0.0
  %715 = vmatpush1.msra.mxu0 %v209
  %716 = vmatprep.mubr.f32.mxu0 %v279
  %717 = vmatmul.mubr.f32.gmra.mrb[0].mxu0 %v277
  %v718 = vpop.f32.mrb[0].mxu0
  %v719 = vadd.f32 %v649, %v718
  %v720 = vpop.f32.mrb[0].mxu0
  %721 = vdwg.mxu0
  %722 = vmatprep.subr.mxu0 0.0
  %723 = vmatpush1.msra.mxu0 %v210
  %724 = vmatprep.subr.mxu0 0.0
  %725 = vmatpush1.msra.mxu0 %v211
  %726 = vmatprep.subr.mxu0 0.0
  %727 = vmatpush1.msra.mxu0 %v212
  %728 = vmatprep.subr.mxu0 0.0
  %729 = vmatpush1.msra.mxu0 %v213
  %730 = vmatprep.subr.mxu0 0.0
  %731 = vmatpush1.msra.mxu0 %v214
  %732 = vmatprep.subr.mxu0 0.0
  %733 = vmatpush1.msra.mxu0 %v215
  %734 = vmatprep.subr.mxu0 0.0
  %735 = vmatpush1.msra.mxu0 %v216
  %736 = vmatprep.subr.mxu0 0.0
  %737 = vmatpush1.msra.mxu0 %v217
  %738 = vmatprep.subr.mxu0 0.0
  %739 = vmatpush1.msra.mxu0 0.0
  %740 = vmatprep.subr.mxu0 0.0
  %741 = vmatpush1.msra.mxu0 0.0
  %742 = vmatprep.subr.mxu0 0.0
  %743 = vmatpush1.msra.mxu0 0.0
  %744 = vmatprep.subr.mxu0 0.0
  %745 = vmatpush1.msra.mxu0 0.0
  %746 = vmatprep.subr.mxu0 0.0
  %747 = vmatpush1.msra.mxu0 0.0
  %748 = vmatprep.subr.mxu0 0.0
  %749 = vmatpush1.msra.mxu0 0.0
  %750 = vmatprep.subr.mxu0 0.0
  %751 = vmatpush1.msra.mxu0 0.0
  %752 = vmatprep.subr.mxu0 0.0
  %753 = vmatpush1.msra.mxu0 0.0
  %754 = vmatprep.subr.mxu0 0.0
  %755 = vmatpush1.msra.mxu0 0.0
  %756 = vmatprep.subr.mxu0 0.0
  %757 = vmatpush1.msra.mxu0 0.0
  %758 = vmatprep.subr.mxu0 0.0
  %759 = vmatpush1.msra.mxu0 0.0
  %760 = vmatprep.subr.mxu0 0.0
  %761 = vmatpush1.msra.mxu0 0.0
  %762 = vmatprep.subr.mxu0 0.0
  %763 = vmatpush1.msra.mxu0 0.0
  %764 = vmatprep.subr.mxu0 0.0
  %765 = vmatpush1.msra.mxu0 0.0
  %766 = vmatprep.subr.mxu0 0.0
  %767 = vmatpush1.msra.mxu0 0.0
  %768 = vmatprep.subr.mxu0 0.0
  %769 = vmatpush1.msra.mxu0 0.0
  %770 = vmatprep.subr.mxu0 0.0
  %771 = vmatpush1.msra.mxu0 0.0
  %772 = vmatprep.subr.mxu0 0.0
  %773 = vmatpush1.msra.mxu0 0.0
  %774 = vmatprep.subr.mxu0 0.0
  %775 = vmatpush1.msra.mxu0 0.0
  %776 = vmatprep.subr.mxu0 0.0
  %777 = vmatpush1.msra.mxu0 0.0
  %778 = vmatprep.subr.mxu0 0.0
  %779 = vmatpush1.msra.mxu0 0.0
  %780 = vmatprep.subr.mxu0 0.0
  %781 = vmatpush1.msra.mxu0 0.0
  %782 = vmatprep.subr.mxu0 0.0
  %783 = vmatpush1.msra.mxu0 0.0
  %784 = vmatprep.subr.mxu0 0.0
  %785 = vmatpush1.msra.mxu0 0.0
  %786 = vmatprep.mubr.f32.mxu0 0.0
  %787 = vmatmul.mubr.f32.gmra.mrb[0].mxu0 %v300
  %v788 = vpop.f32.mrb[0].mxu0
  %v789 = vadd.f32 %v719, %v788
  %v790 = vpop.f32.mrb[0].mxu0
  %791 = vdwg.mxu0
  %v792 = vmax.f32 %v789, 0.0
  %vm793 = vcmask 680960
  %794 = vst.msk [vmem:[%s3] sm:$0x3] %vm793, %v792
  // Predicated region
  $region14: #{net_forward.10} parent=0 // pred_check
    _
  $region15: #{net_forward.10} parent=0 // pred_check_branch
    %796 = sbr.rel (0) target = $region17
  $region16: #{net_forward.10} parent=0 // pred_region
    _
  $region17: #{net_forward.10} parent=0 // pred_fallthru
    _
  // Predicated region
  $region18: #{net_forward.10} parent=0 // pred_check
    _
  $region19: #{net_forward.10} parent=0 // pred_check_branch
    %798 = sbr.rel (0) target = $region21
  $region20: #{net_forward.10} parent=0 // pred_region
    _
  $region21: #{net_forward.10} parent=0 // pred_fallthru
    _

// kernel: net_forward.11
$region0: #{net_forward.11}
  #allocation0 [shape = 'u32[]', space=smem, size = 0x4, offset = 0x4, fixed_abs, tag = 'smem constant byte address 0x4 - core index']
  #allocation1 [shape = 'u32[144,128]{1,0:T(1,128)}', space=vmem, size = 0x12000, scoped, tag = 'internal scratch']
  %s0 = inlined_call_operand.vmem [shape: f32[2,84], index: 0, kind: input, shape index: {}]
  %s1 = inlined_call_operand.vmem [shape: f32[84,2], index: 1, kind: input, shape index: {}]
  %s2 = inlined_call_operand.vmem [shape: f32[1,2], index: 2, kind: input, shape index: {}]
  %s3 = inlined_call_operand.hbm [shape: f32[2,2], index: 3, kind: output, shape index: {}]
  %s4 = sld [smem:[#allocation0]]
  $region22: #{net_forward.11} parent=0
    _
  %s6 = ssub.s32 1, %s4
  %s7 = scalar_select 0, %s6, %s4
  $region1: #{net_forward.11} parent=0
    #allocation2 [shape = 'u8[1024]{0}', space=vmem, size = 0x400, scoped, tag = 'output window, operand 0, single buffered']
    #allocation3 [shape = 's32[1]{0}', space=sflag, size = 0x4, scoped, tag = 'scoped memory for net_forward.11']
    %8 = vsyncpa [#allocation3], 0
    // Predicated region
    $region2: #{net_forward.11} parent=1 // pred_check
      _
    $region3: #{net_forward.11} parent=1 // pred_check_branch
      %10 = sbr.rel (0) target = $region5
    $region4: #{net_forward.11} parent=1 // pred_region
      _
    $region5: #{net_forward.11} parent=1 // pred_fallthru
      _
    // Predicated region
    $region6: #{net_forward.11} parent=1 // pred_check
      _
    $region7: #{net_forward.11} parent=1 // pred_check_branch
      %12 = sbr.rel (0) target = $region9
    $region8: #{net_forward.11} parent=1 // pred_region
      _
    $region9: #{net_forward.11} parent=1 // pred_fallthru
      _
    // Predicated region
    $region10: #{net_forward.11} parent=1 // pred_check
      _
    $region11: #{net_forward.11} parent=1 // pred_check_branch
      %14 = sbr.rel (0) target = $region13
    $region12: #{net_forward.11} parent=1 // pred_region
      _
    $region13: #{net_forward.11} parent=1 // pred_fallthru
      _
    %v15 = vld [vmem:[%s0] sm:$0x3]
    %v16 = vld [vmem:[%s1] sm:$0xff]
    %v17 = vld [vmem:[%s1 + $0x8] sm:$0xff]
    %v18 = vld [vmem:[%s1 + $0x10] sm:$0xff]
    %v19 = vld [vmem:[%s1 + $0x18] sm:$0xff]
    %v20 = vld [vmem:[%s1 + $0x20] sm:$0xff]
    %v21 = vld [vmem:[%s1 + $0x28] sm:$0xff]
    %v22 = vld [vmem:[%s1 + $0x30] sm:$0xff]
    %v23 = vld [vmem:[%s1 + $0x38] sm:$0xff]
    %v24 = vld [vmem:[%s1 + $0x40] sm:$0xff]
    %v25 = vld [vmem:[%s1 + $0x48] sm:$0xff]
    %v26 = vld [vmem:[%s1 + $0x50] sm:$0xf]
    %v27 = vld [vmem:[%s2] sm:$0x1]
    %v29 = vlaneseq
    %v30 = vshrl.u32 %v29, 7
    %v31 = vsub.s32 0, %v30
    %v32 = vrot.slane %v27, %v31
    %vm34 = vcmask 687104
    %v36 = vsel %vm34, %v15, 0
    %vm38 = vcmask 1043456
    %v40 = vsel %vm38, %v26, 0
    %42 = vmatprep.subr.mxu0 0.0
    %43 = vmatpush1.msra.mxu0 %v16
    %44 = vmatprep.subr.mxu0 0.0
    %45 = vmatpush1.msra.mxu0 %v17
    %46 = vmatprep.subr.mxu0 0.0
    %47 = vmatpush1.msra.mxu0 %v18
    %48 = vmatprep.subr.mxu0 0.0
    %49 = vmatpush1.msra.mxu0 %v19
    %50 = vmatprep.subr.mxu0 0.0
    %51 = vmatpush1.msra.mxu0 %v20
    %52 = vmatprep.subr.mxu0 0.0
    %53 = vmatpush1.msra.mxu0 %v21
    %54 = vmatprep.subr.mxu0 0.0
    %55 = vmatpush1.msra.mxu0 %v22
    %56 = vmatprep.subr.mxu0 0.0
    %57 = vmatpush1.msra.mxu0 %v23
    %58 = vmatprep.subr.mxu0 0.0
    %59 = vmatpush1.msra.mxu0 %v24
    %60 = vmatprep.subr.mxu0 0.0
    %61 = vmatpush1.msra.mxu0 %v25
    %62 = vmatprep.subr.mxu0 0.0
    %63 = vmatpush1.msra.mxu0 %v40
    %64 = vmatprep.subr.mxu0 0.0
    %65 = vmatpush1.msra.mxu0 0.0
    %66 = vmatprep.subr.mxu0 0.0
    %67 = vmatpush1.msra.mxu0 0.0
    %68 = vmatprep.subr.mxu0 0.0
    %69 = vmatpush1.msra.mxu0 0.0
    %70 = vmatprep.subr.mxu0 0.0
    %71 = vmatpush1.msra.mxu0 0.0
    %72 = vmatprep.subr.mxu0 0.0
    %73 = vmatpush1.msra.mxu0 0.0
    %74 = vmatprep.subr.mxu0 0.0
    %75 = vmatpush1.msra.mxu0 0.0
    %76 = vmatprep.subr.mxu0 0.0
    %77 = vmatpush1.msra.mxu0 0.0
    %78 = vmatprep.subr.mxu0 0.0
    %79 = vmatpush1.msra.mxu0 0.0
    %80 = vmatprep.subr.mxu0 0.0
    %81 = vmatpush1.msra.mxu0 0.0
    %82 = vmatprep.subr.mxu0 0.0
    %83 = vmatpush1.msra.mxu0 0.0
    %84 = vmatprep.subr.mxu0 0.0
    %85 = vmatpush1.msra.mxu0 0.0
    %86 = vmatprep.subr.mxu0 0.0
    %87 = vmatpush1.msra.mxu0 0.0
    %88 = vmatprep.subr.mxu0 0.0
    %89 = vmatpush1.msra.mxu0 0.0
    %90 = vmatprep.subr.mxu0 0.0
    %91 = vmatpush1.msra.mxu0 0.0
    %92 = vmatprep.subr.mxu0 0.0
    %93 = vmatpush1.msra.mxu0 0.0
    %94 = vmatprep.subr.mxu0 0.0
    %95 = vmatpush1.msra.mxu0 0.0
    %96 = vmatprep.subr.mxu0 0.0
    %97 = vmatpush1.msra.mxu0 0.0
    %98 = vmatprep.subr.mxu0 0.0
    %99 = vmatpush1.msra.mxu0 0.0
    %100 = vmatprep.subr.mxu0 0.0
    %101 = vmatpush1.msra.mxu0 0.0
    %102 = vmatprep.subr.mxu0 0.0
    %103 = vmatpush1.msra.mxu0 0.0
    %104 = vmatprep.subr.mxu0 0.0
    %105 = vmatpush1.msra.mxu0 0.0
    %106 = vmatprep.mubr.f32.mxu0 0.0
    %107 = vmatmul.mubr.f32.gmra.mrb[0].mxu0 %v36
    %v108 = vpop.f32.mrb[0].mxu0
    %v109 = vadd.f32 %v32, %v108
    %v110 = vpop.f32.mrb[0].mxu0
    %111 = vdwg.mxu0
    %vm112 = vcmask 9216
    %113 = vst.msk [vmem:[#allocation2] sm:$0x3] %vm112, %v109
    // Predicated region
    $region14: #{net_forward.11} parent=1 // pred_check
      _
    $region15: #{net_forward.11} parent=1 // pred_check_branch
      %115 = sbr.rel (0) target = $region17
    $region16: #{net_forward.11} parent=1 // pred_region
      %s117 = ssub.s32 32, 32
      %118 = vsyncadd [#allocation3], %s117
      %s120 = sshll.u32 [#allocation2], 4
      %s121 = int_to_ptr.vmem [resolvable:$true] %s120
      %123 = dma.vmem_to_hbm [thread:$0]  %s121, 32, %s3, [#allocation3]
    $region17: #{net_forward.11} parent=1 // pred_fallthru
      _
    // Predicated region
    $region18: #{net_forward.11} parent=1 // pred_check
      _
    $region19: #{net_forward.11} parent=1 // pred_check_branch
      %125 = sbr.rel (0) target = $region21
    $region20: #{net_forward.11} parent=1 // pred_region
      %126 = dma.done [#allocation3], 32
    $region21: #{net_forward.11} parent=1 // pred_fallthru
      _
    %127 = vsyncpa [#allocation3], 1

</llo_original>
